<compile_context>
chip_gen: v5e
topology: v5e:2x2
jax: 0.10.0
libtpu: 0.0.40
codegen_flags: <defaults>
</compile_context>

<pallas_src>
import functools

import numpy as np
import jax
import jax.numpy as jnp
from jax import lax
from jax.experimental import pallas as pl
from jax.experimental.pallas import tpu as pltpu


def _round_up(x, m):
    return ((x + m - 1) // m) * m


def _detect_mxu_tile():
    # v6e / v7x: 2x256x256 MXU -> 256-wide tiles.  v5e and older: 128.
    try:
        kind = jax.devices()[0].device_kind.lower()
    except Exception:
        kind = ""
    if "v6" in kind or "v7" in kind:
        return 256
    return 128


TN_MAX = TM_MAX = _detect_mxu_tile()
MERGE_ROWS = 512   # rows per merge-kernel block (512x128 f32 x 4 arrays ~ 1 MiB)


# -----------------------------------------------------------------------------
# Pallas kernels
# -----------------------------------------------------------------------------
def _gemm_act_kernel(*refs, act):
    if act == "prelu":
        a_ref, b_ref, bias_ref, alpha_ref, o_ref = refs
    else:
        a_ref, b_ref, bias_ref, o_ref = refs
    # bf16 x bf16 -> f32 accumulate on the MXU
    y = jnp.dot(a_ref[...], b_ref[...], preferred_element_type=jnp.float32)
    y = y + bias_ref[...]
    if act == "prelu":
        y = jnp.where(y > 0, y, alpha_ref[...] * y)
    elif act == "relu":
        y = jnp.maximum(y, 0.0)
    o_ref[...] = y.astype(o_ref.dtype)


def pallas_gemm(a, b_packed, bias, alpha=None, act="none", n_true=None,
                out_dtype=jnp.bfloat16):
    """(M, K) @ pre-packed (K, Np) + bias, fused activation on the MXU.

    b_packed / bias / alpha are pre-padded along N to a multiple of 128 lanes
    and in GEMM layout.  K is used un-padded (full-dim blocks; input channels
    are padded to a multiple of 8 upstream so B's sublane dim is aligned).
    Returns (M, n_true) in `out_dtype`.
    """
    M, K = a.shape
    Kb, Np = b_packed.shape
    assert K == Kb, (K, Kb)
    n_true = Np if n_true is None else n_true

    a = a.astype(jnp.bfloat16)

    if M < 64:
        # Small-M fallback: pallas_call dispatch + per-step overhead dominates
        # for the scale-4 blocks at small inputs; let XLA fuse the epilogue.
        y = jnp.dot(a, b_packed, preferred_element_type=jnp.float32) + bias
        if act == "prelu":
            y = jnp.where(y > 0, y, alpha * y)
        elif act == "relu":
            y = jnp.maximum(y, 0.0)
        return y[:, :n_true].astype(out_dtype)

    tn = TN_MAX if Np % TN_MAX == 0 else 128
    tm = min(TM_MAX, _round_up(M, 16))
    Mp = _round_up(M, tm)
    if Mp != M:
        a = jnp.pad(a, ((0, Mp - M), (0, 0)))

    in_specs = [
        pl.BlockSpec((tm, K), lambda j, i: (i, 0)),   # A: changes with inner M axis
        pl.BlockSpec((K, tn), lambda j, i: (0, j)),   # B: resident across inner M axis
        pl.BlockSpec((1, tn), lambda j, i: (0, j)),
    ]
    args = [a, b_packed, bias]
    if act == "prelu":
        in_specs.append(pl.BlockSpec((1, tn), lambda j, i: (0, j)))
        args.append(alpha)

    out = pl.pallas_call(
        functools.partial(_gemm_act_kernel, act=act),
        # N tiles OUTER, M tiles INNER -> weight/bias block index constant
        # over the inner loop => Pallas does not re-DMA the weight tile.
        grid=(Np // tn, Mp // tm),
        in_specs=in_specs,
        out_specs=pl.BlockSpec((tm, tn), lambda j, i: (i, j)),
        out_shape=jax.ShapeDtypeStruct((Mp, Np), out_dtype),
        compiler_params=pltpu.CompilerParams(
            dimension_semantics=("parallel", "parallel"),
            vmem_limit_bytes=32 * 1024 * 1024),
    )(*args)
    return out[:M, :n_true]


def _merge_kernel(w0_ref, w1_ref, m_ref, o_ref):
    m = jax.nn.sigmoid(m_ref[...])
    o_ref[...] = jnp.clip(w0_ref[...] * m + w1_ref[...] * (1.0 - m), 0.0, 1.0)


def merge_all_pallas(w0, w1, mask):
    """Fused sigmoid(mask) blend + clamp for ALL 9 outputs, tiled over a
    1-D 'parallel' grid so it pipelines and fits VMEM at real resolutions."""
    shape = w0.shape
    total = int(np.prod(shape))
    lanes = 128
    rows = _round_up(pl.cdiv(total, lanes), MERGE_ROWS)
    pad = rows * lanes - total

    def prep(t):
        return jnp.pad(t.reshape(-1).astype(jnp.float32), (0, pad)).reshape(rows, lanes)

    out = pl.pallas_call(
        _merge_kernel,
        grid=(rows // MERGE_ROWS,),
        in_specs=[pl.BlockSpec((MERGE_ROWS, lanes), lambda i: (i, 0))] * 3,
        out_specs=pl.BlockSpec((MERGE_ROWS, lanes), lambda i: (i, 0)),
        out_shape=jax.ShapeDtypeStruct((rows, lanes), jnp.float32),
        compiler_params=pltpu.CompilerParams(
            dimension_semantics=("parallel",)),
    )(prep(w0), prep(w1), prep(mask))
    return out.reshape(-1)[:total].reshape(shape)


# -----------------------------------------------------------------------------
# Weight packing (done ONCE at init, outside the forward pass)
# -----------------------------------------------------------------------------
def pack_conv(w, b, alpha=None):
    """(Cout, Cin, k, k) PyTorch-layout conv -> bf16 GEMM RHS.

    K = round_up(Cin, 8) * k * k (channel-major, tap row-major — matches
    conv_general_dilated_patches feature order); N padded to 128 lanes.
    """
    Cout, Cin, kh, kw = w.shape
    cinp = _round_up(Cin, 8)
    K_true = Cin * kh * kw
    Kp, Np = cinp * kh * kw, _round_up(Cout, 128)
    bm = jnp.zeros((Kp, Np), jnp.float32).at[:K_true, :Cout].set(
        w.reshape(Cout, K_true).T)
    layer = {
        "w": bm.astype(jnp.bfloat16),
        "b": jnp.zeros((1, Np), jnp.float32).at[0, :Cout].set(b),
        "cout": int(Cout),
        "cinp": int(cinp),
        "k": int(kh),
    }
    if alpha is not None:
        layer["a"] = jnp.zeros((1, Np), jnp.float32).at[0, :Cout].set(alpha)
    return layer


def pack_deconv(wt, b):
    """ConvTranspose2d(Cin, Cout, k=4, s=2, p=1) -> sub-pixel 3x3-patch GEMM RHS.

    Output sub-pixel (r, c) at (m, n) reads a 2x2 input window with a 2x2
    sub-kernel of the 4x4 transposed kernel (ky = oy + 1 - 2*iy).  Entries are
    scattered into (Cin, 3, 3, 2, 2, Cout) matching the 3x3 im2col tap order,
    so ONE GEMM produces all 4 sub-pixel phases.
    """
    wt_np = np.asarray(wt, dtype=np.float32)       # (Cin, Cout, 4, 4)
    Cin, Cout = wt_np.shape[0], wt_np.shape[1]
    cinp = _round_up(Cin, 8)
    R = np.zeros((Cin, 3, 3, 2, 2, Cout), np.float32)
    taps = {0: [(0, 3), (1, 1)], 1: [(1, 2), (2, 0)]}   # parity -> [(offset, k-index)]
    for r in (0, 1):
        for (dy, ky) in taps[r]:
            for c in (0, 1):
                for (dx, kx) in taps[c]:
                    R[:, dy, dx, r, c, :] = wt_np[:, :, ky, kx]
    K_true, N = Cin * 9, 4 * Cout
    Kp, Np = cinp * 9, _round_up(N, 128)
    bm = np.zeros((Kp, Np), np.float32)
    bm[:K_true, :N] = R.reshape(K_true, N)
    bias4 = np.zeros((1, Np), np.float32)
    bias4[0, :N] = np.tile(np.asarray(b, np.float32), 4)   # ordered (r*2+c, co)
    return {
        "w": jnp.asarray(bm, jnp.bfloat16),
        "b": jnp.asarray(bias4, jnp.float32),
        "cout": int(Cout),
        "cinp": int(cinp),
        "k": 3,
    }


# -----------------------------------------------------------------------------
# Conv lowering: bf16 NHWC patches via conv_general_dilated_patches, Pallas GEMM
# -----------------------------------------------------------------------------
def _prep_patches(x_nhwc, cinp, k, stride, padding):
    x = x_nhwc.astype(jnp.bfloat16)
    c = x.shape[-1]
    if c < cinp:                                  # channel pad -> K pad (end of K)
        x = jnp.pad(x, ((0, 0), (0, 0), (0, 0), (0, cinp - c)))
    # Output (N, Ho, Wo, C*k*k); feature dim channel-major, tap row-major —
    # matches w.reshape(Cout, Cin*k*k) packing above.
    return lax.conv_general_dilated_patches(
        x, (k, k), (stride, stride), [(padding, padding), (padding, padding)],
        dimension_numbers=("NHWC", "OIHW", "NHWC"))


def conv2d_packed(x, layer, stride=1, padding=1, act="prelu",
                  out_dtype=jnp.bfloat16):
    """x: (N, H, W, Cin) -> (N, Ho, Wo, Cout) NHWC, fused bias + act."""
    N = x.shape[0]
    patches = _prep_patches(x, layer["cinp"], layer["k"], stride, padding)
    _, Ho, Wo, K = patches.shape
    y = pallas_gemm(patches.reshape(N * Ho * Wo, K), layer["w"], layer["b"],
                    alpha=layer.get("a"), act=act, n_true=layer["cout"],
                    out_dtype=out_dtype)
    return y.reshape(N, Ho, Wo, layer["cout"])


def conv_transpose2d_packed(x, layer):
    """x: (N, H, W, Cin) -> (N, 2H, 2W, Cout) NHWC via sub-pixel 3x3-patch GEMM."""
    N, H, W, _ = x.shape
    Cout = layer["cout"]
    patches = _prep_patches(x, layer["cinp"], 3, 1, 1)
    y = pallas_gemm(patches.reshape(N * H * W, layer["cinp"] * 9),
                    layer["w"], layer["b"], act="none", n_true=4 * Cout,
                    out_dtype=jnp.float32)
    y = y.reshape(N, H, W, 2, 2, Cout)
    # interleave sub-pixel phases: out[n, 2h+r, 2w+c, co] = y[n, h, w, r, c, co]
    return y.transpose(0, 1, 3, 2, 4, 5).reshape(N, 2 * H, 2 * W, Cout)


# -----------------------------------------------------------------------------
# Bilinear resize (align_corners=False), matches F.interpolate 'bilinear'
# -----------------------------------------------------------------------------
def _resize_matrix(n_in, n_out):
    if n_in == n_out:
        return np.eye(n_out, dtype=np.float32)
    scale = n_in / n_out
    m = np.zeros((n_out, n_in), dtype=np.float32)
    for i in range(n_out):
        src = max((i + 0.5) * scale - 0.5, 0.0)
        i0 = min(int(np.floor(src)), n_in - 1)
        i1 = min(i0 + 1, n_in - 1)
        w1 = min(max(src - i0, 0.0), 1.0)
        m[i, i0] += 1.0 - w1
        m[i, i1] += w1
    return m


def resize_bilinear(x, out_h, out_w):
    """x: (N, H, W, C) NHWC."""
    _, H, W, _ = x.shape
    if H == out_h and W == out_w:
        return x
    Wh = jnp.asarray(_resize_matrix(H, out_h))
    Ww = jnp.asarray(_resize_matrix(W, out_w))
    return jnp.einsum("oh,nhwc,pw->nopc", Wh, x, Ww)


# -----------------------------------------------------------------------------
# warp == torch.nn.functional.grid_sample(bilinear, border, align_corners=True)
# -----------------------------------------------------------------------------
def warp(img, flow):
    """img: (N, H, W, C), flow: (N, H, W, 2) with flow[...,0]=x, flow[...,1]=y."""
    N, H, W, C = img.shape
    xs = jnp.linspace(-1.0, 1.0, W)
    ys = jnp.linspace(-1.0, 1.0, H)
    gx = xs[None, None, :] + flow[..., 0] / ((W - 1) / 2.0)
    gy = ys[None, :, None] + flow[..., 1] / ((H - 1) / 2.0)
    ix = jnp.clip((gx + 1.0) * 0.5 * (W - 1), 0.0, W - 1)   # border padding
    iy = jnp.clip((gy + 1.0) * 0.5 * (H - 1), 0.0, H - 1)
    ix0f = jnp.floor(ix)
    iy0f = jnp.floor(iy)
    wx = ix - ix0f
    wy = iy - iy0f
    ix0 = ix0f.astype(jnp.int32)
    iy0 = iy0f.astype(jnp.int32)
    ix1 = jnp.minimum(ix0 + 1, W - 1)
    iy1 = jnp.minimum(iy0 + 1, H - 1)

    def per_batch(imgb, y0, y1, x0, x1, wxb, wyb):
        v00 = imgb[y0, x0]
        v01 = imgb[y0, x1]
        v10 = imgb[y1, x0]
        v11 = imgb[y1, x1]
        return (v00 * ((1 - wyb) * (1 - wxb))[..., None]
                + v01 * ((1 - wyb) * wxb)[..., None]
                + v10 * (wyb * (1 - wxb))[..., None]
                + v11 * (wyb * wxb)[..., None])

    return jax.vmap(per_batch)(img, iy0, iy1, ix0, ix1, wx, wy)


# -----------------------------------------------------------------------------
# Parameters (deterministic, synthetic) — packed into GEMM layout at init
# -----------------------------------------------------------------------------
def init_params(key, action_dim=2):
    keys = iter(jax.random.split(key, 256))

    def convp(cin, cout, k=3, prelu=True):
        w = jax.random.normal(next(keys), (cout, cin, k, k), jnp.float32) / np.sqrt(cin * k * k)
        b = jax.random.normal(next(keys), (cout,), jnp.float32) * 0.01
        a = jnp.full((cout,), 0.25, jnp.float32) if prelu else None
        return pack_conv(w, b, a)

    in_planes = 13 + 4 + 2 * action_dim
    feats = [160, 160, 160, 80, 80, 80, 44, 44, 44]
    blocks = []
    for F_ in feats:
        bp = {
            "conv0_0": convp(in_planes, F_ // 2),
            "conv0_1": convp(F_ // 2, F_),
            "cb0": convp(F_, F_),
            "cb1": convp(F_, F_),
            "cb2": convp(F_, F_),
            "conv_sq": convp(F_, F_ // 4),
            "conv1": convp(in_planes, 8),
            "cb1_0": convp(8, 8),
        }
        cin_last = F_ // 4 + 8
        wt = jax.random.normal(next(keys), (cin_last, 5, 4, 4), jnp.float32) / np.sqrt(cin_last * 16)
        bt = jax.random.normal(next(keys), (5,), jnp.float32) * 0.01
        bp["lastconv"] = pack_deconv(wt, bt)
        blocks.append(bp)

    params = {"blocks": blocks}
    params["routing0"] = convp(6, 32, prelu=False)
    params["routing1"] = convp(32, 32, prelu=False)
    params["l1_w"] = jax.random.normal(next(keys), (32, 9), jnp.float32) / np.sqrt(32)
    params["l1_b"] = jax.random.normal(next(keys), (9,), jnp.float32) * 0.01
    return params


# -----------------------------------------------------------------------------
# MVFB block and DMVFNAct forward (all activations NHWC, bf16 between convs)
# -----------------------------------------------------------------------------
def mvfb_forward(bp, x, flow, scale):
    N, H, W, _ = x.shape
    x0, flow0 = x, flow
    if scale != 1:
        x = resize_bilinear(x, H // scale, W // scale)
        flow = resize_bilinear(flow, H // scale, W // scale) * (1.0 / scale)
    xin = jnp.concatenate([x, flow], axis=-1)

    x1 = conv2d_packed(xin, bp["conv0_0"], stride=2, padding=1, act="prelu")
    x1 = conv2d_packed(x1, bp["conv0_1"], stride=2, padding=1, act="prelu")

    y = x1
    for name in ("cb0", "cb1", "cb2"):
        y = conv2d_packed(y, bp[name], stride=1, padding=1, act="prelu")
    x2 = conv2d_packed(y + x1, bp["conv_sq"], stride=1, padding=1, act="prelu")

    x3 = conv2d_packed(jnp.concatenate([x0, flow0], axis=-1), bp["conv1"],
                       stride=2, padding=1, act="prelu")
    x4 = conv2d_packed(x3, bp["cb1_0"], stride=1, padding=1, act="prelu")

    if x2.shape[1] != x4.shape[1]:
        x2 = resize_bilinear(x2, x4.shape[1], x4.shape[2])
    else:
        x2 = resize_bilinear(x2, int(x2.shape[1] * scale * 2), int(x2.shape[2] * scale * 2))

    tmp = conv_transpose2d_packed(
        jnp.concatenate([x2.astype(x4.dtype), x4], axis=-1), bp["lastconv"])
    return tmp[..., :4], tmp[..., 4:5]          # flow_d (f32), mask_d (f32)


def dmvfn_forward(params, x, scale, actions, bern_key, training=True):
    B, _, H, W = x.shape
    # NCHW (module interface) -> NHWC for everything internal
    x = jnp.transpose(x, (0, 2, 3, 1))
    action0 = jnp.transpose(actions[0], (0, 2, 3, 1))
    action1 = jnp.transpose(actions[1], (0, 2, 3, 1))

    # routing head
    r = conv2d_packed(x[..., :6], params["routing0"], stride=1, padding=1,
                      act="relu", out_dtype=jnp.float32)
    r = conv2d_packed(r, params["routing1"], stride=1, padding=1,
                      act="none", out_dtype=jnp.float32)
    r = jnp.mean(r, axis=(1, 2))                                  # AdaptiveAvgPool2d((1,1))
    r = jnp.dot(r, params["l1_w"]) + params["l1_b"]               # tiny 2x32x9 Linear
    r = jax.nn.sigmoid(r)
    r = r / (jnp.sum(r, axis=1, keepdims=True) + 1e-6) * 4.5
    r = jnp.clip(r, 0.0, 1.0)
    ref = jax.random.bernoulli(bern_key, r).astype(jnp.float32)   # RoundSTE forward

    img0, img1 = x[..., :3], x[..., 3:6]
    warped_img0, warped_img1 = img0, img1
    flow = jnp.zeros((B, H, W, 4), jnp.float32)
    mask = jnp.zeros((B, H, W, 1), jnp.float32)

    merged_final, mask_final = [], []
    for i in range(9):
        inp = jnp.concatenate(
            [img0, img1, warped_img0, warped_img1, action0, action1, mask], axis=-1)
        flow_d, mask_d = mvfb_forward(params["blocks"][i], inp, flow, scale[i])
        flow_rn = flow + flow_d
        mask_rn = mask + mask_d
        ri = ref[:, i].reshape(B, 1, 1, 1)
        flow = flow + flow_d * ri
        mask = mask + mask_d * ri
        # Batch the 4 grid_sample warps into one vmapped gather.
        imgs = jnp.concatenate([img0, img1, img0, img1], axis=0)
        flows = jnp.concatenate([flow[..., :2], flow[..., 2:4],
                                 flow_rn[..., :2], flow_rn[..., 2:4]], axis=0)
        w4 = warp(imgs, flows)
        warped_img0, warped_img1 = w4[:B], w4[B:2 * B]
        warped_img0_rn, warped_img1_rn = w4[2 * B:3 * B], w4[3 * B:]
        if i < 8:
            mask_final.append(mask_rn)
            merged_final.append((warped_img0_rn, warped_img1_rn))
        else:
            mask_final.append(mask)
            merged_final.append((warped_img0, warped_img1))

    # One gridded, lane-dense sigmoid+blend+clamp Pallas call for all 9 outputs.
    w0s = jnp.stack([m[0] for m in merged_final])                     # (9,B,H,W,3)
    w1s = jnp.stack([m[1] for m in merged_final])
    ms = jnp.stack([jnp.broadcast_to(m, (B, H, W, 3)) for m in mask_final])
    merged = merge_all_pallas(w0s, w1s, ms)
    # back to NCHW to match the PyTorch module's output layout
    return [jnp.transpose(merged[i], (0, 3, 1, 2)) for i in range(9)]


# -----------------------------------------------------------------------------
if __name__ == "__main__":
    key = jax.random.PRNGKey(0)
    k_x, k_a0, k_a1, k_p, k_bern = jax.random.split(key, 5)

    B, H, W = 2, 16, 16
    action_dim = 2
    x = jax.random.uniform(k_x, (B, 6, H, W), jnp.float32)            # img0 | img1
    actions = [
        jax.random.uniform(k_a0, (B, action_dim, H, W), jnp.float32),
        jax.random.uniform(k_a1, (B, action_dim, H, W), jnp.float32),
    ]
    scale = (4, 4, 4, 2, 2, 2, 1, 1, 1)

    params = init_params(k_p, action_dim=action_dim)

    # params are closed over so packed weights / block metadata stay static.
    @jax.jit
    def fwd(x_, a0_, a1_, key_):
        return dmvfn_forward(params, x_, scale, [a0_, a1_], key_, training=True)

    outs = fwd(x, actions[0], actions[1], k_bern)
    outs = [jax.block_until_ready(o) for o in outs]
    assert len(outs) == 9 and all(o.shape == (B, 3, H, W) for o in outs)
    assert all(bool(jnp.all(jnp.isfinite(o))) for o in outs)
    print("KERNEL_OK")
</pallas_src>

<mosaic_0001>
module attributes {stable_mosaic.version = 11 : i64} {
  func.func @_gemm_act_kernel(%arg0: i32, %arg1: i32, %arg2: memref<128x216xbf16, #tpu.memory_space<vmem>>, %arg3: memref<216x128xbf16, #tpu.memory_space<vmem>>, %arg4: memref<1x128xf32, #tpu.memory_space<vmem>>, %arg5: memref<1x128xf32, #tpu.memory_space<vmem>>, %arg6: memref<128x128xbf16, #tpu.memory_space<vmem>>) attributes {dimension_semantics = [#tpu.dimension_semantics<parallel>, #tpu.dimension_semantics<parallel>], iteration_bounds = array<i64: 1, 1>, scalar_prefetch = 0 : i64, scratch_operands = 0 : i64, tpu.core_type = #tpu.core_type<tc>, window_params = [{transform_indices = @transform_0, window_bounds = array<i64: 128, 216>}, {transform_indices = @transform_1, window_bounds = array<i64: 216, 128>}, {transform_indices = @transform_2, window_bounds = array<i64: 1, 128>}, {transform_indices = @transform_3, window_bounds = array<i64: 1, 128>}, {transform_indices = @transform_4, window_bounds = array<i64: 128, 128>}]} {
    %c0 = arith.constant 0 : index
    %c0_0 = arith.constant 0 : index
    %0 = vector.load %arg2[%c0, %c0_0] : memref<128x216xbf16, #tpu.memory_space<vmem>>, vector<128x216xbf16>
    %c0_1 = arith.constant 0 : index
    %c0_2 = arith.constant 0 : index
    %1 = vector.load %arg3[%c0_1, %c0_2] : memref<216x128xbf16, #tpu.memory_space<vmem>>, vector<216x128xbf16>
    %cst = arith.constant dense<0.000000e+00> : vector<128x128xf32>
    %2 = tpu.matmul %0, %1, %cst {dimension_numbers = #tpu.dot_dimension_numbers<[1], [0], [0], [1], [0, 0, 1, 1], [], []>} : vector<128x216xbf16>, vector<216x128xbf16>, vector<128x128xf32> -> vector<128x128xf32>
    %c0_3 = arith.constant 0 : index
    %c0_4 = arith.constant 0 : index
    %3 = vector.load %arg4[%c0_3, %c0_4] : memref<1x128xf32, #tpu.memory_space<vmem>>, vector<1x128xf32>
    %4 = vector.broadcast %3 : vector<1x128xf32> to vector<128x128xf32>
    %5 = arith.addf %2, %4 : vector<128x128xf32>
    %cst_5 = arith.constant 0.000000e+00 : f32
    %6 = vector.broadcast %cst_5 : f32 to vector<128x128xf32>
    %7 = arith.cmpf ogt, %5, %6 : vector<128x128xf32>
    %c0_6 = arith.constant 0 : index
    %c0_7 = arith.constant 0 : index
    %8 = vector.load %arg5[%c0_6, %c0_7] : memref<1x128xf32, #tpu.memory_space<vmem>>, vector<1x128xf32>
    %9 = vector.broadcast %8 : vector<1x128xf32> to vector<128x128xf32>
    %10 = arith.mulf %9, %5 : vector<128x128xf32>
    %11 = arith.select %7, %5, %10 : vector<128x128xi1>, vector<128x128xf32>
    %12 = arith.truncf %11 : vector<128x128xf32> to vector<128x128xbf16>
    %c0_8 = arith.constant 0 : index
    %c0_9 = arith.constant 0 : index
    %13 = vector.load %arg6[%c0_8, %c0_9] : memref<128x128xbf16, #tpu.memory_space<vmem>>, vector<128x128xbf16>
    tpu.vector_store %arg6[%c0_8, %c0_9], %12 {strides = array<i32>} : memref<128x128xbf16, #tpu.memory_space<vmem>>, vector<128x128xbf16>,
    return
  }
  func.func @transform_0(%arg0: i32, %arg1: i32) -> (i32, i32) {
    %c0_i32 = arith.constant 0 : i32
    %c0_i32_0 = arith.constant 0 : i32
    return %arg1, %c0_i32 : i32, i32
  }
  func.func @transform_1(%arg0: i32, %arg1: i32) -> (i32, i32) {
    %c0_i32 = arith.constant 0 : i32
    %c0_i32_0 = arith.constant 0 : i32
    return %c0_i32, %arg0 : i32, i32
  }
  func.func @transform_2(%arg0: i32, %arg1: i32) -> (i32, i32) {
    %c0_i32 = arith.constant 0 : i32
    %c0_i32_0 = arith.constant 0 : i32
    return %c0_i32, %arg0 : i32, i32
  }
  func.func @transform_3(%arg0: i32, %arg1: i32) -> (i32, i32) {
    %c0_i32 = arith.constant 0 : i32
    %c0_i32_0 = arith.constant 0 : i32
    return %c0_i32, %arg0 : i32, i32
  }
  func.func @transform_4(%arg0: i32, %arg1: i32) -> (i32, i32) {
    %c0_i32 = arith.constant 0 : i32
    return %arg1, %arg0 : i32, i32
  }
}

module attributes {stable_mosaic.version = 11 : i64} {
  func.func @_gemm_act_kernel(%arg0: i32, %arg1: i32, %arg2: memref<128x72xbf16, #tpu.memory_space<vmem>>, %arg3: memref<72x128xbf16, #tpu.memory_space<vmem>>, %arg4: memref<1x128xf32, #tpu.memory_space<vmem>>, %arg5: memref<1x128xf32, #tpu.memory_space<vmem>>, %arg6: memref<128x128xbf16, #tpu.memory_space<vmem>>) attributes {dimension_semantics = [#tpu.dimension_semantics<parallel>, #tpu.dimension_semantics<parallel>], iteration_bounds = array<i64: 1, 1>, scalar_prefetch = 0 : i64, scratch_operands = 0 : i64, tpu.core_type = #tpu.core_type<tc>, window_params = [{transform_indices = @transform_0, window_bounds = array<i64: 128, 72>}, {transform_indices = @transform_1, window_bounds = array<i64: 72, 128>}, {transform_indices = @transform_2, window_bounds = array<i64: 1, 128>}, {transform_indices = @transform_3, window_bounds = array<i64: 1, 128>}, {transform_indices = @transform_4, window_bounds = array<i64: 128, 128>}]} {
    %c0 = arith.constant 0 : index
    %c0_0 = arith.constant 0 : index
    %0 = vector.load %arg2[%c0, %c0_0] : memref<128x72xbf16, #tpu.memory_space<vmem>>, vector<128x72xbf16>
    %c0_1 = arith.constant 0 : index
    %c0_2 = arith.constant 0 : index
    %1 = vector.load %arg3[%c0_1, %c0_2] : memref<72x128xbf16, #tpu.memory_space<vmem>>, vector<72x128xbf16>
    %cst = arith.constant dense<0.000000e+00> : vector<128x128xf32>
    %2 = tpu.matmul %0, %1, %cst {dimension_numbers = #tpu.dot_dimension_numbers<[1], [0], [0], [1], [0, 0, 1, 1], [], []>} : vector<128x72xbf16>, vector<72x128xbf16>, vector<128x128xf32> -> vector<128x128xf32>
    %c0_3 = arith.constant 0 : index
    %c0_4 = arith.constant 0 : index
    %3 = vector.load %arg4[%c0_3, %c0_4] : memref<1x128xf32, #tpu.memory_space<vmem>>, vector<1x128xf32>
    %4 = vector.broadcast %3 : vector<1x128xf32> to vector<128x128xf32>
    %5 = arith.addf %2, %4 : vector<128x128xf32>
    %cst_5 = arith.constant 0.000000e+00 : f32
    %6 = vector.broadcast %cst_5 : f32 to vector<128x128xf32>
    %7 = arith.cmpf ogt, %5, %6 : vector<128x128xf32>
    %c0_6 = arith.constant 0 : index
    %c0_7 = arith.constant 0 : index
    %8 = vector.load %arg5[%c0_6, %c0_7] : memref<1x128xf32, #tpu.memory_space<vmem>>, vector<1x128xf32>
    %9 = vector.broadcast %8 : vector<1x128xf32> to vector<128x128xf32>
    %10 = arith.mulf %9, %5 : vector<128x128xf32>
    %11 = arith.select %7, %5, %10 : vector<128x128xi1>, vector<128x128xf32>
    %12 = arith.truncf %11 : vector<128x128xf32> to vector<128x128xbf16>
    %c0_8 = arith.constant 0 : index
    %c0_9 = arith.constant 0 : index
    %13 = vector.load %arg6[%c0_8, %c0_9] : memref<128x128xbf16, #tpu.memory_space<vmem>>, vector<128x128xbf16>
    tpu.vector_store %arg6[%c0_8, %c0_9], %12 {strides = array<i32>} : memref<128x128xbf16, #tpu.memory_space<vmem>>, vector<128x128xbf16>,
    return
  }
  func.func @transform_0(%arg0: i32, %arg1: i32) -> (i32, i32) {
    %c0_i32 = arith.constant 0 : i32
    %c0_i32_0 = arith.constant 0 : i32
    return %arg1, %c0_i32 : i32, i32
  }
  func.func @transform_1(%arg0: i32, %arg1: i32) -> (i32, i32) {
    %c0_i32 = arith.constant 0 : i32
    %c0_i32_0 = arith.constant 0 : i32
    return %c0_i32, %arg0 : i32, i32
  }
  func.func @transform_2(%arg0: i32, %arg1: i32) -> (i32, i32) {
    %c0_i32 = arith.constant 0 : i32
    %c0_i32_0 = arith.constant 0 : i32
    return %c0_i32, %arg0 : i32, i32
  }
  func.func @transform_3(%arg0: i32, %arg1: i32) -> (i32, i32) {
    %c0_i32 = arith.constant 0 : i32
    %c0_i32_0 = arith.constant 0 : i32
    return %c0_i32, %arg0 : i32, i32
  }
  func.func @transform_4(%arg0: i32, %arg1: i32) -> (i32, i32) {
    %c0_i32 = arith.constant 0 : i32
    return %arg1, %arg0 : i32, i32
  }
}

module attributes {stable_mosaic.version = 11 : i64} {
  func.func @_gemm_act_kernel(%arg0: i32, %arg1: i32, %arg2: memref<128x432xbf16, #tpu.memory_space<vmem>>, %arg3: memref<432x128xbf16, #tpu.memory_space<vmem>>, %arg4: memref<1x128xf32, #tpu.memory_space<vmem>>, %arg5: memref<128x128xf32, #tpu.memory_space<vmem>>) attributes {dimension_semantics = [#tpu.dimension_semantics<parallel>, #tpu.dimension_semantics<parallel>], iteration_bounds = array<i64: 1, 1>, scalar_prefetch = 0 : i64, scratch_operands = 0 : i64, tpu.core_type = #tpu.core_type<tc>, window_params = [{transform_indices = @transform_0, window_bounds = array<i64: 128, 432>}, {transform_indices = @transform_1, window_bounds = array<i64: 432, 128>}, {transform_indices = @transform_2, window_bounds = array<i64: 1, 128>}, {transform_indices = @transform_3, window_bounds = array<i64: 128, 128>}]} {
    %c0 = arith.constant 0 : index
    %c0_0 = arith.constant 0 : index
    %0 = vector.load %arg2[%c0, %c0_0] : memref<128x432xbf16, #tpu.memory_space<vmem>>, vector<128x432xbf16>
    %c0_1 = arith.constant 0 : index
    %c0_2 = arith.constant 0 : index
    %1 = vector.load %arg3[%c0_1, %c0_2] : memref<432x128xbf16, #tpu.memory_space<vmem>>, vector<432x128xbf16>
    %cst = arith.constant dense<0.000000e+00> : vector<128x128xf32>
    %2 = tpu.matmul %0, %1, %cst {dimension_numbers = #tpu.dot_dimension_numbers<[1], [0], [0], [1], [0, 0, 1, 1], [], []>} : vector<128x432xbf16>, vector<432x128xbf16>, vector<128x128xf32> -> vector<128x128xf32>
    %c0_3 = arith.constant 0 : index
    %c0_4 = arith.constant 0 : index
    %3 = vector.load %arg4[%c0_3, %c0_4] : memref<1x128xf32, #tpu.memory_space<vmem>>, vector<1x128xf32>
    %4 = vector.broadcast %3 : vector<1x128xf32> to vector<128x128xf32>
    %5 = arith.addf %2, %4 : vector<128x128xf32>
    %c0_5 = arith.constant 0 : index
    %c0_6 = arith.constant 0 : index
    %6 = vector.load %arg5[%c0_5, %c0_6] : memref<128x128xf32, #tpu.memory_space<vmem>>, vector<128x128xf32>
    tpu.vector_store %arg5[%c0_5, %c0_6], %5 {strides = array<i32>} : memref<128x128xf32, #tpu.memory_space<vmem>>, vector<128x128xf32>,
    return
  }
  func.func @transform_0(%arg0: i32, %arg1: i32) -> (i32, i32) {
    %c0_i32 = arith.constant 0 : i32
    %c0_i32_0 = arith.constant 0 : i32
    return %arg1, %c0_i32 : i32, i32
  }
  func.func @transform_1(%arg0: i32, %arg1: i32) -> (i32, i32) {
    %c0_i32 = arith.constant 0 : i32
    %c0_i32_0 = arith.constant 0 : i32
    return %c0_i32, %arg0 : i32, i32
  }
  func.func @transform_2(%arg0: i32, %arg1: i32) -> (i32, i32) {
    %c0_i32 = arith.constant 0 : i32
    %c0_i32_0 = arith.constant 0 : i32
    return %c0_i32, %arg0 : i32, i32
  }
  func.func @transform_3(%arg0: i32, %arg1: i32) -> (i32, i32) {
    %c0_i32 = arith.constant 0 : i32
    return %arg1, %arg0 : i32, i32
  }
}

module attributes {stable_mosaic.version = 11 : i64} {
  func.func @_gemm_act_kernel(%arg0: i32, %arg1: i32, %arg2: memref<128x72xbf16, #tpu.memory_space<vmem>>, %arg3: memref<72x128xbf16, #tpu.memory_space<vmem>>, %arg4: memref<1x128xf32, #tpu.memory_space<vmem>>, %arg5: memref<128x128xf32, #tpu.memory_space<vmem>>) attributes {dimension_semantics = [#tpu.dimension_semantics<parallel>, #tpu.dimension_semantics<parallel>], iteration_bounds = array<i64: 1, 4>, scalar_prefetch = 0 : i64, scratch_operands = 0 : i64, tpu.core_type = #tpu.core_type<tc>, window_params = [{transform_indices = @transform_0, window_bounds = array<i64: 128, 72>}, {transform_indices = @transform_1, window_bounds = array<i64: 72, 128>}, {transform_indices = @transform_2, window_bounds = array<i64: 1, 128>}, {transform_indices = @transform_3, window_bounds = array<i64: 128, 128>}]} {
    %c0 = arith.constant 0 : index
    %c0_0 = arith.constant 0 : index
    %0 = vector.load %arg2[%c0, %c0_0] : memref<128x72xbf16, #tpu.memory_space<vmem>>, vector<128x72xbf16>
    %c0_1 = arith.constant 0 : index
    %c0_2 = arith.constant 0 : index
    %1 = vector.load %arg3[%c0_1, %c0_2] : memref<72x128xbf16, #tpu.memory_space<vmem>>, vector<72x128xbf16>
    %cst = arith.constant dense<0.000000e+00> : vector<128x128xf32>
    %2 = tpu.matmul %0, %1, %cst {dimension_numbers = #tpu.dot_dimension_numbers<[1], [0], [0], [1], [0, 0, 1, 1], [], []>} : vector<128x72xbf16>, vector<72x128xbf16>, vector<128x128xf32> -> vector<128x128xf32>
    %c0_3 = arith.constant 0 : index
    %c0_4 = arith.constant 0 : index
    %3 = vector.load %arg4[%c0_3, %c0_4] : memref<1x128xf32, #tpu.memory_space<vmem>>, vector<1x128xf32>
    %4 = vector.broadcast %3 : vector<1x128xf32> to vector<128x128xf32>
    %5 = arith.addf %2, %4 : vector<128x128xf32>
    %cst_5 = arith.constant 0.000000e+00 : f32
    %6 = vector.broadcast %cst_5 : f32 to vector<128x128xf32>
    %7 = arith.maximumf %5, %6 : vector<128x128xf32>
    %c0_6 = arith.constant 0 : index
    %c0_7 = arith.constant 0 : index
    %8 = vector.load %arg5[%c0_6, %c0_7] : memref<128x128xf32, #tpu.memory_space<vmem>>, vector<128x128xf32>
    tpu.vector_store %arg5[%c0_6, %c0_7], %7 {strides = array<i32>} : memref<128x128xf32, #tpu.memory_space<vmem>>, vector<128x128xf32>,
    return
  }
  func.func @transform_0(%arg0: i32, %arg1: i32) -> (i32, i32) {
    %c0_i32 = arith.constant 0 : i32
    %c0_i32_0 = arith.constant 0 : i32
    return %arg1, %c0_i32 : i32, i32
  }
  func.func @transform_1(%arg0: i32, %arg1: i32) -> (i32, i32) {
    %c0_i32 = arith.constant 0 : i32
    %c0_i32_0 = arith.constant 0 : i32
    return %c0_i32, %arg0 : i32, i32
  }
  func.func @transform_2(%arg0: i32, %arg1: i32) -> (i32, i32) {
    %c0_i32 = arith.constant 0 : i32
    %c0_i32_0 = arith.constant 0 : i32
    return %c0_i32, %arg0 : i32, i32
  }
  func.func @transform_3(%arg0: i32, %arg1: i32) -> (i32, i32) {
    %c0_i32 = arith.constant 0 : i32
    return %arg1, %arg0 : i32, i32
  }
}

module attributes {stable_mosaic.version = 11 : i64} {
  func.func @_gemm_act_kernel(%arg0: i32, %arg1: i32, %arg2: memref<128x288xbf16, #tpu.memory_space<vmem>>, %arg3: memref<288x128xbf16, #tpu.memory_space<vmem>>, %arg4: memref<1x128xf32, #tpu.memory_space<vmem>>, %arg5: memref<128x128xf32, #tpu.memory_space<vmem>>) attributes {dimension_semantics = [#tpu.dimension_semantics<parallel>, #tpu.dimension_semantics<parallel>], iteration_bounds = array<i64: 1, 4>, scalar_prefetch = 0 : i64, scratch_operands = 0 : i64, tpu.core_type = #tpu.core_type<tc>, window_params = [{transform_indices = @transform_0, window_bounds = array<i64: 128, 288>}, {transform_indices = @transform_1, window_bounds = array<i64: 288, 128>}, {transform_indices = @transform_2, window_bounds = array<i64: 1, 128>}, {transform_indices = @transform_3, window_bounds = array<i64: 128, 128>}]} {
    %c0 = arith.constant 0 : index
    %c0_0 = arith.constant 0 : index
    %0 = vector.load %arg2[%c0, %c0_0] : memref<128x288xbf16, #tpu.memory_space<vmem>>, vector<128x288xbf16>
    %c0_1 = arith.constant 0 : index
    %c0_2 = arith.constant 0 : index
    %1 = vector.load %arg3[%c0_1, %c0_2] : memref<288x128xbf16, #tpu.memory_space<vmem>>, vector<288x128xbf16>
    %cst = arith.constant dense<0.000000e+00> : vector<128x128xf32>
    %2 = tpu.matmul %0, %1, %cst {dimension_numbers = #tpu.dot_dimension_numbers<[1], [0], [0], [1], [0, 0, 1, 1], [], []>} : vector<128x288xbf16>, vector<288x128xbf16>, vector<128x128xf32> -> vector<128x128xf32>
    %c0_3 = arith.constant 0 : index
    %c0_4 = arith.constant 0 : index
    %3 = vector.load %arg4[%c0_3, %c0_4] : memref<1x128xf32, #tpu.memory_space<vmem>>, vector<1x128xf32>
    %4 = vector.broadcast %3 : vector<1x128xf32> to vector<128x128xf32>
    %5 = arith.addf %2, %4 : vector<128x128xf32>
    %c0_5 = arith.constant 0 : index
    %c0_6 = arith.constant 0 : index
    %6 = vector.load %arg5[%c0_5, %c0_6] : memref<128x128xf32, #tpu.memory_space<vmem>>, vector<128x128xf32>
    tpu.vector_store %arg5[%c0_5, %c0_6], %5 {strides = array<i32>} : memref<128x128xf32, #tpu.memory_space<vmem>>, vector<128x128xf32>,
    return
  }
  func.func @transform_0(%arg0: i32, %arg1: i32) -> (i32, i32) {
    %c0_i32 = arith.constant 0 : i32
    %c0_i32_0 = arith.constant 0 : i32
    return %arg1, %c0_i32 : i32, i32
  }
  func.func @transform_1(%arg0: i32, %arg1: i32) -> (i32, i32) {
    %c0_i32 = arith.constant 0 : i32
    %c0_i32_0 = arith.constant 0 : i32
    return %c0_i32, %arg0 : i32, i32
  }
  func.func @transform_2(%arg0: i32, %arg1: i32) -> (i32, i32) {
    %c0_i32 = arith.constant 0 : i32
    %c0_i32_0 = arith.constant 0 : i32
    return %c0_i32, %arg0 : i32, i32
  }
  func.func @transform_3(%arg0: i32, %arg1: i32) -> (i32, i32) {
    %c0_i32 = arith.constant 0 : i32
    return %arg1, %arg0 : i32, i32
  }
}

module attributes {stable_mosaic.version = 11 : i64} {
  func.func @_gemm_act_kernel(%arg0: i32, %arg1: i32, %arg2: memref<128x288xbf16, #tpu.memory_space<vmem>>, %arg3: memref<288x128xbf16, #tpu.memory_space<vmem>>, %arg4: memref<1x128xf32, #tpu.memory_space<vmem>>, %arg5: memref<128x128xf32, #tpu.memory_space<vmem>>) attributes {dimension_semantics = [#tpu.dimension_semantics<parallel>, #tpu.dimension_semantics<parallel>], iteration_bounds = array<i64: 1, 1>, scalar_prefetch = 0 : i64, scratch_operands = 0 : i64, tpu.core_type = #tpu.core_type<tc>, window_params = [{transform_indices = @transform_0, window_bounds = array<i64: 128, 288>}, {transform_indices = @transform_1, window_bounds = array<i64: 288, 128>}, {transform_indices = @transform_2, window_bounds = array<i64: 1, 128>}, {transform_indices = @transform_3, window_bounds = array<i64: 128, 128>}]} {
    %c0 = arith.constant 0 : index
    %c0_0 = arith.constant 0 : index
    %0 = vector.load %arg2[%c0, %c0_0] : memref<128x288xbf16, #tpu.memory_space<vmem>>, vector<128x288xbf16>
    %c0_1 = arith.constant 0 : index
    %c0_2 = arith.constant 0 : index
    %1 = vector.load %arg3[%c0_1, %c0_2] : memref<288x128xbf16, #tpu.memory_space<vmem>>, vector<288x128xbf16>
    %cst = arith.constant dense<0.000000e+00> : vector<128x128xf32>
    %2 = tpu.matmul %0, %1, %cst {dimension_numbers = #tpu.dot_dimension_numbers<[1], [0], [0], [1], [0, 0, 1, 1], [], []>} : vector<128x288xbf16>, vector<288x128xbf16>, vector<128x128xf32> -> vector<128x128xf32>
    %c0_3 = arith.constant 0 : index
    %c0_4 = arith.constant 0 : index
    %3 = vector.load %arg4[%c0_3, %c0_4] : memref<1x128xf32, #tpu.memory_space<vmem>>, vector<1x128xf32>
    %4 = vector.broadcast %3 : vector<1x128xf32> to vector<128x128xf32>
    %5 = arith.addf %2, %4 : vector<128x128xf32>
    %c0_5 = arith.constant 0 : index
    %c0_6 = arith.constant 0 : index
    %6 = vector.load %arg5[%c0_5, %c0_6] : memref<128x128xf32, #tpu.memory_space<vmem>>, vector<128x128xf32>
    tpu.vector_store %arg5[%c0_5, %c0_6], %5 {strides = array<i32>} : memref<128x128xf32, #tpu.memory_space<vmem>>, vector<128x128xf32>,
    return
  }
  func.func @transform_0(%arg0: i32, %arg1: i32) -> (i32, i32) {
    %c0_i32 = arith.constant 0 : i32
    %c0_i32_0 = arith.constant 0 : i32
    return %arg1, %c0_i32 : i32, i32
  }
  func.func @transform_1(%arg0: i32, %arg1: i32) -> (i32, i32) {
    %c0_i32 = arith.constant 0 : i32
    %c0_i32_0 = arith.constant 0 : i32
    return %c0_i32, %arg0 : i32, i32
  }
  func.func @transform_2(%arg0: i32, %arg1: i32) -> (i32, i32) {
    %c0_i32 = arith.constant 0 : i32
    %c0_i32_0 = arith.constant 0 : i32
    return %c0_i32, %arg0 : i32, i32
  }
  func.func @transform_3(%arg0: i32, %arg1: i32) -> (i32, i32) {
    %c0_i32 = arith.constant 0 : i32
    return %arg1, %arg0 : i32, i32
  }
}

module attributes {stable_mosaic.version = 11 : i64} {
  func.func @_gemm_act_kernel(%arg0: i32, %arg1: i32, %arg2: memref<128x216xbf16, #tpu.memory_space<vmem>>, %arg3: memref<216x128xbf16, #tpu.memory_space<vmem>>, %arg4: memref<1x128xf32, #tpu.memory_space<vmem>>, %arg5: memref<128x128xf32, #tpu.memory_space<vmem>>) attributes {dimension_semantics = [#tpu.dimension_semantics<parallel>, #tpu.dimension_semantics<parallel>], iteration_bounds = array<i64: 1, 1>, scalar_prefetch = 0 : i64, scratch_operands = 0 : i64, tpu.core_type = #tpu.core_type<tc>, window_params = [{transform_indices = @transform_0, window_bounds = array<i64: 128, 216>}, {transform_indices = @transform_1, window_bounds = array<i64: 216, 128>}, {transform_indices = @transform_2, window_bounds = array<i64: 1, 128>}, {transform_indices = @transform_3, window_bounds = array<i64: 128, 128>}]} {
    %c0 = arith.constant 0 : index
    %c0_0 = arith.constant 0 : index
    %0 = vector.load %arg2[%c0, %c0_0] : memref<128x216xbf16, #tpu.memory_space<vmem>>, vector<128x216xbf16>
    %c0_1 = arith.constant 0 : index
    %c0_2 = arith.constant 0 : index
    %1 = vector.load %arg3[%c0_1, %c0_2] : memref<216x128xbf16, #tpu.memory_space<vmem>>, vector<216x128xbf16>
    %cst = arith.constant dense<0.000000e+00> : vector<128x128xf32>
    %2 = tpu.matmul %0, %1, %cst {dimension_numbers = #tpu.dot_dimension_numbers<[1], [0], [0], [1], [0, 0, 1, 1], [], []>} : vector<128x216xbf16>, vector<216x128xbf16>, vector<128x128xf32> -> vector<128x128xf32>
    %c0_3 = arith.constant 0 : index
    %c0_4 = arith.constant 0 : index
    %3 = vector.load %arg4[%c0_3, %c0_4] : memref<1x128xf32, #tpu.memory_space<vmem>>, vector<1x128xf32>
    %4 = vector.broadcast %3 : vector<1x128xf32> to vector<128x128xf32>
    %5 = arith.addf %2, %4 : vector<128x128xf32>
    %c0_5 = arith.constant 0 : index
    %c0_6 = arith.constant 0 : index
    %6 = vector.load %arg5[%c0_5, %c0_6] : memref<128x128xf32, #tpu.memory_space<vmem>>, vector<128x128xf32>
    tpu.vector_store %arg5[%c0_5, %c0_6], %5 {strides = array<i32>} : memref<128x128xf32, #tpu.memory_space<vmem>>, vector<128x128xf32>,
    return
  }
  func.func @transform_0(%arg0: i32, %arg1: i32) -> (i32, i32) {
    %c0_i32 = arith.constant 0 : i32
    %c0_i32_0 = arith.constant 0 : i32
    return %arg1, %c0_i32 : i32, i32
  }
  func.func @transform_1(%arg0: i32, %arg1: i32) -> (i32, i32) {
    %c0_i32 = arith.constant 0 : i32
    %c0_i32_0 = arith.constant 0 : i32
    return %c0_i32, %arg0 : i32, i32
  }
  func.func @transform_2(%arg0: i32, %arg1: i32) -> (i32, i32) {
    %c0_i32 = arith.constant 0 : i32
    %c0_i32_0 = arith.constant 0 : i32
    return %c0_i32, %arg0 : i32, i32
  }
  func.func @transform_3(%arg0: i32, %arg1: i32) -> (i32, i32) {
    %c0_i32 = arith.constant 0 : i32
    return %arg1, %arg0 : i32, i32
  }
}

module attributes {stable_mosaic.version = 11 : i64} {
  func.func @_merge_kernel(%arg0: i32, %arg1: memref<512x128xf32, #tpu.memory_space<vmem>>, %arg2: memref<512x128xf32, #tpu.memory_space<vmem>>, %arg3: memref<512x128xf32, #tpu.memory_space<vmem>>, %arg4: memref<512x128xf32, #tpu.memory_space<vmem>>) attributes {dimension_semantics = [#tpu.dimension_semantics<parallel>], iteration_bounds = array<i64: 1>, scalar_prefetch = 0 : i64, scratch_operands = 0 : i64, tpu.core_type = #tpu.core_type<tc>, window_params = [{transform_indices = @transform_0, window_bounds = array<i64: 512, 128>}, {transform_indices = @transform_1, window_bounds = array<i64: 512, 128>}, {transform_indices = @transform_2, window_bounds = array<i64: 512, 128>}, {transform_indices = @transform_3, window_bounds = array<i64: 512, 128>}]} {
    %c0 = arith.constant 0 : index
    %c0_0 = arith.constant 0 : index
    %0 = vector.load %arg3[%c0, %c0_0] : memref<512x128xf32, #tpu.memory_space<vmem>>, vector<512x128xf32>
    %1 = arith.negf %0 : vector<512x128xf32>
    %2 = math.exp %1 : vector<512x128xf32>
    %cst = arith.constant 1.000000e+00 : f32
    %3 = vector.broadcast %cst : f32 to vector<512x128xf32>
    %4 = arith.addf %3, %2 : vector<512x128xf32>
    %5 = arith.divf %3, %4 : vector<512x128xf32>
    %c0_1 = arith.constant 0 : index
    %c0_2 = arith.constant 0 : index
    %6 = vector.load %arg1[%c0_1, %c0_2] : memref<512x128xf32, #tpu.memory_space<vmem>>, vector<512x128xf32>
    %7 = arith.mulf %6, %5 : vector<512x128xf32>
    %c0_3 = arith.constant 0 : index
    %c0_4 = arith.constant 0 : index
    %8 = vector.load %arg2[%c0_3, %c0_4] : memref<512x128xf32, #tpu.memory_space<vmem>>, vector<512x128xf32>
    %cst_5 = arith.constant 1.000000e+00 : f32
    %9 = vector.broadcast %cst_5 : f32 to vector<512x128xf32>
    %10 = arith.subf %9, %5 : vector<512x128xf32>
    %11 = arith.mulf %8, %10 : vector<512x128xf32>
    %12 = arith.addf %7, %11 : vector<512x128xf32>
    %cst_6 = arith.constant 0.000000e+00 : f32
    %cst_7 = arith.constant 1.000000e+00 : f32
    %13 = vector.broadcast %cst_6 : f32 to vector<512x128xf32>
    %14 = arith.maximumf %13, %12 : vector<512x128xf32>
    %15 = vector.broadcast %cst_7 : f32 to vector<512x128xf32>
    %16 = arith.minimumf %15, %14 : vector<512x128xf32>
    %c0_8 = arith.constant 0 : index
    %c0_9 = arith.constant 0 : index
    %17 = vector.load %arg4[%c0_8, %c0_9] : memref<512x128xf32, #tpu.memory_space<vmem>>, vector<512x128xf32>
    tpu.vector_store %arg4[%c0_8, %c0_9], %16 {strides = array<i32>} : memref<512x128xf32, #tpu.memory_space<vmem>>, vector<512x128xf32>,
    return
  }
  func.func @transform_0(%arg0: i32) -> (i32, i32) {
    %c0_i32 = arith.constant 0 : i32
    %c0_i32_0 = arith.constant 0 : i32
    return %arg0, %c0_i32 : i32, i32
  }
  func.func @transform_1(%arg0: i32) -> (i32, i32) {
    %c0_i32 = arith.constant 0 : i32
    %c0_i32_0 = arith.constant 0 : i32
    return %arg0, %c0_i32 : i32, i32
  }
  func.func @transform_2(%arg0: i32) -> (i32, i32) {
    %c0_i32 = arith.constant 0 : i32
    %c0_i32_0 = arith.constant 0 : i32
    return %arg0, %c0_i32 : i32, i32
  }
  func.func @transform_3(%arg0: i32) -> (i32, i32) {
    %c0_i32 = arith.constant 0 : i32
    %c0_i32_0 = arith.constant 0 : i32
    return %arg0, %c0_i32 : i32, i32
  }
}

</mosaic_0001>

<llo_original>
// kernel: reverse
$region0: #{reverse}
  #allocation0 [shape = 's32[1]{0}', space=sflag, size = 0x4, scoped, tag = 'scoped memory for reverse']
  %s0 = inlined_call_operand.vmem [shape: bf16[720,80,3,3], index: 0, kind: input, shape index: {}]
  %s1 = inlined_call_operand.vmem [shape: bf16[720,80,3,3], index: 1, kind: output, shape index: {}]
  %s2 = scalar_lea.vmem %s0, 1920
  %v3 = vld [vmem:[%s2] sm:$0xf]
  %v4 = vunpack.c.l.bf16 %v3
  %v5 = vunpack.c.h.bf16 %v3
  %s6 = scalar_lea.vmem %s0, 1200
  %v7 = vld [vmem:[%s6] sm:$0xf]
  %v8 = vunpack.c.l.bf16 %v7
  %v9 = vunpack.c.h.bf16 %v7
  %s10 = scalar_lea.vmem %s1, 720
  %s11 = scalar_lea.vmem %s0, 480
  %v12 = vld [vmem:[%s11] sm:$0xf]
  %v13 = vunpack.c.l.bf16 %v12
  %v14 = vunpack.c.h.bf16 %v12
  %s15 = scalar_lea.vmem %s1, 1440
  %s16 = scalar_lea.vmem %s0, 1680
  %v17 = vld [vmem:[%s16] sm:$0xf]
  %v18 = vunpack.c.l.bf16 %v17
  %v19 = vunpack.c.h.bf16 %v17
  %s20 = scalar_lea.vmem %s1, 240
  %s21 = scalar_lea.vmem %s0, 960
  %v22 = vld [vmem:[%s21] sm:$0xf]
  %v23 = vunpack.c.l.bf16 %v22
  %v24 = vunpack.c.h.bf16 %v22
  %s25 = scalar_lea.vmem %s1, 960
  %s26 = scalar_lea.vmem %s0, 240
  %v27 = vld [vmem:[%s26] sm:$0xf]
  %v28 = vunpack.c.l.bf16 %v27
  %v29 = vunpack.c.h.bf16 %v27
  %s30 = scalar_lea.vmem %s1, 1680
  %s31 = scalar_lea.vmem %s0, 1440
  %v32 = vld [vmem:[%s31] sm:$0xf]
  %v33 = vunpack.c.l.bf16 %v32
  %v34 = vunpack.c.h.bf16 %v32
  %s35 = scalar_lea.vmem %s1, 480
  %s36 = scalar_lea.vmem %s0, 720
  %v37 = vld [vmem:[%s36] sm:$0xf]
  %v38 = vunpack.c.l.bf16 %v37
  %v39 = vunpack.c.h.bf16 %v37
  %s40 = scalar_lea.vmem %s1, 1200
  %v41 = vld [vmem:[%s0] sm:$0xf]
  %v42 = vunpack.c.l.bf16 %v41
  %v43 = vunpack.c.h.bf16 %v41
  %s44 = scalar_lea.vmem %s1, 1920
  %s45 = scalar_lea.vmem %s0, 1944
  %v46 = vld [vmem:[%s45] sm:$0xf]
  %v47 = vunpack.c.l.bf16 %v46
  %v48 = vunpack.c.h.bf16 %v46
  %s49 = scalar_lea.vmem %s1, 24
  %s50 = scalar_lea.vmem %s0, 1224
  %v51 = vld [vmem:[%s50] sm:$0xf]
  %v52 = vunpack.c.l.bf16 %v51
  %v53 = vunpack.c.h.bf16 %v51
  %s54 = scalar_lea.vmem %s1, 744
  %s55 = scalar_lea.vmem %s0, 504
  %v56 = vld [vmem:[%s55] sm:$0xf]
  %v57 = vunpack.c.l.bf16 %v56
  %v58 = vunpack.c.h.bf16 %v56
  %s59 = scalar_lea.vmem %s1, 1464
  %s60 = scalar_lea.vmem %s0, 1704
  %v61 = vld [vmem:[%s60] sm:$0xf]
  %v62 = vunpack.c.l.bf16 %v61
  %v63 = vunpack.c.h.bf16 %v61
  %s64 = scalar_lea.vmem %s1, 264
  %s65 = scalar_lea.vmem %s0, 984
  %v66 = vld [vmem:[%s65] sm:$0xf]
  %v67 = vunpack.c.l.bf16 %v66
  %v68 = vunpack.c.h.bf16 %v66
  %s69 = scalar_lea.vmem %s1, 984
  %s70 = scalar_lea.vmem %s0, 264
  %v71 = vld [vmem:[%s70] sm:$0xf]
  %v72 = vunpack.c.l.bf16 %v71
  %v73 = vunpack.c.h.bf16 %v71
  %s74 = scalar_lea.vmem %s1, 1704
  %s75 = scalar_lea.vmem %s0, 1464
  %v76 = vld [vmem:[%s75] sm:$0xf]
  %v77 = vunpack.c.l.bf16 %v76
  %v78 = vunpack.c.h.bf16 %v76
  %s79 = scalar_lea.vmem %s1, 504
  %s80 = scalar_lea.vmem %s0, 744
  %v81 = vld [vmem:[%s80] sm:$0xf]
  %v82 = vunpack.c.l.bf16 %v81
  %v83 = vunpack.c.h.bf16 %v81
  %s84 = scalar_lea.vmem %s1, 1224
  %s85 = scalar_lea.vmem %s0, 24
  %v86 = vld [vmem:[%s85] sm:$0xf]
  %v87 = vunpack.c.l.bf16 %v86
  %v88 = vunpack.c.h.bf16 %v86
  %s89 = scalar_lea.vmem %s1, 1944
  %s90 = scalar_lea.vmem %s0, 1968
  %v91 = vld [vmem:[%s90] sm:$0xf]
  %v92 = vunpack.c.l.bf16 %v91
  %v93 = vunpack.c.h.bf16 %v91
  %s94 = scalar_lea.vmem %s1, 48
  %s95 = scalar_lea.vmem %s0, 1248
  %v96 = vld [vmem:[%s95] sm:$0xf]
  %v97 = vunpack.c.l.bf16 %v96
  %v98 = vunpack.c.h.bf16 %v96
  %s99 = scalar_lea.vmem %s1, 768
  %s100 = scalar_lea.vmem %s0, 528
  %v101 = vld [vmem:[%s100] sm:$0xf]
  %v102 = vunpack.c.l.bf16 %v101
  %v103 = vunpack.c.h.bf16 %v101
  %s104 = scalar_lea.vmem %s1, 1488
  %s105 = scalar_lea.vmem %s0, 1728
  %v106 = vld [vmem:[%s105] sm:$0xf]
  %v107 = vunpack.c.l.bf16 %v106
  %v108 = vunpack.c.h.bf16 %v106
  %s109 = scalar_lea.vmem %s1, 288
  %s110 = scalar_lea.vmem %s0, 1008
  %v111 = vld [vmem:[%s110] sm:$0xf]
  %v112 = vunpack.c.l.bf16 %v111
  %v113 = vunpack.c.h.bf16 %v111
  %s114 = scalar_lea.vmem %s1, 1008
  %s115 = scalar_lea.vmem %s0, 288
  %v116 = vld [vmem:[%s115] sm:$0xf]
  %v117 = vunpack.c.l.bf16 %v116
  %v118 = vunpack.c.h.bf16 %v116
  %s119 = scalar_lea.vmem %s1, 1728
  %s120 = scalar_lea.vmem %s0, 1488
  %v121 = vld [vmem:[%s120] sm:$0xf]
  %v122 = vunpack.c.l.bf16 %v121
  %v123 = vunpack.c.h.bf16 %v121
  %s124 = scalar_lea.vmem %s1, 528
  %s125 = scalar_lea.vmem %s0, 768
  %v126 = vld [vmem:[%s125] sm:$0xf]
  %v127 = vunpack.c.l.bf16 %v126
  %v128 = vunpack.c.h.bf16 %v126
  %s129 = scalar_lea.vmem %s1, 1248
  %s130 = scalar_lea.vmem %s0, 48
  %v131 = vld [vmem:[%s130] sm:$0xf]
  %v132 = vunpack.c.l.bf16 %v131
  %v133 = vunpack.c.h.bf16 %v131
  %s134 = scalar_lea.vmem %s1, 1968
  %s135 = scalar_lea.vmem %s0, 1992
  %v136 = vld [vmem:[%s135] sm:$0xf]
  %v137 = vunpack.c.l.bf16 %v136
  %v138 = vunpack.c.h.bf16 %v136
  %s139 = scalar_lea.vmem %s1, 72
  %s140 = scalar_lea.vmem %s0, 1272
  %v141 = vld [vmem:[%s140] sm:$0xf]
  %v142 = vunpack.c.l.bf16 %v141
  %v143 = vunpack.c.h.bf16 %v141
  %s144 = scalar_lea.vmem %s1, 792
  %s145 = scalar_lea.vmem %s0, 552
  %v146 = vld [vmem:[%s145] sm:$0xf]
  %v147 = vunpack.c.l.bf16 %v146
  %v148 = vunpack.c.h.bf16 %v146
  %s149 = scalar_lea.vmem %s1, 1512
  %s150 = scalar_lea.vmem %s0, 1752
  %v151 = vld [vmem:[%s150] sm:$0xf]
  %v152 = vunpack.c.l.bf16 %v151
  %v153 = vunpack.c.h.bf16 %v151
  %s154 = scalar_lea.vmem %s1, 312
  %s155 = scalar_lea.vmem %s0, 1032
  %v156 = vld [vmem:[%s155] sm:$0xf]
  %v157 = vunpack.c.l.bf16 %v156
  %v158 = vunpack.c.h.bf16 %v156
  %s159 = scalar_lea.vmem %s1, 1032
  %s160 = scalar_lea.vmem %s0, 312
  %v161 = vld [vmem:[%s160] sm:$0xf]
  %v162 = vunpack.c.l.bf16 %v161
  %v163 = vunpack.c.h.bf16 %v161
  %s164 = scalar_lea.vmem %s1, 1752
  %s165 = scalar_lea.vmem %s0, 1512
  %v166 = vld [vmem:[%s165] sm:$0xf]
  %v167 = vunpack.c.l.bf16 %v166
  %v168 = vunpack.c.h.bf16 %v166
  %s169 = scalar_lea.vmem %s1, 552
  %s170 = scalar_lea.vmem %s0, 792
  %v171 = vld [vmem:[%s170] sm:$0xf]
  %v172 = vunpack.c.l.bf16 %v171
  %v173 = vunpack.c.h.bf16 %v171
  %s174 = scalar_lea.vmem %s1, 1272
  %s175 = scalar_lea.vmem %s0, 72
  %v176 = vld [vmem:[%s175] sm:$0xf]
  %v177 = vunpack.c.l.bf16 %v176
  %v178 = vunpack.c.h.bf16 %v176
  %s179 = scalar_lea.vmem %s1, 1992
  %s180 = scalar_lea.vmem %s0, 2016
  %v181 = vld [vmem:[%s180] sm:$0xf]
  %v182 = vunpack.c.l.bf16 %v181
  %v183 = vunpack.c.h.bf16 %v181
  %s184 = scalar_lea.vmem %s1, 96
  %s185 = scalar_lea.vmem %s0, 1296
  %v186 = vld [vmem:[%s185] sm:$0xf]
  %v187 = vunpack.c.l.bf16 %v186
  %v188 = vunpack.c.h.bf16 %v186
  %s189 = scalar_lea.vmem %s1, 816
  %s190 = scalar_lea.vmem %s0, 576
  %v191 = vld [vmem:[%s190] sm:$0xf]
  %v192 = vunpack.c.l.bf16 %v191
  %v193 = vunpack.c.h.bf16 %v191
  %s194 = scalar_lea.vmem %s1, 1536
  %s195 = scalar_lea.vmem %s0, 1776
  %v196 = vld [vmem:[%s195] sm:$0xf]
  %v197 = vunpack.c.l.bf16 %v196
  %v198 = vunpack.c.h.bf16 %v196
  %s199 = scalar_lea.vmem %s1, 336
  %s200 = scalar_lea.vmem %s0, 1056
  %v201 = vld [vmem:[%s200] sm:$0xf]
  %v202 = vunpack.c.l.bf16 %v201
  %v203 = vunpack.c.h.bf16 %v201
  %s204 = scalar_lea.vmem %s1, 1056
  %s205 = scalar_lea.vmem %s0, 336
  %v206 = vld [vmem:[%s205] sm:$0xf]
  %v207 = vunpack.c.l.bf16 %v206
  %v208 = vunpack.c.h.bf16 %v206
  %s209 = scalar_lea.vmem %s1, 1776
  %s210 = scalar_lea.vmem %s0, 1536
  %v211 = vld [vmem:[%s210] sm:$0xf]
  %v212 = vunpack.c.l.bf16 %v211
  %v213 = vunpack.c.h.bf16 %v211
  %s214 = scalar_lea.vmem %s1, 576
  %s215 = scalar_lea.vmem %s0, 816
  %v216 = vld [vmem:[%s215] sm:$0xf]
  %v217 = vunpack.c.l.bf16 %v216
  %v218 = vunpack.c.h.bf16 %v216
  %s219 = scalar_lea.vmem %s1, 1296
  %s220 = scalar_lea.vmem %s0, 96
  %v221 = vld [vmem:[%s220] sm:$0xf]
  %v222 = vunpack.c.l.bf16 %v221
  %v223 = vunpack.c.h.bf16 %v221
  %s224 = scalar_lea.vmem %s1, 2016
  %s225 = scalar_lea.vmem %s0, 2040
  %v226 = vld [vmem:[%s225] sm:$0xf]
  %v227 = vunpack.c.l.bf16 %v226
  %v228 = vunpack.c.h.bf16 %v226
  %s229 = scalar_lea.vmem %s1, 120
  %s230 = scalar_lea.vmem %s0, 1320
  %v231 = vld [vmem:[%s230] sm:$0xf]
  %v232 = vunpack.c.l.bf16 %v231
  %v233 = vunpack.c.h.bf16 %v231
  %s234 = scalar_lea.vmem %s1, 840
  %s235 = scalar_lea.vmem %s0, 600
  %v236 = vld [vmem:[%s235] sm:$0xf]
  %v237 = vunpack.c.l.bf16 %v236
  %v238 = vunpack.c.h.bf16 %v236
  %s239 = scalar_lea.vmem %s1, 1560
  %s240 = scalar_lea.vmem %s0, 1800
  %v241 = vld [vmem:[%s240] sm:$0xf]
  %v242 = vunpack.c.l.bf16 %v241
  %v243 = vunpack.c.h.bf16 %v241
  %s244 = scalar_lea.vmem %s1, 360
  %s245 = scalar_lea.vmem %s0, 1080
  %v246 = vld [vmem:[%s245] sm:$0xf]
  %v247 = vunpack.c.l.bf16 %v246
  %v248 = vunpack.c.h.bf16 %v246
  %s249 = scalar_lea.vmem %s1, 1080
  %s250 = scalar_lea.vmem %s0, 360
  %v251 = vld [vmem:[%s250] sm:$0xf]
  %v252 = vunpack.c.l.bf16 %v251
  %v253 = vunpack.c.h.bf16 %v251
  %s254 = scalar_lea.vmem %s1, 1800
  %s255 = scalar_lea.vmem %s0, 1560
  %v256 = vld [vmem:[%s255] sm:$0xf]
  %v257 = vunpack.c.l.bf16 %v256
  %v258 = vunpack.c.h.bf16 %v256
  %s259 = scalar_lea.vmem %s1, 600
  %s260 = scalar_lea.vmem %s0, 840
  %v261 = vld [vmem:[%s260] sm:$0xf]
  %v262 = vunpack.c.l.bf16 %v261
  %v263 = vunpack.c.h.bf16 %v261
  %s264 = scalar_lea.vmem %s1, 1320
  %s265 = scalar_lea.vmem %s0, 120
  %v266 = vld [vmem:[%s265] sm:$0xf]
  %v267 = vunpack.c.l.bf16 %v266
  %v268 = vunpack.c.h.bf16 %v266
  %s269 = scalar_lea.vmem %s1, 2040
  %s270 = scalar_lea.vmem %s0, 2064
  %v271 = vld [vmem:[%s270] sm:$0xf]
  %v272 = vunpack.c.l.bf16 %v271
  %v273 = vunpack.c.h.bf16 %v271
  %s274 = scalar_lea.vmem %s1, 144
  %s275 = scalar_lea.vmem %s0, 1344
  %v276 = vld [vmem:[%s275] sm:$0xf]
  %v277 = vunpack.c.l.bf16 %v276
  %v278 = vunpack.c.h.bf16 %v276
  %s279 = scalar_lea.vmem %s1, 864
  %s280 = scalar_lea.vmem %s0, 624
  %v281 = vld [vmem:[%s280] sm:$0xf]
  %v282 = vunpack.c.l.bf16 %v281
  %v283 = vunpack.c.h.bf16 %v281
  %s284 = scalar_lea.vmem %s1, 1584
  %s285 = scalar_lea.vmem %s0, 1824
  %v286 = vld [vmem:[%s285] sm:$0xf]
  %v287 = vunpack.c.l.bf16 %v286
  %v288 = vunpack.c.h.bf16 %v286
  %s289 = scalar_lea.vmem %s1, 384
  %s290 = scalar_lea.vmem %s0, 1104
  %v291 = vld [vmem:[%s290] sm:$0xf]
  %v292 = vunpack.c.l.bf16 %v291
  %v293 = vunpack.c.h.bf16 %v291
  %s294 = scalar_lea.vmem %s1, 1104
  %s295 = scalar_lea.vmem %s0, 384
  %v296 = vld [vmem:[%s295] sm:$0xf]
  %v297 = vunpack.c.l.bf16 %v296
  %v298 = vunpack.c.h.bf16 %v296
  %s299 = scalar_lea.vmem %s1, 1824
  %s300 = scalar_lea.vmem %s0, 1584
  %v301 = vld [vmem:[%s300] sm:$0xf]
  %v302 = vunpack.c.l.bf16 %v301
  %v303 = vunpack.c.h.bf16 %v301
  %s304 = scalar_lea.vmem %s1, 624
  %s305 = scalar_lea.vmem %s0, 864
  %v306 = vld [vmem:[%s305] sm:$0xf]
  %v307 = vunpack.c.l.bf16 %v306
  %v308 = vunpack.c.h.bf16 %v306
  %s309 = scalar_lea.vmem %s1, 1344
  %s310 = scalar_lea.vmem %s0, 144
  %v311 = vld [vmem:[%s310] sm:$0xf]
  %v312 = vunpack.c.l.bf16 %v311
  %v313 = vunpack.c.h.bf16 %v311
  %s314 = scalar_lea.vmem %s1, 2064
  %s315 = scalar_lea.vmem %s0, 2088
  %v316 = vld [vmem:[%s315] sm:$0xf]
  %v317 = vunpack.c.l.bf16 %v316
  %v318 = vunpack.c.h.bf16 %v316
  %s319 = scalar_lea.vmem %s1, 168
  %s320 = scalar_lea.vmem %s0, 1368
  %v321 = vld [vmem:[%s320] sm:$0xf]
  %v322 = vunpack.c.l.bf16 %v321
  %v323 = vunpack.c.h.bf16 %v321
  %s324 = scalar_lea.vmem %s1, 888
  %s325 = scalar_lea.vmem %s0, 648
  %v326 = vld [vmem:[%s325] sm:$0xf]
  %v327 = vunpack.c.l.bf16 %v326
  %v328 = vunpack.c.h.bf16 %v326
  %s329 = scalar_lea.vmem %s1, 1608
  %s330 = scalar_lea.vmem %s0, 1848
  %v331 = vld [vmem:[%s330] sm:$0xf]
  %v332 = vunpack.c.l.bf16 %v331
  %v333 = vunpack.c.h.bf16 %v331
  %s334 = scalar_lea.vmem %s1, 408
  %s335 = scalar_lea.vmem %s0, 1128
  %v336 = vld [vmem:[%s335] sm:$0xf]
  %v337 = vunpack.c.l.bf16 %v336
  %v338 = vunpack.c.h.bf16 %v336
  %s339 = scalar_lea.vmem %s1, 1128
  %s340 = scalar_lea.vmem %s0, 408
  %v341 = vld [vmem:[%s340] sm:$0xf]
  %v342 = vunpack.c.l.bf16 %v341
  %v343 = vunpack.c.h.bf16 %v341
  %s344 = scalar_lea.vmem %s1, 1848
  %s345 = scalar_lea.vmem %s0, 1608
  %v346 = vld [vmem:[%s345] sm:$0xf]
  %v347 = vunpack.c.l.bf16 %v346
  %v348 = vunpack.c.h.bf16 %v346
  %s349 = scalar_lea.vmem %s1, 648
  %s350 = scalar_lea.vmem %s0, 888
  %v351 = vld [vmem:[%s350] sm:$0xf]
  %v352 = vunpack.c.l.bf16 %v351
  %v353 = vunpack.c.h.bf16 %v351
  %s354 = scalar_lea.vmem %s1, 1368
  %s355 = scalar_lea.vmem %s0, 168
  %v356 = vld [vmem:[%s355] sm:$0xf]
  %v357 = vunpack.c.l.bf16 %v356
  %v358 = vunpack.c.h.bf16 %v356
  %s359 = scalar_lea.vmem %s1, 2088
  %s360 = scalar_lea.vmem %s0, 2112
  %v361 = vld [vmem:[%s360] sm:$0xf]
  %v362 = vunpack.c.l.bf16 %v361
  %v363 = vunpack.c.h.bf16 %v361
  %s364 = scalar_lea.vmem %s1, 192
  %s365 = scalar_lea.vmem %s0, 1392
  %v366 = vld [vmem:[%s365] sm:$0xf]
  %v367 = vunpack.c.l.bf16 %v366
  %v368 = vunpack.c.h.bf16 %v366
  %s369 = scalar_lea.vmem %s1, 912
  %s370 = scalar_lea.vmem %s0, 672
  %v371 = vld [vmem:[%s370] sm:$0xf]
  %v372 = vunpack.c.l.bf16 %v371
  %v373 = vunpack.c.h.bf16 %v371
  %s374 = scalar_lea.vmem %s1, 1632
  %s375 = scalar_lea.vmem %s0, 1872
  %v376 = vld [vmem:[%s375] sm:$0xf]
  %v377 = vunpack.c.l.bf16 %v376
  %v378 = vunpack.c.h.bf16 %v376
  %s379 = scalar_lea.vmem %s1, 432
  %s380 = scalar_lea.vmem %s0, 1152
  %v381 = vld [vmem:[%s380] sm:$0xf]
  %v382 = vunpack.c.l.bf16 %v381
  %v383 = vunpack.c.h.bf16 %v381
  %s384 = scalar_lea.vmem %s1, 1152
  %s385 = scalar_lea.vmem %s0, 432
  %v386 = vld [vmem:[%s385] sm:$0xf]
  %v387 = vunpack.c.l.bf16 %v386
  %v388 = vunpack.c.h.bf16 %v386
  %s389 = scalar_lea.vmem %s1, 1872
  %s390 = scalar_lea.vmem %s0, 1632
  %v391 = vld [vmem:[%s390] sm:$0xf]
  %v392 = vunpack.c.l.bf16 %v391
  %v393 = vunpack.c.h.bf16 %v391
  %s394 = scalar_lea.vmem %s1, 672
  %s395 = scalar_lea.vmem %s0, 912
  %v396 = vld [vmem:[%s395] sm:$0xf]
  %v397 = vunpack.c.l.bf16 %v396
  %v398 = vunpack.c.h.bf16 %v396
  %s399 = scalar_lea.vmem %s1, 1392
  %s400 = scalar_lea.vmem %s0, 192
  %v401 = vld [vmem:[%s400] sm:$0xf]
  %v402 = vunpack.c.l.bf16 %v401
  %v403 = vunpack.c.h.bf16 %v401
  %s404 = scalar_lea.vmem %s1, 2112
  %s405 = scalar_lea.vmem %s0, 2136
  %v406 = vld [vmem:[%s405] sm:$0xf]
  %v407 = vunpack.c.l.bf16 %v406
  %v408 = vunpack.c.h.bf16 %v406
  %s409 = scalar_lea.vmem %s1, 216
  %s410 = scalar_lea.vmem %s0, 1416
  %v411 = vld [vmem:[%s410] sm:$0xf]
  %v412 = vunpack.c.l.bf16 %v411
  %v413 = vunpack.c.h.bf16 %v411
  %s414 = scalar_lea.vmem %s1, 936
  %s415 = scalar_lea.vmem %s0, 696
  %v416 = vld [vmem:[%s415] sm:$0xf]
  %v417 = vunpack.c.l.bf16 %v416
  %v418 = vunpack.c.h.bf16 %v416
  %s419 = scalar_lea.vmem %s1, 1656
  %s420 = scalar_lea.vmem %s0, 1896
  %v421 = vld [vmem:[%s420] sm:$0xf]
  %v422 = vunpack.c.l.bf16 %v421
  %v423 = vunpack.c.h.bf16 %v421
  %s424 = scalar_lea.vmem %s1, 456
  %s425 = scalar_lea.vmem %s0, 1176
  %v426 = vld [vmem:[%s425] sm:$0xf]
  %v427 = vunpack.c.l.bf16 %v426
  %v428 = vunpack.c.h.bf16 %v426
  %s429 = scalar_lea.vmem %s1, 1176
  %s430 = scalar_lea.vmem %s0, 456
  %v431 = vld [vmem:[%s430] sm:$0xf]
  %v432 = vunpack.c.l.bf16 %v431
  %v433 = vunpack.c.h.bf16 %v431
  %s434 = scalar_lea.vmem %s1, 1896
  %s435 = scalar_lea.vmem %s0, 1656
  %v436 = vld [vmem:[%s435] sm:$0xf]
  %v437 = vunpack.c.l.bf16 %v436
  %v438 = vunpack.c.h.bf16 %v436
  %s439 = scalar_lea.vmem %s1, 696
  %s440 = scalar_lea.vmem %s0, 936
  %v441 = vld [vmem:[%s440] sm:$0xf]
  %v442 = vunpack.c.l.bf16 %v441
  %v443 = vunpack.c.h.bf16 %v441
  %s444 = scalar_lea.vmem %s1, 1416
  %s445 = scalar_lea.vmem %s0, 216
  %v446 = vld [vmem:[%s445] sm:$0xf]
  %v447 = vunpack.c.l.bf16 %v446
  %v448 = vunpack.c.h.bf16 %v446
  %s449 = scalar_lea.vmem %s1, 2136
  %s450 = scalar_lea.vmem %s0, 1924
  %v451 = vld [vmem:[%s450] sm:$0xf]
  %v452 = vunpack.c.l.bf16 %v451
  %v453 = vunpack.c.h.bf16 %v451
  %s454 = scalar_lea.vmem %s1, 4
  %s455 = scalar_lea.vmem %s454, 4294967292
  %v456 = vpack.c.bf16 %v452, %v4
  %457 = vst [vmem:[%s455] sm:$0xff] %v456
  %s458 = scalar_lea.vmem %s0, 1204
  %v459 = vld [vmem:[%s458] sm:$0xf]
  %v460 = vunpack.c.l.bf16 %v459
  %v461 = vunpack.c.h.bf16 %v459
  %s462 = scalar_lea.vmem %s1, 724
  %s463 = scalar_lea.vmem %s462, 4294967292
  %v464 = vpack.c.bf16 %v460, %v8
  %465 = vst [vmem:[%s463] sm:$0xff] %v464
  %s466 = scalar_lea.vmem %s0, 484
  %v467 = vld [vmem:[%s466] sm:$0xf]
  %v468 = vunpack.c.l.bf16 %v467
  %v469 = vunpack.c.h.bf16 %v467
  %s470 = scalar_lea.vmem %s1, 1444
  %s471 = scalar_lea.vmem %s470, 4294967292
  %v472 = vpack.c.bf16 %v468, %v13
  %473 = vst [vmem:[%s471] sm:$0xff] %v472
  %s474 = scalar_lea.vmem %s0, 1684
  %v475 = vld [vmem:[%s474] sm:$0xf]
  %v476 = vunpack.c.l.bf16 %v475
  %v477 = vunpack.c.h.bf16 %v475
  %s478 = scalar_lea.vmem %s1, 244
  %s479 = scalar_lea.vmem %s478, 4294967292
  %v480 = vpack.c.bf16 %v476, %v18
  %481 = vst [vmem:[%s479] sm:$0xff] %v480
  %s482 = scalar_lea.vmem %s0, 964
  %v483 = vld [vmem:[%s482] sm:$0xf]
  %v484 = vunpack.c.l.bf16 %v483
  %v485 = vunpack.c.h.bf16 %v483
  %s486 = scalar_lea.vmem %s1, 964
  %s487 = scalar_lea.vmem %s486, 4294967292
  %v488 = vpack.c.bf16 %v484, %v23
  %489 = vst [vmem:[%s487] sm:$0xff] %v488
  %s490 = scalar_lea.vmem %s0, 244
  %v491 = vld [vmem:[%s490] sm:$0xf]
  %v492 = vunpack.c.l.bf16 %v491
  %v493 = vunpack.c.h.bf16 %v491
  %s494 = scalar_lea.vmem %s1, 1684
  %s495 = scalar_lea.vmem %s494, 4294967292
  %v496 = vpack.c.bf16 %v492, %v28
  %497 = vst [vmem:[%s495] sm:$0xff] %v496
  %s498 = scalar_lea.vmem %s0, 1444
  %v499 = vld [vmem:[%s498] sm:$0xf]
  %v500 = vunpack.c.l.bf16 %v499
  %v501 = vunpack.c.h.bf16 %v499
  %s502 = scalar_lea.vmem %s1, 484
  %s503 = scalar_lea.vmem %s502, 4294967292
  %v504 = vpack.c.bf16 %v500, %v33
  %505 = vst [vmem:[%s503] sm:$0xff] %v504
  %s506 = scalar_lea.vmem %s0, 724
  %v507 = vld [vmem:[%s506] sm:$0xf]
  %v508 = vunpack.c.l.bf16 %v507
  %v509 = vunpack.c.h.bf16 %v507
  %s510 = scalar_lea.vmem %s1, 1204
  %s511 = scalar_lea.vmem %s510, 4294967292
  %v512 = vpack.c.bf16 %v508, %v38
  %513 = vst [vmem:[%s511] sm:$0xff] %v512
  %s514 = scalar_lea.vmem %s0, 4
  %v515 = vld [vmem:[%s514] sm:$0xf]
  %v516 = vunpack.c.l.bf16 %v515
  %v517 = vunpack.c.h.bf16 %v515
  %s518 = scalar_lea.vmem %s1, 1924
  %s519 = scalar_lea.vmem %s518, 4294967292
  %v520 = vpack.c.bf16 %v516, %v42
  %521 = vst [vmem:[%s519] sm:$0xff] %v520
  %s522 = scalar_lea.vmem %s0, 1948
  %v523 = vld [vmem:[%s522] sm:$0xf]
  %v524 = vunpack.c.l.bf16 %v523
  %v525 = vunpack.c.h.bf16 %v523
  %s526 = scalar_lea.vmem %s1, 28
  %s527 = scalar_lea.vmem %s526, 4294967292
  %v528 = vpack.c.bf16 %v524, %v47
  %529 = vst [vmem:[%s527] sm:$0xff] %v528
  %s530 = scalar_lea.vmem %s0, 1228
  %v531 = vld [vmem:[%s530] sm:$0xf]
  %v532 = vunpack.c.l.bf16 %v531
  %v533 = vunpack.c.h.bf16 %v531
  %s534 = scalar_lea.vmem %s1, 748
  %s535 = scalar_lea.vmem %s534, 4294967292
  %v536 = vpack.c.bf16 %v532, %v52
  %537 = vst [vmem:[%s535] sm:$0xff] %v536
  %s538 = scalar_lea.vmem %s0, 508
  %v539 = vld [vmem:[%s538] sm:$0xf]
  %v540 = vunpack.c.l.bf16 %v539
  %v541 = vunpack.c.h.bf16 %v539
  %s542 = scalar_lea.vmem %s1, 1468
  %s543 = scalar_lea.vmem %s542, 4294967292
  %v544 = vpack.c.bf16 %v540, %v57
  %545 = vst [vmem:[%s543] sm:$0xff] %v544
  %s546 = scalar_lea.vmem %s0, 1708
  %v547 = vld [vmem:[%s546] sm:$0xf]
  %v548 = vunpack.c.l.bf16 %v547
  %v549 = vunpack.c.h.bf16 %v547
  %s550 = scalar_lea.vmem %s1, 268
  %s551 = scalar_lea.vmem %s550, 4294967292
  %v552 = vpack.c.bf16 %v548, %v62
  %553 = vst [vmem:[%s551] sm:$0xff] %v552
  %s554 = scalar_lea.vmem %s0, 988
  %v555 = vld [vmem:[%s554] sm:$0xf]
  %v556 = vunpack.c.l.bf16 %v555
  %v557 = vunpack.c.h.bf16 %v555
  %s558 = scalar_lea.vmem %s1, 988
  %s559 = scalar_lea.vmem %s558, 4294967292
  %v560 = vpack.c.bf16 %v556, %v67
  %561 = vst [vmem:[%s559] sm:$0xff] %v560
  %s562 = scalar_lea.vmem %s0, 268
  %v563 = vld [vmem:[%s562] sm:$0xf]
  %v564 = vunpack.c.l.bf16 %v563
  %v565 = vunpack.c.h.bf16 %v563
  %s566 = scalar_lea.vmem %s1, 1708
  %s567 = scalar_lea.vmem %s566, 4294967292
  %v568 = vpack.c.bf16 %v564, %v72
  %569 = vst [vmem:[%s567] sm:$0xff] %v568
  %s570 = scalar_lea.vmem %s0, 1468
  %v571 = vld [vmem:[%s570] sm:$0xf]
  %v572 = vunpack.c.l.bf16 %v571
  %v573 = vunpack.c.h.bf16 %v571
  %s574 = scalar_lea.vmem %s1, 508
  %s575 = scalar_lea.vmem %s574, 4294967292
  %v576 = vpack.c.bf16 %v572, %v77
  %577 = vst [vmem:[%s575] sm:$0xff] %v576
  %s578 = scalar_lea.vmem %s0, 748
  %v579 = vld [vmem:[%s578] sm:$0xf]
  %v580 = vunpack.c.l.bf16 %v579
  %v581 = vunpack.c.h.bf16 %v579
  %s582 = scalar_lea.vmem %s1, 1228
  %s583 = scalar_lea.vmem %s582, 4294967292
  %v584 = vpack.c.bf16 %v580, %v82
  %585 = vst [vmem:[%s583] sm:$0xff] %v584
  %s586 = scalar_lea.vmem %s0, 28
  %v587 = vld [vmem:[%s586] sm:$0xf]
  %v588 = vunpack.c.l.bf16 %v587
  %v589 = vunpack.c.h.bf16 %v587
  %s590 = scalar_lea.vmem %s1, 1948
  %s591 = scalar_lea.vmem %s590, 4294967292
  %v592 = vpack.c.bf16 %v588, %v87
  %593 = vst [vmem:[%s591] sm:$0xff] %v592
  %s594 = scalar_lea.vmem %s0, 1972
  %v595 = vld [vmem:[%s594] sm:$0xf]
  %v596 = vunpack.c.l.bf16 %v595
  %v597 = vunpack.c.h.bf16 %v595
  %s598 = scalar_lea.vmem %s1, 52
  %s599 = scalar_lea.vmem %s598, 4294967292
  %v600 = vpack.c.bf16 %v596, %v92
  %601 = vst [vmem:[%s599] sm:$0xff] %v600
  %s602 = scalar_lea.vmem %s0, 1252
  %v603 = vld [vmem:[%s602] sm:$0xf]
  %v604 = vunpack.c.l.bf16 %v603
  %v605 = vunpack.c.h.bf16 %v603
  %s606 = scalar_lea.vmem %s1, 772
  %s607 = scalar_lea.vmem %s606, 4294967292
  %v608 = vpack.c.bf16 %v604, %v97
  %609 = vst [vmem:[%s607] sm:$0xff] %v608
  %s610 = scalar_lea.vmem %s0, 532
  %v611 = vld [vmem:[%s610] sm:$0xf]
  %v612 = vunpack.c.l.bf16 %v611
  %v613 = vunpack.c.h.bf16 %v611
  %s614 = scalar_lea.vmem %s1, 1492
  %s615 = scalar_lea.vmem %s614, 4294967292
  %v616 = vpack.c.bf16 %v612, %v102
  %617 = vst [vmem:[%s615] sm:$0xff] %v616
  %s618 = scalar_lea.vmem %s0, 1732
  %v619 = vld [vmem:[%s618] sm:$0xf]
  %v620 = vunpack.c.l.bf16 %v619
  %v621 = vunpack.c.h.bf16 %v619
  %s622 = scalar_lea.vmem %s1, 292
  %s623 = scalar_lea.vmem %s622, 4294967292
  %v624 = vpack.c.bf16 %v620, %v107
  %625 = vst [vmem:[%s623] sm:$0xff] %v624
  %s626 = scalar_lea.vmem %s0, 1012
  %v627 = vld [vmem:[%s626] sm:$0xf]
  %v628 = vunpack.c.l.bf16 %v627
  %v629 = vunpack.c.h.bf16 %v627
  %s630 = scalar_lea.vmem %s1, 1012
  %s631 = scalar_lea.vmem %s630, 4294967292
  %v632 = vpack.c.bf16 %v628, %v112
  %633 = vst [vmem:[%s631] sm:$0xff] %v632
  %s634 = scalar_lea.vmem %s0, 292
  %v635 = vld [vmem:[%s634] sm:$0xf]
  %v636 = vunpack.c.l.bf16 %v635
  %v637 = vunpack.c.h.bf16 %v635
  %s638 = scalar_lea.vmem %s1, 1732
  %s639 = scalar_lea.vmem %s638, 4294967292
  %v640 = vpack.c.bf16 %v636, %v117
  %641 = vst [vmem:[%s639] sm:$0xff] %v640
  %s642 = scalar_lea.vmem %s0, 1492
  %v643 = vld [vmem:[%s642] sm:$0xf]
  %v644 = vunpack.c.l.bf16 %v643
  %v645 = vunpack.c.h.bf16 %v643
  %s646 = scalar_lea.vmem %s1, 532
  %s647 = scalar_lea.vmem %s646, 4294967292
  %v648 = vpack.c.bf16 %v644, %v122
  %649 = vst [vmem:[%s647] sm:$0xff] %v648
  %s650 = scalar_lea.vmem %s0, 772
  %v651 = vld [vmem:[%s650] sm:$0xf]
  %v652 = vunpack.c.l.bf16 %v651
  %v653 = vunpack.c.h.bf16 %v651
  %s654 = scalar_lea.vmem %s1, 1252
  %s655 = scalar_lea.vmem %s654, 4294967292
  %v656 = vpack.c.bf16 %v652, %v127
  %657 = vst [vmem:[%s655] sm:$0xff] %v656
  %s658 = scalar_lea.vmem %s0, 52
  %v659 = vld [vmem:[%s658] sm:$0xf]
  %v660 = vunpack.c.l.bf16 %v659
  %v661 = vunpack.c.h.bf16 %v659
  %s662 = scalar_lea.vmem %s1, 1972
  %s663 = scalar_lea.vmem %s662, 4294967292
  %v664 = vpack.c.bf16 %v660, %v132
  %665 = vst [vmem:[%s663] sm:$0xff] %v664
  %s666 = scalar_lea.vmem %s0, 1996
  %v667 = vld [vmem:[%s666] sm:$0xf]
  %v668 = vunpack.c.l.bf16 %v667
  %v669 = vunpack.c.h.bf16 %v667
  %s670 = scalar_lea.vmem %s1, 76
  %s671 = scalar_lea.vmem %s670, 4294967292
  %v672 = vpack.c.bf16 %v668, %v137
  %673 = vst [vmem:[%s671] sm:$0xff] %v672
  %s674 = scalar_lea.vmem %s0, 1276
  %v675 = vld [vmem:[%s674] sm:$0xf]
  %v676 = vunpack.c.l.bf16 %v675
  %v677 = vunpack.c.h.bf16 %v675
  %s678 = scalar_lea.vmem %s1, 796
  %s679 = scalar_lea.vmem %s678, 4294967292
  %v680 = vpack.c.bf16 %v676, %v142
  %681 = vst [vmem:[%s679] sm:$0xff] %v680
  %s682 = scalar_lea.vmem %s0, 556
  %v683 = vld [vmem:[%s682] sm:$0xf]
  %v684 = vunpack.c.l.bf16 %v683
  %v685 = vunpack.c.h.bf16 %v683
  %s686 = scalar_lea.vmem %s1, 1516
  %s687 = scalar_lea.vmem %s686, 4294967292
  %v688 = vpack.c.bf16 %v684, %v147
  %689 = vst [vmem:[%s687] sm:$0xff] %v688
  %s690 = scalar_lea.vmem %s0, 1756
  %v691 = vld [vmem:[%s690] sm:$0xf]
  %v692 = vunpack.c.l.bf16 %v691
  %v693 = vunpack.c.h.bf16 %v691
  %s694 = scalar_lea.vmem %s1, 316
  %s695 = scalar_lea.vmem %s694, 4294967292
  %v696 = vpack.c.bf16 %v692, %v152
  %697 = vst [vmem:[%s695] sm:$0xff] %v696
  %s698 = scalar_lea.vmem %s0, 1036
  %v699 = vld [vmem:[%s698] sm:$0xf]
  %v700 = vunpack.c.l.bf16 %v699
  %v701 = vunpack.c.h.bf16 %v699
  %s702 = scalar_lea.vmem %s1, 1036
  %s703 = scalar_lea.vmem %s702, 4294967292
  %v704 = vpack.c.bf16 %v700, %v157
  %705 = vst [vmem:[%s703] sm:$0xff] %v704
  %s706 = scalar_lea.vmem %s0, 316
  %v707 = vld [vmem:[%s706] sm:$0xf]
  %v708 = vunpack.c.l.bf16 %v707
  %v709 = vunpack.c.h.bf16 %v707
  %s710 = scalar_lea.vmem %s1, 1756
  %s711 = scalar_lea.vmem %s710, 4294967292
  %v712 = vpack.c.bf16 %v708, %v162
  %713 = vst [vmem:[%s711] sm:$0xff] %v712
  %s714 = scalar_lea.vmem %s0, 1516
  %v715 = vld [vmem:[%s714] sm:$0xf]
  %v716 = vunpack.c.l.bf16 %v715
  %v717 = vunpack.c.h.bf16 %v715
  %s718 = scalar_lea.vmem %s1, 556
  %s719 = scalar_lea.vmem %s718, 4294967292
  %v720 = vpack.c.bf16 %v716, %v167
  %721 = vst [vmem:[%s719] sm:$0xff] %v720
  %s722 = scalar_lea.vmem %s0, 796
  %v723 = vld [vmem:[%s722] sm:$0xf]
  %v724 = vunpack.c.l.bf16 %v723
  %v725 = vunpack.c.h.bf16 %v723
  %s726 = scalar_lea.vmem %s1, 1276
  %s727 = scalar_lea.vmem %s726, 4294967292
  %v728 = vpack.c.bf16 %v724, %v172
  %729 = vst [vmem:[%s727] sm:$0xff] %v728
  %s730 = scalar_lea.vmem %s0, 76
  %v731 = vld [vmem:[%s730] sm:$0xf]
  %v732 = vunpack.c.l.bf16 %v731
  %v733 = vunpack.c.h.bf16 %v731
  %s734 = scalar_lea.vmem %s1, 1996
  %s735 = scalar_lea.vmem %s734, 4294967292
  %v736 = vpack.c.bf16 %v732, %v177
  %737 = vst [vmem:[%s735] sm:$0xff] %v736
  %s738 = scalar_lea.vmem %s0, 2020
  %v739 = vld [vmem:[%s738] sm:$0xf]
  %v740 = vunpack.c.l.bf16 %v739
  %v741 = vunpack.c.h.bf16 %v739
  %s742 = scalar_lea.vmem %s1, 100
  %s743 = scalar_lea.vmem %s742, 4294967292
  %v744 = vpack.c.bf16 %v740, %v182
  %745 = vst [vmem:[%s743] sm:$0xff] %v744
  %s746 = scalar_lea.vmem %s0, 1300
  %v747 = vld [vmem:[%s746] sm:$0xf]
  %v748 = vunpack.c.l.bf16 %v747
  %v749 = vunpack.c.h.bf16 %v747
  %s750 = scalar_lea.vmem %s1, 820
  %s751 = scalar_lea.vmem %s750, 4294967292
  %v752 = vpack.c.bf16 %v748, %v187
  %753 = vst [vmem:[%s751] sm:$0xff] %v752
  %s754 = scalar_lea.vmem %s0, 580
  %v755 = vld [vmem:[%s754] sm:$0xf]
  %v756 = vunpack.c.l.bf16 %v755
  %v757 = vunpack.c.h.bf16 %v755
  %s758 = scalar_lea.vmem %s1, 1540
  %s759 = scalar_lea.vmem %s758, 4294967292
  %v760 = vpack.c.bf16 %v756, %v192
  %761 = vst [vmem:[%s759] sm:$0xff] %v760
  %s762 = scalar_lea.vmem %s0, 1780
  %v763 = vld [vmem:[%s762] sm:$0xf]
  %v764 = vunpack.c.l.bf16 %v763
  %v765 = vunpack.c.h.bf16 %v763
  %s766 = scalar_lea.vmem %s1, 340
  %s767 = scalar_lea.vmem %s766, 4294967292
  %v768 = vpack.c.bf16 %v764, %v197
  %769 = vst [vmem:[%s767] sm:$0xff] %v768
  %s770 = scalar_lea.vmem %s0, 1060
  %v771 = vld [vmem:[%s770] sm:$0xf]
  %v772 = vunpack.c.l.bf16 %v771
  %v773 = vunpack.c.h.bf16 %v771
  %s774 = scalar_lea.vmem %s1, 1060
  %s775 = scalar_lea.vmem %s774, 4294967292
  %v776 = vpack.c.bf16 %v772, %v202
  %777 = vst [vmem:[%s775] sm:$0xff] %v776
  %s778 = scalar_lea.vmem %s0, 340
  %v779 = vld [vmem:[%s778] sm:$0xf]
  %v780 = vunpack.c.l.bf16 %v779
  %v781 = vunpack.c.h.bf16 %v779
  %s782 = scalar_lea.vmem %s1, 1780
  %s783 = scalar_lea.vmem %s782, 4294967292
  %v784 = vpack.c.bf16 %v780, %v207
  %785 = vst [vmem:[%s783] sm:$0xff] %v784
  %s786 = scalar_lea.vmem %s0, 1540
  %v787 = vld [vmem:[%s786] sm:$0xf]
  %v788 = vunpack.c.l.bf16 %v787
  %v789 = vunpack.c.h.bf16 %v787
  %s790 = scalar_lea.vmem %s1, 580
  %s791 = scalar_lea.vmem %s790, 4294967292
  %v792 = vpack.c.bf16 %v788, %v212
  %793 = vst [vmem:[%s791] sm:$0xff] %v792
  %s794 = scalar_lea.vmem %s0, 820
  %v795 = vld [vmem:[%s794] sm:$0xf]
  %v796 = vunpack.c.l.bf16 %v795
  %v797 = vunpack.c.h.bf16 %v795
  %s798 = scalar_lea.vmem %s1, 1300
  %s799 = scalar_lea.vmem %s798, 4294967292
  %v800 = vpack.c.bf16 %v796, %v217
  %801 = vst [vmem:[%s799] sm:$0xff] %v800
  %s802 = scalar_lea.vmem %s0, 100
  %v803 = vld [vmem:[%s802] sm:$0xf]
  %v804 = vunpack.c.l.bf16 %v803
  %v805 = vunpack.c.h.bf16 %v803
  %s806 = scalar_lea.vmem %s1, 2020
  %s807 = scalar_lea.vmem %s806, 4294967292
  %v808 = vpack.c.bf16 %v804, %v222
  %809 = vst [vmem:[%s807] sm:$0xff] %v808
  %s810 = scalar_lea.vmem %s0, 2044
  %v811 = vld [vmem:[%s810] sm:$0xf]
  %v812 = vunpack.c.l.bf16 %v811
  %v813 = vunpack.c.h.bf16 %v811
  %s814 = scalar_lea.vmem %s1, 124
  %s815 = scalar_lea.vmem %s814, 4294967292
  %v816 = vpack.c.bf16 %v812, %v227
  %817 = vst [vmem:[%s815] sm:$0xff] %v816
  %s818 = scalar_lea.vmem %s0, 1324
  %v819 = vld [vmem:[%s818] sm:$0xf]
  %v820 = vunpack.c.l.bf16 %v819
  %v821 = vunpack.c.h.bf16 %v819
  %s822 = scalar_lea.vmem %s1, 844
  %s823 = scalar_lea.vmem %s822, 4294967292
  %v824 = vpack.c.bf16 %v820, %v232
  %825 = vst [vmem:[%s823] sm:$0xff] %v824
  %s826 = scalar_lea.vmem %s0, 604
  %v827 = vld [vmem:[%s826] sm:$0xf]
  %v828 = vunpack.c.l.bf16 %v827
  %v829 = vunpack.c.h.bf16 %v827
  %s830 = scalar_lea.vmem %s1, 1564
  %s831 = scalar_lea.vmem %s830, 4294967292
  %v832 = vpack.c.bf16 %v828, %v237
  %833 = vst [vmem:[%s831] sm:$0xff] %v832
  %s834 = scalar_lea.vmem %s0, 1804
  %v835 = vld [vmem:[%s834] sm:$0xf]
  %v836 = vunpack.c.l.bf16 %v835
  %v837 = vunpack.c.h.bf16 %v835
  %s838 = scalar_lea.vmem %s1, 364
  %s839 = scalar_lea.vmem %s838, 4294967292
  %v840 = vpack.c.bf16 %v836, %v242
  %841 = vst [vmem:[%s839] sm:$0xff] %v840
  %s842 = scalar_lea.vmem %s0, 1084
  %v843 = vld [vmem:[%s842] sm:$0xf]
  %v844 = vunpack.c.l.bf16 %v843
  %v845 = vunpack.c.h.bf16 %v843
  %s846 = scalar_lea.vmem %s1, 1084
  %s847 = scalar_lea.vmem %s846, 4294967292
  %v848 = vpack.c.bf16 %v844, %v247
  %849 = vst [vmem:[%s847] sm:$0xff] %v848
  %s850 = scalar_lea.vmem %s0, 364
  %v851 = vld [vmem:[%s850] sm:$0xf]
  %v852 = vunpack.c.l.bf16 %v851
  %v853 = vunpack.c.h.bf16 %v851
  %s854 = scalar_lea.vmem %s1, 1804
  %s855 = scalar_lea.vmem %s854, 4294967292
  %v856 = vpack.c.bf16 %v852, %v252
  %857 = vst [vmem:[%s855] sm:$0xff] %v856
  %s858 = scalar_lea.vmem %s0, 1564
  %v859 = vld [vmem:[%s858] sm:$0xf]
  %v860 = vunpack.c.l.bf16 %v859
  %v861 = vunpack.c.h.bf16 %v859
  %s862 = scalar_lea.vmem %s1, 604
  %s863 = scalar_lea.vmem %s862, 4294967292
  %v864 = vpack.c.bf16 %v860, %v257
  %865 = vst [vmem:[%s863] sm:$0xff] %v864
  %s866 = scalar_lea.vmem %s0, 844
  %v867 = vld [vmem:[%s866] sm:$0xf]
  %v868 = vunpack.c.l.bf16 %v867
  %v869 = vunpack.c.h.bf16 %v867
  %s870 = scalar_lea.vmem %s1, 1324
  %s871 = scalar_lea.vmem %s870, 4294967292
  %v872 = vpack.c.bf16 %v868, %v262
  %873 = vst [vmem:[%s871] sm:$0xff] %v872
  %s874 = scalar_lea.vmem %s0, 124
  %v875 = vld [vmem:[%s874] sm:$0xf]
  %v876 = vunpack.c.l.bf16 %v875
  %v877 = vunpack.c.h.bf16 %v875
  %s878 = scalar_lea.vmem %s1, 2044
  %s879 = scalar_lea.vmem %s878, 4294967292
  %v880 = vpack.c.bf16 %v876, %v267
  %881 = vst [vmem:[%s879] sm:$0xff] %v880
  %s882 = scalar_lea.vmem %s0, 2068
  %v883 = vld [vmem:[%s882] sm:$0xf]
  %v884 = vunpack.c.l.bf16 %v883
  %v885 = vunpack.c.h.bf16 %v883
  %s886 = scalar_lea.vmem %s1, 148
  %s887 = scalar_lea.vmem %s886, 4294967292
  %v888 = vpack.c.bf16 %v884, %v272
  %889 = vst [vmem:[%s887] sm:$0xff] %v888
  %s890 = scalar_lea.vmem %s0, 1348
  %v891 = vld [vmem:[%s890] sm:$0xf]
  %v892 = vunpack.c.l.bf16 %v891
  %v893 = vunpack.c.h.bf16 %v891
  %s894 = scalar_lea.vmem %s1, 868
  %s895 = scalar_lea.vmem %s894, 4294967292
  %v896 = vpack.c.bf16 %v892, %v277
  %897 = vst [vmem:[%s895] sm:$0xff] %v896
  %s898 = scalar_lea.vmem %s0, 628
  %v899 = vld [vmem:[%s898] sm:$0xf]
  %v900 = vunpack.c.l.bf16 %v899
  %v901 = vunpack.c.h.bf16 %v899
  %s902 = scalar_lea.vmem %s1, 1588
  %s903 = scalar_lea.vmem %s902, 4294967292
  %v904 = vpack.c.bf16 %v900, %v282
  %905 = vst [vmem:[%s903] sm:$0xff] %v904
  %s906 = scalar_lea.vmem %s0, 1828
  %v907 = vld [vmem:[%s906] sm:$0xf]
  %v908 = vunpack.c.l.bf16 %v907
  %v909 = vunpack.c.h.bf16 %v907
  %s910 = scalar_lea.vmem %s1, 388
  %s911 = scalar_lea.vmem %s910, 4294967292
  %v912 = vpack.c.bf16 %v908, %v287
  %913 = vst [vmem:[%s911] sm:$0xff] %v912
  %s914 = scalar_lea.vmem %s0, 1108
  %v915 = vld [vmem:[%s914] sm:$0xf]
  %v916 = vunpack.c.l.bf16 %v915
  %v917 = vunpack.c.h.bf16 %v915
  %s918 = scalar_lea.vmem %s1, 1108
  %s919 = scalar_lea.vmem %s918, 4294967292
  %v920 = vpack.c.bf16 %v916, %v292
  %921 = vst [vmem:[%s919] sm:$0xff] %v920
  %s922 = scalar_lea.vmem %s0, 388
  %v923 = vld [vmem:[%s922] sm:$0xf]
  %v924 = vunpack.c.l.bf16 %v923
  %v925 = vunpack.c.h.bf16 %v923
  %s926 = scalar_lea.vmem %s1, 1828
  %s927 = scalar_lea.vmem %s926, 4294967292
  %v928 = vpack.c.bf16 %v924, %v297
  %929 = vst [vmem:[%s927] sm:$0xff] %v928
  %s930 = scalar_lea.vmem %s0, 1588
  %v931 = vld [vmem:[%s930] sm:$0xf]
  %v932 = vunpack.c.l.bf16 %v931
  %v933 = vunpack.c.h.bf16 %v931
  %s934 = scalar_lea.vmem %s1, 628
  %s935 = scalar_lea.vmem %s934, 4294967292
  %v936 = vpack.c.bf16 %v932, %v302
  %937 = vst [vmem:[%s935] sm:$0xff] %v936
  %s938 = scalar_lea.vmem %s0, 868
  %v939 = vld [vmem:[%s938] sm:$0xf]
  %v940 = vunpack.c.l.bf16 %v939
  %v941 = vunpack.c.h.bf16 %v939
  %s942 = scalar_lea.vmem %s1, 1348
  %s943 = scalar_lea.vmem %s942, 4294967292
  %v944 = vpack.c.bf16 %v940, %v307
  %945 = vst [vmem:[%s943] sm:$0xff] %v944
  %s946 = scalar_lea.vmem %s0, 148
  %v947 = vld [vmem:[%s946] sm:$0xf]
  %v948 = vunpack.c.l.bf16 %v947
  %v949 = vunpack.c.h.bf16 %v947
  %s950 = scalar_lea.vmem %s1, 2068
  %s951 = scalar_lea.vmem %s950, 4294967292
  %v952 = vpack.c.bf16 %v948, %v312
  %953 = vst [vmem:[%s951] sm:$0xff] %v952
  %s954 = scalar_lea.vmem %s0, 2092
  %v955 = vld [vmem:[%s954] sm:$0xf]
  %v956 = vunpack.c.l.bf16 %v955
  %v957 = vunpack.c.h.bf16 %v955
  %s958 = scalar_lea.vmem %s1, 172
  %s959 = scalar_lea.vmem %s958, 4294967292
  %v960 = vpack.c.bf16 %v956, %v317
  %961 = vst [vmem:[%s959] sm:$0xff] %v960
  %s962 = scalar_lea.vmem %s0, 1372
  %v963 = vld [vmem:[%s962] sm:$0xf]
  %v964 = vunpack.c.l.bf16 %v963
  %v965 = vunpack.c.h.bf16 %v963
  %s966 = scalar_lea.vmem %s1, 892
  %s967 = scalar_lea.vmem %s966, 4294967292
  %v968 = vpack.c.bf16 %v964, %v322
  %969 = vst [vmem:[%s967] sm:$0xff] %v968
  %s970 = scalar_lea.vmem %s0, 652
  %v971 = vld [vmem:[%s970] sm:$0xf]
  %v972 = vunpack.c.l.bf16 %v971
  %v973 = vunpack.c.h.bf16 %v971
  %s974 = scalar_lea.vmem %s1, 1612
  %s975 = scalar_lea.vmem %s974, 4294967292
  %v976 = vpack.c.bf16 %v972, %v327
  %977 = vst [vmem:[%s975] sm:$0xff] %v976
  %s978 = scalar_lea.vmem %s0, 1852
  %v979 = vld [vmem:[%s978] sm:$0xf]
  %v980 = vunpack.c.l.bf16 %v979
  %v981 = vunpack.c.h.bf16 %v979
  %s982 = scalar_lea.vmem %s1, 412
  %s983 = scalar_lea.vmem %s982, 4294967292
  %v984 = vpack.c.bf16 %v980, %v332
  %985 = vst [vmem:[%s983] sm:$0xff] %v984
  %s986 = scalar_lea.vmem %s0, 1132
  %v987 = vld [vmem:[%s986] sm:$0xf]
  %v988 = vunpack.c.l.bf16 %v987
  %v989 = vunpack.c.h.bf16 %v987
  %s990 = scalar_lea.vmem %s1, 1132
  %s991 = scalar_lea.vmem %s990, 4294967292
  %v992 = vpack.c.bf16 %v988, %v337
  %993 = vst [vmem:[%s991] sm:$0xff] %v992
  %s994 = scalar_lea.vmem %s0, 412
  %v995 = vld [vmem:[%s994] sm:$0xf]
  %v996 = vunpack.c.l.bf16 %v995
  %v997 = vunpack.c.h.bf16 %v995
  %s998 = scalar_lea.vmem %s1, 1852
  %s999 = scalar_lea.vmem %s998, 4294967292
  %v1000 = vpack.c.bf16 %v996, %v342
  %1001 = vst [vmem:[%s999] sm:$0xff] %v1000
  %s1002 = scalar_lea.vmem %s0, 1612
  %v1003 = vld [vmem:[%s1002] sm:$0xf]
  %v1004 = vunpack.c.l.bf16 %v1003
  %v1005 = vunpack.c.h.bf16 %v1003
  %s1006 = scalar_lea.vmem %s1, 652
  %s1007 = scalar_lea.vmem %s1006, 4294967292
  %v1008 = vpack.c.bf16 %v1004, %v347
  %1009 = vst [vmem:[%s1007] sm:$0xff] %v1008
  %s1010 = scalar_lea.vmem %s0, 892
  %v1011 = vld [vmem:[%s1010] sm:$0xf]
  %v1012 = vunpack.c.l.bf16 %v1011
  %v1013 = vunpack.c.h.bf16 %v1011
  %s1014 = scalar_lea.vmem %s1, 1372
  %s1015 = scalar_lea.vmem %s1014, 4294967292
  %v1016 = vpack.c.bf16 %v1012, %v352
  %1017 = vst [vmem:[%s1015] sm:$0xff] %v1016
  %s1018 = scalar_lea.vmem %s0, 172
  %v1019 = vld [vmem:[%s1018] sm:$0xf]
  %v1020 = vunpack.c.l.bf16 %v1019
  %v1021 = vunpack.c.h.bf16 %v1019
  %s1022 = scalar_lea.vmem %s1, 2092
  %s1023 = scalar_lea.vmem %s1022, 4294967292
  %v1024 = vpack.c.bf16 %v1020, %v357
  %1025 = vst [vmem:[%s1023] sm:$0xff] %v1024
  %s1026 = scalar_lea.vmem %s0, 2116
  %v1027 = vld [vmem:[%s1026] sm:$0xf]
  %v1028 = vunpack.c.l.bf16 %v1027
  %v1029 = vunpack.c.h.bf16 %v1027
  %s1030 = scalar_lea.vmem %s1, 196
  %s1031 = scalar_lea.vmem %s1030, 4294967292
  %v1032 = vpack.c.bf16 %v1028, %v362
  %1033 = vst [vmem:[%s1031] sm:$0xff] %v1032
  %s1034 = scalar_lea.vmem %s0, 1396
  %v1035 = vld [vmem:[%s1034] sm:$0xf]
  %v1036 = vunpack.c.l.bf16 %v1035
  %v1037 = vunpack.c.h.bf16 %v1035
  %s1038 = scalar_lea.vmem %s1, 916
  %s1039 = scalar_lea.vmem %s1038, 4294967292
  %v1040 = vpack.c.bf16 %v1036, %v367
  %1041 = vst [vmem:[%s1039] sm:$0xff] %v1040
  %s1042 = scalar_lea.vmem %s0, 676
  %v1043 = vld [vmem:[%s1042] sm:$0xf]
  %v1044 = vunpack.c.l.bf16 %v1043
  %v1045 = vunpack.c.h.bf16 %v1043
  %s1046 = scalar_lea.vmem %s1, 1636
  %s1047 = scalar_lea.vmem %s1046, 4294967292
  %v1048 = vpack.c.bf16 %v1044, %v372
  %1049 = vst [vmem:[%s1047] sm:$0xff] %v1048
  %s1050 = scalar_lea.vmem %s0, 1876
  %v1051 = vld [vmem:[%s1050] sm:$0xf]
  %v1052 = vunpack.c.l.bf16 %v1051
  %v1053 = vunpack.c.h.bf16 %v1051
  %s1054 = scalar_lea.vmem %s1, 436
  %s1055 = scalar_lea.vmem %s1054, 4294967292
  %v1056 = vpack.c.bf16 %v1052, %v377
  %1057 = vst [vmem:[%s1055] sm:$0xff] %v1056
  %s1058 = scalar_lea.vmem %s0, 1156
  %v1059 = vld [vmem:[%s1058] sm:$0xf]
  %v1060 = vunpack.c.l.bf16 %v1059
  %v1061 = vunpack.c.h.bf16 %v1059
  %s1062 = scalar_lea.vmem %s1, 1156
  %s1063 = scalar_lea.vmem %s1062, 4294967292
  %v1064 = vpack.c.bf16 %v1060, %v382
  %1065 = vst [vmem:[%s1063] sm:$0xff] %v1064
  %s1066 = scalar_lea.vmem %s0, 436
  %v1067 = vld [vmem:[%s1066] sm:$0xf]
  %v1068 = vunpack.c.l.bf16 %v1067
  %v1069 = vunpack.c.h.bf16 %v1067
  %s1070 = scalar_lea.vmem %s1, 1876
  %s1071 = scalar_lea.vmem %s1070, 4294967292
  %v1072 = vpack.c.bf16 %v1068, %v387
  %1073 = vst [vmem:[%s1071] sm:$0xff] %v1072
  %s1074 = scalar_lea.vmem %s0, 1636
  %v1075 = vld [vmem:[%s1074] sm:$0xf]
  %v1076 = vunpack.c.l.bf16 %v1075
  %v1077 = vunpack.c.h.bf16 %v1075
  %s1078 = scalar_lea.vmem %s1, 676
  %s1079 = scalar_lea.vmem %s1078, 4294967292
  %v1080 = vpack.c.bf16 %v1076, %v392
  %1081 = vst [vmem:[%s1079] sm:$0xff] %v1080
  %s1082 = scalar_lea.vmem %s0, 916
  %v1083 = vld [vmem:[%s1082] sm:$0xf]
  %v1084 = vunpack.c.l.bf16 %v1083
  %v1085 = vunpack.c.h.bf16 %v1083
  %s1086 = scalar_lea.vmem %s1, 1396
  %s1087 = scalar_lea.vmem %s1086, 4294967292
  %v1088 = vpack.c.bf16 %v1084, %v397
  %1089 = vst [vmem:[%s1087] sm:$0xff] %v1088
  %s1090 = scalar_lea.vmem %s0, 196
  %v1091 = vld [vmem:[%s1090] sm:$0xf]
  %v1092 = vunpack.c.l.bf16 %v1091
  %v1093 = vunpack.c.h.bf16 %v1091
  %s1094 = scalar_lea.vmem %s1, 2116
  %s1095 = scalar_lea.vmem %s1094, 4294967292
  %v1096 = vpack.c.bf16 %v1092, %v402
  %1097 = vst [vmem:[%s1095] sm:$0xff] %v1096
  %s1098 = scalar_lea.vmem %s0, 2140
  %v1099 = vld [vmem:[%s1098] sm:$0xf]
  %v1100 = vunpack.c.l.bf16 %v1099
  %v1101 = vunpack.c.h.bf16 %v1099
  %s1102 = scalar_lea.vmem %s1, 220
  %s1103 = scalar_lea.vmem %s1102, 4294967292
  %v1104 = vpack.c.bf16 %v1100, %v407
  %1105 = vst [vmem:[%s1103] sm:$0xff] %v1104
  %s1106 = scalar_lea.vmem %s0, 1420
  %v1107 = vld [vmem:[%s1106] sm:$0xf]
  %v1108 = vunpack.c.l.bf16 %v1107
  %v1109 = vunpack.c.h.bf16 %v1107
  %s1110 = scalar_lea.vmem %s1, 940
  %s1111 = scalar_lea.vmem %s1110, 4294967292
  %v1112 = vpack.c.bf16 %v1108, %v412
  %1113 = vst [vmem:[%s1111] sm:$0xff] %v1112
  %s1114 = scalar_lea.vmem %s0, 700
  %v1115 = vld [vmem:[%s1114] sm:$0xf]
  %v1116 = vunpack.c.l.bf16 %v1115
  %v1117 = vunpack.c.h.bf16 %v1115
  %s1118 = scalar_lea.vmem %s1, 1660
  %s1119 = scalar_lea.vmem %s1118, 4294967292
  %v1120 = vpack.c.bf16 %v1116, %v417
  %1121 = vst [vmem:[%s1119] sm:$0xff] %v1120
  %s1122 = scalar_lea.vmem %s0, 1900
  %v1123 = vld [vmem:[%s1122] sm:$0xf]
  %v1124 = vunpack.c.l.bf16 %v1123
  %v1125 = vunpack.c.h.bf16 %v1123
  %s1126 = scalar_lea.vmem %s1, 460
  %s1127 = scalar_lea.vmem %s1126, 4294967292
  %v1128 = vpack.c.bf16 %v1124, %v422
  %1129 = vst [vmem:[%s1127] sm:$0xff] %v1128
  %s1130 = scalar_lea.vmem %s0, 1180
  %v1131 = vld [vmem:[%s1130] sm:$0xf]
  %v1132 = vunpack.c.l.bf16 %v1131
  %v1133 = vunpack.c.h.bf16 %v1131
  %s1134 = scalar_lea.vmem %s1, 1180
  %s1135 = scalar_lea.vmem %s1134, 4294967292
  %v1136 = vpack.c.bf16 %v1132, %v427
  %1137 = vst [vmem:[%s1135] sm:$0xff] %v1136
  %s1138 = scalar_lea.vmem %s0, 460
  %v1139 = vld [vmem:[%s1138] sm:$0xf]
  %v1140 = vunpack.c.l.bf16 %v1139
  %v1141 = vunpack.c.h.bf16 %v1139
  %s1142 = scalar_lea.vmem %s1, 1900
  %s1143 = scalar_lea.vmem %s1142, 4294967292
  %v1144 = vpack.c.bf16 %v1140, %v432
  %1145 = vst [vmem:[%s1143] sm:$0xff] %v1144
  %s1146 = scalar_lea.vmem %s0, 1660
  %v1147 = vld [vmem:[%s1146] sm:$0xf]
  %v1148 = vunpack.c.l.bf16 %v1147
  %v1149 = vunpack.c.h.bf16 %v1147
  %s1150 = scalar_lea.vmem %s1, 700
  %s1151 = scalar_lea.vmem %s1150, 4294967292
  %v1152 = vpack.c.bf16 %v1148, %v437
  %1153 = vst [vmem:[%s1151] sm:$0xff] %v1152
  %s1154 = scalar_lea.vmem %s0, 940
  %v1155 = vld [vmem:[%s1154] sm:$0xf]
  %v1156 = vunpack.c.l.bf16 %v1155
  %v1157 = vunpack.c.h.bf16 %v1155
  %s1158 = scalar_lea.vmem %s1, 1420
  %s1159 = scalar_lea.vmem %s1158, 4294967292
  %v1160 = vpack.c.bf16 %v1156, %v442
  %1161 = vst [vmem:[%s1159] sm:$0xff] %v1160
  %s1162 = scalar_lea.vmem %s0, 220
  %v1163 = vld [vmem:[%s1162] sm:$0xf]
  %v1164 = vunpack.c.l.bf16 %v1163
  %v1165 = vunpack.c.h.bf16 %v1163
  %s1166 = scalar_lea.vmem %s1, 2140
  %s1167 = scalar_lea.vmem %s1166, 4294967292
  %v1168 = vpack.c.bf16 %v1164, %v447
  %1169 = vst [vmem:[%s1167] sm:$0xff] %v1168
  %s1170 = scalar_lea.vmem %s0, 1928
  %v1171 = vld [vmem:[%s1170] sm:$0xf]
  %v1172 = vunpack.c.l.bf16 %v1171
  %v1173 = vunpack.c.h.bf16 %v1171
  %s1174 = scalar_lea.vmem %s1, 8
  %s1175 = scalar_lea.vmem %s0, 1208
  %v1176 = vld [vmem:[%s1175] sm:$0xf]
  %v1177 = vunpack.c.l.bf16 %v1176
  %v1178 = vunpack.c.h.bf16 %v1176
  %s1179 = scalar_lea.vmem %s1, 728
  %s1180 = scalar_lea.vmem %s0, 488
  %v1181 = vld [vmem:[%s1180] sm:$0xf]
  %v1182 = vunpack.c.l.bf16 %v1181
  %v1183 = vunpack.c.h.bf16 %v1181
  %s1184 = scalar_lea.vmem %s1, 1448
  %s1185 = scalar_lea.vmem %s0, 1688
  %v1186 = vld [vmem:[%s1185] sm:$0xf]
  %v1187 = vunpack.c.l.bf16 %v1186
  %v1188 = vunpack.c.h.bf16 %v1186
  %s1189 = scalar_lea.vmem %s1, 248
  %s1190 = scalar_lea.vmem %s0, 968
  %v1191 = vld [vmem:[%s1190] sm:$0xf]
  %v1192 = vunpack.c.l.bf16 %v1191
  %v1193 = vunpack.c.h.bf16 %v1191
  %s1194 = scalar_lea.vmem %s1, 968
  %s1195 = scalar_lea.vmem %s0, 248
  %v1196 = vld [vmem:[%s1195] sm:$0xf]
  %v1197 = vunpack.c.l.bf16 %v1196
  %v1198 = vunpack.c.h.bf16 %v1196
  %s1199 = scalar_lea.vmem %s1, 1688
  %s1200 = scalar_lea.vmem %s0, 1448
  %v1201 = vld [vmem:[%s1200] sm:$0xf]
  %v1202 = vunpack.c.l.bf16 %v1201
  %v1203 = vunpack.c.h.bf16 %v1201
  %s1204 = scalar_lea.vmem %s1, 488
  %s1205 = scalar_lea.vmem %s0, 728
  %v1206 = vld [vmem:[%s1205] sm:$0xf]
  %v1207 = vunpack.c.l.bf16 %v1206
  %v1208 = vunpack.c.h.bf16 %v1206
  %s1209 = scalar_lea.vmem %s1, 1208
  %s1210 = scalar_lea.vmem %s0, 8
  %v1211 = vld [vmem:[%s1210] sm:$0xf]
  %v1212 = vunpack.c.l.bf16 %v1211
  %v1213 = vunpack.c.h.bf16 %v1211
  %s1214 = scalar_lea.vmem %s1, 1928
  %s1215 = scalar_lea.vmem %s0, 1952
  %v1216 = vld [vmem:[%s1215] sm:$0xf]
  %v1217 = vunpack.c.l.bf16 %v1216
  %v1218 = vunpack.c.h.bf16 %v1216
  %s1219 = scalar_lea.vmem %s1, 32
  %s1220 = scalar_lea.vmem %s0, 1232
  %v1221 = vld [vmem:[%s1220] sm:$0xf]
  %v1222 = vunpack.c.l.bf16 %v1221
  %v1223 = vunpack.c.h.bf16 %v1221
  %s1224 = scalar_lea.vmem %s1, 752
  %s1225 = scalar_lea.vmem %s0, 512
  %v1226 = vld [vmem:[%s1225] sm:$0xf]
  %v1227 = vunpack.c.l.bf16 %v1226
  %v1228 = vunpack.c.h.bf16 %v1226
  %s1229 = scalar_lea.vmem %s1, 1472
  %s1230 = scalar_lea.vmem %s0, 1712
  %v1231 = vld [vmem:[%s1230] sm:$0xf]
  %v1232 = vunpack.c.l.bf16 %v1231
  %v1233 = vunpack.c.h.bf16 %v1231
  %s1234 = scalar_lea.vmem %s1, 272
  %s1235 = scalar_lea.vmem %s0, 992
  %v1236 = vld [vmem:[%s1235] sm:$0xf]
  %v1237 = vunpack.c.l.bf16 %v1236
  %v1238 = vunpack.c.h.bf16 %v1236
  %s1239 = scalar_lea.vmem %s1, 992
  %s1240 = scalar_lea.vmem %s0, 272
  %v1241 = vld [vmem:[%s1240] sm:$0xf]
  %v1242 = vunpack.c.l.bf16 %v1241
  %v1243 = vunpack.c.h.bf16 %v1241
  %s1244 = scalar_lea.vmem %s1, 1712
  %s1245 = scalar_lea.vmem %s0, 1472
  %v1246 = vld [vmem:[%s1245] sm:$0xf]
  %v1247 = vunpack.c.l.bf16 %v1246
  %v1248 = vunpack.c.h.bf16 %v1246
  %s1249 = scalar_lea.vmem %s1, 512
  %s1250 = scalar_lea.vmem %s0, 752
  %v1251 = vld [vmem:[%s1250] sm:$0xf]
  %v1252 = vunpack.c.l.bf16 %v1251
  %v1253 = vunpack.c.h.bf16 %v1251
  %s1254 = scalar_lea.vmem %s1, 1232
  %s1255 = scalar_lea.vmem %s0, 32
  %v1256 = vld [vmem:[%s1255] sm:$0xf]
  %v1257 = vunpack.c.l.bf16 %v1256
  %v1258 = vunpack.c.h.bf16 %v1256
  %s1259 = scalar_lea.vmem %s1, 1952
  %s1260 = scalar_lea.vmem %s0, 1976
  %v1261 = vld [vmem:[%s1260] sm:$0xf]
  %v1262 = vunpack.c.l.bf16 %v1261
  %v1263 = vunpack.c.h.bf16 %v1261
  %s1264 = scalar_lea.vmem %s1, 56
  %s1265 = scalar_lea.vmem %s0, 1256
  %v1266 = vld [vmem:[%s1265] sm:$0xf]
  %v1267 = vunpack.c.l.bf16 %v1266
  %v1268 = vunpack.c.h.bf16 %v1266
  %s1269 = scalar_lea.vmem %s1, 776
  %s1270 = scalar_lea.vmem %s0, 536
  %v1271 = vld [vmem:[%s1270] sm:$0xf]
  %v1272 = vunpack.c.l.bf16 %v1271
  %v1273 = vunpack.c.h.bf16 %v1271
  %s1274 = scalar_lea.vmem %s1, 1496
  %s1275 = scalar_lea.vmem %s0, 1736
  %v1276 = vld [vmem:[%s1275] sm:$0xf]
  %v1277 = vunpack.c.l.bf16 %v1276
  %v1278 = vunpack.c.h.bf16 %v1276
  %s1279 = scalar_lea.vmem %s1, 296
  %s1280 = scalar_lea.vmem %s0, 1016
  %v1281 = vld [vmem:[%s1280] sm:$0xf]
  %v1282 = vunpack.c.l.bf16 %v1281
  %v1283 = vunpack.c.h.bf16 %v1281
  %s1284 = scalar_lea.vmem %s1, 1016
  %s1285 = scalar_lea.vmem %s0, 296
  %v1286 = vld [vmem:[%s1285] sm:$0xf]
  %v1287 = vunpack.c.l.bf16 %v1286
  %v1288 = vunpack.c.h.bf16 %v1286
  %s1289 = scalar_lea.vmem %s1, 1736
  %s1290 = scalar_lea.vmem %s0, 1496
  %v1291 = vld [vmem:[%s1290] sm:$0xf]
  %v1292 = vunpack.c.l.bf16 %v1291
  %v1293 = vunpack.c.h.bf16 %v1291
  %s1294 = scalar_lea.vmem %s1, 536
  %s1295 = scalar_lea.vmem %s0, 776
  %v1296 = vld [vmem:[%s1295] sm:$0xf]
  %v1297 = vunpack.c.l.bf16 %v1296
  %v1298 = vunpack.c.h.bf16 %v1296
  %s1299 = scalar_lea.vmem %s1, 1256
  %s1300 = scalar_lea.vmem %s0, 56
  %v1301 = vld [vmem:[%s1300] sm:$0xf]
  %v1302 = vunpack.c.l.bf16 %v1301
  %v1303 = vunpack.c.h.bf16 %v1301
  %s1304 = scalar_lea.vmem %s1, 1976
  %s1305 = scalar_lea.vmem %s0, 2000
  %v1306 = vld [vmem:[%s1305] sm:$0xf]
  %v1307 = vunpack.c.l.bf16 %v1306
  %v1308 = vunpack.c.h.bf16 %v1306
  %s1309 = scalar_lea.vmem %s1, 80
  %s1310 = scalar_lea.vmem %s0, 1280
  %v1311 = vld [vmem:[%s1310] sm:$0xf]
  %v1312 = vunpack.c.l.bf16 %v1311
  %v1313 = vunpack.c.h.bf16 %v1311
  %s1314 = scalar_lea.vmem %s1, 800
  %s1315 = scalar_lea.vmem %s0, 560
  %v1316 = vld [vmem:[%s1315] sm:$0xf]
  %v1317 = vunpack.c.l.bf16 %v1316
  %v1318 = vunpack.c.h.bf16 %v1316
  %s1319 = scalar_lea.vmem %s1, 1520
  %s1320 = scalar_lea.vmem %s0, 1760
  %v1321 = vld [vmem:[%s1320] sm:$0xf]
  %v1322 = vunpack.c.l.bf16 %v1321
  %v1323 = vunpack.c.h.bf16 %v1321
  %s1324 = scalar_lea.vmem %s1, 320
  %s1325 = scalar_lea.vmem %s0, 1040
  %v1326 = vld [vmem:[%s1325] sm:$0xf]
  %v1327 = vunpack.c.l.bf16 %v1326
  %v1328 = vunpack.c.h.bf16 %v1326
  %s1329 = scalar_lea.vmem %s1, 1040
  %s1330 = scalar_lea.vmem %s0, 320
  %v1331 = vld [vmem:[%s1330] sm:$0xf]
  %v1332 = vunpack.c.l.bf16 %v1331
  %v1333 = vunpack.c.h.bf16 %v1331
  %s1334 = scalar_lea.vmem %s1, 1760
  %s1335 = scalar_lea.vmem %s0, 1520
  %v1336 = vld [vmem:[%s1335] sm:$0xf]
  %v1337 = vunpack.c.l.bf16 %v1336
  %v1338 = vunpack.c.h.bf16 %v1336
  %s1339 = scalar_lea.vmem %s1, 560
  %s1340 = scalar_lea.vmem %s0, 800
  %v1341 = vld [vmem:[%s1340] sm:$0xf]
  %v1342 = vunpack.c.l.bf16 %v1341
  %v1343 = vunpack.c.h.bf16 %v1341
  %s1344 = scalar_lea.vmem %s1, 1280
  %s1345 = scalar_lea.vmem %s0, 80
  %v1346 = vld [vmem:[%s1345] sm:$0xf]
  %v1347 = vunpack.c.l.bf16 %v1346
  %v1348 = vunpack.c.h.bf16 %v1346
  %s1349 = scalar_lea.vmem %s1, 2000
  %s1350 = scalar_lea.vmem %s0, 2024
  %v1351 = vld [vmem:[%s1350] sm:$0xf]
  %v1352 = vunpack.c.l.bf16 %v1351
  %v1353 = vunpack.c.h.bf16 %v1351
  %s1354 = scalar_lea.vmem %s1, 104
  %s1355 = scalar_lea.vmem %s0, 1304
  %v1356 = vld [vmem:[%s1355] sm:$0xf]
  %v1357 = vunpack.c.l.bf16 %v1356
  %v1358 = vunpack.c.h.bf16 %v1356
  %s1359 = scalar_lea.vmem %s1, 824
  %s1360 = scalar_lea.vmem %s0, 584
  %v1361 = vld [vmem:[%s1360] sm:$0xf]
  %v1362 = vunpack.c.l.bf16 %v1361
  %v1363 = vunpack.c.h.bf16 %v1361
  %s1364 = scalar_lea.vmem %s1, 1544
  %s1365 = scalar_lea.vmem %s0, 1784
  %v1366 = vld [vmem:[%s1365] sm:$0xf]
  %v1367 = vunpack.c.l.bf16 %v1366
  %v1368 = vunpack.c.h.bf16 %v1366
  %s1369 = scalar_lea.vmem %s1, 344
  %s1370 = scalar_lea.vmem %s0, 1064
  %v1371 = vld [vmem:[%s1370] sm:$0xf]
  %v1372 = vunpack.c.l.bf16 %v1371
  %v1373 = vunpack.c.h.bf16 %v1371
  %s1374 = scalar_lea.vmem %s1, 1064
  %s1375 = scalar_lea.vmem %s0, 344
  %v1376 = vld [vmem:[%s1375] sm:$0xf]
  %v1377 = vunpack.c.l.bf16 %v1376
  %v1378 = vunpack.c.h.bf16 %v1376
  %s1379 = scalar_lea.vmem %s1, 1784
  %s1380 = scalar_lea.vmem %s0, 1544
  %v1381 = vld [vmem:[%s1380] sm:$0xf]
  %v1382 = vunpack.c.l.bf16 %v1381
  %v1383 = vunpack.c.h.bf16 %v1381
  %s1384 = scalar_lea.vmem %s1, 584
  %s1385 = scalar_lea.vmem %s0, 824
  %v1386 = vld [vmem:[%s1385] sm:$0xf]
  %v1387 = vunpack.c.l.bf16 %v1386
  %v1388 = vunpack.c.h.bf16 %v1386
  %s1389 = scalar_lea.vmem %s1, 1304
  %s1390 = scalar_lea.vmem %s0, 104
  %v1391 = vld [vmem:[%s1390] sm:$0xf]
  %v1392 = vunpack.c.l.bf16 %v1391
  %v1393 = vunpack.c.h.bf16 %v1391
  %s1394 = scalar_lea.vmem %s1, 2024
  %s1395 = scalar_lea.vmem %s0, 2048
  %v1396 = vld [vmem:[%s1395] sm:$0xf]
  %v1397 = vunpack.c.l.bf16 %v1396
  %v1398 = vunpack.c.h.bf16 %v1396
  %s1399 = scalar_lea.vmem %s1, 128
  %s1400 = scalar_lea.vmem %s0, 1328
  %v1401 = vld [vmem:[%s1400] sm:$0xf]
  %v1402 = vunpack.c.l.bf16 %v1401
  %v1403 = vunpack.c.h.bf16 %v1401
  %s1404 = scalar_lea.vmem %s1, 848
  %s1405 = scalar_lea.vmem %s0, 608
  %v1406 = vld [vmem:[%s1405] sm:$0xf]
  %v1407 = vunpack.c.l.bf16 %v1406
  %v1408 = vunpack.c.h.bf16 %v1406
  %s1409 = scalar_lea.vmem %s1, 1568
  %s1410 = scalar_lea.vmem %s0, 1808
  %v1411 = vld [vmem:[%s1410] sm:$0xf]
  %v1412 = vunpack.c.l.bf16 %v1411
  %v1413 = vunpack.c.h.bf16 %v1411
  %s1414 = scalar_lea.vmem %s1, 368
  %s1415 = scalar_lea.vmem %s0, 1088
  %v1416 = vld [vmem:[%s1415] sm:$0xf]
  %v1417 = vunpack.c.l.bf16 %v1416
  %v1418 = vunpack.c.h.bf16 %v1416
  %s1419 = scalar_lea.vmem %s1, 1088
  %s1420 = scalar_lea.vmem %s0, 368
  %v1421 = vld [vmem:[%s1420] sm:$0xf]
  %v1422 = vunpack.c.l.bf16 %v1421
  %v1423 = vunpack.c.h.bf16 %v1421
  %s1424 = scalar_lea.vmem %s1, 1808
  %s1425 = scalar_lea.vmem %s0, 1568
  %v1426 = vld [vmem:[%s1425] sm:$0xf]
  %v1427 = vunpack.c.l.bf16 %v1426
  %v1428 = vunpack.c.h.bf16 %v1426
  %s1429 = scalar_lea.vmem %s1, 608
  %s1430 = scalar_lea.vmem %s0, 848
  %v1431 = vld [vmem:[%s1430] sm:$0xf]
  %v1432 = vunpack.c.l.bf16 %v1431
  %v1433 = vunpack.c.h.bf16 %v1431
  %s1434 = scalar_lea.vmem %s1, 1328
  %s1435 = scalar_lea.vmem %s0, 128
  %v1436 = vld [vmem:[%s1435] sm:$0xf]
  %v1437 = vunpack.c.l.bf16 %v1436
  %v1438 = vunpack.c.h.bf16 %v1436
  %s1439 = scalar_lea.vmem %s1, 2048
  %s1440 = scalar_lea.vmem %s0, 2072
  %v1441 = vld [vmem:[%s1440] sm:$0xf]
  %v1442 = vunpack.c.l.bf16 %v1441
  %v1443 = vunpack.c.h.bf16 %v1441
  %s1444 = scalar_lea.vmem %s1, 152
  %s1445 = scalar_lea.vmem %s0, 1352
  %v1446 = vld [vmem:[%s1445] sm:$0xf]
  %v1447 = vunpack.c.l.bf16 %v1446
  %v1448 = vunpack.c.h.bf16 %v1446
  %s1449 = scalar_lea.vmem %s1, 872
  %s1450 = scalar_lea.vmem %s0, 632
  %v1451 = vld [vmem:[%s1450] sm:$0xf]
  %v1452 = vunpack.c.l.bf16 %v1451
  %v1453 = vunpack.c.h.bf16 %v1451
  %s1454 = scalar_lea.vmem %s1, 1592
  %s1455 = scalar_lea.vmem %s0, 1832
  %v1456 = vld [vmem:[%s1455] sm:$0xf]
  %v1457 = vunpack.c.l.bf16 %v1456
  %v1458 = vunpack.c.h.bf16 %v1456
  %s1459 = scalar_lea.vmem %s1, 392
  %s1460 = scalar_lea.vmem %s0, 1112
  %v1461 = vld [vmem:[%s1460] sm:$0xf]
  %v1462 = vunpack.c.l.bf16 %v1461
  %v1463 = vunpack.c.h.bf16 %v1461
  %s1464 = scalar_lea.vmem %s1, 1112
  %s1465 = scalar_lea.vmem %s0, 392
  %v1466 = vld [vmem:[%s1465] sm:$0xf]
  %v1467 = vunpack.c.l.bf16 %v1466
  %v1468 = vunpack.c.h.bf16 %v1466
  %s1469 = scalar_lea.vmem %s1, 1832
  %s1470 = scalar_lea.vmem %s0, 1592
  %v1471 = vld [vmem:[%s1470] sm:$0xf]
  %v1472 = vunpack.c.l.bf16 %v1471
  %v1473 = vunpack.c.h.bf16 %v1471
  %s1474 = scalar_lea.vmem %s1, 632
  %s1475 = scalar_lea.vmem %s0, 872
  %v1476 = vld [vmem:[%s1475] sm:$0xf]
  %v1477 = vunpack.c.l.bf16 %v1476
  %v1478 = vunpack.c.h.bf16 %v1476
  %s1479 = scalar_lea.vmem %s1, 1352
  %s1480 = scalar_lea.vmem %s0, 152
  %v1481 = vld [vmem:[%s1480] sm:$0xf]
  %v1482 = vunpack.c.l.bf16 %v1481
  %v1483 = vunpack.c.h.bf16 %v1481
  %s1484 = scalar_lea.vmem %s1, 2072
  %s1485 = scalar_lea.vmem %s0, 2096
  %v1486 = vld [vmem:[%s1485] sm:$0xf]
  %v1487 = vunpack.c.l.bf16 %v1486
  %v1488 = vunpack.c.h.bf16 %v1486
  %s1489 = scalar_lea.vmem %s1, 176
  %s1490 = scalar_lea.vmem %s0, 1376
  %v1491 = vld [vmem:[%s1490] sm:$0xf]
  %v1492 = vunpack.c.l.bf16 %v1491
  %v1493 = vunpack.c.h.bf16 %v1491
  %s1494 = scalar_lea.vmem %s1, 896
  %s1495 = scalar_lea.vmem %s0, 656
  %v1496 = vld [vmem:[%s1495] sm:$0xf]
  %v1497 = vunpack.c.l.bf16 %v1496
  %v1498 = vunpack.c.h.bf16 %v1496
  %s1499 = scalar_lea.vmem %s1, 1616
  %s1500 = scalar_lea.vmem %s0, 1856
  %v1501 = vld [vmem:[%s1500] sm:$0xf]
  %v1502 = vunpack.c.l.bf16 %v1501
  %v1503 = vunpack.c.h.bf16 %v1501
  %s1504 = scalar_lea.vmem %s1, 416
  %s1505 = scalar_lea.vmem %s0, 1136
  %v1506 = vld [vmem:[%s1505] sm:$0xf]
  %v1507 = vunpack.c.l.bf16 %v1506
  %v1508 = vunpack.c.h.bf16 %v1506
  %s1509 = scalar_lea.vmem %s1, 1136
  %s1510 = scalar_lea.vmem %s0, 416
  %v1511 = vld [vmem:[%s1510] sm:$0xf]
  %v1512 = vunpack.c.l.bf16 %v1511
  %v1513 = vunpack.c.h.bf16 %v1511
  %s1514 = scalar_lea.vmem %s1, 1856
  %s1515 = scalar_lea.vmem %s0, 1616
  %v1516 = vld [vmem:[%s1515] sm:$0xf]
  %v1517 = vunpack.c.l.bf16 %v1516
  %v1518 = vunpack.c.h.bf16 %v1516
  %s1519 = scalar_lea.vmem %s1, 656
  %s1520 = scalar_lea.vmem %s0, 896
  %v1521 = vld [vmem:[%s1520] sm:$0xf]
  %v1522 = vunpack.c.l.bf16 %v1521
  %v1523 = vunpack.c.h.bf16 %v1521
  %s1524 = scalar_lea.vmem %s1, 1376
  %s1525 = scalar_lea.vmem %s0, 176
  %v1526 = vld [vmem:[%s1525] sm:$0xf]
  %v1527 = vunpack.c.l.bf16 %v1526
  %v1528 = vunpack.c.h.bf16 %v1526
  %s1529 = scalar_lea.vmem %s1, 2096
  %s1530 = scalar_lea.vmem %s0, 2120
  %v1531 = vld [vmem:[%s1530] sm:$0xf]
  %v1532 = vunpack.c.l.bf16 %v1531
  %v1533 = vunpack.c.h.bf16 %v1531
  %s1534 = scalar_lea.vmem %s1, 200
  %s1535 = scalar_lea.vmem %s0, 1400
  %v1536 = vld [vmem:[%s1535] sm:$0xf]
  %v1537 = vunpack.c.l.bf16 %v1536
  %v1538 = vunpack.c.h.bf16 %v1536
  %s1539 = scalar_lea.vmem %s1, 920
  %s1540 = scalar_lea.vmem %s0, 680
  %v1541 = vld [vmem:[%s1540] sm:$0xf]
  %v1542 = vunpack.c.l.bf16 %v1541
  %v1543 = vunpack.c.h.bf16 %v1541
  %s1544 = scalar_lea.vmem %s1, 1640
  %s1545 = scalar_lea.vmem %s0, 1880
  %v1546 = vld [vmem:[%s1545] sm:$0xf]
  %v1547 = vunpack.c.l.bf16 %v1546
  %v1548 = vunpack.c.h.bf16 %v1546
  %s1549 = scalar_lea.vmem %s1, 440
  %s1550 = scalar_lea.vmem %s0, 1160
  %v1551 = vld [vmem:[%s1550] sm:$0xf]
  %v1552 = vunpack.c.l.bf16 %v1551
  %v1553 = vunpack.c.h.bf16 %v1551
  %s1554 = scalar_lea.vmem %s1, 1160
  %s1555 = scalar_lea.vmem %s0, 440
  %v1556 = vld [vmem:[%s1555] sm:$0xf]
  %v1557 = vunpack.c.l.bf16 %v1556
  %v1558 = vunpack.c.h.bf16 %v1556
  %s1559 = scalar_lea.vmem %s1, 1880
  %s1560 = scalar_lea.vmem %s0, 1640
  %v1561 = vld [vmem:[%s1560] sm:$0xf]
  %v1562 = vunpack.c.l.bf16 %v1561
  %v1563 = vunpack.c.h.bf16 %v1561
  %s1564 = scalar_lea.vmem %s1, 680
  %s1565 = scalar_lea.vmem %s0, 920
  %v1566 = vld [vmem:[%s1565] sm:$0xf]
  %v1567 = vunpack.c.l.bf16 %v1566
  %v1568 = vunpack.c.h.bf16 %v1566
  %s1569 = scalar_lea.vmem %s1, 1400
  %s1570 = scalar_lea.vmem %s0, 200
  %v1571 = vld [vmem:[%s1570] sm:$0xf]
  %v1572 = vunpack.c.l.bf16 %v1571
  %v1573 = vunpack.c.h.bf16 %v1571
  %s1574 = scalar_lea.vmem %s1, 2120
  %s1575 = scalar_lea.vmem %s0, 2144
  %v1576 = vld [vmem:[%s1575] sm:$0xf]
  %v1577 = vunpack.c.l.bf16 %v1576
  %v1578 = vunpack.c.h.bf16 %v1576
  %s1579 = scalar_lea.vmem %s1, 224
  %s1580 = scalar_lea.vmem %s0, 1424
  %v1581 = vld [vmem:[%s1580] sm:$0xf]
  %v1582 = vunpack.c.l.bf16 %v1581
  %v1583 = vunpack.c.h.bf16 %v1581
  %s1584 = scalar_lea.vmem %s1, 944
  %s1585 = scalar_lea.vmem %s0, 704
  %v1586 = vld [vmem:[%s1585] sm:$0xf]
  %v1587 = vunpack.c.l.bf16 %v1586
  %v1588 = vunpack.c.h.bf16 %v1586
  %s1589 = scalar_lea.vmem %s1, 1664
  %s1590 = scalar_lea.vmem %s0, 1904
  %v1591 = vld [vmem:[%s1590] sm:$0xf]
  %v1592 = vunpack.c.l.bf16 %v1591
  %v1593 = vunpack.c.h.bf16 %v1591
  %s1594 = scalar_lea.vmem %s1, 464
  %s1595 = scalar_lea.vmem %s0, 1184
  %v1596 = vld [vmem:[%s1595] sm:$0xf]
  %v1597 = vunpack.c.l.bf16 %v1596
  %v1598 = vunpack.c.h.bf16 %v1596
  %s1599 = scalar_lea.vmem %s1, 1184
  %s1600 = scalar_lea.vmem %s0, 464
  %v1601 = vld [vmem:[%s1600] sm:$0xf]
  %v1602 = vunpack.c.l.bf16 %v1601
  %v1603 = vunpack.c.h.bf16 %v1601
  %s1604 = scalar_lea.vmem %s1, 1904
  %s1605 = scalar_lea.vmem %s0, 1664
  %v1606 = vld [vmem:[%s1605] sm:$0xf]
  %v1607 = vunpack.c.l.bf16 %v1606
  %v1608 = vunpack.c.h.bf16 %v1606
  %s1609 = scalar_lea.vmem %s1, 704
  %s1610 = scalar_lea.vmem %s0, 944
  %v1611 = vld [vmem:[%s1610] sm:$0xf]
  %v1612 = vunpack.c.l.bf16 %v1611
  %v1613 = vunpack.c.h.bf16 %v1611
  %s1614 = scalar_lea.vmem %s1, 1424
  %s1615 = scalar_lea.vmem %s0, 224
  %v1616 = vld [vmem:[%s1615] sm:$0xf]
  %v1617 = vunpack.c.l.bf16 %v1616
  %v1618 = vunpack.c.h.bf16 %v1616
  %s1619 = scalar_lea.vmem %s1, 2144
  %s1620 = scalar_lea.vmem %s0, 1932
  %v1621 = vld [vmem:[%s1620] sm:$0xf]
  %v1622 = vunpack.c.l.bf16 %v1621
  %v1623 = vunpack.c.h.bf16 %v1621
  %s1624 = scalar_lea.vmem %s1, 12
  %s1625 = scalar_lea.vmem %s1624, 4294967292
  %v1626 = vpack.c.bf16 %v1622, %v1172
  %1627 = vst [vmem:[%s1625] sm:$0xff] %v1626
  %s1628 = scalar_lea.vmem %s0, 1212
  %v1629 = vld [vmem:[%s1628] sm:$0xf]
  %v1630 = vunpack.c.l.bf16 %v1629
  %v1631 = vunpack.c.h.bf16 %v1629
  %s1632 = scalar_lea.vmem %s1, 732
  %s1633 = scalar_lea.vmem %s1632, 4294967292
  %v1634 = vpack.c.bf16 %v1630, %v1177
  %1635 = vst [vmem:[%s1633] sm:$0xff] %v1634
  %s1636 = scalar_lea.vmem %s0, 492
  %v1637 = vld [vmem:[%s1636] sm:$0xf]
  %v1638 = vunpack.c.l.bf16 %v1637
  %v1639 = vunpack.c.h.bf16 %v1637
  %s1640 = scalar_lea.vmem %s1, 1452
  %s1641 = scalar_lea.vmem %s1640, 4294967292
  %v1642 = vpack.c.bf16 %v1638, %v1182
  %1643 = vst [vmem:[%s1641] sm:$0xff] %v1642
  %s1644 = scalar_lea.vmem %s0, 1692
  %v1645 = vld [vmem:[%s1644] sm:$0xf]
  %v1646 = vunpack.c.l.bf16 %v1645
  %v1647 = vunpack.c.h.bf16 %v1645
  %s1648 = scalar_lea.vmem %s1, 252
  %s1649 = scalar_lea.vmem %s1648, 4294967292
  %v1650 = vpack.c.bf16 %v1646, %v1187
  %1651 = vst [vmem:[%s1649] sm:$0xff] %v1650
  %s1652 = scalar_lea.vmem %s0, 972
  %v1653 = vld [vmem:[%s1652] sm:$0xf]
  %v1654 = vunpack.c.l.bf16 %v1653
  %v1655 = vunpack.c.h.bf16 %v1653
  %s1656 = scalar_lea.vmem %s1, 972
  %s1657 = scalar_lea.vmem %s1656, 4294967292
  %v1658 = vpack.c.bf16 %v1654, %v1192
  %1659 = vst [vmem:[%s1657] sm:$0xff] %v1658
  %s1660 = scalar_lea.vmem %s0, 252
  %v1661 = vld [vmem:[%s1660] sm:$0xf]
  %v1662 = vunpack.c.l.bf16 %v1661
  %v1663 = vunpack.c.h.bf16 %v1661
  %s1664 = scalar_lea.vmem %s1, 1692
  %s1665 = scalar_lea.vmem %s1664, 4294967292
  %v1666 = vpack.c.bf16 %v1662, %v1197
  %1667 = vst [vmem:[%s1665] sm:$0xff] %v1666
  %s1668 = scalar_lea.vmem %s0, 1452
  %v1669 = vld [vmem:[%s1668] sm:$0xf]
  %v1670 = vunpack.c.l.bf16 %v1669
  %v1671 = vunpack.c.h.bf16 %v1669
  %s1672 = scalar_lea.vmem %s1, 492
  %s1673 = scalar_lea.vmem %s1672, 4294967292
  %v1674 = vpack.c.bf16 %v1670, %v1202
  %1675 = vst [vmem:[%s1673] sm:$0xff] %v1674
  %s1676 = scalar_lea.vmem %s0, 732
  %v1677 = vld [vmem:[%s1676] sm:$0xf]
  %v1678 = vunpack.c.l.bf16 %v1677
  %v1679 = vunpack.c.h.bf16 %v1677
  %s1680 = scalar_lea.vmem %s1, 1212
  %s1681 = scalar_lea.vmem %s1680, 4294967292
  %v1682 = vpack.c.bf16 %v1678, %v1207
  %1683 = vst [vmem:[%s1681] sm:$0xff] %v1682
  %s1684 = scalar_lea.vmem %s0, 12
  %v1685 = vld [vmem:[%s1684] sm:$0xf]
  %v1686 = vunpack.c.l.bf16 %v1685
  %v1687 = vunpack.c.h.bf16 %v1685
  %s1688 = scalar_lea.vmem %s1, 1932
  %s1689 = scalar_lea.vmem %s1688, 4294967292
  %v1690 = vpack.c.bf16 %v1686, %v1212
  %1691 = vst [vmem:[%s1689] sm:$0xff] %v1690
  %s1692 = scalar_lea.vmem %s0, 1956
  %v1693 = vld [vmem:[%s1692] sm:$0xf]
  %v1694 = vunpack.c.l.bf16 %v1693
  %v1695 = vunpack.c.h.bf16 %v1693
  %s1696 = scalar_lea.vmem %s1, 36
  %s1697 = scalar_lea.vmem %s1696, 4294967292
  %v1698 = vpack.c.bf16 %v1694, %v1217
  %1699 = vst [vmem:[%s1697] sm:$0xff] %v1698
  %s1700 = scalar_lea.vmem %s0, 1236
  %v1701 = vld [vmem:[%s1700] sm:$0xf]
  %v1702 = vunpack.c.l.bf16 %v1701
  %v1703 = vunpack.c.h.bf16 %v1701
  %s1704 = scalar_lea.vmem %s1, 756
  %s1705 = scalar_lea.vmem %s1704, 4294967292
  %v1706 = vpack.c.bf16 %v1702, %v1222
  %1707 = vst [vmem:[%s1705] sm:$0xff] %v1706
  %s1708 = scalar_lea.vmem %s0, 516
  %v1709 = vld [vmem:[%s1708] sm:$0xf]
  %v1710 = vunpack.c.l.bf16 %v1709
  %v1711 = vunpack.c.h.bf16 %v1709
  %s1712 = scalar_lea.vmem %s1, 1476
  %s1713 = scalar_lea.vmem %s1712, 4294967292
  %v1714 = vpack.c.bf16 %v1710, %v1227
  %1715 = vst [vmem:[%s1713] sm:$0xff] %v1714
  %s1716 = scalar_lea.vmem %s0, 1716
  %v1717 = vld [vmem:[%s1716] sm:$0xf]
  %v1718 = vunpack.c.l.bf16 %v1717
  %v1719 = vunpack.c.h.bf16 %v1717
  %s1720 = scalar_lea.vmem %s1, 276
  %s1721 = scalar_lea.vmem %s1720, 4294967292
  %v1722 = vpack.c.bf16 %v1718, %v1232
  %1723 = vst [vmem:[%s1721] sm:$0xff] %v1722
  %s1724 = scalar_lea.vmem %s0, 996
  %v1725 = vld [vmem:[%s1724] sm:$0xf]
  %v1726 = vunpack.c.l.bf16 %v1725
  %v1727 = vunpack.c.h.bf16 %v1725
  %s1728 = scalar_lea.vmem %s1, 996
  %s1729 = scalar_lea.vmem %s1728, 4294967292
  %v1730 = vpack.c.bf16 %v1726, %v1237
  %1731 = vst [vmem:[%s1729] sm:$0xff] %v1730
  %s1732 = scalar_lea.vmem %s0, 276
  %v1733 = vld [vmem:[%s1732] sm:$0xf]
  %v1734 = vunpack.c.l.bf16 %v1733
  %v1735 = vunpack.c.h.bf16 %v1733
  %s1736 = scalar_lea.vmem %s1, 1716
  %s1737 = scalar_lea.vmem %s1736, 4294967292
  %v1738 = vpack.c.bf16 %v1734, %v1242
  %1739 = vst [vmem:[%s1737] sm:$0xff] %v1738
  %s1740 = scalar_lea.vmem %s0, 1476
  %v1741 = vld [vmem:[%s1740] sm:$0xf]
  %v1742 = vunpack.c.l.bf16 %v1741
  %v1743 = vunpack.c.h.bf16 %v1741
  %s1744 = scalar_lea.vmem %s1, 516
  %s1745 = scalar_lea.vmem %s1744, 4294967292
  %v1746 = vpack.c.bf16 %v1742, %v1247
  %1747 = vst [vmem:[%s1745] sm:$0xff] %v1746
  %s1748 = scalar_lea.vmem %s0, 756
  %v1749 = vld [vmem:[%s1748] sm:$0xf]
  %v1750 = vunpack.c.l.bf16 %v1749
  %v1751 = vunpack.c.h.bf16 %v1749
  %s1752 = scalar_lea.vmem %s1, 1236
  %s1753 = scalar_lea.vmem %s1752, 4294967292
  %v1754 = vpack.c.bf16 %v1750, %v1252
  %1755 = vst [vmem:[%s1753] sm:$0xff] %v1754
  %s1756 = scalar_lea.vmem %s0, 36
  %v1757 = vld [vmem:[%s1756] sm:$0xf]
  %v1758 = vunpack.c.l.bf16 %v1757
  %v1759 = vunpack.c.h.bf16 %v1757
  %s1760 = scalar_lea.vmem %s1, 1956
  %s1761 = scalar_lea.vmem %s1760, 4294967292
  %v1762 = vpack.c.bf16 %v1758, %v1257
  %1763 = vst [vmem:[%s1761] sm:$0xff] %v1762
  %s1764 = scalar_lea.vmem %s0, 1980
  %v1765 = vld [vmem:[%s1764] sm:$0xf]
  %v1766 = vunpack.c.l.bf16 %v1765
  %v1767 = vunpack.c.h.bf16 %v1765
  %s1768 = scalar_lea.vmem %s1, 60
  %s1769 = scalar_lea.vmem %s1768, 4294967292
  %v1770 = vpack.c.bf16 %v1766, %v1262
  %1771 = vst [vmem:[%s1769] sm:$0xff] %v1770
  %s1772 = scalar_lea.vmem %s0, 1260
  %v1773 = vld [vmem:[%s1772] sm:$0xf]
  %v1774 = vunpack.c.l.bf16 %v1773
  %v1775 = vunpack.c.h.bf16 %v1773
  %s1776 = scalar_lea.vmem %s1, 780
  %s1777 = scalar_lea.vmem %s1776, 4294967292
  %v1778 = vpack.c.bf16 %v1774, %v1267
  %1779 = vst [vmem:[%s1777] sm:$0xff] %v1778
  %s1780 = scalar_lea.vmem %s0, 540
  %v1781 = vld [vmem:[%s1780] sm:$0xf]
  %v1782 = vunpack.c.l.bf16 %v1781
  %v1783 = vunpack.c.h.bf16 %v1781
  %s1784 = scalar_lea.vmem %s1, 1500
  %s1785 = scalar_lea.vmem %s1784, 4294967292
  %v1786 = vpack.c.bf16 %v1782, %v1272
  %1787 = vst [vmem:[%s1785] sm:$0xff] %v1786
  %s1788 = scalar_lea.vmem %s0, 1740
  %v1789 = vld [vmem:[%s1788] sm:$0xf]
  %v1790 = vunpack.c.l.bf16 %v1789
  %v1791 = vunpack.c.h.bf16 %v1789
  %s1792 = scalar_lea.vmem %s1, 300
  %s1793 = scalar_lea.vmem %s1792, 4294967292
  %v1794 = vpack.c.bf16 %v1790, %v1277
  %1795 = vst [vmem:[%s1793] sm:$0xff] %v1794
  %s1796 = scalar_lea.vmem %s0, 1020
  %v1797 = vld [vmem:[%s1796] sm:$0xf]
  %v1798 = vunpack.c.l.bf16 %v1797
  %v1799 = vunpack.c.h.bf16 %v1797
  %s1800 = scalar_lea.vmem %s1, 1020
  %s1801 = scalar_lea.vmem %s1800, 4294967292
  %v1802 = vpack.c.bf16 %v1798, %v1282
  %1803 = vst [vmem:[%s1801] sm:$0xff] %v1802
  %s1804 = scalar_lea.vmem %s0, 300
  %v1805 = vld [vmem:[%s1804] sm:$0xf]
  %v1806 = vunpack.c.l.bf16 %v1805
  %v1807 = vunpack.c.h.bf16 %v1805
  %s1808 = scalar_lea.vmem %s1, 1740
  %s1809 = scalar_lea.vmem %s1808, 4294967292
  %v1810 = vpack.c.bf16 %v1806, %v1287
  %1811 = vst [vmem:[%s1809] sm:$0xff] %v1810
  %s1812 = scalar_lea.vmem %s0, 1500
  %v1813 = vld [vmem:[%s1812] sm:$0xf]
  %v1814 = vunpack.c.l.bf16 %v1813
  %v1815 = vunpack.c.h.bf16 %v1813
  %s1816 = scalar_lea.vmem %s1, 540
  %s1817 = scalar_lea.vmem %s1816, 4294967292
  %v1818 = vpack.c.bf16 %v1814, %v1292
  %1819 = vst [vmem:[%s1817] sm:$0xff] %v1818
  %s1820 = scalar_lea.vmem %s0, 780
  %v1821 = vld [vmem:[%s1820] sm:$0xf]
  %v1822 = vunpack.c.l.bf16 %v1821
  %v1823 = vunpack.c.h.bf16 %v1821
  %s1824 = scalar_lea.vmem %s1, 1260
  %s1825 = scalar_lea.vmem %s1824, 4294967292
  %v1826 = vpack.c.bf16 %v1822, %v1297
  %1827 = vst [vmem:[%s1825] sm:$0xff] %v1826
  %s1828 = scalar_lea.vmem %s0, 60
  %v1829 = vld [vmem:[%s1828] sm:$0xf]
  %v1830 = vunpack.c.l.bf16 %v1829
  %v1831 = vunpack.c.h.bf16 %v1829
  %s1832 = scalar_lea.vmem %s1, 1980
  %s1833 = scalar_lea.vmem %s1832, 4294967292
  %v1834 = vpack.c.bf16 %v1830, %v1302
  %1835 = vst [vmem:[%s1833] sm:$0xff] %v1834
  %s1836 = scalar_lea.vmem %s0, 2004
  %v1837 = vld [vmem:[%s1836] sm:$0xf]
  %v1838 = vunpack.c.l.bf16 %v1837
  %v1839 = vunpack.c.h.bf16 %v1837
  %s1840 = scalar_lea.vmem %s1, 84
  %s1841 = scalar_lea.vmem %s1840, 4294967292
  %v1842 = vpack.c.bf16 %v1838, %v1307
  %1843 = vst [vmem:[%s1841] sm:$0xff] %v1842
  %s1844 = scalar_lea.vmem %s0, 1284
  %v1845 = vld [vmem:[%s1844] sm:$0xf]
  %v1846 = vunpack.c.l.bf16 %v1845
  %v1847 = vunpack.c.h.bf16 %v1845
  %s1848 = scalar_lea.vmem %s1, 804
  %s1849 = scalar_lea.vmem %s1848, 4294967292
  %v1850 = vpack.c.bf16 %v1846, %v1312
  %1851 = vst [vmem:[%s1849] sm:$0xff] %v1850
  %s1852 = scalar_lea.vmem %s0, 564
  %v1853 = vld [vmem:[%s1852] sm:$0xf]
  %v1854 = vunpack.c.l.bf16 %v1853
  %v1855 = vunpack.c.h.bf16 %v1853
  %s1856 = scalar_lea.vmem %s1, 1524
  %s1857 = scalar_lea.vmem %s1856, 4294967292
  %v1858 = vpack.c.bf16 %v1854, %v1317
  %1859 = vst [vmem:[%s1857] sm:$0xff] %v1858
  %s1860 = scalar_lea.vmem %s0, 1764
  %v1861 = vld [vmem:[%s1860] sm:$0xf]
  %v1862 = vunpack.c.l.bf16 %v1861
  %v1863 = vunpack.c.h.bf16 %v1861
  %s1864 = scalar_lea.vmem %s1, 324
  %s1865 = scalar_lea.vmem %s1864, 4294967292
  %v1866 = vpack.c.bf16 %v1862, %v1322
  %1867 = vst [vmem:[%s1865] sm:$0xff] %v1866
  %s1868 = scalar_lea.vmem %s0, 1044
  %v1869 = vld [vmem:[%s1868] sm:$0xf]
  %v1870 = vunpack.c.l.bf16 %v1869
  %v1871 = vunpack.c.h.bf16 %v1869
  %s1872 = scalar_lea.vmem %s1, 1044
  %s1873 = scalar_lea.vmem %s1872, 4294967292
  %v1874 = vpack.c.bf16 %v1870, %v1327
  %1875 = vst [vmem:[%s1873] sm:$0xff] %v1874
  %s1876 = scalar_lea.vmem %s0, 324
  %v1877 = vld [vmem:[%s1876] sm:$0xf]
  %v1878 = vunpack.c.l.bf16 %v1877
  %v1879 = vunpack.c.h.bf16 %v1877
  %s1880 = scalar_lea.vmem %s1, 1764
  %s1881 = scalar_lea.vmem %s1880, 4294967292
  %v1882 = vpack.c.bf16 %v1878, %v1332
  %1883 = vst [vmem:[%s1881] sm:$0xff] %v1882
  %s1884 = scalar_lea.vmem %s0, 1524
  %v1885 = vld [vmem:[%s1884] sm:$0xf]
  %v1886 = vunpack.c.l.bf16 %v1885
  %v1887 = vunpack.c.h.bf16 %v1885
  %s1888 = scalar_lea.vmem %s1, 564
  %s1889 = scalar_lea.vmem %s1888, 4294967292
  %v1890 = vpack.c.bf16 %v1886, %v1337
  %1891 = vst [vmem:[%s1889] sm:$0xff] %v1890
  %s1892 = scalar_lea.vmem %s0, 804
  %v1893 = vld [vmem:[%s1892] sm:$0xf]
  %v1894 = vunpack.c.l.bf16 %v1893
  %v1895 = vunpack.c.h.bf16 %v1893
  %s1896 = scalar_lea.vmem %s1, 1284
  %s1897 = scalar_lea.vmem %s1896, 4294967292
  %v1898 = vpack.c.bf16 %v1894, %v1342
  %1899 = vst [vmem:[%s1897] sm:$0xff] %v1898
  %s1900 = scalar_lea.vmem %s0, 84
  %v1901 = vld [vmem:[%s1900] sm:$0xf]
  %v1902 = vunpack.c.l.bf16 %v1901
  %v1903 = vunpack.c.h.bf16 %v1901
  %s1904 = scalar_lea.vmem %s1, 2004
  %s1905 = scalar_lea.vmem %s1904, 4294967292
  %v1906 = vpack.c.bf16 %v1902, %v1347
  %1907 = vst [vmem:[%s1905] sm:$0xff] %v1906
  %s1908 = scalar_lea.vmem %s0, 2028
  %v1909 = vld [vmem:[%s1908] sm:$0xf]
  %v1910 = vunpack.c.l.bf16 %v1909
  %v1911 = vunpack.c.h.bf16 %v1909
  %s1912 = scalar_lea.vmem %s1, 108
  %s1913 = scalar_lea.vmem %s1912, 4294967292
  %v1914 = vpack.c.bf16 %v1910, %v1352
  %1915 = vst [vmem:[%s1913] sm:$0xff] %v1914
  %s1916 = scalar_lea.vmem %s0, 1308
  %v1917 = vld [vmem:[%s1916] sm:$0xf]
  %v1918 = vunpack.c.l.bf16 %v1917
  %v1919 = vunpack.c.h.bf16 %v1917
  %s1920 = scalar_lea.vmem %s1, 828
  %s1921 = scalar_lea.vmem %s1920, 4294967292
  %v1922 = vpack.c.bf16 %v1918, %v1357
  %1923 = vst [vmem:[%s1921] sm:$0xff] %v1922
  %s1924 = scalar_lea.vmem %s0, 588
  %v1925 = vld [vmem:[%s1924] sm:$0xf]
  %v1926 = vunpack.c.l.bf16 %v1925
  %v1927 = vunpack.c.h.bf16 %v1925
  %s1928 = scalar_lea.vmem %s1, 1548
  %s1929 = scalar_lea.vmem %s1928, 4294967292
  %v1930 = vpack.c.bf16 %v1926, %v1362
  %1931 = vst [vmem:[%s1929] sm:$0xff] %v1930
  %s1932 = scalar_lea.vmem %s0, 1788
  %v1933 = vld [vmem:[%s1932] sm:$0xf]
  %v1934 = vunpack.c.l.bf16 %v1933
  %v1935 = vunpack.c.h.bf16 %v1933
  %s1936 = scalar_lea.vmem %s1, 348
  %s1937 = scalar_lea.vmem %s1936, 4294967292
  %v1938 = vpack.c.bf16 %v1934, %v1367
  %1939 = vst [vmem:[%s1937] sm:$0xff] %v1938
  %s1940 = scalar_lea.vmem %s0, 1068
  %v1941 = vld [vmem:[%s1940] sm:$0xf]
  %v1942 = vunpack.c.l.bf16 %v1941
  %v1943 = vunpack.c.h.bf16 %v1941
  %s1944 = scalar_lea.vmem %s1, 1068
  %s1945 = scalar_lea.vmem %s1944, 4294967292
  %v1946 = vpack.c.bf16 %v1942, %v1372
  %1947 = vst [vmem:[%s1945] sm:$0xff] %v1946
  %s1948 = scalar_lea.vmem %s0, 348
  %v1949 = vld [vmem:[%s1948] sm:$0xf]
  %v1950 = vunpack.c.l.bf16 %v1949
  %v1951 = vunpack.c.h.bf16 %v1949
  %s1952 = scalar_lea.vmem %s1, 1788
  %s1953 = scalar_lea.vmem %s1952, 4294967292
  %v1954 = vpack.c.bf16 %v1950, %v1377
  %1955 = vst [vmem:[%s1953] sm:$0xff] %v1954
  %s1956 = scalar_lea.vmem %s0, 1548
  %v1957 = vld [vmem:[%s1956] sm:$0xf]
  %v1958 = vunpack.c.l.bf16 %v1957
  %v1959 = vunpack.c.h.bf16 %v1957
  %s1960 = scalar_lea.vmem %s1, 588
  %s1961 = scalar_lea.vmem %s1960, 4294967292
  %v1962 = vpack.c.bf16 %v1958, %v1382
  %1963 = vst [vmem:[%s1961] sm:$0xff] %v1962
  %s1964 = scalar_lea.vmem %s0, 828
  %v1965 = vld [vmem:[%s1964] sm:$0xf]
  %v1966 = vunpack.c.l.bf16 %v1965
  %v1967 = vunpack.c.h.bf16 %v1965
  %s1968 = scalar_lea.vmem %s1, 1308
  %s1969 = scalar_lea.vmem %s1968, 4294967292
  %v1970 = vpack.c.bf16 %v1966, %v1387
  %1971 = vst [vmem:[%s1969] sm:$0xff] %v1970
  %s1972 = scalar_lea.vmem %s0, 108
  %v1973 = vld [vmem:[%s1972] sm:$0xf]
  %v1974 = vunpack.c.l.bf16 %v1973
  %v1975 = vunpack.c.h.bf16 %v1973
  %s1976 = scalar_lea.vmem %s1, 2028
  %s1977 = scalar_lea.vmem %s1976, 4294967292
  %v1978 = vpack.c.bf16 %v1974, %v1392
  %1979 = vst [vmem:[%s1977] sm:$0xff] %v1978
  %s1980 = scalar_lea.vmem %s0, 2052
  %v1981 = vld [vmem:[%s1980] sm:$0xf]
  %v1982 = vunpack.c.l.bf16 %v1981
  %v1983 = vunpack.c.h.bf16 %v1981
  %s1984 = scalar_lea.vmem %s1, 132
  %s1985 = scalar_lea.vmem %s1984, 4294967292
  %v1986 = vpack.c.bf16 %v1982, %v1397
  %1987 = vst [vmem:[%s1985] sm:$0xff] %v1986
  %s1988 = scalar_lea.vmem %s0, 1332
  %v1989 = vld [vmem:[%s1988] sm:$0xf]
  %v1990 = vunpack.c.l.bf16 %v1989
  %v1991 = vunpack.c.h.bf16 %v1989
  %s1992 = scalar_lea.vmem %s1, 852
  %s1993 = scalar_lea.vmem %s1992, 4294967292
  %v1994 = vpack.c.bf16 %v1990, %v1402
  %1995 = vst [vmem:[%s1993] sm:$0xff] %v1994
  %s1996 = scalar_lea.vmem %s0, 612
  %v1997 = vld [vmem:[%s1996] sm:$0xf]
  %v1998 = vunpack.c.l.bf16 %v1997
  %v1999 = vunpack.c.h.bf16 %v1997
  %s2000 = scalar_lea.vmem %s1, 1572
  %s2001 = scalar_lea.vmem %s2000, 4294967292
  %v2002 = vpack.c.bf16 %v1998, %v1407
  %2003 = vst [vmem:[%s2001] sm:$0xff] %v2002
  %s2004 = scalar_lea.vmem %s0, 1812
  %v2005 = vld [vmem:[%s2004] sm:$0xf]
  %v2006 = vunpack.c.l.bf16 %v2005
  %v2007 = vunpack.c.h.bf16 %v2005
  %s2008 = scalar_lea.vmem %s1, 372
  %s2009 = scalar_lea.vmem %s2008, 4294967292
  %v2010 = vpack.c.bf16 %v2006, %v1412
  %2011 = vst [vmem:[%s2009] sm:$0xff] %v2010
  %s2012 = scalar_lea.vmem %s0, 1092
  %v2013 = vld [vmem:[%s2012] sm:$0xf]
  %v2014 = vunpack.c.l.bf16 %v2013
  %v2015 = vunpack.c.h.bf16 %v2013
  %s2016 = scalar_lea.vmem %s1, 1092
  %s2017 = scalar_lea.vmem %s2016, 4294967292
  %v2018 = vpack.c.bf16 %v2014, %v1417
  %2019 = vst [vmem:[%s2017] sm:$0xff] %v2018
  %s2020 = scalar_lea.vmem %s0, 372
  %v2021 = vld [vmem:[%s2020] sm:$0xf]
  %v2022 = vunpack.c.l.bf16 %v2021
  %v2023 = vunpack.c.h.bf16 %v2021
  %s2024 = scalar_lea.vmem %s1, 1812
  %s2025 = scalar_lea.vmem %s2024, 4294967292
  %v2026 = vpack.c.bf16 %v2022, %v1422
  %2027 = vst [vmem:[%s2025] sm:$0xff] %v2026
  %s2028 = scalar_lea.vmem %s0, 1572
  %v2029 = vld [vmem:[%s2028] sm:$0xf]
  %v2030 = vunpack.c.l.bf16 %v2029
  %v2031 = vunpack.c.h.bf16 %v2029
  %s2032 = scalar_lea.vmem %s1, 612
  %s2033 = scalar_lea.vmem %s2032, 4294967292
  %v2034 = vpack.c.bf16 %v2030, %v1427
  %2035 = vst [vmem:[%s2033] sm:$0xff] %v2034
  %s2036 = scalar_lea.vmem %s0, 852
  %v2037 = vld [vmem:[%s2036] sm:$0xf]
  %v2038 = vunpack.c.l.bf16 %v2037
  %v2039 = vunpack.c.h.bf16 %v2037
  %s2040 = scalar_lea.vmem %s1, 1332
  %s2041 = scalar_lea.vmem %s2040, 4294967292
  %v2042 = vpack.c.bf16 %v2038, %v1432
  %2043 = vst [vmem:[%s2041] sm:$0xff] %v2042
  %s2044 = scalar_lea.vmem %s0, 132
  %v2045 = vld [vmem:[%s2044] sm:$0xf]
  %v2046 = vunpack.c.l.bf16 %v2045
  %v2047 = vunpack.c.h.bf16 %v2045
  %s2048 = scalar_lea.vmem %s1, 2052
  %s2049 = scalar_lea.vmem %s2048, 4294967292
  %v2050 = vpack.c.bf16 %v2046, %v1437
  %2051 = vst [vmem:[%s2049] sm:$0xff] %v2050
  %s2052 = scalar_lea.vmem %s0, 2076
  %v2053 = vld [vmem:[%s2052] sm:$0xf]
  %v2054 = vunpack.c.l.bf16 %v2053
  %v2055 = vunpack.c.h.bf16 %v2053
  %s2056 = scalar_lea.vmem %s1, 156
  %s2057 = scalar_lea.vmem %s2056, 4294967292
  %v2058 = vpack.c.bf16 %v2054, %v1442
  %2059 = vst [vmem:[%s2057] sm:$0xff] %v2058
  %s2060 = scalar_lea.vmem %s0, 1356
  %v2061 = vld [vmem:[%s2060] sm:$0xf]
  %v2062 = vunpack.c.l.bf16 %v2061
  %v2063 = vunpack.c.h.bf16 %v2061
  %s2064 = scalar_lea.vmem %s1, 876
  %s2065 = scalar_lea.vmem %s2064, 4294967292
  %v2066 = vpack.c.bf16 %v2062, %v1447
  %2067 = vst [vmem:[%s2065] sm:$0xff] %v2066
  %s2068 = scalar_lea.vmem %s0, 636
  %v2069 = vld [vmem:[%s2068] sm:$0xf]
  %v2070 = vunpack.c.l.bf16 %v2069
  %v2071 = vunpack.c.h.bf16 %v2069
  %s2072 = scalar_lea.vmem %s1, 1596
  %s2073 = scalar_lea.vmem %s2072, 4294967292
  %v2074 = vpack.c.bf16 %v2070, %v1452
  %2075 = vst [vmem:[%s2073] sm:$0xff] %v2074
  %s2076 = scalar_lea.vmem %s0, 1836
  %v2077 = vld [vmem:[%s2076] sm:$0xf]
  %v2078 = vunpack.c.l.bf16 %v2077
  %v2079 = vunpack.c.h.bf16 %v2077
  %s2080 = scalar_lea.vmem %s1, 396
  %s2081 = scalar_lea.vmem %s2080, 4294967292
  %v2082 = vpack.c.bf16 %v2078, %v1457
  %2083 = vst [vmem:[%s2081] sm:$0xff] %v2082
  %s2084 = scalar_lea.vmem %s0, 1116
  %v2085 = vld [vmem:[%s2084] sm:$0xf]
  %v2086 = vunpack.c.l.bf16 %v2085
  %v2087 = vunpack.c.h.bf16 %v2085
  %s2088 = scalar_lea.vmem %s1, 1116
  %s2089 = scalar_lea.vmem %s2088, 4294967292
  %v2090 = vpack.c.bf16 %v2086, %v1462
  %2091 = vst [vmem:[%s2089] sm:$0xff] %v2090
  %s2092 = scalar_lea.vmem %s0, 396
  %v2093 = vld [vmem:[%s2092] sm:$0xf]
  %v2094 = vunpack.c.l.bf16 %v2093
  %v2095 = vunpack.c.h.bf16 %v2093
  %s2096 = scalar_lea.vmem %s1, 1836
  %s2097 = scalar_lea.vmem %s2096, 4294967292
  %v2098 = vpack.c.bf16 %v2094, %v1467
  %2099 = vst [vmem:[%s2097] sm:$0xff] %v2098
  %s2100 = scalar_lea.vmem %s0, 1596
  %v2101 = vld [vmem:[%s2100] sm:$0xf]
  %v2102 = vunpack.c.l.bf16 %v2101
  %v2103 = vunpack.c.h.bf16 %v2101
  %s2104 = scalar_lea.vmem %s1, 636
  %s2105 = scalar_lea.vmem %s2104, 4294967292
  %v2106 = vpack.c.bf16 %v2102, %v1472
  %2107 = vst [vmem:[%s2105] sm:$0xff] %v2106
  %s2108 = scalar_lea.vmem %s0, 876
  %v2109 = vld [vmem:[%s2108] sm:$0xf]
  %v2110 = vunpack.c.l.bf16 %v2109
  %v2111 = vunpack.c.h.bf16 %v2109
  %s2112 = scalar_lea.vmem %s1, 1356
  %s2113 = scalar_lea.vmem %s2112, 4294967292
  %v2114 = vpack.c.bf16 %v2110, %v1477
  %2115 = vst [vmem:[%s2113] sm:$0xff] %v2114
  %s2116 = scalar_lea.vmem %s0, 156
  %v2117 = vld [vmem:[%s2116] sm:$0xf]
  %v2118 = vunpack.c.l.bf16 %v2117
  %v2119 = vunpack.c.h.bf16 %v2117
  %s2120 = scalar_lea.vmem %s1, 2076
  %s2121 = scalar_lea.vmem %s2120, 4294967292
  %v2122 = vpack.c.bf16 %v2118, %v1482
  %2123 = vst [vmem:[%s2121] sm:$0xff] %v2122
  %s2124 = scalar_lea.vmem %s0, 2100
  %v2125 = vld [vmem:[%s2124] sm:$0xf]
  %v2126 = vunpack.c.l.bf16 %v2125
  %v2127 = vunpack.c.h.bf16 %v2125
  %s2128 = scalar_lea.vmem %s1, 180
  %s2129 = scalar_lea.vmem %s2128, 4294967292
  %v2130 = vpack.c.bf16 %v2126, %v1487
  %2131 = vst [vmem:[%s2129] sm:$0xff] %v2130
  %s2132 = scalar_lea.vmem %s0, 1380
  %v2133 = vld [vmem:[%s2132] sm:$0xf]
  %v2134 = vunpack.c.l.bf16 %v2133
  %v2135 = vunpack.c.h.bf16 %v2133
  %s2136 = scalar_lea.vmem %s1, 900
  %s2137 = scalar_lea.vmem %s2136, 4294967292
  %v2138 = vpack.c.bf16 %v2134, %v1492
  %2139 = vst [vmem:[%s2137] sm:$0xff] %v2138
  %s2140 = scalar_lea.vmem %s0, 660
  %v2141 = vld [vmem:[%s2140] sm:$0xf]
  %v2142 = vunpack.c.l.bf16 %v2141
  %v2143 = vunpack.c.h.bf16 %v2141
  %s2144 = scalar_lea.vmem %s1, 1620
  %s2145 = scalar_lea.vmem %s2144, 4294967292
  %v2146 = vpack.c.bf16 %v2142, %v1497
  %2147 = vst [vmem:[%s2145] sm:$0xff] %v2146
  %s2148 = scalar_lea.vmem %s0, 1860
  %v2149 = vld [vmem:[%s2148] sm:$0xf]
  %v2150 = vunpack.c.l.bf16 %v2149
  %v2151 = vunpack.c.h.bf16 %v2149
  %s2152 = scalar_lea.vmem %s1, 420
  %s2153 = scalar_lea.vmem %s2152, 4294967292
  %v2154 = vpack.c.bf16 %v2150, %v1502
  %2155 = vst [vmem:[%s2153] sm:$0xff] %v2154
  %s2156 = scalar_lea.vmem %s0, 1140
  %v2157 = vld [vmem:[%s2156] sm:$0xf]
  %v2158 = vunpack.c.l.bf16 %v2157
  %v2159 = vunpack.c.h.bf16 %v2157
  %s2160 = scalar_lea.vmem %s1, 1140
  %s2161 = scalar_lea.vmem %s2160, 4294967292
  %v2162 = vpack.c.bf16 %v2158, %v1507
  %2163 = vst [vmem:[%s2161] sm:$0xff] %v2162
  %s2164 = scalar_lea.vmem %s0, 420
  %v2165 = vld [vmem:[%s2164] sm:$0xf]
  %v2166 = vunpack.c.l.bf16 %v2165
  %v2167 = vunpack.c.h.bf16 %v2165
  %s2168 = scalar_lea.vmem %s1, 1860
  %s2169 = scalar_lea.vmem %s2168, 4294967292
  %v2170 = vpack.c.bf16 %v2166, %v1512
  %2171 = vst [vmem:[%s2169] sm:$0xff] %v2170
  %s2172 = scalar_lea.vmem %s0, 1620
  %v2173 = vld [vmem:[%s2172] sm:$0xf]
  %v2174 = vunpack.c.l.bf16 %v2173
  %v2175 = vunpack.c.h.bf16 %v2173
  %s2176 = scalar_lea.vmem %s1, 660
  %s2177 = scalar_lea.vmem %s2176, 4294967292
  %v2178 = vpack.c.bf16 %v2174, %v1517
  %2179 = vst [vmem:[%s2177] sm:$0xff] %v2178
  %s2180 = scalar_lea.vmem %s0, 900
  %v2181 = vld [vmem:[%s2180] sm:$0xf]
  %v2182 = vunpack.c.l.bf16 %v2181
  %v2183 = vunpack.c.h.bf16 %v2181
  %s2184 = scalar_lea.vmem %s1, 1380
  %s2185 = scalar_lea.vmem %s2184, 4294967292
  %v2186 = vpack.c.bf16 %v2182, %v1522
  %2187 = vst [vmem:[%s2185] sm:$0xff] %v2186
  %s2188 = scalar_lea.vmem %s0, 180
  %v2189 = vld [vmem:[%s2188] sm:$0xf]
  %v2190 = vunpack.c.l.bf16 %v2189
  %v2191 = vunpack.c.h.bf16 %v2189
  %s2192 = scalar_lea.vmem %s1, 2100
  %s2193 = scalar_lea.vmem %s2192, 4294967292
  %v2194 = vpack.c.bf16 %v2190, %v1527
  %2195 = vst [vmem:[%s2193] sm:$0xff] %v2194
  %s2196 = scalar_lea.vmem %s0, 2124
  %v2197 = vld [vmem:[%s2196] sm:$0xf]
  %v2198 = vunpack.c.l.bf16 %v2197
  %v2199 = vunpack.c.h.bf16 %v2197
  %s2200 = scalar_lea.vmem %s1, 204
  %s2201 = scalar_lea.vmem %s2200, 4294967292
  %v2202 = vpack.c.bf16 %v2198, %v1532
  %2203 = vst [vmem:[%s2201] sm:$0xff] %v2202
  %s2204 = scalar_lea.vmem %s0, 1404
  %v2205 = vld [vmem:[%s2204] sm:$0xf]
  %v2206 = vunpack.c.l.bf16 %v2205
  %v2207 = vunpack.c.h.bf16 %v2205
  %s2208 = scalar_lea.vmem %s1, 924
  %s2209 = scalar_lea.vmem %s2208, 4294967292
  %v2210 = vpack.c.bf16 %v2206, %v1537
  %2211 = vst [vmem:[%s2209] sm:$0xff] %v2210
  %s2212 = scalar_lea.vmem %s0, 684
  %v2213 = vld [vmem:[%s2212] sm:$0xf]
  %v2214 = vunpack.c.l.bf16 %v2213
  %v2215 = vunpack.c.h.bf16 %v2213
  %s2216 = scalar_lea.vmem %s1, 1644
  %s2217 = scalar_lea.vmem %s2216, 4294967292
  %v2218 = vpack.c.bf16 %v2214, %v1542
  %2219 = vst [vmem:[%s2217] sm:$0xff] %v2218
  %s2220 = scalar_lea.vmem %s0, 1884
  %v2221 = vld [vmem:[%s2220] sm:$0xf]
  %v2222 = vunpack.c.l.bf16 %v2221
  %v2223 = vunpack.c.h.bf16 %v2221
  %s2224 = scalar_lea.vmem %s1, 444
  %s2225 = scalar_lea.vmem %s2224, 4294967292
  %v2226 = vpack.c.bf16 %v2222, %v1547
  %2227 = vst [vmem:[%s2225] sm:$0xff] %v2226
  %s2228 = scalar_lea.vmem %s0, 1164
  %v2229 = vld [vmem:[%s2228] sm:$0xf]
  %v2230 = vunpack.c.l.bf16 %v2229
  %v2231 = vunpack.c.h.bf16 %v2229
  %s2232 = scalar_lea.vmem %s1, 1164
  %s2233 = scalar_lea.vmem %s2232, 4294967292
  %v2234 = vpack.c.bf16 %v2230, %v1552
  %2235 = vst [vmem:[%s2233] sm:$0xff] %v2234
  %s2236 = scalar_lea.vmem %s0, 444
  %v2237 = vld [vmem:[%s2236] sm:$0xf]
  %v2238 = vunpack.c.l.bf16 %v2237
  %v2239 = vunpack.c.h.bf16 %v2237
  %s2240 = scalar_lea.vmem %s1, 1884
  %s2241 = scalar_lea.vmem %s2240, 4294967292
  %v2242 = vpack.c.bf16 %v2238, %v1557
  %2243 = vst [vmem:[%s2241] sm:$0xff] %v2242
  %s2244 = scalar_lea.vmem %s0, 1644
  %v2245 = vld [vmem:[%s2244] sm:$0xf]
  %v2246 = vunpack.c.l.bf16 %v2245
  %v2247 = vunpack.c.h.bf16 %v2245
  %s2248 = scalar_lea.vmem %s1, 684
  %s2249 = scalar_lea.vmem %s2248, 4294967292
  %v2250 = vpack.c.bf16 %v2246, %v1562
  %2251 = vst [vmem:[%s2249] sm:$0xff] %v2250
  %s2252 = scalar_lea.vmem %s0, 924
  %v2253 = vld [vmem:[%s2252] sm:$0xf]
  %v2254 = vunpack.c.l.bf16 %v2253
  %v2255 = vunpack.c.h.bf16 %v2253
  %s2256 = scalar_lea.vmem %s1, 1404
  %s2257 = scalar_lea.vmem %s2256, 4294967292
  %v2258 = vpack.c.bf16 %v2254, %v1567
  %2259 = vst [vmem:[%s2257] sm:$0xff] %v2258
  %s2260 = scalar_lea.vmem %s0, 204
  %v2261 = vld [vmem:[%s2260] sm:$0xf]
  %v2262 = vunpack.c.l.bf16 %v2261
  %v2263 = vunpack.c.h.bf16 %v2261
  %s2264 = scalar_lea.vmem %s1, 2124
  %s2265 = scalar_lea.vmem %s2264, 4294967292
  %v2266 = vpack.c.bf16 %v2262, %v1572
  %2267 = vst [vmem:[%s2265] sm:$0xff] %v2266
  %s2268 = scalar_lea.vmem %s0, 2148
  %v2269 = vld [vmem:[%s2268] sm:$0xf]
  %v2270 = vunpack.c.l.bf16 %v2269
  %v2271 = vunpack.c.h.bf16 %v2269
  %s2272 = scalar_lea.vmem %s1, 228
  %s2273 = scalar_lea.vmem %s2272, 4294967292
  %v2274 = vpack.c.bf16 %v2270, %v1577
  %2275 = vst [vmem:[%s2273] sm:$0xff] %v2274
  %s2276 = scalar_lea.vmem %s0, 1428
  %v2277 = vld [vmem:[%s2276] sm:$0xf]
  %v2278 = vunpack.c.l.bf16 %v2277
  %v2279 = vunpack.c.h.bf16 %v2277
  %s2280 = scalar_lea.vmem %s1, 948
  %s2281 = scalar_lea.vmem %s2280, 4294967292
  %v2282 = vpack.c.bf16 %v2278, %v1582
  %2283 = vst [vmem:[%s2281] sm:$0xff] %v2282
  %s2284 = scalar_lea.vmem %s0, 708
  %v2285 = vld [vmem:[%s2284] sm:$0xf]
  %v2286 = vunpack.c.l.bf16 %v2285
  %v2287 = vunpack.c.h.bf16 %v2285
  %s2288 = scalar_lea.vmem %s1, 1668
  %s2289 = scalar_lea.vmem %s2288, 4294967292
  %v2290 = vpack.c.bf16 %v2286, %v1587
  %2291 = vst [vmem:[%s2289] sm:$0xff] %v2290
  %s2292 = scalar_lea.vmem %s0, 1908
  %v2293 = vld [vmem:[%s2292] sm:$0xf]
  %v2294 = vunpack.c.l.bf16 %v2293
  %v2295 = vunpack.c.h.bf16 %v2293
  %s2296 = scalar_lea.vmem %s1, 468
  %s2297 = scalar_lea.vmem %s2296, 4294967292
  %v2298 = vpack.c.bf16 %v2294, %v1592
  %2299 = vst [vmem:[%s2297] sm:$0xff] %v2298
  %s2300 = scalar_lea.vmem %s0, 1188
  %v2301 = vld [vmem:[%s2300] sm:$0xf]
  %v2302 = vunpack.c.l.bf16 %v2301
  %v2303 = vunpack.c.h.bf16 %v2301
  %s2304 = scalar_lea.vmem %s1, 1188
  %s2305 = scalar_lea.vmem %s2304, 4294967292
  %v2306 = vpack.c.bf16 %v2302, %v1597
  %2307 = vst [vmem:[%s2305] sm:$0xff] %v2306
  %s2308 = scalar_lea.vmem %s0, 468
  %v2309 = vld [vmem:[%s2308] sm:$0xf]
  %v2310 = vunpack.c.l.bf16 %v2309
  %v2311 = vunpack.c.h.bf16 %v2309
  %s2312 = scalar_lea.vmem %s1, 1908
  %s2313 = scalar_lea.vmem %s2312, 4294967292
  %v2314 = vpack.c.bf16 %v2310, %v1602
  %2315 = vst [vmem:[%s2313] sm:$0xff] %v2314
  %s2316 = scalar_lea.vmem %s0, 1668
  %v2317 = vld [vmem:[%s2316] sm:$0xf]
  %v2318 = vunpack.c.l.bf16 %v2317
  %v2319 = vunpack.c.h.bf16 %v2317
  %s2320 = scalar_lea.vmem %s1, 708
  %s2321 = scalar_lea.vmem %s2320, 4294967292
  %v2322 = vpack.c.bf16 %v2318, %v1607
  %2323 = vst [vmem:[%s2321] sm:$0xff] %v2322
  %s2324 = scalar_lea.vmem %s0, 948
  %v2325 = vld [vmem:[%s2324] sm:$0xf]
  %v2326 = vunpack.c.l.bf16 %v2325
  %v2327 = vunpack.c.h.bf16 %v2325
  %s2328 = scalar_lea.vmem %s1, 1428
  %s2329 = scalar_lea.vmem %s2328, 4294967292
  %v2330 = vpack.c.bf16 %v2326, %v1612
  %2331 = vst [vmem:[%s2329] sm:$0xff] %v2330
  %s2332 = scalar_lea.vmem %s0, 228
  %v2333 = vld [vmem:[%s2332] sm:$0xf]
  %v2334 = vunpack.c.l.bf16 %v2333
  %v2335 = vunpack.c.h.bf16 %v2333
  %s2336 = scalar_lea.vmem %s1, 2148
  %s2337 = scalar_lea.vmem %s2336, 4294967292
  %v2338 = vpack.c.bf16 %v2334, %v1617
  %2339 = vst [vmem:[%s2337] sm:$0xff] %v2338
  %s2340 = scalar_lea.vmem %s0, 1936
  %v2341 = vld [vmem:[%s2340] sm:$0xf]
  %v2342 = vunpack.c.l.bf16 %v2341
  %v2343 = vunpack.c.h.bf16 %v2341
  %s2344 = scalar_lea.vmem %s1, 16
  %s2345 = scalar_lea.vmem %s0, 1216
  %v2346 = vld [vmem:[%s2345] sm:$0xf]
  %v2347 = vunpack.c.l.bf16 %v2346
  %v2348 = vunpack.c.h.bf16 %v2346
  %s2349 = scalar_lea.vmem %s1, 736
  %s2350 = scalar_lea.vmem %s0, 496
  %v2351 = vld [vmem:[%s2350] sm:$0xf]
  %v2352 = vunpack.c.l.bf16 %v2351
  %v2353 = vunpack.c.h.bf16 %v2351
  %s2354 = scalar_lea.vmem %s1, 1456
  %s2355 = scalar_lea.vmem %s0, 1696
  %v2356 = vld [vmem:[%s2355] sm:$0xf]
  %v2357 = vunpack.c.l.bf16 %v2356
  %v2358 = vunpack.c.h.bf16 %v2356
  %s2359 = scalar_lea.vmem %s1, 256
  %s2360 = scalar_lea.vmem %s0, 976
  %v2361 = vld [vmem:[%s2360] sm:$0xf]
  %v2362 = vunpack.c.l.bf16 %v2361
  %v2363 = vunpack.c.h.bf16 %v2361
  %s2364 = scalar_lea.vmem %s1, 976
  %s2365 = scalar_lea.vmem %s0, 256
  %v2366 = vld [vmem:[%s2365] sm:$0xf]
  %v2367 = vunpack.c.l.bf16 %v2366
  %v2368 = vunpack.c.h.bf16 %v2366
  %s2369 = scalar_lea.vmem %s1, 1696
  %s2370 = scalar_lea.vmem %s0, 1456
  %v2371 = vld [vmem:[%s2370] sm:$0xf]
  %v2372 = vunpack.c.l.bf16 %v2371
  %v2373 = vunpack.c.h.bf16 %v2371
  %s2374 = scalar_lea.vmem %s1, 496
  %s2375 = scalar_lea.vmem %s0, 736
  %v2376 = vld [vmem:[%s2375] sm:$0xf]
  %v2377 = vunpack.c.l.bf16 %v2376
  %v2378 = vunpack.c.h.bf16 %v2376
  %s2379 = scalar_lea.vmem %s1, 1216
  %s2380 = scalar_lea.vmem %s0, 16
  %v2381 = vld [vmem:[%s2380] sm:$0xf]
  %v2382 = vunpack.c.l.bf16 %v2381
  %v2383 = vunpack.c.h.bf16 %v2381
  %s2384 = scalar_lea.vmem %s1, 1936
  %s2385 = scalar_lea.vmem %s0, 1960
  %v2386 = vld [vmem:[%s2385] sm:$0xf]
  %v2387 = vunpack.c.l.bf16 %v2386
  %v2388 = vunpack.c.h.bf16 %v2386
  %s2389 = scalar_lea.vmem %s1, 40
  %s2390 = scalar_lea.vmem %s0, 1240
  %v2391 = vld [vmem:[%s2390] sm:$0xf]
  %v2392 = vunpack.c.l.bf16 %v2391
  %v2393 = vunpack.c.h.bf16 %v2391
  %s2394 = scalar_lea.vmem %s1, 760
  %s2395 = scalar_lea.vmem %s0, 520
  %v2396 = vld [vmem:[%s2395] sm:$0xf]
  %v2397 = vunpack.c.l.bf16 %v2396
  %v2398 = vunpack.c.h.bf16 %v2396
  %s2399 = scalar_lea.vmem %s1, 1480
  %s2400 = scalar_lea.vmem %s0, 1720
  %v2401 = vld [vmem:[%s2400] sm:$0xf]
  %v2402 = vunpack.c.l.bf16 %v2401
  %v2403 = vunpack.c.h.bf16 %v2401
  %s2404 = scalar_lea.vmem %s1, 280
  %s2405 = scalar_lea.vmem %s0, 1000
  %v2406 = vld [vmem:[%s2405] sm:$0xf]
  %v2407 = vunpack.c.l.bf16 %v2406
  %v2408 = vunpack.c.h.bf16 %v2406
  %s2409 = scalar_lea.vmem %s1, 1000
  %s2410 = scalar_lea.vmem %s0, 280
  %v2411 = vld [vmem:[%s2410] sm:$0xf]
  %v2412 = vunpack.c.l.bf16 %v2411
  %v2413 = vunpack.c.h.bf16 %v2411
  %s2414 = scalar_lea.vmem %s1, 1720
  %s2415 = scalar_lea.vmem %s0, 1480
  %v2416 = vld [vmem:[%s2415] sm:$0xf]
  %v2417 = vunpack.c.l.bf16 %v2416
  %v2418 = vunpack.c.h.bf16 %v2416
  %s2419 = scalar_lea.vmem %s1, 520
  %s2420 = scalar_lea.vmem %s0, 760
  %v2421 = vld [vmem:[%s2420] sm:$0xf]
  %v2422 = vunpack.c.l.bf16 %v2421
  %v2423 = vunpack.c.h.bf16 %v2421
  %s2424 = scalar_lea.vmem %s1, 1240
  %s2425 = scalar_lea.vmem %s0, 40
  %v2426 = vld [vmem:[%s2425] sm:$0xf]
  %v2427 = vunpack.c.l.bf16 %v2426
  %v2428 = vunpack.c.h.bf16 %v2426
  %s2429 = scalar_lea.vmem %s1, 1960
  %s2430 = scalar_lea.vmem %s0, 1984
  %v2431 = vld [vmem:[%s2430] sm:$0xf]
  %v2432 = vunpack.c.l.bf16 %v2431
  %v2433 = vunpack.c.h.bf16 %v2431
  %s2434 = scalar_lea.vmem %s1, 64
  %s2435 = scalar_lea.vmem %s0, 1264
  %v2436 = vld [vmem:[%s2435] sm:$0xf]
  %v2437 = vunpack.c.l.bf16 %v2436
  %v2438 = vunpack.c.h.bf16 %v2436
  %s2439 = scalar_lea.vmem %s1, 784
  %s2440 = scalar_lea.vmem %s0, 544
  %v2441 = vld [vmem:[%s2440] sm:$0xf]
  %v2442 = vunpack.c.l.bf16 %v2441
  %v2443 = vunpack.c.h.bf16 %v2441
  %s2444 = scalar_lea.vmem %s1, 1504
  %s2445 = scalar_lea.vmem %s0, 1744
  %v2446 = vld [vmem:[%s2445] sm:$0xf]
  %v2447 = vunpack.c.l.bf16 %v2446
  %v2448 = vunpack.c.h.bf16 %v2446
  %s2449 = scalar_lea.vmem %s1, 304
  %s2450 = scalar_lea.vmem %s0, 1024
  %v2451 = vld [vmem:[%s2450] sm:$0xf]
  %v2452 = vunpack.c.l.bf16 %v2451
  %v2453 = vunpack.c.h.bf16 %v2451
  %s2454 = scalar_lea.vmem %s1, 1024
  %s2455 = scalar_lea.vmem %s0, 304
  %v2456 = vld [vmem:[%s2455] sm:$0xf]
  %v2457 = vunpack.c.l.bf16 %v2456
  %v2458 = vunpack.c.h.bf16 %v2456
  %s2459 = scalar_lea.vmem %s1, 1744
  %s2460 = scalar_lea.vmem %s0, 1504
  %v2461 = vld [vmem:[%s2460] sm:$0xf]
  %v2462 = vunpack.c.l.bf16 %v2461
  %v2463 = vunpack.c.h.bf16 %v2461
  %s2464 = scalar_lea.vmem %s1, 544
  %s2465 = scalar_lea.vmem %s0, 784
  %v2466 = vld [vmem:[%s2465] sm:$0xf]
  %v2467 = vunpack.c.l.bf16 %v2466
  %v2468 = vunpack.c.h.bf16 %v2466
  %s2469 = scalar_lea.vmem %s1, 1264
  %s2470 = scalar_lea.vmem %s0, 64
  %v2471 = vld [vmem:[%s2470] sm:$0xf]
  %v2472 = vunpack.c.l.bf16 %v2471
  %v2473 = vunpack.c.h.bf16 %v2471
  %s2474 = scalar_lea.vmem %s1, 1984
  %s2475 = scalar_lea.vmem %s0, 2008
  %v2476 = vld [vmem:[%s2475] sm:$0xf]
  %v2477 = vunpack.c.l.bf16 %v2476
  %v2478 = vunpack.c.h.bf16 %v2476
  %s2479 = scalar_lea.vmem %s1, 88
  %s2480 = scalar_lea.vmem %s0, 1288
  %v2481 = vld [vmem:[%s2480] sm:$0xf]
  %v2482 = vunpack.c.l.bf16 %v2481
  %v2483 = vunpack.c.h.bf16 %v2481
  %s2484 = scalar_lea.vmem %s1, 808
  %s2485 = scalar_lea.vmem %s0, 568
  %v2486 = vld [vmem:[%s2485] sm:$0xf]
  %v2487 = vunpack.c.l.bf16 %v2486
  %v2488 = vunpack.c.h.bf16 %v2486
  %s2489 = scalar_lea.vmem %s1, 1528
  %s2490 = scalar_lea.vmem %s0, 1768
  %v2491 = vld [vmem:[%s2490] sm:$0xf]
  %v2492 = vunpack.c.l.bf16 %v2491
  %v2493 = vunpack.c.h.bf16 %v2491
  %s2494 = scalar_lea.vmem %s1, 328
  %s2495 = scalar_lea.vmem %s0, 1048
  %v2496 = vld [vmem:[%s2495] sm:$0xf]
  %v2497 = vunpack.c.l.bf16 %v2496
  %v2498 = vunpack.c.h.bf16 %v2496
  %s2499 = scalar_lea.vmem %s1, 1048
  %s2500 = scalar_lea.vmem %s0, 328
  %v2501 = vld [vmem:[%s2500] sm:$0xf]
  %v2502 = vunpack.c.l.bf16 %v2501
  %v2503 = vunpack.c.h.bf16 %v2501
  %s2504 = scalar_lea.vmem %s1, 1768
  %s2505 = scalar_lea.vmem %s0, 1528
  %v2506 = vld [vmem:[%s2505] sm:$0xf]
  %v2507 = vunpack.c.l.bf16 %v2506
  %v2508 = vunpack.c.h.bf16 %v2506
  %s2509 = scalar_lea.vmem %s1, 568
  %s2510 = scalar_lea.vmem %s0, 808
  %v2511 = vld [vmem:[%s2510] sm:$0xf]
  %v2512 = vunpack.c.l.bf16 %v2511
  %v2513 = vunpack.c.h.bf16 %v2511
  %s2514 = scalar_lea.vmem %s1, 1288
  %s2515 = scalar_lea.vmem %s0, 88
  %v2516 = vld [vmem:[%s2515] sm:$0xf]
  %v2517 = vunpack.c.l.bf16 %v2516
  %v2518 = vunpack.c.h.bf16 %v2516
  %s2519 = scalar_lea.vmem %s1, 2008
  %s2520 = scalar_lea.vmem %s0, 2032
  %v2521 = vld [vmem:[%s2520] sm:$0xf]
  %v2522 = vunpack.c.l.bf16 %v2521
  %v2523 = vunpack.c.h.bf16 %v2521
  %s2524 = scalar_lea.vmem %s1, 112
  %s2525 = scalar_lea.vmem %s0, 1312
  %v2526 = vld [vmem:[%s2525] sm:$0xf]
  %v2527 = vunpack.c.l.bf16 %v2526
  %v2528 = vunpack.c.h.bf16 %v2526
  %s2529 = scalar_lea.vmem %s1, 832
  %s2530 = scalar_lea.vmem %s0, 592
  %v2531 = vld [vmem:[%s2530] sm:$0xf]
  %v2532 = vunpack.c.l.bf16 %v2531
  %v2533 = vunpack.c.h.bf16 %v2531
  %s2534 = scalar_lea.vmem %s1, 1552
  %s2535 = scalar_lea.vmem %s0, 1792
  %v2536 = vld [vmem:[%s2535] sm:$0xf]
  %v2537 = vunpack.c.l.bf16 %v2536
  %v2538 = vunpack.c.h.bf16 %v2536
  %s2539 = scalar_lea.vmem %s1, 352
  %s2540 = scalar_lea.vmem %s0, 1072
  %v2541 = vld [vmem:[%s2540] sm:$0xf]
  %v2542 = vunpack.c.l.bf16 %v2541
  %v2543 = vunpack.c.h.bf16 %v2541
  %s2544 = scalar_lea.vmem %s1, 1072
  %s2545 = scalar_lea.vmem %s0, 352
  %v2546 = vld [vmem:[%s2545] sm:$0xf]
  %v2547 = vunpack.c.l.bf16 %v2546
  %v2548 = vunpack.c.h.bf16 %v2546
  %s2549 = scalar_lea.vmem %s1, 1792
  %s2550 = scalar_lea.vmem %s0, 1552
  %v2551 = vld [vmem:[%s2550] sm:$0xf]
  %v2552 = vunpack.c.l.bf16 %v2551
  %v2553 = vunpack.c.h.bf16 %v2551
  %s2554 = scalar_lea.vmem %s1, 592
  %s2555 = scalar_lea.vmem %s0, 832
  %v2556 = vld [vmem:[%s2555] sm:$0xf]
  %v2557 = vunpack.c.l.bf16 %v2556
  %v2558 = vunpack.c.h.bf16 %v2556
  %s2559 = scalar_lea.vmem %s1, 1312
  %s2560 = scalar_lea.vmem %s0, 112
  %v2561 = vld [vmem:[%s2560] sm:$0xf]
  %v2562 = vunpack.c.l.bf16 %v2561
  %v2563 = vunpack.c.h.bf16 %v2561
  %s2564 = scalar_lea.vmem %s1, 2032
  %s2565 = scalar_lea.vmem %s0, 2056
  %v2566 = vld [vmem:[%s2565] sm:$0xf]
  %v2567 = vunpack.c.l.bf16 %v2566
  %v2568 = vunpack.c.h.bf16 %v2566
  %s2569 = scalar_lea.vmem %s1, 136
  %s2570 = scalar_lea.vmem %s0, 1336
  %v2571 = vld [vmem:[%s2570] sm:$0xf]
  %v2572 = vunpack.c.l.bf16 %v2571
  %v2573 = vunpack.c.h.bf16 %v2571
  %s2574 = scalar_lea.vmem %s1, 856
  %s2575 = scalar_lea.vmem %s0, 616
  %v2576 = vld [vmem:[%s2575] sm:$0xf]
  %v2577 = vunpack.c.l.bf16 %v2576
  %v2578 = vunpack.c.h.bf16 %v2576
  %s2579 = scalar_lea.vmem %s1, 1576
  %s2580 = scalar_lea.vmem %s0, 1816
  %v2581 = vld [vmem:[%s2580] sm:$0xf]
  %v2582 = vunpack.c.l.bf16 %v2581
  %v2583 = vunpack.c.h.bf16 %v2581
  %s2584 = scalar_lea.vmem %s1, 376
  %s2585 = scalar_lea.vmem %s0, 1096
  %v2586 = vld [vmem:[%s2585] sm:$0xf]
  %v2587 = vunpack.c.l.bf16 %v2586
  %v2588 = vunpack.c.h.bf16 %v2586
  %s2589 = scalar_lea.vmem %s1, 1096
  %s2590 = scalar_lea.vmem %s0, 376
  %v2591 = vld [vmem:[%s2590] sm:$0xf]
  %v2592 = vunpack.c.l.bf16 %v2591
  %v2593 = vunpack.c.h.bf16 %v2591
  %s2594 = scalar_lea.vmem %s1, 1816
  %s2595 = scalar_lea.vmem %s0, 1576
  %v2596 = vld [vmem:[%s2595] sm:$0xf]
  %v2597 = vunpack.c.l.bf16 %v2596
  %v2598 = vunpack.c.h.bf16 %v2596
  %s2599 = scalar_lea.vmem %s1, 616
  %s2600 = scalar_lea.vmem %s0, 856
  %v2601 = vld [vmem:[%s2600] sm:$0xf]
  %v2602 = vunpack.c.l.bf16 %v2601
  %v2603 = vunpack.c.h.bf16 %v2601
  %s2604 = scalar_lea.vmem %s1, 1336
  %s2605 = scalar_lea.vmem %s0, 136
  %v2606 = vld [vmem:[%s2605] sm:$0xf]
  %v2607 = vunpack.c.l.bf16 %v2606
  %v2608 = vunpack.c.h.bf16 %v2606
  %s2609 = scalar_lea.vmem %s1, 2056
  %s2610 = scalar_lea.vmem %s0, 2080
  %v2611 = vld [vmem:[%s2610] sm:$0xf]
  %v2612 = vunpack.c.l.bf16 %v2611
  %v2613 = vunpack.c.h.bf16 %v2611
  %s2614 = scalar_lea.vmem %s1, 160
  %s2615 = scalar_lea.vmem %s0, 1360
  %v2616 = vld [vmem:[%s2615] sm:$0xf]
  %v2617 = vunpack.c.l.bf16 %v2616
  %v2618 = vunpack.c.h.bf16 %v2616
  %s2619 = scalar_lea.vmem %s1, 880
  %s2620 = scalar_lea.vmem %s0, 640
  %v2621 = vld [vmem:[%s2620] sm:$0xf]
  %v2622 = vunpack.c.l.bf16 %v2621
  %v2623 = vunpack.c.h.bf16 %v2621
  %s2624 = scalar_lea.vmem %s1, 1600
  %s2625 = scalar_lea.vmem %s0, 1840
  %v2626 = vld [vmem:[%s2625] sm:$0xf]
  %v2627 = vunpack.c.l.bf16 %v2626
  %v2628 = vunpack.c.h.bf16 %v2626
  %s2629 = scalar_lea.vmem %s1, 400
  %s2630 = scalar_lea.vmem %s0, 1120
  %v2631 = vld [vmem:[%s2630] sm:$0xf]
  %v2632 = vunpack.c.l.bf16 %v2631
  %v2633 = vunpack.c.h.bf16 %v2631
  %s2634 = scalar_lea.vmem %s1, 1120
  %s2635 = scalar_lea.vmem %s0, 400
  %v2636 = vld [vmem:[%s2635] sm:$0xf]
  %v2637 = vunpack.c.l.bf16 %v2636
  %v2638 = vunpack.c.h.bf16 %v2636
  %s2639 = scalar_lea.vmem %s1, 1840
  %s2640 = scalar_lea.vmem %s0, 1600
  %v2641 = vld [vmem:[%s2640] sm:$0xf]
  %v2642 = vunpack.c.l.bf16 %v2641
  %v2643 = vunpack.c.h.bf16 %v2641
  %s2644 = scalar_lea.vmem %s1, 640
  %s2645 = scalar_lea.vmem %s0, 880
  %v2646 = vld [vmem:[%s2645] sm:$0xf]
  %v2647 = vunpack.c.l.bf16 %v2646
  %v2648 = vunpack.c.h.bf16 %v2646
  %s2649 = scalar_lea.vmem %s1, 1360
  %s2650 = scalar_lea.vmem %s0, 160
  %v2651 = vld [vmem:[%s2650] sm:$0xf]
  %v2652 = vunpack.c.l.bf16 %v2651
  %v2653 = vunpack.c.h.bf16 %v2651
  %s2654 = scalar_lea.vmem %s1, 2080
  %s2655 = scalar_lea.vmem %s0, 2104
  %v2656 = vld [vmem:[%s2655] sm:$0xf]
  %v2657 = vunpack.c.l.bf16 %v2656
  %v2658 = vunpack.c.h.bf16 %v2656
  %s2659 = scalar_lea.vmem %s1, 184
  %s2660 = scalar_lea.vmem %s0, 1384
  %v2661 = vld [vmem:[%s2660] sm:$0xf]
  %v2662 = vunpack.c.l.bf16 %v2661
  %v2663 = vunpack.c.h.bf16 %v2661
  %s2664 = scalar_lea.vmem %s1, 904
  %s2665 = scalar_lea.vmem %s0, 664
  %v2666 = vld [vmem:[%s2665] sm:$0xf]
  %v2667 = vunpack.c.l.bf16 %v2666
  %v2668 = vunpack.c.h.bf16 %v2666
  %s2669 = scalar_lea.vmem %s1, 1624
  %s2670 = scalar_lea.vmem %s0, 1864
  %v2671 = vld [vmem:[%s2670] sm:$0xf]
  %v2672 = vunpack.c.l.bf16 %v2671
  %v2673 = vunpack.c.h.bf16 %v2671
  %s2674 = scalar_lea.vmem %s1, 424
  %s2675 = scalar_lea.vmem %s0, 1144
  %v2676 = vld [vmem:[%s2675] sm:$0xf]
  %v2677 = vunpack.c.l.bf16 %v2676
  %v2678 = vunpack.c.h.bf16 %v2676
  %s2679 = scalar_lea.vmem %s1, 1144
  %s2680 = scalar_lea.vmem %s0, 424
  %v2681 = vld [vmem:[%s2680] sm:$0xf]
  %v2682 = vunpack.c.l.bf16 %v2681
  %v2683 = vunpack.c.h.bf16 %v2681
  %s2684 = scalar_lea.vmem %s1, 1864
  %s2685 = scalar_lea.vmem %s0, 1624
  %v2686 = vld [vmem:[%s2685] sm:$0xf]
  %v2687 = vunpack.c.l.bf16 %v2686
  %v2688 = vunpack.c.h.bf16 %v2686
  %s2689 = scalar_lea.vmem %s1, 664
  %s2690 = scalar_lea.vmem %s0, 904
  %v2691 = vld [vmem:[%s2690] sm:$0xf]
  %v2692 = vunpack.c.l.bf16 %v2691
  %v2693 = vunpack.c.h.bf16 %v2691
  %s2694 = scalar_lea.vmem %s1, 1384
  %s2695 = scalar_lea.vmem %s0, 184
  %v2696 = vld [vmem:[%s2695] sm:$0xf]
  %v2697 = vunpack.c.l.bf16 %v2696
  %v2698 = vunpack.c.h.bf16 %v2696
  %s2699 = scalar_lea.vmem %s1, 2104
  %s2700 = scalar_lea.vmem %s0, 2128
  %v2701 = vld [vmem:[%s2700] sm:$0xf]
  %v2702 = vunpack.c.l.bf16 %v2701
  %v2703 = vunpack.c.h.bf16 %v2701
  %s2704 = scalar_lea.vmem %s1, 208
  %s2705 = scalar_lea.vmem %s0, 1408
  %v2706 = vld [vmem:[%s2705] sm:$0xf]
  %v2707 = vunpack.c.l.bf16 %v2706
  %v2708 = vunpack.c.h.bf16 %v2706
  %s2709 = scalar_lea.vmem %s1, 928
  %s2710 = scalar_lea.vmem %s0, 688
  %v2711 = vld [vmem:[%s2710] sm:$0xf]
  %v2712 = vunpack.c.l.bf16 %v2711
  %v2713 = vunpack.c.h.bf16 %v2711
  %s2714 = scalar_lea.vmem %s1, 1648
  %s2715 = scalar_lea.vmem %s0, 1888
  %v2716 = vld [vmem:[%s2715] sm:$0xf]
  %v2717 = vunpack.c.l.bf16 %v2716
  %v2718 = vunpack.c.h.bf16 %v2716
  %s2719 = scalar_lea.vmem %s1, 448
  %s2720 = scalar_lea.vmem %s0, 1168
  %v2721 = vld [vmem:[%s2720] sm:$0xf]
  %v2722 = vunpack.c.l.bf16 %v2721
  %v2723 = vunpack.c.h.bf16 %v2721
  %s2724 = scalar_lea.vmem %s1, 1168
  %s2725 = scalar_lea.vmem %s0, 448
  %v2726 = vld [vmem:[%s2725] sm:$0xf]
  %v2727 = vunpack.c.l.bf16 %v2726
  %v2728 = vunpack.c.h.bf16 %v2726
  %s2729 = scalar_lea.vmem %s1, 1888
  %s2730 = scalar_lea.vmem %s0, 1648
  %v2731 = vld [vmem:[%s2730] sm:$0xf]
  %v2732 = vunpack.c.l.bf16 %v2731
  %v2733 = vunpack.c.h.bf16 %v2731
  %s2734 = scalar_lea.vmem %s1, 688
  %s2735 = scalar_lea.vmem %s0, 928
  %v2736 = vld [vmem:[%s2735] sm:$0xf]
  %v2737 = vunpack.c.l.bf16 %v2736
  %v2738 = vunpack.c.h.bf16 %v2736
  %s2739 = scalar_lea.vmem %s1, 1408
  %s2740 = scalar_lea.vmem %s0, 208
  %v2741 = vld [vmem:[%s2740] sm:$0xf]
  %v2742 = vunpack.c.l.bf16 %v2741
  %v2743 = vunpack.c.h.bf16 %v2741
  %s2744 = scalar_lea.vmem %s1, 2128
  %s2745 = scalar_lea.vmem %s0, 2152
  %v2746 = vld [vmem:[%s2745] sm:$0xf]
  %v2747 = vunpack.c.l.bf16 %v2746
  %v2748 = vunpack.c.h.bf16 %v2746
  %s2749 = scalar_lea.vmem %s1, 232
  %s2750 = scalar_lea.vmem %s0, 1432
  %v2751 = vld [vmem:[%s2750] sm:$0xf]
  %v2752 = vunpack.c.l.bf16 %v2751
  %v2753 = vunpack.c.h.bf16 %v2751
  %s2754 = scalar_lea.vmem %s1, 952
  %s2755 = scalar_lea.vmem %s0, 712
  %v2756 = vld [vmem:[%s2755] sm:$0xf]
  %v2757 = vunpack.c.l.bf16 %v2756
  %v2758 = vunpack.c.h.bf16 %v2756
  %s2759 = scalar_lea.vmem %s1, 1672
  %s2760 = scalar_lea.vmem %s0, 1912
  %v2761 = vld [vmem:[%s2760] sm:$0xf]
  %v2762 = vunpack.c.l.bf16 %v2761
  %v2763 = vunpack.c.h.bf16 %v2761
  %s2764 = scalar_lea.vmem %s1, 472
  %s2765 = scalar_lea.vmem %s0, 1192
  %v2766 = vld [vmem:[%s2765] sm:$0xf]
  %v2767 = vunpack.c.l.bf16 %v2766
  %v2768 = vunpack.c.h.bf16 %v2766
  %s2769 = scalar_lea.vmem %s1, 1192
  %s2770 = scalar_lea.vmem %s0, 472
  %v2771 = vld [vmem:[%s2770] sm:$0xf]
  %v2772 = vunpack.c.l.bf16 %v2771
  %v2773 = vunpack.c.h.bf16 %v2771
  %s2774 = scalar_lea.vmem %s1, 1912
  %s2775 = scalar_lea.vmem %s0, 1672
  %v2776 = vld [vmem:[%s2775] sm:$0xf]
  %v2777 = vunpack.c.l.bf16 %v2776
  %v2778 = vunpack.c.h.bf16 %v2776
  %s2779 = scalar_lea.vmem %s1, 712
  %s2780 = scalar_lea.vmem %s0, 952
  %v2781 = vld [vmem:[%s2780] sm:$0xf]
  %v2782 = vunpack.c.l.bf16 %v2781
  %v2783 = vunpack.c.h.bf16 %v2781
  %s2784 = scalar_lea.vmem %s1, 1432
  %s2785 = scalar_lea.vmem %s0, 232
  %v2786 = vld [vmem:[%s2785] sm:$0xf]
  %v2787 = vunpack.c.l.bf16 %v2786
  %v2788 = vunpack.c.h.bf16 %v2786
  %s2789 = scalar_lea.vmem %s1, 2152
  %s2790 = scalar_lea.vmem %s0, 1940
  %v2791 = vld [vmem:[%s2790] sm:$0xf]
  %v2792 = vunpack.c.l.bf16 %v2791
  %v2793 = vunpack.c.h.bf16 %v2791
  %s2794 = scalar_lea.vmem %s1, 20
  %s2795 = scalar_lea.vmem %s2794, 4294967292
  %v2796 = vpack.c.bf16 %v2792, %v2342
  %2797 = vst [vmem:[%s2795] sm:$0xff] %v2796
  %s2798 = scalar_lea.vmem %s0, 1220
  %v2799 = vld [vmem:[%s2798] sm:$0xf]
  %v2800 = vunpack.c.l.bf16 %v2799
  %v2801 = vunpack.c.h.bf16 %v2799
  %s2802 = scalar_lea.vmem %s1, 740
  %s2803 = scalar_lea.vmem %s2802, 4294967292
  %v2804 = vpack.c.bf16 %v2800, %v2347
  %2805 = vst [vmem:[%s2803] sm:$0xff] %v2804
  %s2806 = scalar_lea.vmem %s0, 500
  %v2807 = vld [vmem:[%s2806] sm:$0xf]
  %v2808 = vunpack.c.l.bf16 %v2807
  %v2809 = vunpack.c.h.bf16 %v2807
  %s2810 = scalar_lea.vmem %s1, 1460
  %s2811 = scalar_lea.vmem %s2810, 4294967292
  %v2812 = vpack.c.bf16 %v2808, %v2352
  %2813 = vst [vmem:[%s2811] sm:$0xff] %v2812
  %s2814 = scalar_lea.vmem %s0, 1700
  %v2815 = vld [vmem:[%s2814] sm:$0xf]
  %v2816 = vunpack.c.l.bf16 %v2815
  %v2817 = vunpack.c.h.bf16 %v2815
  %s2818 = scalar_lea.vmem %s1, 260
  %s2819 = scalar_lea.vmem %s2818, 4294967292
  %v2820 = vpack.c.bf16 %v2816, %v2357
  %2821 = vst [vmem:[%s2819] sm:$0xff] %v2820
  %s2822 = scalar_lea.vmem %s0, 980
  %v2823 = vld [vmem:[%s2822] sm:$0xf]
  %v2824 = vunpack.c.l.bf16 %v2823
  %v2825 = vunpack.c.h.bf16 %v2823
  %s2826 = scalar_lea.vmem %s1, 980
  %s2827 = scalar_lea.vmem %s2826, 4294967292
  %v2828 = vpack.c.bf16 %v2824, %v2362
  %2829 = vst [vmem:[%s2827] sm:$0xff] %v2828
  %s2830 = scalar_lea.vmem %s0, 260
  %v2831 = vld [vmem:[%s2830] sm:$0xf]
  %v2832 = vunpack.c.l.bf16 %v2831
  %v2833 = vunpack.c.h.bf16 %v2831
  %s2834 = scalar_lea.vmem %s1, 1700
  %s2835 = scalar_lea.vmem %s2834, 4294967292
  %v2836 = vpack.c.bf16 %v2832, %v2367
  %2837 = vst [vmem:[%s2835] sm:$0xff] %v2836
  %s2838 = scalar_lea.vmem %s0, 1460
  %v2839 = vld [vmem:[%s2838] sm:$0xf]
  %v2840 = vunpack.c.l.bf16 %v2839
  %v2841 = vunpack.c.h.bf16 %v2839
  %s2842 = scalar_lea.vmem %s1, 500
  %s2843 = scalar_lea.vmem %s2842, 4294967292
  %v2844 = vpack.c.bf16 %v2840, %v2372
  %2845 = vst [vmem:[%s2843] sm:$0xff] %v2844
  %s2846 = scalar_lea.vmem %s0, 740
  %v2847 = vld [vmem:[%s2846] sm:$0xf]
  %v2848 = vunpack.c.l.bf16 %v2847
  %v2849 = vunpack.c.h.bf16 %v2847
  %s2850 = scalar_lea.vmem %s1, 1220
  %s2851 = scalar_lea.vmem %s2850, 4294967292
  %v2852 = vpack.c.bf16 %v2848, %v2377
  %2853 = vst [vmem:[%s2851] sm:$0xff] %v2852
  %s2854 = scalar_lea.vmem %s0, 20
  %v2855 = vld [vmem:[%s2854] sm:$0xf]
  %v2856 = vunpack.c.l.bf16 %v2855
  %v2857 = vunpack.c.h.bf16 %v2855
  %s2858 = scalar_lea.vmem %s1, 1940
  %s2859 = scalar_lea.vmem %s2858, 4294967292
  %v2860 = vpack.c.bf16 %v2856, %v2382
  %2861 = vst [vmem:[%s2859] sm:$0xff] %v2860
  %s2862 = scalar_lea.vmem %s0, 1964
  %v2863 = vld [vmem:[%s2862] sm:$0xf]
  %v2864 = vunpack.c.l.bf16 %v2863
  %v2865 = vunpack.c.h.bf16 %v2863
  %s2866 = scalar_lea.vmem %s1, 44
  %s2867 = scalar_lea.vmem %s2866, 4294967292
  %v2868 = vpack.c.bf16 %v2864, %v2387
  %2869 = vst [vmem:[%s2867] sm:$0xff] %v2868
  %s2870 = scalar_lea.vmem %s0, 1244
  %v2871 = vld [vmem:[%s2870] sm:$0xf]
  %v2872 = vunpack.c.l.bf16 %v2871
  %v2873 = vunpack.c.h.bf16 %v2871
  %s2874 = scalar_lea.vmem %s1, 764
  %s2875 = scalar_lea.vmem %s2874, 4294967292
  %v2876 = vpack.c.bf16 %v2872, %v2392
  %2877 = vst [vmem:[%s2875] sm:$0xff] %v2876
  %s2878 = scalar_lea.vmem %s0, 524
  %v2879 = vld [vmem:[%s2878] sm:$0xf]
  %v2880 = vunpack.c.l.bf16 %v2879
  %v2881 = vunpack.c.h.bf16 %v2879
  %s2882 = scalar_lea.vmem %s1, 1484
  %s2883 = scalar_lea.vmem %s2882, 4294967292
  %v2884 = vpack.c.bf16 %v2880, %v2397
  %2885 = vst [vmem:[%s2883] sm:$0xff] %v2884
  %s2886 = scalar_lea.vmem %s0, 1724
  %v2887 = vld [vmem:[%s2886] sm:$0xf]
  %v2888 = vunpack.c.l.bf16 %v2887
  %v2889 = vunpack.c.h.bf16 %v2887
  %s2890 = scalar_lea.vmem %s1, 284
  %s2891 = scalar_lea.vmem %s2890, 4294967292
  %v2892 = vpack.c.bf16 %v2888, %v2402
  %2893 = vst [vmem:[%s2891] sm:$0xff] %v2892
  %s2894 = scalar_lea.vmem %s0, 1004
  %v2895 = vld [vmem:[%s2894] sm:$0xf]
  %v2896 = vunpack.c.l.bf16 %v2895
  %v2897 = vunpack.c.h.bf16 %v2895
  %s2898 = scalar_lea.vmem %s1, 1004
  %s2899 = scalar_lea.vmem %s2898, 4294967292
  %v2900 = vpack.c.bf16 %v2896, %v2407
  %2901 = vst [vmem:[%s2899] sm:$0xff] %v2900
  %s2902 = scalar_lea.vmem %s0, 284
  %v2903 = vld [vmem:[%s2902] sm:$0xf]
  %v2904 = vunpack.c.l.bf16 %v2903
  %v2905 = vunpack.c.h.bf16 %v2903
  %s2906 = scalar_lea.vmem %s1, 1724
  %s2907 = scalar_lea.vmem %s2906, 4294967292
  %v2908 = vpack.c.bf16 %v2904, %v2412
  %2909 = vst [vmem:[%s2907] sm:$0xff] %v2908
  %s2910 = scalar_lea.vmem %s0, 1484
  %v2911 = vld [vmem:[%s2910] sm:$0xf]
  %v2912 = vunpack.c.l.bf16 %v2911
  %v2913 = vunpack.c.h.bf16 %v2911
  %s2914 = scalar_lea.vmem %s1, 524
  %s2915 = scalar_lea.vmem %s2914, 4294967292
  %v2916 = vpack.c.bf16 %v2912, %v2417
  %2917 = vst [vmem:[%s2915] sm:$0xff] %v2916
  %s2918 = scalar_lea.vmem %s0, 764
  %v2919 = vld [vmem:[%s2918] sm:$0xf]
  %v2920 = vunpack.c.l.bf16 %v2919
  %v2921 = vunpack.c.h.bf16 %v2919
  %s2922 = scalar_lea.vmem %s1, 1244
  %s2923 = scalar_lea.vmem %s2922, 4294967292
  %v2924 = vpack.c.bf16 %v2920, %v2422
  %2925 = vst [vmem:[%s2923] sm:$0xff] %v2924
  %s2926 = scalar_lea.vmem %s0, 44
  %v2927 = vld [vmem:[%s2926] sm:$0xf]
  %v2928 = vunpack.c.l.bf16 %v2927
  %v2929 = vunpack.c.h.bf16 %v2927
  %s2930 = scalar_lea.vmem %s1, 1964
  %s2931 = scalar_lea.vmem %s2930, 4294967292
  %v2932 = vpack.c.bf16 %v2928, %v2427
  %2933 = vst [vmem:[%s2931] sm:$0xff] %v2932
  %s2934 = scalar_lea.vmem %s0, 1988
  %v2935 = vld [vmem:[%s2934] sm:$0xf]
  %v2936 = vunpack.c.l.bf16 %v2935
  %v2937 = vunpack.c.h.bf16 %v2935
  %s2938 = scalar_lea.vmem %s1, 68
  %s2939 = scalar_lea.vmem %s2938, 4294967292
  %v2940 = vpack.c.bf16 %v2936, %v2432
  %2941 = vst [vmem:[%s2939] sm:$0xff] %v2940
  %s2942 = scalar_lea.vmem %s0, 1268
  %v2943 = vld [vmem:[%s2942] sm:$0xf]
  %v2944 = vunpack.c.l.bf16 %v2943
  %v2945 = vunpack.c.h.bf16 %v2943
  %s2946 = scalar_lea.vmem %s1, 788
  %s2947 = scalar_lea.vmem %s2946, 4294967292
  %v2948 = vpack.c.bf16 %v2944, %v2437
  %2949 = vst [vmem:[%s2947] sm:$0xff] %v2948
  %s2950 = scalar_lea.vmem %s0, 548
  %v2951 = vld [vmem:[%s2950] sm:$0xf]
  %v2952 = vunpack.c.l.bf16 %v2951
  %v2953 = vunpack.c.h.bf16 %v2951
  %s2954 = scalar_lea.vmem %s1, 1508
  %s2955 = scalar_lea.vmem %s2954, 4294967292
  %v2956 = vpack.c.bf16 %v2952, %v2442
  %2957 = vst [vmem:[%s2955] sm:$0xff] %v2956
  %s2958 = scalar_lea.vmem %s0, 1748
  %v2959 = vld [vmem:[%s2958] sm:$0xf]
  %v2960 = vunpack.c.l.bf16 %v2959
  %v2961 = vunpack.c.h.bf16 %v2959
  %s2962 = scalar_lea.vmem %s1, 308
  %s2963 = scalar_lea.vmem %s2962, 4294967292
  %v2964 = vpack.c.bf16 %v2960, %v2447
  %2965 = vst [vmem:[%s2963] sm:$0xff] %v2964
  %s2966 = scalar_lea.vmem %s0, 1028
  %v2967 = vld [vmem:[%s2966] sm:$0xf]
  %v2968 = vunpack.c.l.bf16 %v2967
  %v2969 = vunpack.c.h.bf16 %v2967
  %s2970 = scalar_lea.vmem %s1, 1028
  %s2971 = scalar_lea.vmem %s2970, 4294967292
  %v2972 = vpack.c.bf16 %v2968, %v2452
  %2973 = vst [vmem:[%s2971] sm:$0xff] %v2972
  %s2974 = scalar_lea.vmem %s0, 308
  %v2975 = vld [vmem:[%s2974] sm:$0xf]
  %v2976 = vunpack.c.l.bf16 %v2975
  %v2977 = vunpack.c.h.bf16 %v2975
  %s2978 = scalar_lea.vmem %s1, 1748
  %s2979 = scalar_lea.vmem %s2978, 4294967292
  %v2980 = vpack.c.bf16 %v2976, %v2457
  %2981 = vst [vmem:[%s2979] sm:$0xff] %v2980
  %s2982 = scalar_lea.vmem %s0, 1508
  %v2983 = vld [vmem:[%s2982] sm:$0xf]
  %v2984 = vunpack.c.l.bf16 %v2983
  %v2985 = vunpack.c.h.bf16 %v2983
  %s2986 = scalar_lea.vmem %s1, 548
  %s2987 = scalar_lea.vmem %s2986, 4294967292
  %v2988 = vpack.c.bf16 %v2984, %v2462
  %2989 = vst [vmem:[%s2987] sm:$0xff] %v2988
  %s2990 = scalar_lea.vmem %s0, 788
  %v2991 = vld [vmem:[%s2990] sm:$0xf]
  %v2992 = vunpack.c.l.bf16 %v2991
  %v2993 = vunpack.c.h.bf16 %v2991
  %s2994 = scalar_lea.vmem %s1, 1268
  %s2995 = scalar_lea.vmem %s2994, 4294967292
  %v2996 = vpack.c.bf16 %v2992, %v2467
  %2997 = vst [vmem:[%s2995] sm:$0xff] %v2996
  %s2998 = scalar_lea.vmem %s0, 68
  %v2999 = vld [vmem:[%s2998] sm:$0xf]
  %v3000 = vunpack.c.l.bf16 %v2999
  %v3001 = vunpack.c.h.bf16 %v2999
  %s3002 = scalar_lea.vmem %s1, 1988
  %s3003 = scalar_lea.vmem %s3002, 4294967292
  %v3004 = vpack.c.bf16 %v3000, %v2472
  %3005 = vst [vmem:[%s3003] sm:$0xff] %v3004
  %s3006 = scalar_lea.vmem %s0, 2012
  %v3007 = vld [vmem:[%s3006] sm:$0xf]
  %v3008 = vunpack.c.l.bf16 %v3007
  %v3009 = vunpack.c.h.bf16 %v3007
  %s3010 = scalar_lea.vmem %s1, 92
  %s3011 = scalar_lea.vmem %s3010, 4294967292
  %v3012 = vpack.c.bf16 %v3008, %v2477
  %3013 = vst [vmem:[%s3011] sm:$0xff] %v3012
  %s3014 = scalar_lea.vmem %s0, 1292
  %v3015 = vld [vmem:[%s3014] sm:$0xf]
  %v3016 = vunpack.c.l.bf16 %v3015
  %v3017 = vunpack.c.h.bf16 %v3015
  %s3018 = scalar_lea.vmem %s1, 812
  %s3019 = scalar_lea.vmem %s3018, 4294967292
  %v3020 = vpack.c.bf16 %v3016, %v2482
  %3021 = vst [vmem:[%s3019] sm:$0xff] %v3020
  %s3022 = scalar_lea.vmem %s0, 572
  %v3023 = vld [vmem:[%s3022] sm:$0xf]
  %v3024 = vunpack.c.l.bf16 %v3023
  %v3025 = vunpack.c.h.bf16 %v3023
  %s3026 = scalar_lea.vmem %s1, 1532
  %s3027 = scalar_lea.vmem %s3026, 4294967292
  %v3028 = vpack.c.bf16 %v3024, %v2487
  %3029 = vst [vmem:[%s3027] sm:$0xff] %v3028
  %s3030 = scalar_lea.vmem %s0, 1772
  %v3031 = vld [vmem:[%s3030] sm:$0xf]
  %v3032 = vunpack.c.l.bf16 %v3031
  %v3033 = vunpack.c.h.bf16 %v3031
  %s3034 = scalar_lea.vmem %s1, 332
  %s3035 = scalar_lea.vmem %s3034, 4294967292
  %v3036 = vpack.c.bf16 %v3032, %v2492
  %3037 = vst [vmem:[%s3035] sm:$0xff] %v3036
  %s3038 = scalar_lea.vmem %s0, 1052
  %v3039 = vld [vmem:[%s3038] sm:$0xf]
  %v3040 = vunpack.c.l.bf16 %v3039
  %v3041 = vunpack.c.h.bf16 %v3039
  %s3042 = scalar_lea.vmem %s1, 1052
  %s3043 = scalar_lea.vmem %s3042, 4294967292
  %v3044 = vpack.c.bf16 %v3040, %v2497
  %3045 = vst [vmem:[%s3043] sm:$0xff] %v3044
  %s3046 = scalar_lea.vmem %s0, 332
  %v3047 = vld [vmem:[%s3046] sm:$0xf]
  %v3048 = vunpack.c.l.bf16 %v3047
  %v3049 = vunpack.c.h.bf16 %v3047
  %s3050 = scalar_lea.vmem %s1, 1772
  %s3051 = scalar_lea.vmem %s3050, 4294967292
  %v3052 = vpack.c.bf16 %v3048, %v2502
  %3053 = vst [vmem:[%s3051] sm:$0xff] %v3052
  %s3054 = scalar_lea.vmem %s0, 1532
  %v3055 = vld [vmem:[%s3054] sm:$0xf]
  %v3056 = vunpack.c.l.bf16 %v3055
  %v3057 = vunpack.c.h.bf16 %v3055
  %s3058 = scalar_lea.vmem %s1, 572
  %s3059 = scalar_lea.vmem %s3058, 4294967292
  %v3060 = vpack.c.bf16 %v3056, %v2507
  %3061 = vst [vmem:[%s3059] sm:$0xff] %v3060
  %s3062 = scalar_lea.vmem %s0, 812
  %v3063 = vld [vmem:[%s3062] sm:$0xf]
  %v3064 = vunpack.c.l.bf16 %v3063
  %v3065 = vunpack.c.h.bf16 %v3063
  %s3066 = scalar_lea.vmem %s1, 1292
  %s3067 = scalar_lea.vmem %s3066, 4294967292
  %v3068 = vpack.c.bf16 %v3064, %v2512
  %3069 = vst [vmem:[%s3067] sm:$0xff] %v3068
  %s3070 = scalar_lea.vmem %s0, 92
  %v3071 = vld [vmem:[%s3070] sm:$0xf]
  %v3072 = vunpack.c.l.bf16 %v3071
  %v3073 = vunpack.c.h.bf16 %v3071
  %s3074 = scalar_lea.vmem %s1, 2012
  %s3075 = scalar_lea.vmem %s3074, 4294967292
  %v3076 = vpack.c.bf16 %v3072, %v2517
  %3077 = vst [vmem:[%s3075] sm:$0xff] %v3076
  %s3078 = scalar_lea.vmem %s0, 2036
  %v3079 = vld [vmem:[%s3078] sm:$0xf]
  %v3080 = vunpack.c.l.bf16 %v3079
  %v3081 = vunpack.c.h.bf16 %v3079
  %s3082 = scalar_lea.vmem %s1, 116
  %s3083 = scalar_lea.vmem %s3082, 4294967292
  %v3084 = vpack.c.bf16 %v3080, %v2522
  %3085 = vst [vmem:[%s3083] sm:$0xff] %v3084
  %s3086 = scalar_lea.vmem %s0, 1316
  %v3087 = vld [vmem:[%s3086] sm:$0xf]
  %v3088 = vunpack.c.l.bf16 %v3087
  %v3089 = vunpack.c.h.bf16 %v3087
  %s3090 = scalar_lea.vmem %s1, 836
  %s3091 = scalar_lea.vmem %s3090, 4294967292
  %v3092 = vpack.c.bf16 %v3088, %v2527
  %3093 = vst [vmem:[%s3091] sm:$0xff] %v3092
  %s3094 = scalar_lea.vmem %s0, 596
  %v3095 = vld [vmem:[%s3094] sm:$0xf]
  %v3096 = vunpack.c.l.bf16 %v3095
  %v3097 = vunpack.c.h.bf16 %v3095
  %s3098 = scalar_lea.vmem %s1, 1556
  %s3099 = scalar_lea.vmem %s3098, 4294967292
  %v3100 = vpack.c.bf16 %v3096, %v2532
  %3101 = vst [vmem:[%s3099] sm:$0xff] %v3100
  %s3102 = scalar_lea.vmem %s0, 1796
  %v3103 = vld [vmem:[%s3102] sm:$0xf]
  %v3104 = vunpack.c.l.bf16 %v3103
  %v3105 = vunpack.c.h.bf16 %v3103
  %s3106 = scalar_lea.vmem %s1, 356
  %s3107 = scalar_lea.vmem %s3106, 4294967292
  %v3108 = vpack.c.bf16 %v3104, %v2537
  %3109 = vst [vmem:[%s3107] sm:$0xff] %v3108
  %s3110 = scalar_lea.vmem %s0, 1076
  %v3111 = vld [vmem:[%s3110] sm:$0xf]
  %v3112 = vunpack.c.l.bf16 %v3111
  %v3113 = vunpack.c.h.bf16 %v3111
  %s3114 = scalar_lea.vmem %s1, 1076
  %s3115 = scalar_lea.vmem %s3114, 4294967292
  %v3116 = vpack.c.bf16 %v3112, %v2542
  %3117 = vst [vmem:[%s3115] sm:$0xff] %v3116
  %s3118 = scalar_lea.vmem %s0, 356
  %v3119 = vld [vmem:[%s3118] sm:$0xf]
  %v3120 = vunpack.c.l.bf16 %v3119
  %v3121 = vunpack.c.h.bf16 %v3119
  %s3122 = scalar_lea.vmem %s1, 1796
  %s3123 = scalar_lea.vmem %s3122, 4294967292
  %v3124 = vpack.c.bf16 %v3120, %v2547
  %3125 = vst [vmem:[%s3123] sm:$0xff] %v3124
  %s3126 = scalar_lea.vmem %s0, 1556
  %v3127 = vld [vmem:[%s3126] sm:$0xf]
  %v3128 = vunpack.c.l.bf16 %v3127
  %v3129 = vunpack.c.h.bf16 %v3127
  %s3130 = scalar_lea.vmem %s1, 596
  %s3131 = scalar_lea.vmem %s3130, 4294967292
  %v3132 = vpack.c.bf16 %v3128, %v2552
  %3133 = vst [vmem:[%s3131] sm:$0xff] %v3132
  %s3134 = scalar_lea.vmem %s0, 836
  %v3135 = vld [vmem:[%s3134] sm:$0xf]
  %v3136 = vunpack.c.l.bf16 %v3135
  %v3137 = vunpack.c.h.bf16 %v3135
  %s3138 = scalar_lea.vmem %s1, 1316
  %s3139 = scalar_lea.vmem %s3138, 4294967292
  %v3140 = vpack.c.bf16 %v3136, %v2557
  %3141 = vst [vmem:[%s3139] sm:$0xff] %v3140
  %s3142 = scalar_lea.vmem %s0, 116
  %v3143 = vld [vmem:[%s3142] sm:$0xf]
  %v3144 = vunpack.c.l.bf16 %v3143
  %v3145 = vunpack.c.h.bf16 %v3143
  %s3146 = scalar_lea.vmem %s1, 2036
  %s3147 = scalar_lea.vmem %s3146, 4294967292
  %v3148 = vpack.c.bf16 %v3144, %v2562
  %3149 = vst [vmem:[%s3147] sm:$0xff] %v3148
  %s3150 = scalar_lea.vmem %s0, 2060
  %v3151 = vld [vmem:[%s3150] sm:$0xf]
  %v3152 = vunpack.c.l.bf16 %v3151
  %v3153 = vunpack.c.h.bf16 %v3151
  %s3154 = scalar_lea.vmem %s1, 140
  %s3155 = scalar_lea.vmem %s3154, 4294967292
  %v3156 = vpack.c.bf16 %v3152, %v2567
  %3157 = vst [vmem:[%s3155] sm:$0xff] %v3156
  %s3158 = scalar_lea.vmem %s0, 1340
  %v3159 = vld [vmem:[%s3158] sm:$0xf]
  %v3160 = vunpack.c.l.bf16 %v3159
  %v3161 = vunpack.c.h.bf16 %v3159
  %s3162 = scalar_lea.vmem %s1, 860
  %s3163 = scalar_lea.vmem %s3162, 4294967292
  %v3164 = vpack.c.bf16 %v3160, %v2572
  %3165 = vst [vmem:[%s3163] sm:$0xff] %v3164
  %s3166 = scalar_lea.vmem %s0, 620
  %v3167 = vld [vmem:[%s3166] sm:$0xf]
  %v3168 = vunpack.c.l.bf16 %v3167
  %v3169 = vunpack.c.h.bf16 %v3167
  %s3170 = scalar_lea.vmem %s1, 1580
  %s3171 = scalar_lea.vmem %s3170, 4294967292
  %v3172 = vpack.c.bf16 %v3168, %v2577
  %3173 = vst [vmem:[%s3171] sm:$0xff] %v3172
  %s3174 = scalar_lea.vmem %s0, 1820
  %v3175 = vld [vmem:[%s3174] sm:$0xf]
  %v3176 = vunpack.c.l.bf16 %v3175
  %v3177 = vunpack.c.h.bf16 %v3175
  %s3178 = scalar_lea.vmem %s1, 380
  %s3179 = scalar_lea.vmem %s3178, 4294967292
  %v3180 = vpack.c.bf16 %v3176, %v2582
  %3181 = vst [vmem:[%s3179] sm:$0xff] %v3180
  %s3182 = scalar_lea.vmem %s0, 1100
  %v3183 = vld [vmem:[%s3182] sm:$0xf]
  %v3184 = vunpack.c.l.bf16 %v3183
  %v3185 = vunpack.c.h.bf16 %v3183
  %s3186 = scalar_lea.vmem %s1, 1100
  %s3187 = scalar_lea.vmem %s3186, 4294967292
  %v3188 = vpack.c.bf16 %v3184, %v2587
  %3189 = vst [vmem:[%s3187] sm:$0xff] %v3188
  %s3190 = scalar_lea.vmem %s0, 380
  %v3191 = vld [vmem:[%s3190] sm:$0xf]
  %v3192 = vunpack.c.l.bf16 %v3191
  %v3193 = vunpack.c.h.bf16 %v3191
  %s3194 = scalar_lea.vmem %s1, 1820
  %s3195 = scalar_lea.vmem %s3194, 4294967292
  %v3196 = vpack.c.bf16 %v3192, %v2592
  %3197 = vst [vmem:[%s3195] sm:$0xff] %v3196
  %s3198 = scalar_lea.vmem %s0, 1580
  %v3199 = vld [vmem:[%s3198] sm:$0xf]
  %v3200 = vunpack.c.l.bf16 %v3199
  %v3201 = vunpack.c.h.bf16 %v3199
  %s3202 = scalar_lea.vmem %s1, 620
  %s3203 = scalar_lea.vmem %s3202, 4294967292
  %v3204 = vpack.c.bf16 %v3200, %v2597
  %3205 = vst [vmem:[%s3203] sm:$0xff] %v3204
  %s3206 = scalar_lea.vmem %s0, 860
  %v3207 = vld [vmem:[%s3206] sm:$0xf]
  %v3208 = vunpack.c.l.bf16 %v3207
  %v3209 = vunpack.c.h.bf16 %v3207
  %s3210 = scalar_lea.vmem %s1, 1340
  %s3211 = scalar_lea.vmem %s3210, 4294967292
  %v3212 = vpack.c.bf16 %v3208, %v2602
  %3213 = vst [vmem:[%s3211] sm:$0xff] %v3212
  %s3214 = scalar_lea.vmem %s0, 140
  %v3215 = vld [vmem:[%s3214] sm:$0xf]
  %v3216 = vunpack.c.l.bf16 %v3215
  %v3217 = vunpack.c.h.bf16 %v3215
  %s3218 = scalar_lea.vmem %s1, 2060
  %s3219 = scalar_lea.vmem %s3218, 4294967292
  %v3220 = vpack.c.bf16 %v3216, %v2607
  %3221 = vst [vmem:[%s3219] sm:$0xff] %v3220
  %s3222 = scalar_lea.vmem %s0, 2084
  %v3223 = vld [vmem:[%s3222] sm:$0xf]
  %v3224 = vunpack.c.l.bf16 %v3223
  %v3225 = vunpack.c.h.bf16 %v3223
  %s3226 = scalar_lea.vmem %s1, 164
  %s3227 = scalar_lea.vmem %s3226, 4294967292
  %v3228 = vpack.c.bf16 %v3224, %v2612
  %3229 = vst [vmem:[%s3227] sm:$0xff] %v3228
  %s3230 = scalar_lea.vmem %s0, 1364
  %v3231 = vld [vmem:[%s3230] sm:$0xf]
  %v3232 = vunpack.c.l.bf16 %v3231
  %v3233 = vunpack.c.h.bf16 %v3231
  %s3234 = scalar_lea.vmem %s1, 884
  %s3235 = scalar_lea.vmem %s3234, 4294967292
  %v3236 = vpack.c.bf16 %v3232, %v2617
  %3237 = vst [vmem:[%s3235] sm:$0xff] %v3236
  %s3238 = scalar_lea.vmem %s0, 644
  %v3239 = vld [vmem:[%s3238] sm:$0xf]
  %v3240 = vunpack.c.l.bf16 %v3239
  %v3241 = vunpack.c.h.bf16 %v3239
  %s3242 = scalar_lea.vmem %s1, 1604
  %s3243 = scalar_lea.vmem %s3242, 4294967292
  %v3244 = vpack.c.bf16 %v3240, %v2622
  %3245 = vst [vmem:[%s3243] sm:$0xff] %v3244
  %s3246 = scalar_lea.vmem %s0, 1844
  %v3247 = vld [vmem:[%s3246] sm:$0xf]
  %v3248 = vunpack.c.l.bf16 %v3247
  %v3249 = vunpack.c.h.bf16 %v3247
  %s3250 = scalar_lea.vmem %s1, 404
  %s3251 = scalar_lea.vmem %s3250, 4294967292
  %v3252 = vpack.c.bf16 %v3248, %v2627
  %3253 = vst [vmem:[%s3251] sm:$0xff] %v3252
  %s3254 = scalar_lea.vmem %s0, 1124
  %v3255 = vld [vmem:[%s3254] sm:$0xf]
  %v3256 = vunpack.c.l.bf16 %v3255
  %v3257 = vunpack.c.h.bf16 %v3255
  %s3258 = scalar_lea.vmem %s1, 1124
  %s3259 = scalar_lea.vmem %s3258, 4294967292
  %v3260 = vpack.c.bf16 %v3256, %v2632
  %3261 = vst [vmem:[%s3259] sm:$0xff] %v3260
  %s3262 = scalar_lea.vmem %s0, 404
  %v3263 = vld [vmem:[%s3262] sm:$0xf]
  %v3264 = vunpack.c.l.bf16 %v3263
  %v3265 = vunpack.c.h.bf16 %v3263
  %s3266 = scalar_lea.vmem %s1, 1844
  %s3267 = scalar_lea.vmem %s3266, 4294967292
  %v3268 = vpack.c.bf16 %v3264, %v2637
  %3269 = vst [vmem:[%s3267] sm:$0xff] %v3268
  %s3270 = scalar_lea.vmem %s0, 1604
  %v3271 = vld [vmem:[%s3270] sm:$0xf]
  %v3272 = vunpack.c.l.bf16 %v3271
  %v3273 = vunpack.c.h.bf16 %v3271
  %s3274 = scalar_lea.vmem %s1, 644
  %s3275 = scalar_lea.vmem %s3274, 4294967292
  %v3276 = vpack.c.bf16 %v3272, %v2642
  %3277 = vst [vmem:[%s3275] sm:$0xff] %v3276
  %s3278 = scalar_lea.vmem %s0, 884
  %v3279 = vld [vmem:[%s3278] sm:$0xf]
  %v3280 = vunpack.c.l.bf16 %v3279
  %v3281 = vunpack.c.h.bf16 %v3279
  %s3282 = scalar_lea.vmem %s1, 1364
  %s3283 = scalar_lea.vmem %s3282, 4294967292
  %v3284 = vpack.c.bf16 %v3280, %v2647
  %3285 = vst [vmem:[%s3283] sm:$0xff] %v3284
  %s3286 = scalar_lea.vmem %s0, 164
  %v3287 = vld [vmem:[%s3286] sm:$0xf]
  %v3288 = vunpack.c.l.bf16 %v3287
  %v3289 = vunpack.c.h.bf16 %v3287
  %s3290 = scalar_lea.vmem %s1, 2084
  %s3291 = scalar_lea.vmem %s3290, 4294967292
  %v3292 = vpack.c.bf16 %v3288, %v2652
  %3293 = vst [vmem:[%s3291] sm:$0xff] %v3292
  %s3294 = scalar_lea.vmem %s0, 2108
  %v3295 = vld [vmem:[%s3294] sm:$0xf]
  %v3296 = vunpack.c.l.bf16 %v3295
  %v3297 = vunpack.c.h.bf16 %v3295
  %s3298 = scalar_lea.vmem %s1, 188
  %s3299 = scalar_lea.vmem %s3298, 4294967292
  %v3300 = vpack.c.bf16 %v3296, %v2657
  %3301 = vst [vmem:[%s3299] sm:$0xff] %v3300
  %s3302 = scalar_lea.vmem %s0, 1388
  %v3303 = vld [vmem:[%s3302] sm:$0xf]
  %v3304 = vunpack.c.l.bf16 %v3303
  %v3305 = vunpack.c.h.bf16 %v3303
  %s3306 = scalar_lea.vmem %s1, 908
  %s3307 = scalar_lea.vmem %s3306, 4294967292
  %v3308 = vpack.c.bf16 %v3304, %v2662
  %3309 = vst [vmem:[%s3307] sm:$0xff] %v3308
  %s3310 = scalar_lea.vmem %s0, 668
  %v3311 = vld [vmem:[%s3310] sm:$0xf]
  %v3312 = vunpack.c.l.bf16 %v3311
  %v3313 = vunpack.c.h.bf16 %v3311
  %s3314 = scalar_lea.vmem %s1, 1628
  %s3315 = scalar_lea.vmem %s3314, 4294967292
  %v3316 = vpack.c.bf16 %v3312, %v2667
  %3317 = vst [vmem:[%s3315] sm:$0xff] %v3316
  %s3318 = scalar_lea.vmem %s0, 1868
  %v3319 = vld [vmem:[%s3318] sm:$0xf]
  %v3320 = vunpack.c.l.bf16 %v3319
  %v3321 = vunpack.c.h.bf16 %v3319
  %s3322 = scalar_lea.vmem %s1, 428
  %s3323 = scalar_lea.vmem %s3322, 4294967292
  %v3324 = vpack.c.bf16 %v3320, %v2672
  %3325 = vst [vmem:[%s3323] sm:$0xff] %v3324
  %s3326 = scalar_lea.vmem %s0, 1148
  %v3327 = vld [vmem:[%s3326] sm:$0xf]
  %v3328 = vunpack.c.l.bf16 %v3327
  %v3329 = vunpack.c.h.bf16 %v3327
  %s3330 = scalar_lea.vmem %s1, 1148
  %s3331 = scalar_lea.vmem %s3330, 4294967292
  %v3332 = vpack.c.bf16 %v3328, %v2677
  %3333 = vst [vmem:[%s3331] sm:$0xff] %v3332
  %s3334 = scalar_lea.vmem %s0, 428
  %v3335 = vld [vmem:[%s3334] sm:$0xf]
  %v3336 = vunpack.c.l.bf16 %v3335
  %v3337 = vunpack.c.h.bf16 %v3335
  %s3338 = scalar_lea.vmem %s1, 1868
  %s3339 = scalar_lea.vmem %s3338, 4294967292
  %v3340 = vpack.c.bf16 %v3336, %v2682
  %3341 = vst [vmem:[%s3339] sm:$0xff] %v3340
  %s3342 = scalar_lea.vmem %s0, 1628
  %v3343 = vld [vmem:[%s3342] sm:$0xf]
  %v3344 = vunpack.c.l.bf16 %v3343
  %v3345 = vunpack.c.h.bf16 %v3343
  %s3346 = scalar_lea.vmem %s1, 668
  %s3347 = scalar_lea.vmem %s3346, 4294967292
  %v3348 = vpack.c.bf16 %v3344, %v2687
  %3349 = vst [vmem:[%s3347] sm:$0xff] %v3348
  %s3350 = scalar_lea.vmem %s0, 908
  %v3351 = vld [vmem:[%s3350] sm:$0xf]
  %v3352 = vunpack.c.l.bf16 %v3351
  %v3353 = vunpack.c.h.bf16 %v3351
  %s3354 = scalar_lea.vmem %s1, 1388
  %s3355 = scalar_lea.vmem %s3354, 4294967292
  %v3356 = vpack.c.bf16 %v3352, %v2692
  %3357 = vst [vmem:[%s3355] sm:$0xff] %v3356
  %s3358 = scalar_lea.vmem %s0, 188
  %v3359 = vld [vmem:[%s3358] sm:$0xf]
  %v3360 = vunpack.c.l.bf16 %v3359
  %v3361 = vunpack.c.h.bf16 %v3359
  %s3362 = scalar_lea.vmem %s1, 2108
  %s3363 = scalar_lea.vmem %s3362, 4294967292
  %v3364 = vpack.c.bf16 %v3360, %v2697
  %3365 = vst [vmem:[%s3363] sm:$0xff] %v3364
  %s3366 = scalar_lea.vmem %s0, 2132
  %v3367 = vld [vmem:[%s3366] sm:$0xf]
  %v3368 = vunpack.c.l.bf16 %v3367
  %v3369 = vunpack.c.h.bf16 %v3367
  %s3370 = scalar_lea.vmem %s1, 212
  %s3371 = scalar_lea.vmem %s3370, 4294967292
  %v3372 = vpack.c.bf16 %v3368, %v2702
  %3373 = vst [vmem:[%s3371] sm:$0xff] %v3372
  %s3374 = scalar_lea.vmem %s0, 1412
  %v3375 = vld [vmem:[%s3374] sm:$0xf]
  %v3376 = vunpack.c.l.bf16 %v3375
  %v3377 = vunpack.c.h.bf16 %v3375
  %s3378 = scalar_lea.vmem %s1, 932
  %s3379 = scalar_lea.vmem %s3378, 4294967292
  %v3380 = vpack.c.bf16 %v3376, %v2707
  %3381 = vst [vmem:[%s3379] sm:$0xff] %v3380
  %s3382 = scalar_lea.vmem %s0, 692
  %v3383 = vld [vmem:[%s3382] sm:$0xf]
  %v3384 = vunpack.c.l.bf16 %v3383
  %v3385 = vunpack.c.h.bf16 %v3383
  %s3386 = scalar_lea.vmem %s1, 1652
  %s3387 = scalar_lea.vmem %s3386, 4294967292
  %v3388 = vpack.c.bf16 %v3384, %v2712
  %3389 = vst [vmem:[%s3387] sm:$0xff] %v3388
  %s3390 = scalar_lea.vmem %s0, 1892
  %v3391 = vld [vmem:[%s3390] sm:$0xf]
  %v3392 = vunpack.c.l.bf16 %v3391
  %v3393 = vunpack.c.h.bf16 %v3391
  %s3394 = scalar_lea.vmem %s1, 452
  %s3395 = scalar_lea.vmem %s3394, 4294967292
  %v3396 = vpack.c.bf16 %v3392, %v2717
  %3397 = vst [vmem:[%s3395] sm:$0xff] %v3396
  %s3398 = scalar_lea.vmem %s0, 1172
  %v3399 = vld [vmem:[%s3398] sm:$0xf]
  %v3400 = vunpack.c.l.bf16 %v3399
  %v3401 = vunpack.c.h.bf16 %v3399
  %s3402 = scalar_lea.vmem %s1, 1172
  %s3403 = scalar_lea.vmem %s3402, 4294967292
  %v3404 = vpack.c.bf16 %v3400, %v2722
  %3405 = vst [vmem:[%s3403] sm:$0xff] %v3404
  %s3406 = scalar_lea.vmem %s0, 452
  %v3407 = vld [vmem:[%s3406] sm:$0xf]
  %v3408 = vunpack.c.l.bf16 %v3407
  %v3409 = vunpack.c.h.bf16 %v3407
  %s3410 = scalar_lea.vmem %s1, 1892
  %s3411 = scalar_lea.vmem %s3410, 4294967292
  %v3412 = vpack.c.bf16 %v3408, %v2727
  %3413 = vst [vmem:[%s3411] sm:$0xff] %v3412
  %s3414 = scalar_lea.vmem %s0, 1652
  %v3415 = vld [vmem:[%s3414] sm:$0xf]
  %v3416 = vunpack.c.l.bf16 %v3415
  %v3417 = vunpack.c.h.bf16 %v3415
  %s3418 = scalar_lea.vmem %s1, 692
  %s3419 = scalar_lea.vmem %s3418, 4294967292
  %v3420 = vpack.c.bf16 %v3416, %v2732
  %3421 = vst [vmem:[%s3419] sm:$0xff] %v3420
  %s3422 = scalar_lea.vmem %s0, 932
  %v3423 = vld [vmem:[%s3422] sm:$0xf]
  %v3424 = vunpack.c.l.bf16 %v3423
  %v3425 = vunpack.c.h.bf16 %v3423
  %s3426 = scalar_lea.vmem %s1, 1412
  %s3427 = scalar_lea.vmem %s3426, 4294967292
  %v3428 = vpack.c.bf16 %v3424, %v2737
  %3429 = vst [vmem:[%s3427] sm:$0xff] %v3428
  %s3430 = scalar_lea.vmem %s0, 212
  %v3431 = vld [vmem:[%s3430] sm:$0xf]
  %v3432 = vunpack.c.l.bf16 %v3431
  %v3433 = vunpack.c.h.bf16 %v3431
  %s3434 = scalar_lea.vmem %s1, 2132
  %s3435 = scalar_lea.vmem %s3434, 4294967292
  %v3436 = vpack.c.bf16 %v3432, %v2742
  %3437 = vst [vmem:[%s3435] sm:$0xff] %v3436
  %s3438 = scalar_lea.vmem %s0, 2156
  %v3439 = vld [vmem:[%s3438] sm:$0xf]
  %v3440 = vunpack.c.l.bf16 %v3439
  %v3441 = vunpack.c.h.bf16 %v3439
  %s3442 = scalar_lea.vmem %s1, 236
  %s3443 = scalar_lea.vmem %s3442, 4294967292
  %v3444 = vpack.c.bf16 %v3440, %v2747
  %3445 = vst [vmem:[%s3443] sm:$0xff] %v3444
  %s3446 = scalar_lea.vmem %s0, 1436
  %v3447 = vld [vmem:[%s3446] sm:$0xf]
  %v3448 = vunpack.c.l.bf16 %v3447
  %v3449 = vunpack.c.h.bf16 %v3447
  %s3450 = scalar_lea.vmem %s1, 956
  %s3451 = scalar_lea.vmem %s3450, 4294967292
  %v3452 = vpack.c.bf16 %v3448, %v2752
  %3453 = vst [vmem:[%s3451] sm:$0xff] %v3452
  %s3454 = scalar_lea.vmem %s0, 716
  %v3455 = vld [vmem:[%s3454] sm:$0xf]
  %v3456 = vunpack.c.l.bf16 %v3455
  %v3457 = vunpack.c.h.bf16 %v3455
  %s3458 = scalar_lea.vmem %s1, 1676
  %s3459 = scalar_lea.vmem %s3458, 4294967292
  %v3460 = vpack.c.bf16 %v3456, %v2757
  %3461 = vst [vmem:[%s3459] sm:$0xff] %v3460
  %s3462 = scalar_lea.vmem %s0, 1916
  %v3463 = vld [vmem:[%s3462] sm:$0xf]
  %v3464 = vunpack.c.l.bf16 %v3463
  %v3465 = vunpack.c.h.bf16 %v3463
  %s3466 = scalar_lea.vmem %s1, 476
  %s3467 = scalar_lea.vmem %s3466, 4294967292
  %v3468 = vpack.c.bf16 %v3464, %v2762
  %3469 = vst [vmem:[%s3467] sm:$0xff] %v3468
  %s3470 = scalar_lea.vmem %s0, 1196
  %v3471 = vld [vmem:[%s3470] sm:$0xf]
  %v3472 = vunpack.c.l.bf16 %v3471
  %v3473 = vunpack.c.h.bf16 %v3471
  %s3474 = scalar_lea.vmem %s1, 1196
  %s3475 = scalar_lea.vmem %s3474, 4294967292
  %v3476 = vpack.c.bf16 %v3472, %v2767
  %3477 = vst [vmem:[%s3475] sm:$0xff] %v3476
  %s3478 = scalar_lea.vmem %s0, 476
  %v3479 = vld [vmem:[%s3478] sm:$0xf]
  %v3480 = vunpack.c.l.bf16 %v3479
  %v3481 = vunpack.c.h.bf16 %v3479
  %s3482 = scalar_lea.vmem %s1, 1916
  %s3483 = scalar_lea.vmem %s3482, 4294967292
  %v3484 = vpack.c.bf16 %v3480, %v2772
  %3485 = vst [vmem:[%s3483] sm:$0xff] %v3484
  %s3486 = scalar_lea.vmem %s0, 1676
  %v3487 = vld [vmem:[%s3486] sm:$0xf]
  %v3488 = vunpack.c.l.bf16 %v3487
  %v3489 = vunpack.c.h.bf16 %v3487
  %s3490 = scalar_lea.vmem %s1, 716
  %s3491 = scalar_lea.vmem %s3490, 4294967292
  %v3492 = vpack.c.bf16 %v3488, %v2777
  %3493 = vst [vmem:[%s3491] sm:$0xff] %v3492
  %s3494 = scalar_lea.vmem %s0, 956
  %v3495 = vld [vmem:[%s3494] sm:$0xf]
  %v3496 = vunpack.c.l.bf16 %v3495
  %v3497 = vunpack.c.h.bf16 %v3495
  %s3498 = scalar_lea.vmem %s1, 1436
  %s3499 = scalar_lea.vmem %s3498, 4294967292
  %v3500 = vpack.c.bf16 %v3496, %v2782
  %3501 = vst [vmem:[%s3499] sm:$0xff] %v3500
  %s3502 = scalar_lea.vmem %s0, 236
  %v3503 = vld [vmem:[%s3502] sm:$0xf]
  %v3504 = vunpack.c.l.bf16 %v3503
  %v3505 = vunpack.c.h.bf16 %v3503
  %s3506 = scalar_lea.vmem %s1, 2156
  %s3507 = scalar_lea.vmem %s3506, 4294967292
  %v3508 = vpack.c.bf16 %v3504, %v2787
  %3509 = vst [vmem:[%s3507] sm:$0xff] %v3508

// kernel: fwd.33
$region0: #{fwd.33}
  #allocation0 [shape = 'u32[]', space=smem, size = 0x4, offset = 0x4, fixed_abs, tag = 'smem constant byte address 0x4 - core index']
  #allocation1 [shape = 'u32[72,128]{1,0:T(1,128)}', space=vmem, size = 0x9000, scoped, tag = 'internal scratch']
  %s0 = inlined_call_operand.vmem [shape: bf16[128,216], index: 0, kind: input, shape index: {}]
  %s1 = inlined_call_operand.vmem [shape: bf16[216,128], index: 1, kind: input, shape index: {}]
  %s2 = inlined_call_operand.vmem [shape: f32[1,128], index: 2, kind: input, shape index: {}]
  %s3 = inlined_call_operand.vmem [shape: f32[1,128], index: 3, kind: input, shape index: {}]
  %s4 = inlined_call_operand.vmem [shape: bf16[128,128], index: 4, kind: output, shape index: {}]
  %s5 = sld [smem:[#allocation0]]
  $region26: #{fwd.33} parent=0
    _
  %s7 = ssub.s32 1, %s5
  %s8 = scalar_select 0, %s7, %s5
  // Predicated region
  $region2: #{fwd.33} parent=0 // pred_check
    _
  $region3: #{fwd.33} parent=0 // pred_check_branch
    %10 = sbr.rel (0) target = $region5
  $region4: #{fwd.33} parent=0 // pred_region
    _
  $region5: #{fwd.33} parent=0 // pred_fallthru
    _
  // Predicated region
  $region6: #{fwd.33} parent=0 // pred_check
    _
  $region7: #{fwd.33} parent=0 // pred_check_branch
    %12 = sbr.rel (0) target = $region9
  $region8: #{fwd.33} parent=0 // pred_region
    _
  $region9: #{fwd.33} parent=0 // pred_fallthru
    _
  // Predicated region
  $region10: #{fwd.33} parent=0 // pred_check
    _
  $region11: #{fwd.33} parent=0 // pred_check_branch
    %14 = sbr.rel (0) target = $region13
  $region12: #{fwd.33} parent=0 // pred_region
    _
  $region13: #{fwd.33} parent=0 // pred_fallthru
    _
  // Predicated region
  $region14: #{fwd.33} parent=0 // pred_check
    _
  $region15: #{fwd.33} parent=0 // pred_check_branch
    %16 = sbr.rel (0) target = $region17
  $region16: #{fwd.33} parent=0 // pred_region
    _
  $region17: #{fwd.33} parent=0 // pred_fallthru
    _
  %v18 = vld [vmem:[%s0] sm:$0xff]
  %v19 = vld [vmem:[%s0 + $0x8] sm:$0xff]
  %v20 = vld [vmem:[%s0 + $0x10] sm:$0xff]
  %v21 = vld [vmem:[%s0 + $0x18] sm:$0xff]
  %v22 = vld [vmem:[%s0 + $0x20] sm:$0xff]
  %v23 = vld [vmem:[%s0 + $0x28] sm:$0xff]
  %v24 = vld [vmem:[%s0 + $0x30] sm:$0xff]
  %v25 = vld [vmem:[%s0 + $0x38] sm:$0xff]
  %v26 = vld [vmem:[%s0 + $0x40] sm:$0xff]
  %v27 = vld [vmem:[%s0 + $0x48] sm:$0xff]
  %v28 = vld [vmem:[%s0 + $0x50] sm:$0xff]
  %v29 = vld [vmem:[%s0 + $0x58] sm:$0xff]
  %v30 = vld [vmem:[%s0 + $0x60] sm:$0xff]
  %v31 = vld [vmem:[%s0 + $0x68] sm:$0xff]
  %v32 = vld [vmem:[%s0 + $0x70] sm:$0xff]
  %v33 = vld [vmem:[%s0 + $0x78] sm:$0xff]
  %v34 = vld [vmem:[%s1] sm:$0xf]
  %v35 = vld [vmem:[%s1 + $0x4] sm:$0xf]
  %v36 = vld [vmem:[%s1 + $0x8] sm:$0xf]
  %v37 = vld [vmem:[%s1 + $0xc] sm:$0xf]
  %v38 = vld [vmem:[%s1 + $0x10] sm:$0xf]
  %v39 = vld [vmem:[%s1 + $0x14] sm:$0xf]
  %v40 = vld [vmem:[%s1 + $0x18] sm:$0xf]
  %v41 = vld [vmem:[%s1 + $0x1c] sm:$0xf]
  %v42 = vld [vmem:[%s1 + $0x20] sm:$0xf]
  %v43 = vld [vmem:[%s1 + $0x24] sm:$0xf]
  %v44 = vld [vmem:[%s1 + $0x28] sm:$0xf]
  %v45 = vld [vmem:[%s1 + $0x2c] sm:$0xf]
  %v46 = vld [vmem:[%s1 + $0x30] sm:$0xf]
  %v47 = vld [vmem:[%s1 + $0x34] sm:$0xf]
  %v48 = vld [vmem:[%s1 + $0x38] sm:$0xf]
  %v49 = vld [vmem:[%s1 + $0x3c] sm:$0xf]
  %v50 = vld [vmem:[%s1 + $0x40] sm:$0xf]
  %v51 = vld [vmem:[%s1 + $0x44] sm:$0xf]
  %v52 = vld [vmem:[%s1 + $0x48] sm:$0xf]
  %v53 = vld [vmem:[%s1 + $0x4c] sm:$0xf]
  %v54 = vld [vmem:[%s1 + $0x50] sm:$0xf]
  %v55 = vld [vmem:[%s1 + $0x54] sm:$0xf]
  %v56 = vld [vmem:[%s1 + $0x58] sm:$0xf]
  %v57 = vld [vmem:[%s1 + $0x5c] sm:$0xf]
  %v58 = vld [vmem:[%s1 + $0x60] sm:$0xf]
  %v59 = vld [vmem:[%s1 + $0x64] sm:$0xf]
  %v60 = vld [vmem:[%s1 + $0x68] sm:$0xf]
  %v61 = vld [vmem:[%s2] sm:$0x1]
  %v63 = vperm.slane %v61, 0
  %v81 = vunpack.c.l.b16 %v18
  %v82 = vunpack.c.h.b16 %v18
  %v83 = vunpack.c.l.b16 %v19
  %v84 = vunpack.c.h.b16 %v19
  %v85 = vunpack.c.l.b16 %v20
  %v86 = vunpack.c.h.b16 %v20
  %v87 = vunpack.c.l.b16 %v21
  %v88 = vunpack.c.h.b16 %v21
  %v89 = vunpack.c.l.b16 %v22
  %v90 = vunpack.c.h.b16 %v22
  %v91 = vunpack.c.l.b16 %v23
  %v92 = vunpack.c.h.b16 %v23
  %v93 = vunpack.c.l.b16 %v24
  %v94 = vunpack.c.h.b16 %v24
  %v95 = vunpack.c.l.b16 %v25
  %v96 = vunpack.c.h.b16 %v25
  %v97 = vunpack.c.l.b16 %v26
  %v98 = vunpack.c.h.b16 %v26
  %v99 = vunpack.c.l.b16 %v27
  %v100 = vunpack.c.h.b16 %v27
  %v101 = vunpack.c.l.b16 %v28
  %v102 = vunpack.c.h.b16 %v28
  %v103 = vunpack.c.l.b16 %v29
  %v104 = vunpack.c.h.b16 %v29
  %v105 = vunpack.c.l.b16 %v30
  %v106 = vunpack.c.h.b16 %v30
  %v107 = vunpack.c.l.b16 %v31
  %v108 = vunpack.c.h.b16 %v31
  %v109 = vunpack.c.l.b16 %v32
  %v110 = vunpack.c.h.b16 %v32
  %v111 = vunpack.c.l.b16 %v33
  %v112 = vunpack.c.h.b16 %v33
  %v113 = vpack.c.b16 %v83, %v81
  %v114 = vpack.c.b16 %v84, %v82
  %v115 = vpack.c.b16 %v87, %v85
  %v116 = vpack.c.b16 %v88, %v86
  %v117 = vpack.c.b16 %v91, %v89
  %v118 = vpack.c.b16 %v92, %v90
  %v119 = vpack.c.b16 %v95, %v93
  %v120 = vpack.c.b16 %v96, %v94
  %v121 = vpack.c.b16 %v99, %v97
  %v122 = vpack.c.b16 %v100, %v98
  %v123 = vpack.c.b16 %v103, %v101
  %v124 = vpack.c.b16 %v104, %v102
  %v125 = vpack.c.b16 %v107, %v105
  %v126 = vpack.c.b16 %v108, %v106
  %v127 = vpack.c.b16 %v111, %v109
  %v128 = vpack.c.b16 %v112, %v110
  %v164 = vunpack.c.l.b16 %v34
  %v165 = vunpack.c.l.b16 %v35
  %v166 = vunpack.c.l.b16 %v36
  %v167 = vunpack.c.l.b16 %v37
  %v168 = vunpack.c.l.b16 %v38
  %v169 = vunpack.c.l.b16 %v39
  %v170 = vunpack.c.l.b16 %v40
  %v171 = vunpack.c.l.b16 %v41
  %v172 = vunpack.c.l.b16 %v42
  %v173 = vunpack.c.l.b16 %v43
  %v174 = vunpack.c.l.b16 %v44
  %v175 = vunpack.c.l.b16 %v45
  %v176 = vunpack.c.l.b16 %v46
  %v177 = vunpack.c.l.b16 %v47
  %v178 = vunpack.c.l.b16 %v48
  %v179 = vunpack.c.l.b16 %v49
  %v180 = vunpack.c.l.b16 %v50
  %v181 = vunpack.c.l.b16 %v51
  %v182 = vunpack.c.l.b16 %v52
  %v183 = vunpack.c.l.b16 %v53
  %v184 = vunpack.c.l.b16 %v54
  %v185 = vunpack.c.l.b16 %v55
  %v186 = vunpack.c.l.b16 %v56
  %v187 = vunpack.c.l.b16 %v57
  %v188 = vunpack.c.l.b16 %v58
  %v189 = vunpack.c.l.b16 %v59
  %v190 = vunpack.c.l.b16 %v60
  %v191 = vpack.c.b16 %v165, %v164
  %v192 = vpack.c.b16 %v167, %v166
  %v193 = vpack.c.b16 %v169, %v168
  %v194 = vpack.c.b16 %v171, %v170
  %v195 = vpack.c.b16 %v173, %v172
  %v196 = vpack.c.b16 %v175, %v174
  %v197 = vpack.c.b16 %v177, %v176
  %v198 = vpack.c.b16 %v179, %v178
  %v199 = vpack.c.b16 %v181, %v180
  %v200 = vpack.c.b16 %v183, %v182
  %v201 = vpack.c.b16 %v185, %v184
  %v202 = vpack.c.b16 %v187, %v186
  %v203 = vpack.c.b16 %v189, %v188
  %v204 = vpack.c.b16 %v190, %v190
  %vm218 = vcmask 719872
  %v220 = vsel %vm218, %v114, 0
  %v223 = vsel %vm218, %v116, 0
  %v226 = vsel %vm218, %v118, 0
  %v229 = vsel %vm218, %v120, 0
  %v232 = vsel %vm218, %v122, 0
  %v235 = vsel %vm218, %v124, 0
  %v238 = vsel %vm218, %v126, 0
  %v241 = vsel %vm218, %v128, 0
  %vm243 = vcmask 1043456
  %v245 = vsel %vm243, %v204, 0
  %247 = vmatpush.bf16.msra.mxu0 %v198
  %248 = vmatpush.bf16.msra.mxu0 %v197
  %249 = vmatpush.bf16.msra.mxu0 %v196
  %250 = vmatpush.bf16.msra.mxu0 %v195
  %251 = vmatpush.bf16.msra.mxu0 %v194
  %252 = vmatpush.bf16.msra.mxu0 %v193
  %253 = vmatpush.bf16.msra.mxu0 %v192
  %254 = vmatpush.bf16.msra.mxu0 %v191
  %255 = vmatmul.bf16.gmra.mxu0 %v113
  %v256 = vpop.f32.mrf.mxu0
  %v257 = vadd.f32 %v63, %v256
  %v258 = vpop.f32.mrf.mxu0
  %v259 = vadd.f32 %v63, %v258
  %260 = vmatmul.bf16.gmra.mxu0 %v115
  %v261 = vpop.f32.mrf.mxu0
  %v262 = vadd.f32 %v63, %v261
  %v263 = vpop.f32.mrf.mxu0
  %v264 = vadd.f32 %v63, %v263
  %265 = vmatmul.bf16.gmra.mxu0 %v117
  %v266 = vpop.f32.mrf.mxu0
  %v267 = vadd.f32 %v63, %v266
  %v268 = vpop.f32.mrf.mxu0
  %v269 = vadd.f32 %v63, %v268
  %270 = vmatmul.bf16.gmra.mxu0 %v119
  %v271 = vpop.f32.mrf.mxu0
  %v272 = vadd.f32 %v63, %v271
  %v273 = vpop.f32.mrf.mxu0
  %v274 = vadd.f32 %v63, %v273
  %275 = vmatmul.bf16.gmra.mxu0 %v121
  %v276 = vpop.f32.mrf.mxu0
  %v277 = vadd.f32 %v63, %v276
  %v278 = vpop.f32.mrf.mxu0
  %v279 = vadd.f32 %v63, %v278
  %280 = vmatmul.bf16.gmra.mxu0 %v123
  %v281 = vpop.f32.mrf.mxu0
  %v282 = vadd.f32 %v63, %v281
  %v283 = vpop.f32.mrf.mxu0
  %v284 = vadd.f32 %v63, %v283
  %285 = vmatmul.bf16.gmra.mxu0 %v125
  %v286 = vpop.f32.mrf.mxu0
  %v287 = vadd.f32 %v63, %v286
  %v288 = vpop.f32.mrf.mxu0
  %v289 = vadd.f32 %v63, %v288
  %290 = vmatmul.bf16.gmra.mxu0 %v127
  %v291 = vpop.f32.mrf.mxu0
  %v292 = vadd.f32 %v63, %v291
  %v293 = vpop.f32.mrf.mxu0
  %v294 = vadd.f32 %v63, %v293
  %295 = vdwg.mxu0
  %296 = vmatpush.bf16.msra.mxu0 0
  %297 = vmatpush.bf16.msra.mxu0 0
  %298 = vmatpush.bf16.msra.mxu0 %v245
  %299 = vmatpush.bf16.msra.mxu0 %v203
  %300 = vmatpush.bf16.msra.mxu0 %v202
  %301 = vmatpush.bf16.msra.mxu0 %v201
  %302 = vmatpush.bf16.msra.mxu0 %v200
  %303 = vmatpush.bf16.msra.mxu0 %v199
  %304 = vmatmul.bf16.gmra.mxu0 %v220
  %v305 = vpop.f32.mrf.mxu0
  %v306 = vadd.f32 %v257, %v305
  %v307 = vpop.f32.mrf.mxu0
  %v308 = vadd.f32 %v259, %v307
  %309 = vmatmul.bf16.gmra.mxu0 %v223
  %v310 = vpop.f32.mrf.mxu0
  %v311 = vadd.f32 %v262, %v310
  %v312 = vpop.f32.mrf.mxu0
  %v313 = vadd.f32 %v264, %v312
  %314 = vmatmul.bf16.gmra.mxu0 %v226
  %v315 = vpop.f32.mrf.mxu0
  %v316 = vadd.f32 %v267, %v315
  %v317 = vpop.f32.mrf.mxu0
  %v318 = vadd.f32 %v269, %v317
  %319 = vmatmul.bf16.gmra.mxu0 %v229
  %v320 = vpop.f32.mrf.mxu0
  %v321 = vadd.f32 %v272, %v320
  %v322 = vpop.f32.mrf.mxu0
  %v323 = vadd.f32 %v274, %v322
  %324 = vmatmul.bf16.gmra.mxu0 %v232
  %v325 = vpop.f32.mrf.mxu0
  %v326 = vadd.f32 %v277, %v325
  %v327 = vpop.f32.mrf.mxu0
  %v328 = vadd.f32 %v279, %v327
  %329 = vmatmul.bf16.gmra.mxu0 %v235
  %v330 = vpop.f32.mrf.mxu0
  %v331 = vadd.f32 %v282, %v330
  %v332 = vpop.f32.mrf.mxu0
  %v333 = vadd.f32 %v284, %v332
  %334 = vmatmul.bf16.gmra.mxu0 %v238
  %v335 = vpop.f32.mrf.mxu0
  %v336 = vadd.f32 %v287, %v335
  %v337 = vpop.f32.mrf.mxu0
  %v338 = vadd.f32 %v289, %v337
  %339 = vmatmul.bf16.gmra.mxu0 %v241
  %v340 = vpop.f32.mrf.mxu0
  %v341 = vadd.f32 %v292, %v340
  %v342 = vpop.f32.mrf.mxu0
  %v343 = vadd.f32 %v294, %v342
  %344 = vdwg.mxu0
  %vm345 = vcmp.gt.f32.partialorder %v306, 0.0
  %vm346 = vcmp.gt.f32.partialorder %v308, 0.0
  %vm347 = vcmp.gt.f32.partialorder %v311, 0.0
  %vm348 = vcmp.gt.f32.partialorder %v313, 0.0
  %vm349 = vcmp.gt.f32.partialorder %v316, 0.0
  %vm350 = vcmp.gt.f32.partialorder %v318, 0.0
  %vm351 = vcmp.gt.f32.partialorder %v321, 0.0
  %vm352 = vcmp.gt.f32.partialorder %v323, 0.0
  %vm353 = vcmp.gt.f32.partialorder %v326, 0.0
  %vm354 = vcmp.gt.f32.partialorder %v328, 0.0
  %vm355 = vcmp.gt.f32.partialorder %v331, 0.0
  %vm356 = vcmp.gt.f32.partialorder %v333, 0.0
  %vm357 = vcmp.gt.f32.partialorder %v336, 0.0
  %vm358 = vcmp.gt.f32.partialorder %v338, 0.0
  %vm359 = vcmp.gt.f32.partialorder %v341, 0.0
  %vm360 = vcmp.gt.f32.partialorder %v343, 0.0
  %v361 = vld [vmem:[%s3] sm:$0x1]
  %v363 = vperm.slane %v361, 0
  %v365 = vmul.f32 %v363, %v306
  %v366 = vmul.f32 %v363, %v308
  %v367 = vmul.f32 %v363, %v311
  %v368 = vmul.f32 %v363, %v313
  %v369 = vmul.f32 %v363, %v316
  %v370 = vmul.f32 %v363, %v318
  %v371 = vmul.f32 %v363, %v321
  %v372 = vmul.f32 %v363, %v323
  %v373 = vmul.f32 %v363, %v326
  %v374 = vmul.f32 %v363, %v328
  %v375 = vmul.f32 %v363, %v331
  %v376 = vmul.f32 %v363, %v333
  %v377 = vmul.f32 %v363, %v336
  %v378 = vmul.f32 %v363, %v338
  %v379 = vmul.f32 %v363, %v341
  %v380 = vmul.f32 %v363, %v343
  %v381 = vsel %vm345, %v306, %v365
  %v382 = vsel %vm346, %v308, %v366
  %v383 = vsel %vm347, %v311, %v367
  %v384 = vsel %vm348, %v313, %v368
  %v385 = vsel %vm349, %v316, %v369
  %v386 = vsel %vm350, %v318, %v370
  %v387 = vsel %vm351, %v321, %v371
  %v388 = vsel %vm352, %v323, %v372
  %v389 = vsel %vm353, %v326, %v373
  %v390 = vsel %vm354, %v328, %v374
  %v391 = vsel %vm355, %v331, %v375
  %v392 = vsel %vm356, %v333, %v376
  %v393 = vsel %vm357, %v336, %v377
  %v394 = vsel %vm358, %v338, %v378
  %v395 = vsel %vm359, %v341, %v379
  %v396 = vsel %vm360, %v343, %v380
  %v397 = vpack.c.bf16 %v381, %v381
  %v398 = vpack.c.bf16 %v382, %v382
  %v399 = vpack.c.bf16 %v383, %v383
  %v400 = vpack.c.bf16 %v384, %v384
  %v401 = vpack.c.bf16 %v385, %v385
  %v402 = vpack.c.bf16 %v386, %v386
  %v403 = vpack.c.bf16 %v387, %v387
  %v404 = vpack.c.bf16 %v388, %v388
  %v405 = vpack.c.bf16 %v389, %v389
  %v406 = vpack.c.bf16 %v390, %v390
  %v407 = vpack.c.bf16 %v391, %v391
  %v408 = vpack.c.bf16 %v392, %v392
  %v409 = vpack.c.bf16 %v393, %v393
  %v410 = vpack.c.bf16 %v394, %v394
  %v411 = vpack.c.bf16 %v395, %v395
  %v412 = vpack.c.bf16 %v396, %v396
  %413 = vst [vmem:[%s4] sm:$0xf] %v397
  %414 = vst [vmem:[%s4 + $0x4] sm:$0xf] %v398
  %415 = vst [vmem:[%s4 + $0x8] sm:$0xf] %v399
  %416 = vst [vmem:[%s4 + $0xc] sm:$0xf] %v400
  %417 = vst [vmem:[%s4 + $0x10] sm:$0xf] %v401
  %418 = vst [vmem:[%s4 + $0x14] sm:$0xf] %v402
  %419 = vst [vmem:[%s4 + $0x18] sm:$0xf] %v403
  %420 = vst [vmem:[%s4 + $0x1c] sm:$0xf] %v404
  %421 = vst [vmem:[%s4 + $0x20] sm:$0xf] %v405
  %422 = vst [vmem:[%s4 + $0x24] sm:$0xf] %v406
  %423 = vst [vmem:[%s4 + $0x28] sm:$0xf] %v407
  %424 = vst [vmem:[%s4 + $0x2c] sm:$0xf] %v408
  %425 = vst [vmem:[%s4 + $0x30] sm:$0xf] %v409
  %426 = vst [vmem:[%s4 + $0x34] sm:$0xf] %v410
  %427 = vst [vmem:[%s4 + $0x38] sm:$0xf] %v411
  %428 = vst [vmem:[%s4 + $0x3c] sm:$0xf] %v412
  // Predicated region
  $region18: #{fwd.33} parent=0 // pred_check
    _
  $region19: #{fwd.33} parent=0 // pred_check_branch
    %430 = sbr.rel (0) target = $region21
  $region20: #{fwd.33} parent=0 // pred_region
    _
  $region21: #{fwd.33} parent=0 // pred_fallthru
    _
  // Predicated region
  $region22: #{fwd.33} parent=0 // pred_check
    _
  $region23: #{fwd.33} parent=0 // pred_check_branch
    %432 = sbr.rel (0) target = $region25
  $region24: #{fwd.33} parent=0 // pred_region
    _
  $region25: #{fwd.33} parent=0 // pred_fallthru
    _

// kernel: fwd.34
$region0: #{fwd.34}
  #allocation0 [shape = 'u32[]', space=smem, size = 0x4, offset = 0x4, fixed_abs, tag = 'smem constant byte address 0x4 - core index']
  #allocation1 [shape = 'u32[72,128]{1,0:T(1,128)}', space=vmem, size = 0x9000, scoped, tag = 'internal scratch']
  %s0 = inlined_call_operand.vmem [shape: bf16[128,72], index: 0, kind: input, shape index: {}]
  %s1 = inlined_call_operand.vmem [shape: bf16[72,128], index: 1, kind: input, shape index: {}]
  %s2 = inlined_call_operand.vmem [shape: f32[1,128], index: 2, kind: input, shape index: {}]
  %s3 = inlined_call_operand.vmem [shape: f32[1,128], index: 3, kind: input, shape index: {}]
  %s4 = inlined_call_operand.vmem [shape: bf16[128,128], index: 4, kind: output, shape index: {}]
  %s5 = sld [smem:[#allocation0]]
  $region26: #{fwd.34} parent=0
    _
  %s7 = ssub.s32 1, %s5
  %s8 = scalar_select 0, %s7, %s5
  // Predicated region
  $region2: #{fwd.34} parent=0 // pred_check
    _
  $region3: #{fwd.34} parent=0 // pred_check_branch
    %10 = sbr.rel (0) target = $region5
  $region4: #{fwd.34} parent=0 // pred_region
    _
  $region5: #{fwd.34} parent=0 // pred_fallthru
    _
  // Predicated region
  $region6: #{fwd.34} parent=0 // pred_check
    _
  $region7: #{fwd.34} parent=0 // pred_check_branch
    %12 = sbr.rel (0) target = $region9
  $region8: #{fwd.34} parent=0 // pred_region
    _
  $region9: #{fwd.34} parent=0 // pred_fallthru
    _
  // Predicated region
  $region10: #{fwd.34} parent=0 // pred_check
    _
  $region11: #{fwd.34} parent=0 // pred_check_branch
    %14 = sbr.rel (0) target = $region13
  $region12: #{fwd.34} parent=0 // pred_region
    _
  $region13: #{fwd.34} parent=0 // pred_fallthru
    _
  // Predicated region
  $region14: #{fwd.34} parent=0 // pred_check
    _
  $region15: #{fwd.34} parent=0 // pred_check_branch
    %16 = sbr.rel (0) target = $region17
  $region16: #{fwd.34} parent=0 // pred_region
    _
  $region17: #{fwd.34} parent=0 // pred_fallthru
    _
  %v18 = vld [vmem:[%s0] sm:$0xf]
  %v19 = vld [vmem:[%s0 + $0x4] sm:$0xf]
  %v20 = vld [vmem:[%s0 + $0x8] sm:$0xf]
  %v21 = vld [vmem:[%s0 + $0xc] sm:$0xf]
  %v22 = vld [vmem:[%s0 + $0x10] sm:$0xf]
  %v23 = vld [vmem:[%s0 + $0x14] sm:$0xf]
  %v24 = vld [vmem:[%s0 + $0x18] sm:$0xf]
  %v25 = vld [vmem:[%s0 + $0x1c] sm:$0xf]
  %v26 = vld [vmem:[%s0 + $0x20] sm:$0xf]
  %v27 = vld [vmem:[%s0 + $0x24] sm:$0xf]
  %v28 = vld [vmem:[%s0 + $0x28] sm:$0xf]
  %v29 = vld [vmem:[%s0 + $0x2c] sm:$0xf]
  %v30 = vld [vmem:[%s0 + $0x30] sm:$0xf]
  %v31 = vld [vmem:[%s0 + $0x34] sm:$0xf]
  %v32 = vld [vmem:[%s0 + $0x38] sm:$0xf]
  %v33 = vld [vmem:[%s0 + $0x3c] sm:$0xf]
  %v34 = vld [vmem:[%s1] sm:$0xf]
  %v35 = vld [vmem:[%s1 + $0x4] sm:$0xf]
  %v36 = vld [vmem:[%s1 + $0x8] sm:$0xf]
  %v37 = vld [vmem:[%s1 + $0xc] sm:$0xf]
  %v38 = vld [vmem:[%s1 + $0x10] sm:$0xf]
  %v39 = vld [vmem:[%s1 + $0x14] sm:$0xf]
  %v40 = vld [vmem:[%s1 + $0x18] sm:$0xf]
  %v41 = vld [vmem:[%s1 + $0x1c] sm:$0xf]
  %v42 = vld [vmem:[%s1 + $0x20] sm:$0xf]
  %v43 = vld [vmem:[%s2] sm:$0x1]
  %v45 = vperm.slane %v43, 0
  %v63 = vunpack.c.l.b16 %v18
  %v64 = vunpack.c.l.b16 %v19
  %v65 = vunpack.c.l.b16 %v20
  %v66 = vunpack.c.l.b16 %v21
  %v67 = vunpack.c.l.b16 %v22
  %v68 = vunpack.c.l.b16 %v23
  %v69 = vunpack.c.l.b16 %v24
  %v70 = vunpack.c.l.b16 %v25
  %v71 = vunpack.c.l.b16 %v26
  %v72 = vunpack.c.l.b16 %v27
  %v73 = vunpack.c.l.b16 %v28
  %v74 = vunpack.c.l.b16 %v29
  %v75 = vunpack.c.l.b16 %v30
  %v76 = vunpack.c.l.b16 %v31
  %v77 = vunpack.c.l.b16 %v32
  %v78 = vunpack.c.l.b16 %v33
  %v79 = vpack.c.b16 %v64, %v63
  %v80 = vpack.c.b16 %v66, %v65
  %v81 = vpack.c.b16 %v68, %v67
  %v82 = vpack.c.b16 %v70, %v69
  %v83 = vpack.c.b16 %v72, %v71
  %v84 = vpack.c.b16 %v74, %v73
  %v85 = vpack.c.b16 %v76, %v75
  %v86 = vpack.c.b16 %v78, %v77
  %v96 = vunpack.c.l.b16 %v34
  %v97 = vunpack.c.l.b16 %v35
  %v98 = vunpack.c.l.b16 %v36
  %v99 = vunpack.c.l.b16 %v37
  %v100 = vunpack.c.l.b16 %v38
  %v101 = vunpack.c.l.b16 %v39
  %v102 = vunpack.c.l.b16 %v40
  %v103 = vunpack.c.l.b16 %v41
  %v104 = vunpack.c.l.b16 %v42
  %v105 = vpack.c.b16 %v97, %v96
  %v106 = vpack.c.b16 %v99, %v98
  %v107 = vpack.c.b16 %v101, %v100
  %v108 = vpack.c.b16 %v103, %v102
  %v109 = vpack.c.b16 %v104, %v104
  %vm114 = vcmask 588800
  %v116 = vsel %vm114, %v79, 0
  %v119 = vsel %vm114, %v80, 0
  %v122 = vsel %vm114, %v81, 0
  %v125 = vsel %vm114, %v82, 0
  %v128 = vsel %vm114, %v83, 0
  %v131 = vsel %vm114, %v84, 0
  %v134 = vsel %vm114, %v85, 0
  %v137 = vsel %vm114, %v86, 0
  %vm139 = vcmask 1043456
  %v141 = vsel %vm139, %v109, 0
  %143 = vmatpush.bf16.msra.mxu0 0
  %144 = vmatpush.bf16.msra.mxu0 0
  %145 = vmatpush.bf16.msra.mxu0 0
  %146 = vmatpush.bf16.msra.mxu0 %v141
  %147 = vmatpush.bf16.msra.mxu0 %v108
  %148 = vmatpush.bf16.msra.mxu0 %v107
  %149 = vmatpush.bf16.msra.mxu0 %v106
  %150 = vmatpush.bf16.msra.mxu0 %v105
  %151 = vmatmul.bf16.gmra.mxu0 %v116
  %v152 = vpop.f32.mrf.mxu0
  %v153 = vadd.f32 %v45, %v152
  %v154 = vpop.f32.mrf.mxu0
  %v155 = vadd.f32 %v45, %v154
  %156 = vmatmul.bf16.gmra.mxu0 %v119
  %v157 = vpop.f32.mrf.mxu0
  %v158 = vadd.f32 %v45, %v157
  %v159 = vpop.f32.mrf.mxu0
  %v160 = vadd.f32 %v45, %v159
  %161 = vmatmul.bf16.gmra.mxu0 %v122
  %v162 = vpop.f32.mrf.mxu0
  %v163 = vadd.f32 %v45, %v162
  %v164 = vpop.f32.mrf.mxu0
  %v165 = vadd.f32 %v45, %v164
  %166 = vmatmul.bf16.gmra.mxu0 %v125
  %v167 = vpop.f32.mrf.mxu0
  %v168 = vadd.f32 %v45, %v167
  %v169 = vpop.f32.mrf.mxu0
  %v170 = vadd.f32 %v45, %v169
  %171 = vmatmul.bf16.gmra.mxu0 %v128
  %v172 = vpop.f32.mrf.mxu0
  %v173 = vadd.f32 %v45, %v172
  %v174 = vpop.f32.mrf.mxu0
  %v175 = vadd.f32 %v45, %v174
  %176 = vmatmul.bf16.gmra.mxu0 %v131
  %v177 = vpop.f32.mrf.mxu0
  %v178 = vadd.f32 %v45, %v177
  %v179 = vpop.f32.mrf.mxu0
  %v180 = vadd.f32 %v45, %v179
  %181 = vmatmul.bf16.gmra.mxu0 %v134
  %v182 = vpop.f32.mrf.mxu0
  %v183 = vadd.f32 %v45, %v182
  %v184 = vpop.f32.mrf.mxu0
  %v185 = vadd.f32 %v45, %v184
  %186 = vmatmul.bf16.gmra.mxu0 %v137
  %v187 = vpop.f32.mrf.mxu0
  %v188 = vadd.f32 %v45, %v187
  %v189 = vpop.f32.mrf.mxu0
  %v190 = vadd.f32 %v45, %v189
  %191 = vdwg.mxu0
  %vm192 = vcmp.gt.f32.partialorder %v153, 0.0
  %vm193 = vcmp.gt.f32.partialorder %v155, 0.0
  %vm194 = vcmp.gt.f32.partialorder %v158, 0.0
  %vm195 = vcmp.gt.f32.partialorder %v160, 0.0
  %vm196 = vcmp.gt.f32.partialorder %v163, 0.0
  %vm197 = vcmp.gt.f32.partialorder %v165, 0.0
  %vm198 = vcmp.gt.f32.partialorder %v168, 0.0
  %vm199 = vcmp.gt.f32.partialorder %v170, 0.0
  %vm200 = vcmp.gt.f32.partialorder %v173, 0.0
  %vm201 = vcmp.gt.f32.partialorder %v175, 0.0
  %vm202 = vcmp.gt.f32.partialorder %v178, 0.0
  %vm203 = vcmp.gt.f32.partialorder %v180, 0.0
  %vm204 = vcmp.gt.f32.partialorder %v183, 0.0
  %vm205 = vcmp.gt.f32.partialorder %v185, 0.0
  %vm206 = vcmp.gt.f32.partialorder %v188, 0.0
  %vm207 = vcmp.gt.f32.partialorder %v190, 0.0
  %v208 = vld [vmem:[%s3] sm:$0x1]
  %v210 = vperm.slane %v208, 0
  %v212 = vmul.f32 %v210, %v153
  %v213 = vmul.f32 %v210, %v155
  %v214 = vmul.f32 %v210, %v158
  %v215 = vmul.f32 %v210, %v160
  %v216 = vmul.f32 %v210, %v163
  %v217 = vmul.f32 %v210, %v165
  %v218 = vmul.f32 %v210, %v168
  %v219 = vmul.f32 %v210, %v170
  %v220 = vmul.f32 %v210, %v173
  %v221 = vmul.f32 %v210, %v175
  %v222 = vmul.f32 %v210, %v178
  %v223 = vmul.f32 %v210, %v180
  %v224 = vmul.f32 %v210, %v183
  %v225 = vmul.f32 %v210, %v185
  %v226 = vmul.f32 %v210, %v188
  %v227 = vmul.f32 %v210, %v190
  %v228 = vsel %vm192, %v153, %v212
  %v229 = vsel %vm193, %v155, %v213
  %v230 = vsel %vm194, %v158, %v214
  %v231 = vsel %vm195, %v160, %v215
  %v232 = vsel %vm196, %v163, %v216
  %v233 = vsel %vm197, %v165, %v217
  %v234 = vsel %vm198, %v168, %v218
  %v235 = vsel %vm199, %v170, %v219
  %v236 = vsel %vm200, %v173, %v220
  %v237 = vsel %vm201, %v175, %v221
  %v238 = vsel %vm202, %v178, %v222
  %v239 = vsel %vm203, %v180, %v223
  %v240 = vsel %vm204, %v183, %v224
  %v241 = vsel %vm205, %v185, %v225
  %v242 = vsel %vm206, %v188, %v226
  %v243 = vsel %vm207, %v190, %v227
  %v244 = vpack.c.bf16 %v228, %v228
  %v245 = vpack.c.bf16 %v229, %v229
  %v246 = vpack.c.bf16 %v230, %v230
  %v247 = vpack.c.bf16 %v231, %v231
  %v248 = vpack.c.bf16 %v232, %v232
  %v249 = vpack.c.bf16 %v233, %v233
  %v250 = vpack.c.bf16 %v234, %v234
  %v251 = vpack.c.bf16 %v235, %v235
  %v252 = vpack.c.bf16 %v236, %v236
  %v253 = vpack.c.bf16 %v237, %v237
  %v254 = vpack.c.bf16 %v238, %v238
  %v255 = vpack.c.bf16 %v239, %v239
  %v256 = vpack.c.bf16 %v240, %v240
  %v257 = vpack.c.bf16 %v241, %v241
  %v258 = vpack.c.bf16 %v242, %v242
  %v259 = vpack.c.bf16 %v243, %v243
  %260 = vst [vmem:[%s4] sm:$0xf] %v244
  %261 = vst [vmem:[%s4 + $0x4] sm:$0xf] %v245
  %262 = vst [vmem:[%s4 + $0x8] sm:$0xf] %v246
  %263 = vst [vmem:[%s4 + $0xc] sm:$0xf] %v247
  %264 = vst [vmem:[%s4 + $0x10] sm:$0xf] %v248
  %265 = vst [vmem:[%s4 + $0x14] sm:$0xf] %v249
  %266 = vst [vmem:[%s4 + $0x18] sm:$0xf] %v250
  %267 = vst [vmem:[%s4 + $0x1c] sm:$0xf] %v251
  %268 = vst [vmem:[%s4 + $0x20] sm:$0xf] %v252
  %269 = vst [vmem:[%s4 + $0x24] sm:$0xf] %v253
  %270 = vst [vmem:[%s4 + $0x28] sm:$0xf] %v254
  %271 = vst [vmem:[%s4 + $0x2c] sm:$0xf] %v255
  %272 = vst [vmem:[%s4 + $0x30] sm:$0xf] %v256
  %273 = vst [vmem:[%s4 + $0x34] sm:$0xf] %v257
  %274 = vst [vmem:[%s4 + $0x38] sm:$0xf] %v258
  %275 = vst [vmem:[%s4 + $0x3c] sm:$0xf] %v259
  // Predicated region
  $region18: #{fwd.34} parent=0 // pred_check
    _
  $region19: #{fwd.34} parent=0 // pred_check_branch
    %277 = sbr.rel (0) target = $region21
  $region20: #{fwd.34} parent=0 // pred_region
    _
  $region21: #{fwd.34} parent=0 // pred_fallthru
    _
  // Predicated region
  $region22: #{fwd.34} parent=0 // pred_check
    _
  $region23: #{fwd.34} parent=0 // pred_check_branch
    %279 = sbr.rel (0) target = $region25
  $region24: #{fwd.34} parent=0 // pred_region
    _
  $region25: #{fwd.34} parent=0 // pred_fallthru
    _

// kernel: fwd.35
$region0: #{fwd.35}
  #allocation0 [shape = 'u32[]', space=smem, size = 0x4, offset = 0x4, fixed_abs, tag = 'smem constant byte address 0x4 - core index']
  #allocation1 [shape = 'u32[72,128]{1,0:T(1,128)}', space=vmem, size = 0x9000, scoped, tag = 'internal scratch']
  %s0 = inlined_call_operand.vmem [shape: bf16[128,432], index: 0, kind: input, shape index: {}]
  %s1 = inlined_call_operand.vmem [shape: bf16[432,128], index: 1, kind: input, shape index: {}]
  %s2 = inlined_call_operand.vmem [shape: f32[1,128], index: 2, kind: input, shape index: {}]
  %s3 = inlined_call_operand.vmem [shape: f32[128,128], index: 3, kind: output, shape index: {}]
  %s4 = sld [smem:[#allocation0]]
  $region22: #{fwd.35} parent=0
    _
  %s6 = ssub.s32 1, %s4
  %s7 = scalar_select 0, %s6, %s4
  // Predicated region
  $region2: #{fwd.35} parent=0 // pred_check
    _
  $region3: #{fwd.35} parent=0 // pred_check_branch
    %9 = sbr.rel (0) target = $region5
  $region4: #{fwd.35} parent=0 // pred_region
    _
  $region5: #{fwd.35} parent=0 // pred_fallthru
    _
  // Predicated region
  $region6: #{fwd.35} parent=0 // pred_check
    _
  $region7: #{fwd.35} parent=0 // pred_check_branch
    %11 = sbr.rel (0) target = $region9
  $region8: #{fwd.35} parent=0 // pred_region
    _
  $region9: #{fwd.35} parent=0 // pred_fallthru
    _
  // Predicated region
  $region10: #{fwd.35} parent=0 // pred_check
    _
  $region11: #{fwd.35} parent=0 // pred_check_branch
    %13 = sbr.rel (0) target = $region13
  $region12: #{fwd.35} parent=0 // pred_region
    _
  $region13: #{fwd.35} parent=0 // pred_fallthru
    _
  %v15 = vld [vmem:[%s0] sm:$0xff]
  %v16 = vld [vmem:[%s0 + $0x8] sm:$0xff]
  %v17 = vld [vmem:[%s0 + $0x10] sm:$0xff]
  %v18 = vld [vmem:[%s0 + $0x18] sm:$0xff]
  %v19 = vld [vmem:[%s0 + $0x20] sm:$0xff]
  %v20 = vld [vmem:[%s0 + $0x28] sm:$0xff]
  %v21 = vld [vmem:[%s0 + $0x30] sm:$0xff]
  %v22 = vld [vmem:[%s0 + $0x38] sm:$0xff]
  %v23 = vld [vmem:[%s0 + $0x40] sm:$0xff]
  %v24 = vld [vmem:[%s0 + $0x48] sm:$0xff]
  %v25 = vld [vmem:[%s0 + $0x50] sm:$0xff]
  %v26 = vld [vmem:[%s0 + $0x58] sm:$0xff]
  %v27 = vld [vmem:[%s0 + $0x60] sm:$0xff]
  %v28 = vld [vmem:[%s0 + $0x68] sm:$0xff]
  %v29 = vld [vmem:[%s0 + $0x70] sm:$0xff]
  %v30 = vld [vmem:[%s0 + $0x78] sm:$0xff]
  %v31 = vld [vmem:[%s0 + $0x80] sm:$0xff]
  %v32 = vld [vmem:[%s0 + $0x88] sm:$0xff]
  %v33 = vld [vmem:[%s0 + $0x90] sm:$0xff]
  %v34 = vld [vmem:[%s0 + $0x98] sm:$0xff]
  %v35 = vld [vmem:[%s0 + $0xa0] sm:$0xff]
  %v36 = vld [vmem:[%s0 + $0xa8] sm:$0xff]
  %v37 = vld [vmem:[%s0 + $0xb0] sm:$0xff]
  %v38 = vld [vmem:[%s0 + $0xb8] sm:$0xff]
  %v39 = vld [vmem:[%s0 + $0xc0] sm:$0xff]
  %v40 = vld [vmem:[%s0 + $0xc8] sm:$0xff]
  %v41 = vld [vmem:[%s0 + $0xd0] sm:$0xff]
  %v42 = vld [vmem:[%s0 + $0xd8] sm:$0xff]
  %v43 = vld [vmem:[%s0 + $0xe0] sm:$0xff]
  %v44 = vld [vmem:[%s0 + $0xe8] sm:$0xff]
  %v45 = vld [vmem:[%s0 + $0xf0] sm:$0xff]
  %v46 = vld [vmem:[%s0 + $0xf8] sm:$0xff]
  %v47 = vld [vmem:[%s1] sm:$0xf]
  %v48 = vld [vmem:[%s1 + $0x4] sm:$0xf]
  %v49 = vld [vmem:[%s1 + $0x8] sm:$0xf]
  %v50 = vld [vmem:[%s1 + $0xc] sm:$0xf]
  %v51 = vld [vmem:[%s1 + $0x10] sm:$0xf]
  %v52 = vld [vmem:[%s1 + $0x14] sm:$0xf]
  %v53 = vld [vmem:[%s1 + $0x18] sm:$0xf]
  %v54 = vld [vmem:[%s1 + $0x1c] sm:$0xf]
  %v55 = vld [vmem:[%s1 + $0x20] sm:$0xf]
  %v56 = vld [vmem:[%s1 + $0x24] sm:$0xf]
  %v57 = vld [vmem:[%s1 + $0x28] sm:$0xf]
  %v58 = vld [vmem:[%s1 + $0x2c] sm:$0xf]
  %v59 = vld [vmem:[%s1 + $0x30] sm:$0xf]
  %v60 = vld [vmem:[%s1 + $0x34] sm:$0xf]
  %v61 = vld [vmem:[%s1 + $0x38] sm:$0xf]
  %v62 = vld [vmem:[%s1 + $0x3c] sm:$0xf]
  %v63 = vld [vmem:[%s1 + $0x40] sm:$0xf]
  %v64 = vld [vmem:[%s1 + $0x44] sm:$0xf]
  %v65 = vld [vmem:[%s1 + $0x48] sm:$0xf]
  %v66 = vld [vmem:[%s1 + $0x4c] sm:$0xf]
  %v67 = vld [vmem:[%s1 + $0x50] sm:$0xf]
  %v68 = vld [vmem:[%s1 + $0x54] sm:$0xf]
  %v69 = vld [vmem:[%s1 + $0x58] sm:$0xf]
  %v70 = vld [vmem:[%s1 + $0x5c] sm:$0xf]
  %v71 = vld [vmem:[%s1 + $0x60] sm:$0xf]
  %v72 = vld [vmem:[%s1 + $0x64] sm:$0xf]
  %v73 = vld [vmem:[%s1 + $0x68] sm:$0xf]
  %v74 = vld [vmem:[%s1 + $0x6c] sm:$0xf]
  %v75 = vld [vmem:[%s1 + $0x70] sm:$0xf]
  %v76 = vld [vmem:[%s1 + $0x74] sm:$0xf]
  %v77 = vld [vmem:[%s1 + $0x78] sm:$0xf]
  %v78 = vld [vmem:[%s1 + $0x7c] sm:$0xf]
  %v79 = vld [vmem:[%s1 + $0x80] sm:$0xf]
  %v80 = vld [vmem:[%s1 + $0x84] sm:$0xf]
  %v81 = vld [vmem:[%s1 + $0x88] sm:$0xf]
  %v82 = vld [vmem:[%s1 + $0x8c] sm:$0xf]
  %v83 = vld [vmem:[%s1 + $0x90] sm:$0xf]
  %v84 = vld [vmem:[%s1 + $0x94] sm:$0xf]
  %v85 = vld [vmem:[%s1 + $0x98] sm:$0xf]
  %v86 = vld [vmem:[%s1 + $0x9c] sm:$0xf]
  %v87 = vld [vmem:[%s1 + $0xa0] sm:$0xf]
  %v88 = vld [vmem:[%s1 + $0xa4] sm:$0xf]
  %v89 = vld [vmem:[%s1 + $0xa8] sm:$0xf]
  %v90 = vld [vmem:[%s1 + $0xac] sm:$0xf]
  %v91 = vld [vmem:[%s1 + $0xb0] sm:$0xf]
  %v92 = vld [vmem:[%s1 + $0xb4] sm:$0xf]
  %v93 = vld [vmem:[%s1 + $0xb8] sm:$0xf]
  %v94 = vld [vmem:[%s1 + $0xbc] sm:$0xf]
  %v95 = vld [vmem:[%s1 + $0xc0] sm:$0xf]
  %v96 = vld [vmem:[%s1 + $0xc4] sm:$0xf]
  %v97 = vld [vmem:[%s1 + $0xc8] sm:$0xf]
  %v98 = vld [vmem:[%s1 + $0xcc] sm:$0xf]
  %v99 = vld [vmem:[%s1 + $0xd0] sm:$0xf]
  %v100 = vld [vmem:[%s1 + $0xd4] sm:$0xf]
  %v101 = vld [vmem:[%s2] sm:$0x1]
  %v103 = vperm.slane %v101, 0
  %v137 = vunpack.c.l.b16 %v15
  %v138 = vunpack.c.h.b16 %v15
  %v139 = vunpack.c.l.b16 %v16
  %v140 = vunpack.c.h.b16 %v16
  %v141 = vunpack.c.l.b16 %v17
  %v142 = vunpack.c.h.b16 %v17
  %v143 = vunpack.c.l.b16 %v18
  %v144 = vunpack.c.h.b16 %v18
  %v145 = vunpack.c.l.b16 %v19
  %v146 = vunpack.c.h.b16 %v19
  %v147 = vunpack.c.l.b16 %v20
  %v148 = vunpack.c.h.b16 %v20
  %v149 = vunpack.c.l.b16 %v21
  %v150 = vunpack.c.h.b16 %v21
  %v151 = vunpack.c.l.b16 %v22
  %v152 = vunpack.c.h.b16 %v22
  %v153 = vunpack.c.l.b16 %v23
  %v154 = vunpack.c.h.b16 %v23
  %v155 = vunpack.c.l.b16 %v24
  %v156 = vunpack.c.h.b16 %v24
  %v157 = vunpack.c.l.b16 %v25
  %v158 = vunpack.c.h.b16 %v25
  %v159 = vunpack.c.l.b16 %v26
  %v160 = vunpack.c.h.b16 %v26
  %v161 = vunpack.c.l.b16 %v27
  %v162 = vunpack.c.h.b16 %v27
  %v163 = vunpack.c.l.b16 %v28
  %v164 = vunpack.c.h.b16 %v28
  %v165 = vunpack.c.l.b16 %v29
  %v166 = vunpack.c.h.b16 %v29
  %v167 = vunpack.c.l.b16 %v30
  %v168 = vunpack.c.h.b16 %v30
  %v169 = vunpack.c.l.b16 %v31
  %v170 = vunpack.c.h.b16 %v31
  %v171 = vunpack.c.l.b16 %v32
  %v172 = vunpack.c.h.b16 %v32
  %v173 = vunpack.c.l.b16 %v33
  %v174 = vunpack.c.h.b16 %v33
  %v175 = vunpack.c.l.b16 %v34
  %v176 = vunpack.c.h.b16 %v34
  %v177 = vunpack.c.l.b16 %v35
  %v178 = vunpack.c.h.b16 %v35
  %v179 = vunpack.c.l.b16 %v36
  %v180 = vunpack.c.h.b16 %v36
  %v181 = vunpack.c.l.b16 %v37
  %v182 = vunpack.c.h.b16 %v37
  %v183 = vunpack.c.l.b16 %v38
  %v184 = vunpack.c.h.b16 %v38
  %v185 = vunpack.c.l.b16 %v39
  %v186 = vunpack.c.h.b16 %v39
  %v187 = vunpack.c.l.b16 %v40
  %v188 = vunpack.c.h.b16 %v40
  %v189 = vunpack.c.l.b16 %v41
  %v190 = vunpack.c.h.b16 %v41
  %v191 = vunpack.c.l.b16 %v42
  %v192 = vunpack.c.h.b16 %v42
  %v193 = vunpack.c.l.b16 %v43
  %v194 = vunpack.c.h.b16 %v43
  %v195 = vunpack.c.l.b16 %v44
  %v196 = vunpack.c.h.b16 %v44
  %v197 = vunpack.c.l.b16 %v45
  %v198 = vunpack.c.h.b16 %v45
  %v199 = vunpack.c.l.b16 %v46
  %v200 = vunpack.c.h.b16 %v46
  %v201 = vpack.c.b16 %v141, %v137
  %v202 = vpack.c.b16 %v142, %v138
  %v203 = vpack.c.b16 %v143, %v139
  %v204 = vpack.c.b16 %v144, %v140
  %v205 = vpack.c.b16 %v149, %v145
  %v206 = vpack.c.b16 %v150, %v146
  %v207 = vpack.c.b16 %v151, %v147
  %v208 = vpack.c.b16 %v152, %v148
  %v209 = vpack.c.b16 %v157, %v153
  %v210 = vpack.c.b16 %v158, %v154
  %v211 = vpack.c.b16 %v159, %v155
  %v212 = vpack.c.b16 %v160, %v156
  %v213 = vpack.c.b16 %v165, %v161
  %v214 = vpack.c.b16 %v166, %v162
  %v215 = vpack.c.b16 %v167, %v163
  %v216 = vpack.c.b16 %v168, %v164
  %v217 = vpack.c.b16 %v173, %v169
  %v218 = vpack.c.b16 %v174, %v170
  %v219 = vpack.c.b16 %v175, %v171
  %v220 = vpack.c.b16 %v176, %v172
  %v221 = vpack.c.b16 %v181, %v177
  %v222 = vpack.c.b16 %v182, %v178
  %v223 = vpack.c.b16 %v183, %v179
  %v224 = vpack.c.b16 %v184, %v180
  %v225 = vpack.c.b16 %v189, %v185
  %v226 = vpack.c.b16 %v190, %v186
  %v227 = vpack.c.b16 %v191, %v187
  %v228 = vpack.c.b16 %v192, %v188
  %v229 = vpack.c.b16 %v197, %v193
  %v230 = vpack.c.b16 %v198, %v194
  %v231 = vpack.c.b16 %v199, %v195
  %v232 = vpack.c.b16 %v200, %v196
  %v311 = vunpack.c.l.b16 %v47
  %v312 = vunpack.c.l.b16 %v48
  %v313 = vunpack.c.l.b16 %v49
  %v314 = vunpack.c.l.b16 %v50
  %v315 = vunpack.c.l.b16 %v51
  %v316 = vunpack.c.l.b16 %v52
  %v317 = vunpack.c.l.b16 %v53
  %v318 = vunpack.c.l.b16 %v54
  %v319 = vunpack.c.l.b16 %v55
  %v320 = vunpack.c.l.b16 %v56
  %v321 = vunpack.c.l.b16 %v57
  %v322 = vunpack.c.l.b16 %v58
  %v323 = vunpack.c.l.b16 %v59
  %v324 = vunpack.c.l.b16 %v60
  %v325 = vunpack.c.l.b16 %v61
  %v326 = vunpack.c.l.b16 %v62
  %v327 = vunpack.c.l.b16 %v63
  %v328 = vunpack.c.l.b16 %v64
  %v329 = vunpack.c.l.b16 %v65
  %v330 = vunpack.c.l.b16 %v66
  %v331 = vunpack.c.l.b16 %v67
  %v332 = vunpack.c.l.b16 %v68
  %v333 = vunpack.c.l.b16 %v69
  %v334 = vunpack.c.l.b16 %v70
  %v335 = vunpack.c.l.b16 %v71
  %v336 = vunpack.c.l.b16 %v72
  %v337 = vunpack.c.l.b16 %v73
  %v338 = vunpack.c.l.b16 %v74
  %v339 = vunpack.c.l.b16 %v75
  %v340 = vunpack.c.l.b16 %v76
  %v341 = vunpack.c.l.b16 %v77
  %v342 = vunpack.c.l.b16 %v78
  %v343 = vunpack.c.l.b16 %v79
  %v344 = vunpack.c.l.b16 %v80
  %v345 = vunpack.c.l.b16 %v81
  %v346 = vunpack.c.l.b16 %v82
  %v347 = vunpack.c.l.b16 %v83
  %v348 = vunpack.c.l.b16 %v84
  %v349 = vunpack.c.l.b16 %v85
  %v350 = vunpack.c.l.b16 %v86
  %v351 = vunpack.c.l.b16 %v87
  %v352 = vunpack.c.l.b16 %v88
  %v353 = vunpack.c.l.b16 %v89
  %v354 = vunpack.c.l.b16 %v90
  %v355 = vunpack.c.l.b16 %v91
  %v356 = vunpack.c.l.b16 %v92
  %v357 = vunpack.c.l.b16 %v93
  %v358 = vunpack.c.l.b16 %v94
  %v359 = vunpack.c.l.b16 %v95
  %v360 = vunpack.c.l.b16 %v96
  %v361 = vunpack.c.l.b16 %v97
  %v362 = vunpack.c.l.b16 %v98
  %v363 = vunpack.c.l.b16 %v99
  %v364 = vunpack.c.l.b16 %v100
  %v365 = vpack.c.b16 %v312, %v311
  %v366 = vpack.c.b16 %v314, %v313
  %v367 = vpack.c.b16 %v316, %v315
  %v368 = vpack.c.b16 %v318, %v317
  %v369 = vpack.c.b16 %v320, %v319
  %v370 = vpack.c.b16 %v322, %v321
  %v371 = vpack.c.b16 %v324, %v323
  %v372 = vpack.c.b16 %v326, %v325
  %v373 = vpack.c.b16 %v328, %v327
  %v374 = vpack.c.b16 %v330, %v329
  %v375 = vpack.c.b16 %v332, %v331
  %v376 = vpack.c.b16 %v334, %v333
  %v377 = vpack.c.b16 %v336, %v335
  %v378 = vpack.c.b16 %v338, %v337
  %v379 = vpack.c.b16 %v340, %v339
  %v380 = vpack.c.b16 %v342, %v341
  %v381 = vpack.c.b16 %v344, %v343
  %v382 = vpack.c.b16 %v346, %v345
  %v383 = vpack.c.b16 %v348, %v347
  %v384 = vpack.c.b16 %v350, %v349
  %v385 = vpack.c.b16 %v352, %v351
  %v386 = vpack.c.b16 %v354, %v353
  %v387 = vpack.c.b16 %v356, %v355
  %v388 = vpack.c.b16 %v358, %v357
  %v389 = vpack.c.b16 %v360, %v359
  %v390 = vpack.c.b16 %v362, %v361
  %v391 = vpack.c.b16 %v364, %v363
  %vm419 = vcmask 392192
  %v421 = vsel %vm419, %v204, 0
  %v424 = vsel %vm419, %v208, 0
  %v427 = vsel %vm419, %v212, 0
  %v430 = vsel %vm419, %v216, 0
  %v433 = vsel %vm419, %v220, 0
  %v436 = vsel %vm419, %v224, 0
  %v439 = vsel %vm419, %v228, 0
  %v442 = vsel %vm419, %v232, 0
  %444 = vmatpush.bf16.msra.mxu0 %v372
  %445 = vmatpush.bf16.msra.mxu0 %v371
  %446 = vmatpush.bf16.msra.mxu0 %v370
  %447 = vmatpush.bf16.msra.mxu0 %v369
  %448 = vmatpush.bf16.msra.mxu0 %v368
  %449 = vmatpush.bf16.msra.mxu0 %v367
  %450 = vmatpush.bf16.msra.mxu0 %v366
  %451 = vmatpush.bf16.msra.mxu0 %v365
  %452 = vmatmul.bf16.gmra.mxu0 %v201
  %v453 = vpop.f32.mrf.mxu0
  %v454 = vadd.f32 %v103, %v453
  %v455 = vpop.f32.mrf.mxu0
  %v456 = vadd.f32 %v103, %v455
  %457 = vmatmul.bf16.gmra.mxu0 %v205
  %v458 = vpop.f32.mrf.mxu0
  %v459 = vadd.f32 %v103, %v458
  %v460 = vpop.f32.mrf.mxu0
  %v461 = vadd.f32 %v103, %v460
  %462 = vmatmul.bf16.gmra.mxu0 %v209
  %v463 = vpop.f32.mrf.mxu0
  %v464 = vadd.f32 %v103, %v463
  %v465 = vpop.f32.mrf.mxu0
  %v466 = vadd.f32 %v103, %v465
  %467 = vmatmul.bf16.gmra.mxu0 %v213
  %v468 = vpop.f32.mrf.mxu0
  %v469 = vadd.f32 %v103, %v468
  %v470 = vpop.f32.mrf.mxu0
  %v471 = vadd.f32 %v103, %v470
  %472 = vmatmul.bf16.gmra.mxu0 %v217
  %v473 = vpop.f32.mrf.mxu0
  %v474 = vadd.f32 %v103, %v473
  %v475 = vpop.f32.mrf.mxu0
  %v476 = vadd.f32 %v103, %v475
  %477 = vmatmul.bf16.gmra.mxu0 %v221
  %v478 = vpop.f32.mrf.mxu0
  %v479 = vadd.f32 %v103, %v478
  %v480 = vpop.f32.mrf.mxu0
  %v481 = vadd.f32 %v103, %v480
  %482 = vmatmul.bf16.gmra.mxu0 %v225
  %v483 = vpop.f32.mrf.mxu0
  %v484 = vadd.f32 %v103, %v483
  %v485 = vpop.f32.mrf.mxu0
  %v486 = vadd.f32 %v103, %v485
  %487 = vmatmul.bf16.gmra.mxu0 %v229
  %v488 = vpop.f32.mrf.mxu0
  %v489 = vadd.f32 %v103, %v488
  %v490 = vpop.f32.mrf.mxu0
  %v491 = vadd.f32 %v103, %v490
  %492 = vdwg.mxu0
  %493 = vmatpush.bf16.msra.mxu0 %v380
  %494 = vmatpush.bf16.msra.mxu0 %v379
  %495 = vmatpush.bf16.msra.mxu0 %v378
  %496 = vmatpush.bf16.msra.mxu0 %v377
  %497 = vmatpush.bf16.msra.mxu0 %v376
  %498 = vmatpush.bf16.msra.mxu0 %v375
  %499 = vmatpush.bf16.msra.mxu0 %v374
  %500 = vmatpush.bf16.msra.mxu0 %v373
  %501 = vmatmul.bf16.gmra.mxu0 %v202
  %v502 = vpop.f32.mrf.mxu0
  %v503 = vadd.f32 %v454, %v502
  %v504 = vpop.f32.mrf.mxu0
  %v505 = vadd.f32 %v456, %v504
  %506 = vmatmul.bf16.gmra.mxu0 %v206
  %v507 = vpop.f32.mrf.mxu0
  %v508 = vadd.f32 %v459, %v507
  %v509 = vpop.f32.mrf.mxu0
  %v510 = vadd.f32 %v461, %v509
  %511 = vmatmul.bf16.gmra.mxu0 %v210
  %v512 = vpop.f32.mrf.mxu0
  %v513 = vadd.f32 %v464, %v512
  %v514 = vpop.f32.mrf.mxu0
  %v515 = vadd.f32 %v466, %v514
  %516 = vmatmul.bf16.gmra.mxu0 %v214
  %v517 = vpop.f32.mrf.mxu0
  %v518 = vadd.f32 %v469, %v517
  %v519 = vpop.f32.mrf.mxu0
  %v520 = vadd.f32 %v471, %v519
  %521 = vmatmul.bf16.gmra.mxu0 %v218
  %v522 = vpop.f32.mrf.mxu0
  %v523 = vadd.f32 %v474, %v522
  %v524 = vpop.f32.mrf.mxu0
  %v525 = vadd.f32 %v476, %v524
  %526 = vmatmul.bf16.gmra.mxu0 %v222
  %v527 = vpop.f32.mrf.mxu0
  %v528 = vadd.f32 %v479, %v527
  %v529 = vpop.f32.mrf.mxu0
  %v530 = vadd.f32 %v481, %v529
  %531 = vmatmul.bf16.gmra.mxu0 %v226
  %v532 = vpop.f32.mrf.mxu0
  %v533 = vadd.f32 %v484, %v532
  %v534 = vpop.f32.mrf.mxu0
  %v535 = vadd.f32 %v486, %v534
  %536 = vmatmul.bf16.gmra.mxu0 %v230
  %v537 = vpop.f32.mrf.mxu0
  %v538 = vadd.f32 %v489, %v537
  %v539 = vpop.f32.mrf.mxu0
  %v540 = vadd.f32 %v491, %v539
  %541 = vdwg.mxu0
  %542 = vmatpush.bf16.msra.mxu0 %v388
  %543 = vmatpush.bf16.msra.mxu0 %v387
  %544 = vmatpush.bf16.msra.mxu0 %v386
  %545 = vmatpush.bf16.msra.mxu0 %v385
  %546 = vmatpush.bf16.msra.mxu0 %v384
  %547 = vmatpush.bf16.msra.mxu0 %v383
  %548 = vmatpush.bf16.msra.mxu0 %v382
  %549 = vmatpush.bf16.msra.mxu0 %v381
  %550 = vmatmul.bf16.gmra.mxu0 %v203
  %v551 = vpop.f32.mrf.mxu0
  %v552 = vadd.f32 %v503, %v551
  %v553 = vpop.f32.mrf.mxu0
  %v554 = vadd.f32 %v505, %v553
  %555 = vmatmul.bf16.gmra.mxu0 %v207
  %v556 = vpop.f32.mrf.mxu0
  %v557 = vadd.f32 %v508, %v556
  %v558 = vpop.f32.mrf.mxu0
  %v559 = vadd.f32 %v510, %v558
  %560 = vmatmul.bf16.gmra.mxu0 %v211
  %v561 = vpop.f32.mrf.mxu0
  %v562 = vadd.f32 %v513, %v561
  %v563 = vpop.f32.mrf.mxu0
  %v564 = vadd.f32 %v515, %v563
  %565 = vmatmul.bf16.gmra.mxu0 %v215
  %v566 = vpop.f32.mrf.mxu0
  %v567 = vadd.f32 %v518, %v566
  %v568 = vpop.f32.mrf.mxu0
  %v569 = vadd.f32 %v520, %v568
  %570 = vmatmul.bf16.gmra.mxu0 %v219
  %v571 = vpop.f32.mrf.mxu0
  %v572 = vadd.f32 %v523, %v571
  %v573 = vpop.f32.mrf.mxu0
  %v574 = vadd.f32 %v525, %v573
  %575 = vmatmul.bf16.gmra.mxu0 %v223
  %v576 = vpop.f32.mrf.mxu0
  %v577 = vadd.f32 %v528, %v576
  %v578 = vpop.f32.mrf.mxu0
  %v579 = vadd.f32 %v530, %v578
  %580 = vmatmul.bf16.gmra.mxu0 %v227
  %v581 = vpop.f32.mrf.mxu0
  %v582 = vadd.f32 %v533, %v581
  %v583 = vpop.f32.mrf.mxu0
  %v584 = vadd.f32 %v535, %v583
  %585 = vmatmul.bf16.gmra.mxu0 %v231
  %v586 = vpop.f32.mrf.mxu0
  %v587 = vadd.f32 %v538, %v586
  %v588 = vpop.f32.mrf.mxu0
  %v589 = vadd.f32 %v540, %v588
  %590 = vdwg.mxu0
  %591 = vmatpush.bf16.msra.mxu0 0
  %592 = vmatpush.bf16.msra.mxu0 0
  %593 = vmatpush.bf16.msra.mxu0 0
  %594 = vmatpush.bf16.msra.mxu0 0
  %595 = vmatpush.bf16.msra.mxu0 0
  %596 = vmatpush.bf16.msra.mxu0 %v391
  %597 = vmatpush.bf16.msra.mxu0 %v390
  %598 = vmatpush.bf16.msra.mxu0 %v389
  %599 = vmatmul.bf16.gmra.mxu0 %v421
  %v600 = vpop.f32.mrf.mxu0
  %v601 = vadd.f32 %v552, %v600
  %v602 = vpop.f32.mrf.mxu0
  %v603 = vadd.f32 %v554, %v602
  %604 = vmatmul.bf16.gmra.mxu0 %v424
  %v605 = vpop.f32.mrf.mxu0
  %v606 = vadd.f32 %v557, %v605
  %v607 = vpop.f32.mrf.mxu0
  %v608 = vadd.f32 %v559, %v607
  %609 = vmatmul.bf16.gmra.mxu0 %v427
  %v610 = vpop.f32.mrf.mxu0
  %v611 = vadd.f32 %v562, %v610
  %v612 = vpop.f32.mrf.mxu0
  %v613 = vadd.f32 %v564, %v612
  %614 = vmatmul.bf16.gmra.mxu0 %v430
  %v615 = vpop.f32.mrf.mxu0
  %v616 = vadd.f32 %v567, %v615
  %v617 = vpop.f32.mrf.mxu0
  %v618 = vadd.f32 %v569, %v617
  %619 = vmatmul.bf16.gmra.mxu0 %v433
  %v620 = vpop.f32.mrf.mxu0
  %v621 = vadd.f32 %v572, %v620
  %v622 = vpop.f32.mrf.mxu0
  %v623 = vadd.f32 %v574, %v622
  %624 = vmatmul.bf16.gmra.mxu0 %v436
  %v625 = vpop.f32.mrf.mxu0
  %v626 = vadd.f32 %v577, %v625
  %v627 = vpop.f32.mrf.mxu0
  %v628 = vadd.f32 %v579, %v627
  %629 = vmatmul.bf16.gmra.mxu0 %v439
  %v630 = vpop.f32.mrf.mxu0
  %v631 = vadd.f32 %v582, %v630
  %v632 = vpop.f32.mrf.mxu0
  %v633 = vadd.f32 %v584, %v632
  %634 = vmatmul.bf16.gmra.mxu0 %v442
  %v635 = vpop.f32.mrf.mxu0
  %v636 = vadd.f32 %v587, %v635
  %v637 = vpop.f32.mrf.mxu0
  %v638 = vadd.f32 %v589, %v637
  %639 = vdwg.mxu0
  %640 = vst [vmem:[%s3] sm:$0xff] %v601
  %641 = vst [vmem:[%s3 + $0x8] sm:$0xff] %v603
  %642 = vst [vmem:[%s3 + $0x10] sm:$0xff] %v606
  %643 = vst [vmem:[%s3 + $0x18] sm:$0xff] %v608
  %644 = vst [vmem:[%s3 + $0x20] sm:$0xff] %v611
  %645 = vst [vmem:[%s3 + $0x28] sm:$0xff] %v613
  %646 = vst [vmem:[%s3 + $0x30] sm:$0xff] %v616
  %647 = vst [vmem:[%s3 + $0x38] sm:$0xff] %v618
  %648 = vst [vmem:[%s3 + $0x40] sm:$0xff] %v621
  %649 = vst [vmem:[%s3 + $0x48] sm:$0xff] %v623
  %650 = vst [vmem:[%s3 + $0x50] sm:$0xff] %v626
  %651 = vst [vmem:[%s3 + $0x58] sm:$0xff] %v628
  %652 = vst [vmem:[%s3 + $0x60] sm:$0xff] %v631
  %653 = vst [vmem:[%s3 + $0x68] sm:$0xff] %v633
  %654 = vst [vmem:[%s3 + $0x70] sm:$0xff] %v636
  %655 = vst [vmem:[%s3 + $0x78] sm:$0xff] %v638
  // Predicated region
  $region14: #{fwd.35} parent=0 // pred_check
    _
  $region15: #{fwd.35} parent=0 // pred_check_branch
    %657 = sbr.rel (0) target = $region17
  $region16: #{fwd.35} parent=0 // pred_region
    _
  $region17: #{fwd.35} parent=0 // pred_fallthru
    _
  // Predicated region
  $region18: #{fwd.35} parent=0 // pred_check
    _
  $region19: #{fwd.35} parent=0 // pred_check_branch
    %659 = sbr.rel (0) target = $region21
  $region20: #{fwd.35} parent=0 // pred_region
    _
  $region21: #{fwd.35} parent=0 // pred_fallthru
    _

// kernel: fwd.36
$region0: #{fwd.36}
  #allocation0 [shape = 'u32[]', space=smem, size = 0x4, offset = 0x4, fixed_abs, tag = 'smem constant byte address 0x4 - core index']
  #allocation1 [shape = 'u32[72,128]{1,0:T(1,128)}', space=vmem, size = 0x9000, scoped, tag = 'internal scratch']
  %s0 = inlined_call_operand.vmem [shape: bf16[512,72], index: 0, kind: input, shape index: {}]
  %s1 = inlined_call_operand.vmem [shape: bf16[72,128], index: 1, kind: input, shape index: {}]
  %s2 = inlined_call_operand.vmem [shape: f32[1,128], index: 2, kind: input, shape index: {}]
  %s3 = inlined_call_operand.vmem [shape: f32[512,128], index: 3, kind: output, shape index: {}]
  %s4 = sld [smem:[#allocation0]]
  $region45: #{fwd.36} parent=0
    _
  %s6 = ssub.s32 1, %s4
  %s7 = scalar_select 0, %s6, %s4
  loop: start=0, step=1, limit=6
  $region2: #{fwd.36} parent=0 // loop_pre_header
    _
  $region3: #{fwd.36} parent=0 // loop_header
    %s9 = sphi 0, %s13
    %p10 = scmp.ge.s32.totalorder %s9, 6
    %s16 = sphi 0, %s28
    %s17 = sphi 0, %s24
    %s18 = sphi 0, %s16
    %s19 = sphi 0, %s17
    %s20 = sphi 0, %s18
    %s21 = sphi 0, %s19
    %s31 = sphi 0, %s33
    %s34 = sphi 0, %s31
    %s35 = sphi 0, %s34
    %s51 = sphi 0, %s35
    %s57 = sphi 0, %s59
    %s60 = sphi 0, %s57
    %s61 = sphi 0, %s60
    %s77 = sphi 0, %s61
    %s83 = sphi 0, %s85
    %s86 = sphi 0, %s83
    %s87 = sphi 0, %s86
    %s103 = sphi 0, %s87
    %s111 = sphi 0, %s113
    %s114 = sphi 0, %s111
    %s115 = sphi 0, %s114
    %s131 = sphi 0, %s115
  $region4: #{fwd.36} parent=0 // loop_header_branch
    %12 = sbr.rel (%p10) target = $region8
  $region5: #{fwd.36} parent=0 // loop_body
    %s14 = ssub.s32 %s9, 1
    %s15 = ssub.s32 %s9, 2
    %s22 = sadd.s32 1, %s17
    %p23 = scmp.ge.s32.totalorder %s22, 4
    %s24 = scalar_select %p23, 0, %s22
    %s25 = sadd.s32 1, %s16
    %s26 = scalar_select %p23, %s25, %s16
    %p27 = scmp.ge.s32.totalorder %s26, 1
    %s28 = scalar_select %p27, 0, %s26
    %s29 = ssub.s32 %s17, %s24
    %p30 = scmp.eq.s32.totalorder %s29, 0
    %s32 = sadd.s32 %s31, 1
    %s33 = scalar_select %p30, %s31, %s32
    %p36 = pneg %p30
    %p37 = scmp.eq.s32.totalorder %s9, 3
    %p38 = por %p36, %p37
    %p39 = scmp.ne.s32.totalorder %s31, %s34
    %p40 = scmp.eq.s32.totalorder %s9, 0
    %p41 = por %p39, %p40
    %p42 = scmp.ne.s32.totalorder %s31, %s34
    %p43 = scmp.eq.s32.totalorder %s14, 3
    %p44 = por %p42, %p43
    %p45 = scmp.ne.s32.totalorder %s34, %s35
    %p46 = scmp.eq.s32.totalorder %s14, 0
    %p47 = por %p45, %p46
    %p48 = scmp.ne.s32.totalorder %s34, %s35
    %p49 = scmp.eq.s32.totalorder %s15, 3
    %p50 = por %p48, %p49
    %p52 = scmp.ne.s32.totalorder %s35, %s51
    %p53 = scmp.eq.s32.totalorder %s15, 0
    %p54 = por %p52, %p53
    %s55 = ssub.s32 %s16, %s28
    %p56 = scmp.eq.s32.totalorder %s55, 0
    %s58 = sadd.s32 %s57, 1
    %s59 = scalar_select %p56, %s57, %s58
    %p62 = pneg %p56
    %p63 = scmp.eq.s32.totalorder %s9, 3
    %p64 = por %p62, %p63
    %p65 = scmp.ne.s32.totalorder %s57, %s60
    %p66 = scmp.eq.s32.totalorder %s9, 0
    %p67 = por %p65, %p66
    %p68 = scmp.ne.s32.totalorder %s57, %s60
    %p69 = scmp.eq.s32.totalorder %s14, 3
    %p70 = por %p68, %p69
    %p71 = scmp.ne.s32.totalorder %s60, %s61
    %p72 = scmp.eq.s32.totalorder %s14, 0
    %p73 = por %p71, %p72
    %p74 = scmp.ne.s32.totalorder %s60, %s61
    %p75 = scmp.eq.s32.totalorder %s15, 3
    %p76 = por %p74, %p75
    %p78 = scmp.ne.s32.totalorder %s61, %s77
    %p79 = scmp.eq.s32.totalorder %s15, 0
    %p80 = por %p78, %p79
    %s81 = ssub.s32 %s16, %s28
    %p82 = scmp.eq.s32.totalorder %s81, 0
    %s84 = sadd.s32 %s83, 1
    %s85 = scalar_select %p82, %s83, %s84
    %p88 = pneg %p82
    %p89 = scmp.eq.s32.totalorder %s9, 3
    %p90 = por %p88, %p89
    %p91 = scmp.ne.s32.totalorder %s83, %s86
    %p92 = scmp.eq.s32.totalorder %s9, 0
    %p93 = por %p91, %p92
    %p94 = scmp.ne.s32.totalorder %s83, %s86
    %p95 = scmp.eq.s32.totalorder %s14, 3
    %p96 = por %p94, %p95
    %p97 = scmp.ne.s32.totalorder %s86, %s87
    %p98 = scmp.eq.s32.totalorder %s14, 0
    %p99 = por %p97, %p98
    %p100 = scmp.ne.s32.totalorder %s86, %s87
    %p101 = scmp.eq.s32.totalorder %s15, 3
    %p102 = por %p100, %p101
    %p104 = scmp.ne.s32.totalorder %s87, %s103
    %p105 = scmp.eq.s32.totalorder %s15, 0
    %p106 = por %p104, %p105
    %s107 = ssub.s32 %s17, %s24
    %s108 = ssub.s32 %s16, %s28
    %s109 = sor.u32 %s107, %s108
    %p110 = scmp.eq.s32.totalorder %s109, 0
    %s112 = sadd.s32 %s111, 1
    %s113 = scalar_select %p110, %s111, %s112
    %p116 = pneg %p110
    %p117 = scmp.eq.s32.totalorder %s9, 3
    %p118 = por %p116, %p117
    %p119 = scmp.ne.s32.totalorder %s111, %s114
    %p120 = scmp.eq.s32.totalorder %s9, 0
    %p121 = por %p119, %p120
    %p122 = scmp.ne.s32.totalorder %s111, %s114
    %p123 = scmp.eq.s32.totalorder %s14, 3
    %p124 = por %p122, %p123
    %p125 = scmp.ne.s32.totalorder %s114, %s115
    %p126 = scmp.eq.s32.totalorder %s14, 0
    %p127 = por %p125, %p126
    %p128 = scmp.ne.s32.totalorder %s114, %s115
    %p129 = scmp.eq.s32.totalorder %s15, 3
    %p130 = por %p128, %p129
    %p132 = scmp.ne.s32.totalorder %s115, %s131
    %p133 = scmp.eq.s32.totalorder %s15, 0
    %p134 = por %p132, %p133
    %p135 = scmp.le.s32.totalorder 1, %s9
    %p136 = scmp.lt.s32.totalorder %s9, 5
    %p137 = pnand %p135, %p136
    %p138 = pneg %p137
    // Predicated region
    $region9: #{fwd.36} parent=5 // pred_check
      _
    $region10: #{fwd.36} parent=5 // pred_check_branch
      %140 = sbr.rel (%p137) target = $region12
    $region11: #{fwd.36} parent=5 // pred_region
      %s141 = ssub.s32 %s9, 1
      // Predicated region
      $region13: #{fwd.36} parent=11 // pred_check
        %p142 = pneg %p73
      $region14: #{fwd.36} parent=11 // pred_check_branch
        %144 = sbr.rel (%p142) target = $region16
      $region15: #{fwd.36} parent=11 // pred_region
        %p145 = scmp.lt.s32.totalorder %s18, 0
        %s146 = scalar_select %p145, %s18, 0
        %s147 = smul.addr %s146, 4
        %s148 = scalar_lea.vmem %s1, %s147
      $region16: #{fwd.36} parent=11 // pred_fallthru
        _
      // Predicated region
      $region17: #{fwd.36} parent=11 // pred_check
        %p149 = pneg %p99
      $region18: #{fwd.36} parent=11 // pred_check_branch
        %151 = sbr.rel (%p149) target = $region20
      $region19: #{fwd.36} parent=11 // pred_region
        %p152 = scmp.lt.s32.totalorder %s18, 0
        %s153 = scalar_select %p152, %s18, 0
        %s154 = scalar_lea.vmem %s2, %s153
      $region20: #{fwd.36} parent=11 // pred_fallthru
        _
    $region12: #{fwd.36} parent=5 // pred_fallthru
      _
    %p155 = scmp.lt.s32.totalorder %s9, 4
    // Predicated region
    $region21: #{fwd.36} parent=5 // pred_check
      %p156 = pneg %p155
    $region22: #{fwd.36} parent=5 // pred_check_branch
      %158 = sbr.rel (%p156) target = $region24
    $region23: #{fwd.36} parent=5 // pred_region
      // Predicated region
      $region25: #{fwd.36} parent=23 // pred_check
        %p159 = pneg %p41
      $region26: #{fwd.36} parent=23 // pred_check_branch
        %161 = sbr.rel (%p159) target = $region28
      $region27: #{fwd.36} parent=23 // pred_region
        %s162 = smul.u32 16, %s17
        %p163 = scmp.lt.s32.totalorder %s162, 63
        %s164 = scalar_select %p163, %s162, 63
        %s165 = smul.addr %s164, 4
        %s166 = scalar_lea.vmem %s0, %s165
        %s167 = smul.u32 16, %s17
      $region28: #{fwd.36} parent=23 // pred_fallthru
        _
    $region24: #{fwd.36} parent=5 // pred_fallthru
      _
    %p168 = scmp.le.s32.totalorder 1, %s9
    %p169 = scmp.lt.s32.totalorder %s9, 5
    %p170 = pnand %p168, %p169
    %p171 = pneg %p170
    // Predicated region
    $region29: #{fwd.36} parent=5 // pred_check
      _
    $region30: #{fwd.36} parent=5 // pred_check_branch
      %173 = sbr.rel (%p170) target = $region32
    $region31: #{fwd.36} parent=5 // pred_region
      %s174 = ssub.s32 %s9, 1
      %s175 = smul.u32 16, %s19
      %p176 = scmp.lt.s32.totalorder %s175, 63
      %s177 = scalar_select %p176, %s175, 63
      %s178 = smul.addr %s177, 4
      %s179 = scalar_lea.vmem %s0, %s178
      %p180 = pneg %p47
      %p181 = pneg %p44
      %p182 = scmp.lt.s32.totalorder %s18, 0
      %s183 = scalar_select %p182, %s18, 0
      %s184 = smul.addr %s183, 4
      %s185 = scalar_lea.vmem %s1, %s184
      %p186 = pneg %p73
      %p187 = pneg %p70
      %p188 = scmp.lt.s32.totalorder %s18, 0
      %s189 = scalar_select %p188, %s18, 0
      %s190 = scalar_lea.vmem %s2, %s189
      %p191 = pneg %p99
      %p192 = pneg %p96
      %p193 = pneg %p127
      %p194 = pneg %p124
      %s195 = smul.u32 16, %s19
      %p196 = scmp.lt.s32.totalorder %s195, 63
      %s197 = scalar_select %p196, %s195, 63
      %p198 = scmp.lt.s32.totalorder %s18, 0
      %s199 = scalar_select %p198, %s18, 0
      %s200 = sadd.s32 %s199, %s197
      %s201 = smul.addr %s200, 8
      %s202 = scalar_lea.vmem %s3, %s201
      %s203 = smul.u32 16, %s19
      %p204 = scmp.lt.s32.totalorder %s203, 63
      %s205 = scalar_select %p204, %s203, 63
      %s206 = smul.addr %s205, 4
      %s207 = scalar_lea.vmem %s0, %s206
      %s208 = smul.u32 16, %s19
      %p209 = scmp.lt.s32.totalorder %s18, 0
      %s210 = scalar_select %p209, %s18, 0
      %s211 = smul.addr %s210, 4
      %s212 = scalar_lea.vmem %s1, %s211
      %p213 = scmp.lt.s32.totalorder %s18, 0
      %s214 = scalar_select %p213, %s18, 0
      %s215 = scalar_lea.vmem %s2, %s214
      %s216 = smul.u32 16, %s19
      %p217 = scmp.lt.s32.totalorder %s216, 63
      %s218 = scalar_select %p217, %s216, 63
      %p219 = scmp.lt.s32.totalorder %s18, 0
      %s220 = scalar_select %p219, %s18, 0
      %s221 = sadd.s32 %s220, %s218
      %s222 = smul.addr %s221, 8
      %s223 = scalar_lea.vmem %s3, %s222
      %s224 = smul.u32 16, %s19
      %v226 = vld [vmem:[%s207] sm:$0xf]
      %v227 = vld [vmem:[%s207 + $0x4] sm:$0xf]
      %v228 = vld [vmem:[%s207 + $0x8] sm:$0xf]
      %v229 = vld [vmem:[%s207 + $0xc] sm:$0xf]
      %v230 = vld [vmem:[%s207 + $0x10] sm:$0xf]
      %v231 = vld [vmem:[%s207 + $0x14] sm:$0xf]
      %v232 = vld [vmem:[%s207 + $0x18] sm:$0xf]
      %v233 = vld [vmem:[%s207 + $0x1c] sm:$0xf]
      %v234 = vld [vmem:[%s207 + $0x20] sm:$0xf]
      %v235 = vld [vmem:[%s207 + $0x24] sm:$0xf]
      %v236 = vld [vmem:[%s207 + $0x28] sm:$0xf]
      %v237 = vld [vmem:[%s207 + $0x2c] sm:$0xf]
      %v238 = vld [vmem:[%s207 + $0x30] sm:$0xf]
      %v239 = vld [vmem:[%s207 + $0x34] sm:$0xf]
      %v240 = vld [vmem:[%s207 + $0x38] sm:$0xf]
      %v241 = vld [vmem:[%s207 + $0x3c] sm:$0xf]
      %v242 = vld [vmem:[%s212] sm:$0xf]
      %v243 = vld [vmem:[%s212 + $0x4] sm:$0xf]
      %v244 = vld [vmem:[%s212 + $0x8] sm:$0xf]
      %v245 = vld [vmem:[%s212 + $0xc] sm:$0xf]
      %v246 = vld [vmem:[%s212 + $0x10] sm:$0xf]
      %v247 = vld [vmem:[%s212 + $0x14] sm:$0xf]
      %v248 = vld [vmem:[%s212 + $0x18] sm:$0xf]
      %v249 = vld [vmem:[%s212 + $0x1c] sm:$0xf]
      %v250 = vld [vmem:[%s212 + $0x20] sm:$0xf]
      %v251 = vld [vmem:[%s215] sm:$0x1]
      %v253 = vperm.slane %v251, 0
      %v271 = vunpack.c.l.b16 %v226
      %v272 = vunpack.c.l.b16 %v227
      %v273 = vunpack.c.l.b16 %v228
      %v274 = vunpack.c.l.b16 %v229
      %v275 = vunpack.c.l.b16 %v230
      %v276 = vunpack.c.l.b16 %v231
      %v277 = vunpack.c.l.b16 %v232
      %v278 = vunpack.c.l.b16 %v233
      %v279 = vunpack.c.l.b16 %v234
      %v280 = vunpack.c.l.b16 %v235
      %v281 = vunpack.c.l.b16 %v236
      %v282 = vunpack.c.l.b16 %v237
      %v283 = vunpack.c.l.b16 %v238
      %v284 = vunpack.c.l.b16 %v239
      %v285 = vunpack.c.l.b16 %v240
      %v286 = vunpack.c.l.b16 %v241
      %v287 = vpack.c.b16 %v272, %v271
      %v288 = vpack.c.b16 %v274, %v273
      %v289 = vpack.c.b16 %v276, %v275
      %v290 = vpack.c.b16 %v278, %v277
      %v291 = vpack.c.b16 %v280, %v279
      %v292 = vpack.c.b16 %v282, %v281
      %v293 = vpack.c.b16 %v284, %v283
      %v294 = vpack.c.b16 %v286, %v285
      %v304 = vunpack.c.l.b16 %v242
      %v305 = vunpack.c.l.b16 %v243
      %v306 = vunpack.c.l.b16 %v244
      %v307 = vunpack.c.l.b16 %v245
      %v308 = vunpack.c.l.b16 %v246
      %v309 = vunpack.c.l.b16 %v247
      %v310 = vunpack.c.l.b16 %v248
      %v311 = vunpack.c.l.b16 %v249
      %v312 = vunpack.c.l.b16 %v250
      %v313 = vpack.c.b16 %v305, %v304
      %v314 = vpack.c.b16 %v307, %v306
      %v315 = vpack.c.b16 %v309, %v308
      %v316 = vpack.c.b16 %v311, %v310
      %v317 = vpack.c.b16 %v312, %v312
      %vm322 = vcmask 588800
      %v324 = vsel %vm322, %v287, 0
      %v327 = vsel %vm322, %v288, 0
      %v330 = vsel %vm322, %v289, 0
      %v333 = vsel %vm322, %v290, 0
      %v336 = vsel %vm322, %v291, 0
      %v339 = vsel %vm322, %v292, 0
      %v342 = vsel %vm322, %v293, 0
      %v345 = vsel %vm322, %v294, 0
      %vm347 = vcmask 1043456
      %v349 = vsel %vm347, %v317, 0
      %351 = vmatpush.bf16.msra.mxu0 0
      %352 = vmatpush.bf16.msra.mxu0 0
      %353 = vmatpush.bf16.msra.mxu0 0
      %354 = vmatpush.bf16.msra.mxu0 %v349
      %355 = vmatpush.bf16.msra.mxu0 %v316
      %356 = vmatpush.bf16.msra.mxu0 %v315
      %357 = vmatpush.bf16.msra.mxu0 %v314
      %358 = vmatpush.bf16.msra.mxu0 %v313
      %359 = vmatmul.bf16.gmra.mxu0 %v324
      %v360 = vpop.f32.mrf.mxu0
      %v361 = vadd.f32 %v253, %v360
      %v362 = vpop.f32.mrf.mxu0
      %v363 = vadd.f32 %v253, %v362
      %364 = vmatmul.bf16.gmra.mxu0 %v327
      %v365 = vpop.f32.mrf.mxu0
      %v366 = vadd.f32 %v253, %v365
      %v367 = vpop.f32.mrf.mxu0
      %v368 = vadd.f32 %v253, %v367
      %369 = vmatmul.bf16.gmra.mxu0 %v330
      %v370 = vpop.f32.mrf.mxu0
      %v371 = vadd.f32 %v253, %v370
      %v372 = vpop.f32.mrf.mxu0
      %v373 = vadd.f32 %v253, %v372
      %374 = vmatmul.bf16.gmra.mxu0 %v333
      %v375 = vpop.f32.mrf.mxu0
      %v376 = vadd.f32 %v253, %v375
      %v377 = vpop.f32.mrf.mxu0
      %v378 = vadd.f32 %v253, %v377
      %379 = vmatmul.bf16.gmra.mxu0 %v336
      %v380 = vpop.f32.mrf.mxu0
      %v381 = vadd.f32 %v253, %v380
      %v382 = vpop.f32.mrf.mxu0
      %v383 = vadd.f32 %v253, %v382
      %384 = vmatmul.bf16.gmra.mxu0 %v339
      %v385 = vpop.f32.mrf.mxu0
      %v386 = vadd.f32 %v253, %v385
      %v387 = vpop.f32.mrf.mxu0
      %v388 = vadd.f32 %v253, %v387
      %389 = vmatmul.bf16.gmra.mxu0 %v342
      %v390 = vpop.f32.mrf.mxu0
      %v391 = vadd.f32 %v253, %v390
      %v392 = vpop.f32.mrf.mxu0
      %v393 = vadd.f32 %v253, %v392
      %394 = vmatmul.bf16.gmra.mxu0 %v345
      %v395 = vpop.f32.mrf.mxu0
      %v396 = vadd.f32 %v253, %v395
      %v397 = vpop.f32.mrf.mxu0
      %v398 = vadd.f32 %v253, %v397
      %399 = vdwg.mxu0
      %v400 = vmax.f32 %v361, 0.0
      %v401 = vmax.f32 %v363, 0.0
      %v402 = vmax.f32 %v366, 0.0
      %v403 = vmax.f32 %v368, 0.0
      %v404 = vmax.f32 %v371, 0.0
      %v405 = vmax.f32 %v373, 0.0
      %v406 = vmax.f32 %v376, 0.0
      %v407 = vmax.f32 %v378, 0.0
      %v408 = vmax.f32 %v381, 0.0
      %v409 = vmax.f32 %v383, 0.0
      %v410 = vmax.f32 %v386, 0.0
      %v411 = vmax.f32 %v388, 0.0
      %v412 = vmax.f32 %v391, 0.0
      %v413 = vmax.f32 %v393, 0.0
      %v414 = vmax.f32 %v396, 0.0
      %v415 = vmax.f32 %v398, 0.0
      %416 = vst [vmem:[%s223] sm:$0xff] %v400
      %417 = vst [vmem:[%s223 + $0x8] sm:$0xff] %v401
      %418 = vst [vmem:[%s223 + $0x10] sm:$0xff] %v402
      %419 = vst [vmem:[%s223 + $0x18] sm:$0xff] %v403
      %420 = vst [vmem:[%s223 + $0x20] sm:$0xff] %v404
      %421 = vst [vmem:[%s223 + $0x28] sm:$0xff] %v405
      %422 = vst [vmem:[%s223 + $0x30] sm:$0xff] %v406
      %423 = vst [vmem:[%s223 + $0x38] sm:$0xff] %v407
      %424 = vst [vmem:[%s223 + $0x40] sm:$0xff] %v408
      %425 = vst [vmem:[%s223 + $0x48] sm:$0xff] %v409
      %426 = vst [vmem:[%s223 + $0x50] sm:$0xff] %v410
      %427 = vst [vmem:[%s223 + $0x58] sm:$0xff] %v411
      %428 = vst [vmem:[%s223 + $0x60] sm:$0xff] %v412
      %429 = vst [vmem:[%s223 + $0x68] sm:$0xff] %v413
      %430 = vst [vmem:[%s223 + $0x70] sm:$0xff] %v414
      %431 = vst [vmem:[%s223 + $0x78] sm:$0xff] %v415
      %s432 = smul.u32 16, %s19
      %p433 = scmp.lt.s32.totalorder %s432, 63
      %s434 = scalar_select %p433, %s432, 63
      %p435 = scmp.lt.s32.totalorder %s18, 0
      %s436 = scalar_select %p435, %s18, 0
      %s437 = sadd.s32 %s436, %s434
      %s438 = smul.addr %s437, 8
      %s439 = scalar_lea.vmem %s3, %s438
      // Predicated region
      $region33: #{fwd.36} parent=31 // pred_check
        %p440 = pneg %p124
      $region34: #{fwd.36} parent=31 // pred_check_branch
        %442 = sbr.rel (%p440) target = $region36
      $region35: #{fwd.36} parent=31 // pred_region
        %s443 = smul.u32 16, %s19
      $region36: #{fwd.36} parent=31 // pred_fallthru
        _
    $region32: #{fwd.36} parent=5 // pred_fallthru
      _
    %p444 = scmp.le.s32.totalorder 2, %s9
    // Predicated region
    $region37: #{fwd.36} parent=5 // pred_check
      %p445 = pneg %p444
    $region38: #{fwd.36} parent=5 // pred_check_branch
      %447 = sbr.rel (%p445) target = $region40
    $region39: #{fwd.36} parent=5 // pred_region
      %s448 = ssub.s32 %s9, 2
      // Predicated region
      $region41: #{fwd.36} parent=39 // pred_check
        %p449 = pneg %p130
      $region42: #{fwd.36} parent=39 // pred_check_branch
        %451 = sbr.rel (%p449) target = $region44
      $region43: #{fwd.36} parent=39 // pred_region
        %s452 = smul.u32 16, %s21
        %p453 = scmp.lt.s32.totalorder %s452, 63
        %s454 = scalar_select %p453, %s452, 63
        %p455 = scmp.lt.s32.totalorder %s20, 0
        %s456 = scalar_select %p455, %s20, 0
        %s457 = sadd.s32 %s456, %s454
        %s458 = smul.addr %s457, 8
        %s459 = scalar_lea.vmem %s3, %s458
      $region44: #{fwd.36} parent=39 // pred_fallthru
        _
    $region40: #{fwd.36} parent=5 // pred_fallthru
      _
  $region6: #{fwd.36} parent=0 // loop_footer
    %s13 = sadd.s32 1, %s9
  $region7: #{fwd.36} parent=0 // loop_footer_branch
    %8 = sbr.rel target = $region3
  $region8: #{fwd.36} parent=0 // loop_exit
    _

// kernel: fwd.37
$region0: #{fwd.37}
  #allocation0 [shape = 'u32[]', space=smem, size = 0x4, offset = 0x4, fixed_abs, tag = 'smem constant byte address 0x4 - core index']
  #allocation1 [shape = 'u32[72,128]{1,0:T(1,128)}', space=vmem, size = 0x9000, scoped, tag = 'internal scratch']
  %s0 = inlined_call_operand.vmem [shape: bf16[512,288], index: 0, kind: input, shape index: {}]
  %s1 = inlined_call_operand.vmem [shape: bf16[288,128], index: 1, kind: input, shape index: {}]
  %s2 = inlined_call_operand.vmem [shape: f32[1,128], index: 2, kind: input, shape index: {}]
  %s3 = inlined_call_operand.vmem [shape: f32[512,128], index: 3, kind: output, shape index: {}]
  %s4 = sld [smem:[#allocation0]]
  $region45: #{fwd.37} parent=0
    _
  %s6 = ssub.s32 1, %s4
  %s7 = scalar_select 0, %s6, %s4
  loop: start=0, step=1, limit=6
  $region2: #{fwd.37} parent=0 // loop_pre_header
    _
  $region3: #{fwd.37} parent=0 // loop_header
    %s9 = sphi 0, %s13
    %p10 = scmp.ge.s32.totalorder %s9, 6
    %s16 = sphi 0, %s28
    %s17 = sphi 0, %s24
    %s18 = sphi 0, %s16
    %s19 = sphi 0, %s17
    %s20 = sphi 0, %s18
    %s21 = sphi 0, %s19
    %s31 = sphi 0, %s33
    %s34 = sphi 0, %s31
    %s35 = sphi 0, %s34
    %s51 = sphi 0, %s35
    %s57 = sphi 0, %s59
    %s60 = sphi 0, %s57
    %s61 = sphi 0, %s60
    %s77 = sphi 0, %s61
    %s83 = sphi 0, %s85
    %s86 = sphi 0, %s83
    %s87 = sphi 0, %s86
    %s103 = sphi 0, %s87
    %s111 = sphi 0, %s113
    %s114 = sphi 0, %s111
    %s115 = sphi 0, %s114
    %s131 = sphi 0, %s115
  $region4: #{fwd.37} parent=0 // loop_header_branch
    %12 = sbr.rel (%p10) target = $region8
  $region5: #{fwd.37} parent=0 // loop_body
    %s14 = ssub.s32 %s9, 1
    %s15 = ssub.s32 %s9, 2
    %s22 = sadd.s32 1, %s17
    %p23 = scmp.ge.s32.totalorder %s22, 4
    %s24 = scalar_select %p23, 0, %s22
    %s25 = sadd.s32 1, %s16
    %s26 = scalar_select %p23, %s25, %s16
    %p27 = scmp.ge.s32.totalorder %s26, 1
    %s28 = scalar_select %p27, 0, %s26
    %s29 = ssub.s32 %s17, %s24
    %p30 = scmp.eq.s32.totalorder %s29, 0
    %s32 = sadd.s32 %s31, 1
    %s33 = scalar_select %p30, %s31, %s32
    %p36 = pneg %p30
    %p37 = scmp.eq.s32.totalorder %s9, 3
    %p38 = por %p36, %p37
    %p39 = scmp.ne.s32.totalorder %s31, %s34
    %p40 = scmp.eq.s32.totalorder %s9, 0
    %p41 = por %p39, %p40
    %p42 = scmp.ne.s32.totalorder %s31, %s34
    %p43 = scmp.eq.s32.totalorder %s14, 3
    %p44 = por %p42, %p43
    %p45 = scmp.ne.s32.totalorder %s34, %s35
    %p46 = scmp.eq.s32.totalorder %s14, 0
    %p47 = por %p45, %p46
    %p48 = scmp.ne.s32.totalorder %s34, %s35
    %p49 = scmp.eq.s32.totalorder %s15, 3
    %p50 = por %p48, %p49
    %p52 = scmp.ne.s32.totalorder %s35, %s51
    %p53 = scmp.eq.s32.totalorder %s15, 0
    %p54 = por %p52, %p53
    %s55 = ssub.s32 %s16, %s28
    %p56 = scmp.eq.s32.totalorder %s55, 0
    %s58 = sadd.s32 %s57, 1
    %s59 = scalar_select %p56, %s57, %s58
    %p62 = pneg %p56
    %p63 = scmp.eq.s32.totalorder %s9, 3
    %p64 = por %p62, %p63
    %p65 = scmp.ne.s32.totalorder %s57, %s60
    %p66 = scmp.eq.s32.totalorder %s9, 0
    %p67 = por %p65, %p66
    %p68 = scmp.ne.s32.totalorder %s57, %s60
    %p69 = scmp.eq.s32.totalorder %s14, 3
    %p70 = por %p68, %p69
    %p71 = scmp.ne.s32.totalorder %s60, %s61
    %p72 = scmp.eq.s32.totalorder %s14, 0
    %p73 = por %p71, %p72
    %p74 = scmp.ne.s32.totalorder %s60, %s61
    %p75 = scmp.eq.s32.totalorder %s15, 3
    %p76 = por %p74, %p75
    %p78 = scmp.ne.s32.totalorder %s61, %s77
    %p79 = scmp.eq.s32.totalorder %s15, 0
    %p80 = por %p78, %p79
    %s81 = ssub.s32 %s16, %s28
    %p82 = scmp.eq.s32.totalorder %s81, 0
    %s84 = sadd.s32 %s83, 1
    %s85 = scalar_select %p82, %s83, %s84
    %p88 = pneg %p82
    %p89 = scmp.eq.s32.totalorder %s9, 3
    %p90 = por %p88, %p89
    %p91 = scmp.ne.s32.totalorder %s83, %s86
    %p92 = scmp.eq.s32.totalorder %s9, 0
    %p93 = por %p91, %p92
    %p94 = scmp.ne.s32.totalorder %s83, %s86
    %p95 = scmp.eq.s32.totalorder %s14, 3
    %p96 = por %p94, %p95
    %p97 = scmp.ne.s32.totalorder %s86, %s87
    %p98 = scmp.eq.s32.totalorder %s14, 0
    %p99 = por %p97, %p98
    %p100 = scmp.ne.s32.totalorder %s86, %s87
    %p101 = scmp.eq.s32.totalorder %s15, 3
    %p102 = por %p100, %p101
    %p104 = scmp.ne.s32.totalorder %s87, %s103
    %p105 = scmp.eq.s32.totalorder %s15, 0
    %p106 = por %p104, %p105
    %s107 = ssub.s32 %s17, %s24
    %s108 = ssub.s32 %s16, %s28
    %s109 = sor.u32 %s107, %s108
    %p110 = scmp.eq.s32.totalorder %s109, 0
    %s112 = sadd.s32 %s111, 1
    %s113 = scalar_select %p110, %s111, %s112
    %p116 = pneg %p110
    %p117 = scmp.eq.s32.totalorder %s9, 3
    %p118 = por %p116, %p117
    %p119 = scmp.ne.s32.totalorder %s111, %s114
    %p120 = scmp.eq.s32.totalorder %s9, 0
    %p121 = por %p119, %p120
    %p122 = scmp.ne.s32.totalorder %s111, %s114
    %p123 = scmp.eq.s32.totalorder %s14, 3
    %p124 = por %p122, %p123
    %p125 = scmp.ne.s32.totalorder %s114, %s115
    %p126 = scmp.eq.s32.totalorder %s14, 0
    %p127 = por %p125, %p126
    %p128 = scmp.ne.s32.totalorder %s114, %s115
    %p129 = scmp.eq.s32.totalorder %s15, 3
    %p130 = por %p128, %p129
    %p132 = scmp.ne.s32.totalorder %s115, %s131
    %p133 = scmp.eq.s32.totalorder %s15, 0
    %p134 = por %p132, %p133
    %p135 = scmp.le.s32.totalorder 1, %s9
    %p136 = scmp.lt.s32.totalorder %s9, 5
    %p137 = pnand %p135, %p136
    %p138 = pneg %p137
    // Predicated region
    $region9: #{fwd.37} parent=5 // pred_check
      _
    $region10: #{fwd.37} parent=5 // pred_check_branch
      %140 = sbr.rel (%p137) target = $region12
    $region11: #{fwd.37} parent=5 // pred_region
      %s141 = ssub.s32 %s9, 1
      // Predicated region
      $region13: #{fwd.37} parent=11 // pred_check
        %p142 = pneg %p73
      $region14: #{fwd.37} parent=11 // pred_check_branch
        %144 = sbr.rel (%p142) target = $region16
      $region15: #{fwd.37} parent=11 // pred_region
        %p145 = scmp.lt.s32.totalorder %s18, 0
        %s146 = scalar_select %p145, %s18, 0
        %s147 = smul.addr %s146, 4
        %s148 = scalar_lea.vmem %s1, %s147
      $region16: #{fwd.37} parent=11 // pred_fallthru
        _
      // Predicated region
      $region17: #{fwd.37} parent=11 // pred_check
        %p149 = pneg %p99
      $region18: #{fwd.37} parent=11 // pred_check_branch
        %151 = sbr.rel (%p149) target = $region20
      $region19: #{fwd.37} parent=11 // pred_region
        %p152 = scmp.lt.s32.totalorder %s18, 0
        %s153 = scalar_select %p152, %s18, 0
        %s154 = scalar_lea.vmem %s2, %s153
      $region20: #{fwd.37} parent=11 // pred_fallthru
        _
    $region12: #{fwd.37} parent=5 // pred_fallthru
      _
    %p155 = scmp.lt.s32.totalorder %s9, 4
    // Predicated region
    $region21: #{fwd.37} parent=5 // pred_check
      %p156 = pneg %p155
    $region22: #{fwd.37} parent=5 // pred_check_branch
      %158 = sbr.rel (%p156) target = $region24
    $region23: #{fwd.37} parent=5 // pred_region
      // Predicated region
      $region25: #{fwd.37} parent=23 // pred_check
        %p159 = pneg %p41
      $region26: #{fwd.37} parent=23 // pred_check_branch
        %161 = sbr.rel (%p159) target = $region28
      $region27: #{fwd.37} parent=23 // pred_region
        %s162 = smul.u32 16, %s17
        %p163 = scmp.lt.s32.totalorder %s162, 63
        %s164 = scalar_select %p163, %s162, 63
        %s165 = smul.addr %s164, 3
        %s166 = smul.addr %s165, 4
        %s167 = scalar_lea.vmem %s0, %s166
        %s168 = smul.u32 16, %s17
      $region28: #{fwd.37} parent=23 // pred_fallthru
        _
    $region24: #{fwd.37} parent=5 // pred_fallthru
      _
    %p169 = scmp.le.s32.totalorder 1, %s9
    %p170 = scmp.lt.s32.totalorder %s9, 5
    %p171 = pnand %p169, %p170
    %p172 = pneg %p171
    // Predicated region
    $region29: #{fwd.37} parent=5 // pred_check
      _
    $region30: #{fwd.37} parent=5 // pred_check_branch
      %174 = sbr.rel (%p171) target = $region32
    $region31: #{fwd.37} parent=5 // pred_region
      %s175 = ssub.s32 %s9, 1
      %s176 = smul.u32 16, %s19
      %p177 = scmp.lt.s32.totalorder %s176, 63
      %s178 = scalar_select %p177, %s176, 63
      %s179 = smul.addr %s178, 3
      %s180 = smul.addr %s179, 4
      %s181 = scalar_lea.vmem %s0, %s180
      %p182 = pneg %p47
      %p183 = pneg %p44
      %p184 = scmp.lt.s32.totalorder %s18, 0
      %s185 = scalar_select %p184, %s18, 0
      %s186 = smul.addr %s185, 4
      %s187 = scalar_lea.vmem %s1, %s186
      %p188 = pneg %p73
      %p189 = pneg %p70
      %p190 = scmp.lt.s32.totalorder %s18, 0
      %s191 = scalar_select %p190, %s18, 0
      %s192 = scalar_lea.vmem %s2, %s191
      %p193 = pneg %p99
      %p194 = pneg %p96
      %p195 = pneg %p127
      %p196 = pneg %p124
      %s197 = smul.u32 16, %s19
      %p198 = scmp.lt.s32.totalorder %s197, 63
      %s199 = scalar_select %p198, %s197, 63
      %p200 = scmp.lt.s32.totalorder %s18, 0
      %s201 = scalar_select %p200, %s18, 0
      %s202 = sadd.s32 %s201, %s199
      %s203 = smul.addr %s202, 8
      %s204 = scalar_lea.vmem %s3, %s203
      %s205 = smul.u32 16, %s19
      %p206 = scmp.lt.s32.totalorder %s205, 63
      %s207 = scalar_select %p206, %s205, 63
      %s208 = smul.addr %s207, 3
      %s209 = smul.addr %s208, 4
      %s210 = scalar_lea.vmem %s0, %s209
      %s211 = smul.u32 16, %s19
      %p212 = scmp.lt.s32.totalorder %s18, 0
      %s213 = scalar_select %p212, %s18, 0
      %s214 = smul.addr %s213, 4
      %s215 = scalar_lea.vmem %s1, %s214
      %p216 = scmp.lt.s32.totalorder %s18, 0
      %s217 = scalar_select %p216, %s18, 0
      %s218 = scalar_lea.vmem %s2, %s217
      %s219 = smul.u32 16, %s19
      %p220 = scmp.lt.s32.totalorder %s219, 63
      %s221 = scalar_select %p220, %s219, 63
      %p222 = scmp.lt.s32.totalorder %s18, 0
      %s223 = scalar_select %p222, %s18, 0
      %s224 = sadd.s32 %s223, %s221
      %s225 = smul.addr %s224, 8
      %s226 = scalar_lea.vmem %s3, %s225
      %s227 = smul.u32 16, %s19
      %v229 = vld [vmem:[%s210] sm:$0xff]
      %v230 = vld [vmem:[%s210 + $0x8] sm:$0xf]
      %v231 = vld [vmem:[%s210 + $0xc] sm:$0xff]
      %v232 = vld [vmem:[%s210 + $0x14] sm:$0xf]
      %v233 = vld [vmem:[%s210 + $0x18] sm:$0xff]
      %v234 = vld [vmem:[%s210 + $0x20] sm:$0xf]
      %v235 = vld [vmem:[%s210 + $0x24] sm:$0xff]
      %v236 = vld [vmem:[%s210 + $0x2c] sm:$0xf]
      %v237 = vld [vmem:[%s210 + $0x30] sm:$0xff]
      %v238 = vld [vmem:[%s210 + $0x38] sm:$0xf]
      %v239 = vld [vmem:[%s210 + $0x3c] sm:$0xff]
      %v240 = vld [vmem:[%s210 + $0x44] sm:$0xf]
      %v241 = vld [vmem:[%s210 + $0x48] sm:$0xff]
      %v242 = vld [vmem:[%s210 + $0x50] sm:$0xf]
      %v243 = vld [vmem:[%s210 + $0x54] sm:$0xff]
      %v244 = vld [vmem:[%s210 + $0x5c] sm:$0xf]
      %v245 = vld [vmem:[%s210 + $0x60] sm:$0xff]
      %v246 = vld [vmem:[%s210 + $0x68] sm:$0xf]
      %v247 = vld [vmem:[%s210 + $0x6c] sm:$0xff]
      %v248 = vld [vmem:[%s210 + $0x74] sm:$0xf]
      %v249 = vld [vmem:[%s210 + $0x78] sm:$0xff]
      %v250 = vld [vmem:[%s210 + $0x80] sm:$0xf]
      %v251 = vld [vmem:[%s210 + $0x84] sm:$0xff]
      %v252 = vld [vmem:[%s210 + $0x8c] sm:$0xf]
      %v253 = vld [vmem:[%s210 + $0x90] sm:$0xff]
      %v254 = vld [vmem:[%s210 + $0x98] sm:$0xf]
      %v255 = vld [vmem:[%s210 + $0x9c] sm:$0xff]
      %v256 = vld [vmem:[%s210 + $0xa4] sm:$0xf]
      %v257 = vld [vmem:[%s210 + $0xa8] sm:$0xff]
      %v258 = vld [vmem:[%s210 + $0xb0] sm:$0xf]
      %v259 = vld [vmem:[%s210 + $0xb4] sm:$0xff]
      %v260 = vld [vmem:[%s210 + $0xbc] sm:$0xf]
      %v261 = vld [vmem:[%s215] sm:$0xf]
      %v262 = vld [vmem:[%s215 + $0x4] sm:$0xf]
      %v263 = vld [vmem:[%s215 + $0x8] sm:$0xf]
      %v264 = vld [vmem:[%s215 + $0xc] sm:$0xf]
      %v265 = vld [vmem:[%s215 + $0x10] sm:$0xf]
      %v266 = vld [vmem:[%s215 + $0x14] sm:$0xf]
      %v267 = vld [vmem:[%s215 + $0x18] sm:$0xf]
      %v268 = vld [vmem:[%s215 + $0x1c] sm:$0xf]
      %v269 = vld [vmem:[%s215 + $0x20] sm:$0xf]
      %v270 = vld [vmem:[%s215 + $0x24] sm:$0xf]
      %v271 = vld [vmem:[%s215 + $0x28] sm:$0xf]
      %v272 = vld [vmem:[%s215 + $0x2c] sm:$0xf]
      %v273 = vld [vmem:[%s215 + $0x30] sm:$0xf]
      %v274 = vld [vmem:[%s215 + $0x34] sm:$0xf]
      %v275 = vld [vmem:[%s215 + $0x38] sm:$0xf]
      %v276 = vld [vmem:[%s215 + $0x3c] sm:$0xf]
      %v277 = vld [vmem:[%s215 + $0x40] sm:$0xf]
      %v278 = vld [vmem:[%s215 + $0x44] sm:$0xf]
      %v279 = vld [vmem:[%s215 + $0x48] sm:$0xf]
      %v280 = vld [vmem:[%s215 + $0x4c] sm:$0xf]
      %v281 = vld [vmem:[%s215 + $0x50] sm:$0xf]
      %v282 = vld [vmem:[%s215 + $0x54] sm:$0xf]
      %v283 = vld [vmem:[%s215 + $0x58] sm:$0xf]
      %v284 = vld [vmem:[%s215 + $0x5c] sm:$0xf]
      %v285 = vld [vmem:[%s215 + $0x60] sm:$0xf]
      %v286 = vld [vmem:[%s215 + $0x64] sm:$0xf]
      %v287 = vld [vmem:[%s215 + $0x68] sm:$0xf]
      %v288 = vld [vmem:[%s215 + $0x6c] sm:$0xf]
      %v289 = vld [vmem:[%s215 + $0x70] sm:$0xf]
      %v290 = vld [vmem:[%s215 + $0x74] sm:$0xf]
      %v291 = vld [vmem:[%s215 + $0x78] sm:$0xf]
      %v292 = vld [vmem:[%s215 + $0x7c] sm:$0xf]
      %v293 = vld [vmem:[%s215 + $0x80] sm:$0xf]
      %v294 = vld [vmem:[%s215 + $0x84] sm:$0xf]
      %v295 = vld [vmem:[%s215 + $0x88] sm:$0xf]
      %v296 = vld [vmem:[%s215 + $0x8c] sm:$0xf]
      %v297 = vld [vmem:[%s218] sm:$0x1]
      %v299 = vperm.slane %v297, 0
      %v333 = vunpack.c.l.b16 %v229
      %v334 = vunpack.c.h.b16 %v229
      %v335 = vunpack.c.l.b16 %v230
      %v336 = vunpack.c.l.b16 %v231
      %v337 = vunpack.c.h.b16 %v231
      %v338 = vunpack.c.l.b16 %v232
      %v339 = vunpack.c.l.b16 %v233
      %v340 = vunpack.c.h.b16 %v233
      %v341 = vunpack.c.l.b16 %v234
      %v342 = vunpack.c.l.b16 %v235
      %v343 = vunpack.c.h.b16 %v235
      %v344 = vunpack.c.l.b16 %v236
      %v345 = vunpack.c.l.b16 %v237
      %v346 = vunpack.c.h.b16 %v237
      %v347 = vunpack.c.l.b16 %v238
      %v348 = vunpack.c.l.b16 %v239
      %v349 = vunpack.c.h.b16 %v239
      %v350 = vunpack.c.l.b16 %v240
      %v351 = vunpack.c.l.b16 %v241
      %v352 = vunpack.c.h.b16 %v241
      %v353 = vunpack.c.l.b16 %v242
      %v354 = vunpack.c.l.b16 %v243
      %v355 = vunpack.c.h.b16 %v243
      %v356 = vunpack.c.l.b16 %v244
      %v357 = vunpack.c.l.b16 %v245
      %v358 = vunpack.c.h.b16 %v245
      %v359 = vunpack.c.l.b16 %v246
      %v360 = vunpack.c.l.b16 %v247
      %v361 = vunpack.c.h.b16 %v247
      %v362 = vunpack.c.l.b16 %v248
      %v363 = vunpack.c.l.b16 %v249
      %v364 = vunpack.c.h.b16 %v249
      %v365 = vunpack.c.l.b16 %v250
      %v366 = vunpack.c.l.b16 %v251
      %v367 = vunpack.c.h.b16 %v251
      %v368 = vunpack.c.l.b16 %v252
      %v369 = vunpack.c.l.b16 %v253
      %v370 = vunpack.c.h.b16 %v253
      %v371 = vunpack.c.l.b16 %v254
      %v372 = vunpack.c.l.b16 %v255
      %v373 = vunpack.c.h.b16 %v255
      %v374 = vunpack.c.l.b16 %v256
      %v375 = vunpack.c.l.b16 %v257
      %v376 = vunpack.c.h.b16 %v257
      %v377 = vunpack.c.l.b16 %v258
      %v378 = vunpack.c.l.b16 %v259
      %v379 = vunpack.c.h.b16 %v259
      %v380 = vunpack.c.l.b16 %v260
      %v381 = vpack.c.b16 %v336, %v333
      %v382 = vpack.c.b16 %v337, %v334
      %v383 = vpack.c.b16 %v338, %v335
      %v384 = vpack.c.b16 %v342, %v339
      %v385 = vpack.c.b16 %v343, %v340
      %v386 = vpack.c.b16 %v344, %v341
      %v387 = vpack.c.b16 %v348, %v345
      %v388 = vpack.c.b16 %v349, %v346
      %v389 = vpack.c.b16 %v350, %v347
      %v390 = vpack.c.b16 %v354, %v351
      %v391 = vpack.c.b16 %v355, %v352
      %v392 = vpack.c.b16 %v356, %v353
      %v393 = vpack.c.b16 %v360, %v357
      %v394 = vpack.c.b16 %v361, %v358
      %v395 = vpack.c.b16 %v362, %v359
      %v396 = vpack.c.b16 %v366, %v363
      %v397 = vpack.c.b16 %v367, %v364
      %v398 = vpack.c.b16 %v368, %v365
      %v399 = vpack.c.b16 %v372, %v369
      %v400 = vpack.c.b16 %v373, %v370
      %v401 = vpack.c.b16 %v374, %v371
      %v402 = vpack.c.b16 %v378, %v375
      %v403 = vpack.c.b16 %v379, %v376
      %v404 = vpack.c.b16 %v380, %v377
      %v457 = vunpack.c.l.b16 %v261
      %v458 = vunpack.c.l.b16 %v262
      %v459 = vunpack.c.l.b16 %v263
      %v460 = vunpack.c.l.b16 %v264
      %v461 = vunpack.c.l.b16 %v265
      %v462 = vunpack.c.l.b16 %v266
      %v463 = vunpack.c.l.b16 %v267
      %v464 = vunpack.c.l.b16 %v268
      %v465 = vunpack.c.l.b16 %v269
      %v466 = vunpack.c.l.b16 %v270
      %v467 = vunpack.c.l.b16 %v271
      %v468 = vunpack.c.l.b16 %v272
      %v469 = vunpack.c.l.b16 %v273
      %v470 = vunpack.c.l.b16 %v274
      %v471 = vunpack.c.l.b16 %v275
      %v472 = vunpack.c.l.b16 %v276
      %v473 = vunpack.c.l.b16 %v277
      %v474 = vunpack.c.l.b16 %v278
      %v475 = vunpack.c.l.b16 %v279
      %v476 = vunpack.c.l.b16 %v280
      %v477 = vunpack.c.l.b16 %v281
      %v478 = vunpack.c.l.b16 %v282
      %v479 = vunpack.c.l.b16 %v283
      %v480 = vunpack.c.l.b16 %v284
      %v481 = vunpack.c.l.b16 %v285
      %v482 = vunpack.c.l.b16 %v286
      %v483 = vunpack.c.l.b16 %v287
      %v484 = vunpack.c.l.b16 %v288
      %v485 = vunpack.c.l.b16 %v289
      %v486 = vunpack.c.l.b16 %v290
      %v487 = vunpack.c.l.b16 %v291
      %v488 = vunpack.c.l.b16 %v292
      %v489 = vunpack.c.l.b16 %v293
      %v490 = vunpack.c.l.b16 %v294
      %v491 = vunpack.c.l.b16 %v295
      %v492 = vunpack.c.l.b16 %v296
      %v493 = vpack.c.b16 %v458, %v457
      %v494 = vpack.c.b16 %v460, %v459
      %v495 = vpack.c.b16 %v462, %v461
      %v496 = vpack.c.b16 %v464, %v463
      %v497 = vpack.c.b16 %v466, %v465
      %v498 = vpack.c.b16 %v468, %v467
      %v499 = vpack.c.b16 %v470, %v469
      %v500 = vpack.c.b16 %v472, %v471
      %v501 = vpack.c.b16 %v474, %v473
      %v502 = vpack.c.b16 %v476, %v475
      %v503 = vpack.c.b16 %v478, %v477
      %v504 = vpack.c.b16 %v480, %v479
      %v505 = vpack.c.b16 %v482, %v481
      %v506 = vpack.c.b16 %v484, %v483
      %v507 = vpack.c.b16 %v486, %v485
      %v508 = vpack.c.b16 %v488, %v487
      %v509 = vpack.c.b16 %v490, %v489
      %v510 = vpack.c.b16 %v492, %v491
      %vm529 = vcmask 261120
      %v531 = vsel %vm529, %v383, 0
      %v534 = vsel %vm529, %v386, 0
      %v537 = vsel %vm529, %v389, 0
      %v540 = vsel %vm529, %v392, 0
      %v543 = vsel %vm529, %v395, 0
      %v546 = vsel %vm529, %v398, 0
      %v549 = vsel %vm529, %v401, 0
      %v552 = vsel %vm529, %v404, 0
      %554 = vmatpush.bf16.msra.mxu0 %v500
      %555 = vmatpush.bf16.msra.mxu0 %v499
      %556 = vmatpush.bf16.msra.mxu0 %v498
      %557 = vmatpush.bf16.msra.mxu0 %v497
      %558 = vmatpush.bf16.msra.mxu0 %v496
      %559 = vmatpush.bf16.msra.mxu0 %v495
      %560 = vmatpush.bf16.msra.mxu0 %v494
      %561 = vmatpush.bf16.msra.mxu0 %v493
      %562 = vmatmul.bf16.gmra.mxu0 %v381
      %v563 = vpop.f32.mrf.mxu0
      %v564 = vadd.f32 %v299, %v563
      %v565 = vpop.f32.mrf.mxu0
      %v566 = vadd.f32 %v299, %v565
      %567 = vmatmul.bf16.gmra.mxu0 %v384
      %v568 = vpop.f32.mrf.mxu0
      %v569 = vadd.f32 %v299, %v568
      %v570 = vpop.f32.mrf.mxu0
      %v571 = vadd.f32 %v299, %v570
      %572 = vmatmul.bf16.gmra.mxu0 %v387
      %v573 = vpop.f32.mrf.mxu0
      %v574 = vadd.f32 %v299, %v573
      %v575 = vpop.f32.mrf.mxu0
      %v576 = vadd.f32 %v299, %v575
      %577 = vmatmul.bf16.gmra.mxu0 %v390
      %v578 = vpop.f32.mrf.mxu0
      %v579 = vadd.f32 %v299, %v578
      %v580 = vpop.f32.mrf.mxu0
      %v581 = vadd.f32 %v299, %v580
      %582 = vmatmul.bf16.gmra.mxu0 %v393
      %v583 = vpop.f32.mrf.mxu0
      %v584 = vadd.f32 %v299, %v583
      %v585 = vpop.f32.mrf.mxu0
      %v586 = vadd.f32 %v299, %v585
      %587 = vmatmul.bf16.gmra.mxu0 %v396
      %v588 = vpop.f32.mrf.mxu0
      %v589 = vadd.f32 %v299, %v588
      %v590 = vpop.f32.mrf.mxu0
      %v591 = vadd.f32 %v299, %v590
      %592 = vmatmul.bf16.gmra.mxu0 %v399
      %v593 = vpop.f32.mrf.mxu0
      %v594 = vadd.f32 %v299, %v593
      %v595 = vpop.f32.mrf.mxu0
      %v596 = vadd.f32 %v299, %v595
      %597 = vmatmul.bf16.gmra.mxu0 %v402
      %v598 = vpop.f32.mrf.mxu0
      %v599 = vadd.f32 %v299, %v598
      %v600 = vpop.f32.mrf.mxu0
      %v601 = vadd.f32 %v299, %v600
      %602 = vdwg.mxu0
      %603 = vmatpush.bf16.msra.mxu0 %v508
      %604 = vmatpush.bf16.msra.mxu0 %v507
      %605 = vmatpush.bf16.msra.mxu0 %v506
      %606 = vmatpush.bf16.msra.mxu0 %v505
      %607 = vmatpush.bf16.msra.mxu0 %v504
      %608 = vmatpush.bf16.msra.mxu0 %v503
      %609 = vmatpush.bf16.msra.mxu0 %v502
      %610 = vmatpush.bf16.msra.mxu0 %v501
      %611 = vmatmul.bf16.gmra.mxu0 %v382
      %v612 = vpop.f32.mrf.mxu0
      %v613 = vadd.f32 %v564, %v612
      %v614 = vpop.f32.mrf.mxu0
      %v615 = vadd.f32 %v566, %v614
      %616 = vmatmul.bf16.gmra.mxu0 %v385
      %v617 = vpop.f32.mrf.mxu0
      %v618 = vadd.f32 %v569, %v617
      %v619 = vpop.f32.mrf.mxu0
      %v620 = vadd.f32 %v571, %v619
      %621 = vmatmul.bf16.gmra.mxu0 %v388
      %v622 = vpop.f32.mrf.mxu0
      %v623 = vadd.f32 %v574, %v622
      %v624 = vpop.f32.mrf.mxu0
      %v625 = vadd.f32 %v576, %v624
      %626 = vmatmul.bf16.gmra.mxu0 %v391
      %v627 = vpop.f32.mrf.mxu0
      %v628 = vadd.f32 %v579, %v627
      %v629 = vpop.f32.mrf.mxu0
      %v630 = vadd.f32 %v581, %v629
      %631 = vmatmul.bf16.gmra.mxu0 %v394
      %v632 = vpop.f32.mrf.mxu0
      %v633 = vadd.f32 %v584, %v632
      %v634 = vpop.f32.mrf.mxu0
      %v635 = vadd.f32 %v586, %v634
      %636 = vmatmul.bf16.gmra.mxu0 %v397
      %v637 = vpop.f32.mrf.mxu0
      %v638 = vadd.f32 %v589, %v637
      %v639 = vpop.f32.mrf.mxu0
      %v640 = vadd.f32 %v591, %v639
      %641 = vmatmul.bf16.gmra.mxu0 %v400
      %v642 = vpop.f32.mrf.mxu0
      %v643 = vadd.f32 %v594, %v642
      %v644 = vpop.f32.mrf.mxu0
      %v645 = vadd.f32 %v596, %v644
      %646 = vmatmul.bf16.gmra.mxu0 %v403
      %v647 = vpop.f32.mrf.mxu0
      %v648 = vadd.f32 %v599, %v647
      %v649 = vpop.f32.mrf.mxu0
      %v650 = vadd.f32 %v601, %v649
      %651 = vdwg.mxu0
      %652 = vmatpush.bf16.msra.mxu0 0
      %653 = vmatpush.bf16.msra.mxu0 0
      %654 = vmatpush.bf16.msra.mxu0 0
      %655 = vmatpush.bf16.msra.mxu0 0
      %656 = vmatpush.bf16.msra.mxu0 0
      %657 = vmatpush.bf16.msra.mxu0 0
      %658 = vmatpush.bf16.msra.mxu0 %v510
      %659 = vmatpush.bf16.msra.mxu0 %v509
      %660 = vmatmul.bf16.gmra.mxu0 %v531
      %v661 = vpop.f32.mrf.mxu0
      %v662 = vadd.f32 %v613, %v661
      %v663 = vpop.f32.mrf.mxu0
      %v664 = vadd.f32 %v615, %v663
      %665 = vmatmul.bf16.gmra.mxu0 %v534
      %v666 = vpop.f32.mrf.mxu0
      %v667 = vadd.f32 %v618, %v666
      %v668 = vpop.f32.mrf.mxu0
      %v669 = vadd.f32 %v620, %v668
      %670 = vmatmul.bf16.gmra.mxu0 %v537
      %v671 = vpop.f32.mrf.mxu0
      %v672 = vadd.f32 %v623, %v671
      %v673 = vpop.f32.mrf.mxu0
      %v674 = vadd.f32 %v625, %v673
      %675 = vmatmul.bf16.gmra.mxu0 %v540
      %v676 = vpop.f32.mrf.mxu0
      %v677 = vadd.f32 %v628, %v676
      %v678 = vpop.f32.mrf.mxu0
      %v679 = vadd.f32 %v630, %v678
      %680 = vmatmul.bf16.gmra.mxu0 %v543
      %v681 = vpop.f32.mrf.mxu0
      %v682 = vadd.f32 %v633, %v681
      %v683 = vpop.f32.mrf.mxu0
      %v684 = vadd.f32 %v635, %v683
      %685 = vmatmul.bf16.gmra.mxu0 %v546
      %v686 = vpop.f32.mrf.mxu0
      %v687 = vadd.f32 %v638, %v686
      %v688 = vpop.f32.mrf.mxu0
      %v689 = vadd.f32 %v640, %v688
      %690 = vmatmul.bf16.gmra.mxu0 %v549
      %v691 = vpop.f32.mrf.mxu0
      %v692 = vadd.f32 %v643, %v691
      %v693 = vpop.f32.mrf.mxu0
      %v694 = vadd.f32 %v645, %v693
      %695 = vmatmul.bf16.gmra.mxu0 %v552
      %v696 = vpop.f32.mrf.mxu0
      %v697 = vadd.f32 %v648, %v696
      %v698 = vpop.f32.mrf.mxu0
      %v699 = vadd.f32 %v650, %v698
      %700 = vdwg.mxu0
      %701 = vst [vmem:[%s226] sm:$0xff] %v662
      %702 = vst [vmem:[%s226 + $0x8] sm:$0xff] %v664
      %703 = vst [vmem:[%s226 + $0x10] sm:$0xff] %v667
      %704 = vst [vmem:[%s226 + $0x18] sm:$0xff] %v669
      %705 = vst [vmem:[%s226 + $0x20] sm:$0xff] %v672
      %706 = vst [vmem:[%s226 + $0x28] sm:$0xff] %v674
      %707 = vst [vmem:[%s226 + $0x30] sm:$0xff] %v677
      %708 = vst [vmem:[%s226 + $0x38] sm:$0xff] %v679
      %709 = vst [vmem:[%s226 + $0x40] sm:$0xff] %v682
      %710 = vst [vmem:[%s226 + $0x48] sm:$0xff] %v684
      %711 = vst [vmem:[%s226 + $0x50] sm:$0xff] %v687
      %712 = vst [vmem:[%s226 + $0x58] sm:$0xff] %v689
      %713 = vst [vmem:[%s226 + $0x60] sm:$0xff] %v692
      %714 = vst [vmem:[%s226 + $0x68] sm:$0xff] %v694
      %715 = vst [vmem:[%s226 + $0x70] sm:$0xff] %v697
      %716 = vst [vmem:[%s226 + $0x78] sm:$0xff] %v699
      %s717 = smul.u32 16, %s19
      %p718 = scmp.lt.s32.totalorder %s717, 63
      %s719 = scalar_select %p718, %s717, 63
      %p720 = scmp.lt.s32.totalorder %s18, 0
      %s721 = scalar_select %p720, %s18, 0
      %s722 = sadd.s32 %s721, %s719
      %s723 = smul.addr %s722, 8
      %s724 = scalar_lea.vmem %s3, %s723
      // Predicated region
      $region33: #{fwd.37} parent=31 // pred_check
        %p725 = pneg %p124
      $region34: #{fwd.37} parent=31 // pred_check_branch
        %727 = sbr.rel (%p725) target = $region36
      $region35: #{fwd.37} parent=31 // pred_region
        %s728 = smul.u32 16, %s19
      $region36: #{fwd.37} parent=31 // pred_fallthru
        _
    $region32: #{fwd.37} parent=5 // pred_fallthru
      _
    %p729 = scmp.le.s32.totalorder 2, %s9
    // Predicated region
    $region37: #{fwd.37} parent=5 // pred_check
      %p730 = pneg %p729
    $region38: #{fwd.37} parent=5 // pred_check_branch
      %732 = sbr.rel (%p730) target = $region40
    $region39: #{fwd.37} parent=5 // pred_region
      %s733 = ssub.s32 %s9, 2
      // Predicated region
      $region41: #{fwd.37} parent=39 // pred_check
        %p734 = pneg %p130
      $region42: #{fwd.37} parent=39 // pred_check_branch
        %736 = sbr.rel (%p734) target = $region44
      $region43: #{fwd.37} parent=39 // pred_region
        %s737 = smul.u32 16, %s21
        %p738 = scmp.lt.s32.totalorder %s737, 63
        %s739 = scalar_select %p738, %s737, 63
        %p740 = scmp.lt.s32.totalorder %s20, 0
        %s741 = scalar_select %p740, %s20, 0
        %s742 = sadd.s32 %s741, %s739
        %s743 = smul.addr %s742, 8
        %s744 = scalar_lea.vmem %s3, %s743
      $region44: #{fwd.37} parent=39 // pred_fallthru
        _
    $region40: #{fwd.37} parent=5 // pred_fallthru
      _
  $region6: #{fwd.37} parent=0 // loop_footer
    %s13 = sadd.s32 1, %s9
  $region7: #{fwd.37} parent=0 // loop_footer_branch
    %8 = sbr.rel target = $region3
  $region8: #{fwd.37} parent=0 // loop_exit
    _

// kernel: fwd.46
$region0: #{fwd.46}
  #allocation0 [shape = 'u32[]', space=smem, size = 0x4, offset = 0x4, fixed_abs, tag = 'smem constant byte address 0x4 - core index']
  #allocation1 [shape = 'u32[72,128]{1,0:T(1,128)}', space=vmem, size = 0x9000, scoped, tag = 'internal scratch']
  %s0 = inlined_call_operand.vmem [shape: bf16[128,288], index: 0, kind: input, shape index: {}]
  %s1 = inlined_call_operand.vmem [shape: bf16[288,128], index: 1, kind: input, shape index: {}]
  %s2 = inlined_call_operand.vmem [shape: f32[1,128], index: 2, kind: input, shape index: {}]
  %s3 = inlined_call_operand.vmem [shape: f32[128,128], index: 3, kind: output, shape index: {}]
  %s4 = sld [smem:[#allocation0]]
  $region22: #{fwd.46} parent=0
    _
  %s6 = ssub.s32 1, %s4
  %s7 = scalar_select 0, %s6, %s4
  // Predicated region
  $region2: #{fwd.46} parent=0 // pred_check
    _
  $region3: #{fwd.46} parent=0 // pred_check_branch
    %9 = sbr.rel (0) target = $region5
  $region4: #{fwd.46} parent=0 // pred_region
    _
  $region5: #{fwd.46} parent=0 // pred_fallthru
    _
  // Predicated region
  $region6: #{fwd.46} parent=0 // pred_check
    _
  $region7: #{fwd.46} parent=0 // pred_check_branch
    %11 = sbr.rel (0) target = $region9
  $region8: #{fwd.46} parent=0 // pred_region
    _
  $region9: #{fwd.46} parent=0 // pred_fallthru
    _
  // Predicated region
  $region10: #{fwd.46} parent=0 // pred_check
    _
  $region11: #{fwd.46} parent=0 // pred_check_branch
    %13 = sbr.rel (0) target = $region13
  $region12: #{fwd.46} parent=0 // pred_region
    _
  $region13: #{fwd.46} parent=0 // pred_fallthru
    _
  %v15 = vld [vmem:[%s0] sm:$0xff]
  %v16 = vld [vmem:[%s0 + $0x8] sm:$0xf]
  %v17 = vld [vmem:[%s0 + $0xc] sm:$0xff]
  %v18 = vld [vmem:[%s0 + $0x14] sm:$0xf]
  %v19 = vld [vmem:[%s0 + $0x18] sm:$0xff]
  %v20 = vld [vmem:[%s0 + $0x20] sm:$0xf]
  %v21 = vld [vmem:[%s0 + $0x24] sm:$0xff]
  %v22 = vld [vmem:[%s0 + $0x2c] sm:$0xf]
  %v23 = vld [vmem:[%s0 + $0x30] sm:$0xff]
  %v24 = vld [vmem:[%s0 + $0x38] sm:$0xf]
  %v25 = vld [vmem:[%s0 + $0x3c] sm:$0xff]
  %v26 = vld [vmem:[%s0 + $0x44] sm:$0xf]
  %v27 = vld [vmem:[%s0 + $0x48] sm:$0xff]
  %v28 = vld [vmem:[%s0 + $0x50] sm:$0xf]
  %v29 = vld [vmem:[%s0 + $0x54] sm:$0xff]
  %v30 = vld [vmem:[%s0 + $0x5c] sm:$0xf]
  %v31 = vld [vmem:[%s0 + $0x60] sm:$0xff]
  %v32 = vld [vmem:[%s0 + $0x68] sm:$0xf]
  %v33 = vld [vmem:[%s0 + $0x6c] sm:$0xff]
  %v34 = vld [vmem:[%s0 + $0x74] sm:$0xf]
  %v35 = vld [vmem:[%s0 + $0x78] sm:$0xff]
  %v36 = vld [vmem:[%s0 + $0x80] sm:$0xf]
  %v37 = vld [vmem:[%s0 + $0x84] sm:$0xff]
  %v38 = vld [vmem:[%s0 + $0x8c] sm:$0xf]
  %v39 = vld [vmem:[%s0 + $0x90] sm:$0xff]
  %v40 = vld [vmem:[%s0 + $0x98] sm:$0xf]
  %v41 = vld [vmem:[%s0 + $0x9c] sm:$0xff]
  %v42 = vld [vmem:[%s0 + $0xa4] sm:$0xf]
  %v43 = vld [vmem:[%s0 + $0xa8] sm:$0xff]
  %v44 = vld [vmem:[%s0 + $0xb0] sm:$0xf]
  %v45 = vld [vmem:[%s0 + $0xb4] sm:$0xff]
  %v46 = vld [vmem:[%s0 + $0xbc] sm:$0xf]
  %v47 = vld [vmem:[%s1] sm:$0xf]
  %v48 = vld [vmem:[%s1 + $0x4] sm:$0xf]
  %v49 = vld [vmem:[%s1 + $0x8] sm:$0xf]
  %v50 = vld [vmem:[%s1 + $0xc] sm:$0xf]
  %v51 = vld [vmem:[%s1 + $0x10] sm:$0xf]
  %v52 = vld [vmem:[%s1 + $0x14] sm:$0xf]
  %v53 = vld [vmem:[%s1 + $0x18] sm:$0xf]
  %v54 = vld [vmem:[%s1 + $0x1c] sm:$0xf]
  %v55 = vld [vmem:[%s1 + $0x20] sm:$0xf]
  %v56 = vld [vmem:[%s1 + $0x24] sm:$0xf]
  %v57 = vld [vmem:[%s1 + $0x28] sm:$0xf]
  %v58 = vld [vmem:[%s1 + $0x2c] sm:$0xf]
  %v59 = vld [vmem:[%s1 + $0x30] sm:$0xf]
  %v60 = vld [vmem:[%s1 + $0x34] sm:$0xf]
  %v61 = vld [vmem:[%s1 + $0x38] sm:$0xf]
  %v62 = vld [vmem:[%s1 + $0x3c] sm:$0xf]
  %v63 = vld [vmem:[%s1 + $0x40] sm:$0xf]
  %v64 = vld [vmem:[%s1 + $0x44] sm:$0xf]
  %v65 = vld [vmem:[%s1 + $0x48] sm:$0xf]
  %v66 = vld [vmem:[%s1 + $0x4c] sm:$0xf]
  %v67 = vld [vmem:[%s1 + $0x50] sm:$0xf]
  %v68 = vld [vmem:[%s1 + $0x54] sm:$0xf]
  %v69 = vld [vmem:[%s1 + $0x58] sm:$0xf]
  %v70 = vld [vmem:[%s1 + $0x5c] sm:$0xf]
  %v71 = vld [vmem:[%s1 + $0x60] sm:$0xf]
  %v72 = vld [vmem:[%s1 + $0x64] sm:$0xf]
  %v73 = vld [vmem:[%s1 + $0x68] sm:$0xf]
  %v74 = vld [vmem:[%s1 + $0x6c] sm:$0xf]
  %v75 = vld [vmem:[%s1 + $0x70] sm:$0xf]
  %v76 = vld [vmem:[%s1 + $0x74] sm:$0xf]
  %v77 = vld [vmem:[%s1 + $0x78] sm:$0xf]
  %v78 = vld [vmem:[%s1 + $0x7c] sm:$0xf]
  %v79 = vld [vmem:[%s1 + $0x80] sm:$0xf]
  %v80 = vld [vmem:[%s1 + $0x84] sm:$0xf]
  %v81 = vld [vmem:[%s1 + $0x88] sm:$0xf]
  %v82 = vld [vmem:[%s1 + $0x8c] sm:$0xf]
  %v83 = vld [vmem:[%s2] sm:$0x1]
  %v85 = vperm.slane %v83, 0
  %v119 = vunpack.c.l.b16 %v15
  %v120 = vunpack.c.h.b16 %v15
  %v121 = vunpack.c.l.b16 %v16
  %v122 = vunpack.c.l.b16 %v17
  %v123 = vunpack.c.h.b16 %v17
  %v124 = vunpack.c.l.b16 %v18
  %v125 = vunpack.c.l.b16 %v19
  %v126 = vunpack.c.h.b16 %v19
  %v127 = vunpack.c.l.b16 %v20
  %v128 = vunpack.c.l.b16 %v21
  %v129 = vunpack.c.h.b16 %v21
  %v130 = vunpack.c.l.b16 %v22
  %v131 = vunpack.c.l.b16 %v23
  %v132 = vunpack.c.h.b16 %v23
  %v133 = vunpack.c.l.b16 %v24
  %v134 = vunpack.c.l.b16 %v25
  %v135 = vunpack.c.h.b16 %v25
  %v136 = vunpack.c.l.b16 %v26
  %v137 = vunpack.c.l.b16 %v27
  %v138 = vunpack.c.h.b16 %v27
  %v139 = vunpack.c.l.b16 %v28
  %v140 = vunpack.c.l.b16 %v29
  %v141 = vunpack.c.h.b16 %v29
  %v142 = vunpack.c.l.b16 %v30
  %v143 = vunpack.c.l.b16 %v31
  %v144 = vunpack.c.h.b16 %v31
  %v145 = vunpack.c.l.b16 %v32
  %v146 = vunpack.c.l.b16 %v33
  %v147 = vunpack.c.h.b16 %v33
  %v148 = vunpack.c.l.b16 %v34
  %v149 = vunpack.c.l.b16 %v35
  %v150 = vunpack.c.h.b16 %v35
  %v151 = vunpack.c.l.b16 %v36
  %v152 = vunpack.c.l.b16 %v37
  %v153 = vunpack.c.h.b16 %v37
  %v154 = vunpack.c.l.b16 %v38
  %v155 = vunpack.c.l.b16 %v39
  %v156 = vunpack.c.h.b16 %v39
  %v157 = vunpack.c.l.b16 %v40
  %v158 = vunpack.c.l.b16 %v41
  %v159 = vunpack.c.h.b16 %v41
  %v160 = vunpack.c.l.b16 %v42
  %v161 = vunpack.c.l.b16 %v43
  %v162 = vunpack.c.h.b16 %v43
  %v163 = vunpack.c.l.b16 %v44
  %v164 = vunpack.c.l.b16 %v45
  %v165 = vunpack.c.h.b16 %v45
  %v166 = vunpack.c.l.b16 %v46
  %v167 = vpack.c.b16 %v122, %v119
  %v168 = vpack.c.b16 %v123, %v120
  %v169 = vpack.c.b16 %v124, %v121
  %v170 = vpack.c.b16 %v128, %v125
  %v171 = vpack.c.b16 %v129, %v126
  %v172 = vpack.c.b16 %v130, %v127
  %v173 = vpack.c.b16 %v134, %v131
  %v174 = vpack.c.b16 %v135, %v132
  %v175 = vpack.c.b16 %v136, %v133
  %v176 = vpack.c.b16 %v140, %v137
  %v177 = vpack.c.b16 %v141, %v138
  %v178 = vpack.c.b16 %v142, %v139
  %v179 = vpack.c.b16 %v146, %v143
  %v180 = vpack.c.b16 %v147, %v144
  %v181 = vpack.c.b16 %v148, %v145
  %v182 = vpack.c.b16 %v152, %v149
  %v183 = vpack.c.b16 %v153, %v150
  %v184 = vpack.c.b16 %v154, %v151
  %v185 = vpack.c.b16 %v158, %v155
  %v186 = vpack.c.b16 %v159, %v156
  %v187 = vpack.c.b16 %v160, %v157
  %v188 = vpack.c.b16 %v164, %v161
  %v189 = vpack.c.b16 %v165, %v162
  %v190 = vpack.c.b16 %v166, %v163
  %v243 = vunpack.c.l.b16 %v47
  %v244 = vunpack.c.l.b16 %v48
  %v245 = vunpack.c.l.b16 %v49
  %v246 = vunpack.c.l.b16 %v50
  %v247 = vunpack.c.l.b16 %v51
  %v248 = vunpack.c.l.b16 %v52
  %v249 = vunpack.c.l.b16 %v53
  %v250 = vunpack.c.l.b16 %v54
  %v251 = vunpack.c.l.b16 %v55
  %v252 = vunpack.c.l.b16 %v56
  %v253 = vunpack.c.l.b16 %v57
  %v254 = vunpack.c.l.b16 %v58
  %v255 = vunpack.c.l.b16 %v59
  %v256 = vunpack.c.l.b16 %v60
  %v257 = vunpack.c.l.b16 %v61
  %v258 = vunpack.c.l.b16 %v62
  %v259 = vunpack.c.l.b16 %v63
  %v260 = vunpack.c.l.b16 %v64
  %v261 = vunpack.c.l.b16 %v65
  %v262 = vunpack.c.l.b16 %v66
  %v263 = vunpack.c.l.b16 %v67
  %v264 = vunpack.c.l.b16 %v68
  %v265 = vunpack.c.l.b16 %v69
  %v266 = vunpack.c.l.b16 %v70
  %v267 = vunpack.c.l.b16 %v71
  %v268 = vunpack.c.l.b16 %v72
  %v269 = vunpack.c.l.b16 %v73
  %v270 = vunpack.c.l.b16 %v74
  %v271 = vunpack.c.l.b16 %v75
  %v272 = vunpack.c.l.b16 %v76
  %v273 = vunpack.c.l.b16 %v77
  %v274 = vunpack.c.l.b16 %v78
  %v275 = vunpack.c.l.b16 %v79
  %v276 = vunpack.c.l.b16 %v80
  %v277 = vunpack.c.l.b16 %v81
  %v278 = vunpack.c.l.b16 %v82
  %v279 = vpack.c.b16 %v244, %v243
  %v280 = vpack.c.b16 %v246, %v245
  %v281 = vpack.c.b16 %v248, %v247
  %v282 = vpack.c.b16 %v250, %v249
  %v283 = vpack.c.b16 %v252, %v251
  %v284 = vpack.c.b16 %v254, %v253
  %v285 = vpack.c.b16 %v256, %v255
  %v286 = vpack.c.b16 %v258, %v257
  %v287 = vpack.c.b16 %v260, %v259
  %v288 = vpack.c.b16 %v262, %v261
  %v289 = vpack.c.b16 %v264, %v263
  %v290 = vpack.c.b16 %v266, %v265
  %v291 = vpack.c.b16 %v268, %v267
  %v292 = vpack.c.b16 %v270, %v269
  %v293 = vpack.c.b16 %v272, %v271
  %v294 = vpack.c.b16 %v274, %v273
  %v295 = vpack.c.b16 %v276, %v275
  %v296 = vpack.c.b16 %v278, %v277
  %vm315 = vcmask 261120
  %v317 = vsel %vm315, %v169, 0
  %v320 = vsel %vm315, %v172, 0
  %v323 = vsel %vm315, %v175, 0
  %v326 = vsel %vm315, %v178, 0
  %v329 = vsel %vm315, %v181, 0
  %v332 = vsel %vm315, %v184, 0
  %v335 = vsel %vm315, %v187, 0
  %v338 = vsel %vm315, %v190, 0
  %340 = vmatpush.bf16.msra.mxu0 %v286
  %341 = vmatpush.bf16.msra.mxu0 %v285
  %342 = vmatpush.bf16.msra.mxu0 %v284
  %343 = vmatpush.bf16.msra.mxu0 %v283
  %344 = vmatpush.bf16.msra.mxu0 %v282
  %345 = vmatpush.bf16.msra.mxu0 %v281
  %346 = vmatpush.bf16.msra.mxu0 %v280
  %347 = vmatpush.bf16.msra.mxu0 %v279
  %348 = vmatmul.bf16.gmra.mxu0 %v167
  %v349 = vpop.f32.mrf.mxu0
  %v350 = vadd.f32 %v85, %v349
  %v351 = vpop.f32.mrf.mxu0
  %v352 = vadd.f32 %v85, %v351
  %353 = vmatmul.bf16.gmra.mxu0 %v170
  %v354 = vpop.f32.mrf.mxu0
  %v355 = vadd.f32 %v85, %v354
  %v356 = vpop.f32.mrf.mxu0
  %v357 = vadd.f32 %v85, %v356
  %358 = vmatmul.bf16.gmra.mxu0 %v173
  %v359 = vpop.f32.mrf.mxu0
  %v360 = vadd.f32 %v85, %v359
  %v361 = vpop.f32.mrf.mxu0
  %v362 = vadd.f32 %v85, %v361
  %363 = vmatmul.bf16.gmra.mxu0 %v176
  %v364 = vpop.f32.mrf.mxu0
  %v365 = vadd.f32 %v85, %v364
  %v366 = vpop.f32.mrf.mxu0
  %v367 = vadd.f32 %v85, %v366
  %368 = vmatmul.bf16.gmra.mxu0 %v179
  %v369 = vpop.f32.mrf.mxu0
  %v370 = vadd.f32 %v85, %v369
  %v371 = vpop.f32.mrf.mxu0
  %v372 = vadd.f32 %v85, %v371
  %373 = vmatmul.bf16.gmra.mxu0 %v182
  %v374 = vpop.f32.mrf.mxu0
  %v375 = vadd.f32 %v85, %v374
  %v376 = vpop.f32.mrf.mxu0
  %v377 = vadd.f32 %v85, %v376
  %378 = vmatmul.bf16.gmra.mxu0 %v185
  %v379 = vpop.f32.mrf.mxu0
  %v380 = vadd.f32 %v85, %v379
  %v381 = vpop.f32.mrf.mxu0
  %v382 = vadd.f32 %v85, %v381
  %383 = vmatmul.bf16.gmra.mxu0 %v188
  %v384 = vpop.f32.mrf.mxu0
  %v385 = vadd.f32 %v85, %v384
  %v386 = vpop.f32.mrf.mxu0
  %v387 = vadd.f32 %v85, %v386
  %388 = vdwg.mxu0
  %389 = vmatpush.bf16.msra.mxu0 %v294
  %390 = vmatpush.bf16.msra.mxu0 %v293
  %391 = vmatpush.bf16.msra.mxu0 %v292
  %392 = vmatpush.bf16.msra.mxu0 %v291
  %393 = vmatpush.bf16.msra.mxu0 %v290
  %394 = vmatpush.bf16.msra.mxu0 %v289
  %395 = vmatpush.bf16.msra.mxu0 %v288
  %396 = vmatpush.bf16.msra.mxu0 %v287
  %397 = vmatmul.bf16.gmra.mxu0 %v168
  %v398 = vpop.f32.mrf.mxu0
  %v399 = vadd.f32 %v350, %v398
  %v400 = vpop.f32.mrf.mxu0
  %v401 = vadd.f32 %v352, %v400
  %402 = vmatmul.bf16.gmra.mxu0 %v171
  %v403 = vpop.f32.mrf.mxu0
  %v404 = vadd.f32 %v355, %v403
  %v405 = vpop.f32.mrf.mxu0
  %v406 = vadd.f32 %v357, %v405
  %407 = vmatmul.bf16.gmra.mxu0 %v174
  %v408 = vpop.f32.mrf.mxu0
  %v409 = vadd.f32 %v360, %v408
  %v410 = vpop.f32.mrf.mxu0
  %v411 = vadd.f32 %v362, %v410
  %412 = vmatmul.bf16.gmra.mxu0 %v177
  %v413 = vpop.f32.mrf.mxu0
  %v414 = vadd.f32 %v365, %v413
  %v415 = vpop.f32.mrf.mxu0
  %v416 = vadd.f32 %v367, %v415
  %417 = vmatmul.bf16.gmra.mxu0 %v180
  %v418 = vpop.f32.mrf.mxu0
  %v419 = vadd.f32 %v370, %v418
  %v420 = vpop.f32.mrf.mxu0
  %v421 = vadd.f32 %v372, %v420
  %422 = vmatmul.bf16.gmra.mxu0 %v183
  %v423 = vpop.f32.mrf.mxu0
  %v424 = vadd.f32 %v375, %v423
  %v425 = vpop.f32.mrf.mxu0
  %v426 = vadd.f32 %v377, %v425
  %427 = vmatmul.bf16.gmra.mxu0 %v186
  %v428 = vpop.f32.mrf.mxu0
  %v429 = vadd.f32 %v380, %v428
  %v430 = vpop.f32.mrf.mxu0
  %v431 = vadd.f32 %v382, %v430
  %432 = vmatmul.bf16.gmra.mxu0 %v189
  %v433 = vpop.f32.mrf.mxu0
  %v434 = vadd.f32 %v385, %v433
  %v435 = vpop.f32.mrf.mxu0
  %v436 = vadd.f32 %v387, %v435
  %437 = vdwg.mxu0
  %438 = vmatpush.bf16.msra.mxu0 0
  %439 = vmatpush.bf16.msra.mxu0 0
  %440 = vmatpush.bf16.msra.mxu0 0
  %441 = vmatpush.bf16.msra.mxu0 0
  %442 = vmatpush.bf16.msra.mxu0 0
  %443 = vmatpush.bf16.msra.mxu0 0
  %444 = vmatpush.bf16.msra.mxu0 %v296
  %445 = vmatpush.bf16.msra.mxu0 %v295
  %446 = vmatmul.bf16.gmra.mxu0 %v317
  %v447 = vpop.f32.mrf.mxu0
  %v448 = vadd.f32 %v399, %v447
  %v449 = vpop.f32.mrf.mxu0
  %v450 = vadd.f32 %v401, %v449
  %451 = vmatmul.bf16.gmra.mxu0 %v320
  %v452 = vpop.f32.mrf.mxu0
  %v453 = vadd.f32 %v404, %v452
  %v454 = vpop.f32.mrf.mxu0
  %v455 = vadd.f32 %v406, %v454
  %456 = vmatmul.bf16.gmra.mxu0 %v323
  %v457 = vpop.f32.mrf.mxu0
  %v458 = vadd.f32 %v409, %v457
  %v459 = vpop.f32.mrf.mxu0
  %v460 = vadd.f32 %v411, %v459
  %461 = vmatmul.bf16.gmra.mxu0 %v326
  %v462 = vpop.f32.mrf.mxu0
  %v463 = vadd.f32 %v414, %v462
  %v464 = vpop.f32.mrf.mxu0
  %v465 = vadd.f32 %v416, %v464
  %466 = vmatmul.bf16.gmra.mxu0 %v329
  %v467 = vpop.f32.mrf.mxu0
  %v468 = vadd.f32 %v419, %v467
  %v469 = vpop.f32.mrf.mxu0
  %v470 = vadd.f32 %v421, %v469
  %471 = vmatmul.bf16.gmra.mxu0 %v332
  %v472 = vpop.f32.mrf.mxu0
  %v473 = vadd.f32 %v424, %v472
  %v474 = vpop.f32.mrf.mxu0
  %v475 = vadd.f32 %v426, %v474
  %476 = vmatmul.bf16.gmra.mxu0 %v335
  %v477 = vpop.f32.mrf.mxu0
  %v478 = vadd.f32 %v429, %v477
  %v479 = vpop.f32.mrf.mxu0
  %v480 = vadd.f32 %v431, %v479
  %481 = vmatmul.bf16.gmra.mxu0 %v338
  %v482 = vpop.f32.mrf.mxu0
  %v483 = vadd.f32 %v434, %v482
  %v484 = vpop.f32.mrf.mxu0
  %v485 = vadd.f32 %v436, %v484
  %486 = vdwg.mxu0
  %487 = vst [vmem:[%s3] sm:$0xff] %v448
  %488 = vst [vmem:[%s3 + $0x8] sm:$0xff] %v450
  %489 = vst [vmem:[%s3 + $0x10] sm:$0xff] %v453
  %490 = vst [vmem:[%s3 + $0x18] sm:$0xff] %v455
  %491 = vst [vmem:[%s3 + $0x20] sm:$0xff] %v458
  %492 = vst [vmem:[%s3 + $0x28] sm:$0xff] %v460
  %493 = vst [vmem:[%s3 + $0x30] sm:$0xff] %v463
  %494 = vst [vmem:[%s3 + $0x38] sm:$0xff] %v465
  %495 = vst [vmem:[%s3 + $0x40] sm:$0xff] %v468
  %496 = vst [vmem:[%s3 + $0x48] sm:$0xff] %v470
  %497 = vst [vmem:[%s3 + $0x50] sm:$0xff] %v473
  %498 = vst [vmem:[%s3 + $0x58] sm:$0xff] %v475
  %499 = vst [vmem:[%s3 + $0x60] sm:$0xff] %v478
  %500 = vst [vmem:[%s3 + $0x68] sm:$0xff] %v480
  %501 = vst [vmem:[%s3 + $0x70] sm:$0xff] %v483
  %502 = vst [vmem:[%s3 + $0x78] sm:$0xff] %v485
  // Predicated region
  $region14: #{fwd.46} parent=0 // pred_check
    _
  $region15: #{fwd.46} parent=0 // pred_check_branch
    %504 = sbr.rel (0) target = $region17
  $region16: #{fwd.46} parent=0 // pred_region
    _
  $region17: #{fwd.46} parent=0 // pred_fallthru
    _
  // Predicated region
  $region18: #{fwd.46} parent=0 // pred_check
    _
  $region19: #{fwd.46} parent=0 // pred_check_branch
    %506 = sbr.rel (0) target = $region21
  $region20: #{fwd.46} parent=0 // pred_region
    _
  $region21: #{fwd.46} parent=0 // pred_fallthru
    _

// kernel: fwd.56
$region0: #{fwd.56}
  #allocation0 [shape = 'u32[]', space=smem, size = 0x4, offset = 0x4, fixed_abs, tag = 'smem constant byte address 0x4 - core index']
  #allocation1 [shape = 'u32[72,128]{1,0:T(1,128)}', space=vmem, size = 0x9000, scoped, tag = 'internal scratch']
  %s0 = inlined_call_operand.vmem [shape: bf16[128,216], index: 0, kind: input, shape index: {}]
  %s1 = inlined_call_operand.vmem [shape: bf16[216,128], index: 1, kind: input, shape index: {}]
  %s2 = inlined_call_operand.vmem [shape: f32[1,128], index: 2, kind: input, shape index: {}]
  %s3 = inlined_call_operand.vmem [shape: f32[128,128], index: 3, kind: output, shape index: {}]
  %s4 = sld [smem:[#allocation0]]
  $region22: #{fwd.56} parent=0
    _
  %s6 = ssub.s32 1, %s4
  %s7 = scalar_select 0, %s6, %s4
  // Predicated region
  $region2: #{fwd.56} parent=0 // pred_check
    _
  $region3: #{fwd.56} parent=0 // pred_check_branch
    %9 = sbr.rel (0) target = $region5
  $region4: #{fwd.56} parent=0 // pred_region
    _
  $region5: #{fwd.56} parent=0 // pred_fallthru
    _
  // Predicated region
  $region6: #{fwd.56} parent=0 // pred_check
    _
  $region7: #{fwd.56} parent=0 // pred_check_branch
    %11 = sbr.rel (0) target = $region9
  $region8: #{fwd.56} parent=0 // pred_region
    _
  $region9: #{fwd.56} parent=0 // pred_fallthru
    _
  // Predicated region
  $region10: #{fwd.56} parent=0 // pred_check
    _
  $region11: #{fwd.56} parent=0 // pred_check_branch
    %13 = sbr.rel (0) target = $region13
  $region12: #{fwd.56} parent=0 // pred_region
    _
  $region13: #{fwd.56} parent=0 // pred_fallthru
    _
  %v15 = vld [vmem:[%s0] sm:$0xff]
  %v16 = vld [vmem:[%s0 + $0x8] sm:$0xff]
  %v17 = vld [vmem:[%s0 + $0x10] sm:$0xff]
  %v18 = vld [vmem:[%s0 + $0x18] sm:$0xff]
  %v19 = vld [vmem:[%s0 + $0x20] sm:$0xff]
  %v20 = vld [vmem:[%s0 + $0x28] sm:$0xff]
  %v21 = vld [vmem:[%s0 + $0x30] sm:$0xff]
  %v22 = vld [vmem:[%s0 + $0x38] sm:$0xff]
  %v23 = vld [vmem:[%s0 + $0x40] sm:$0xff]
  %v24 = vld [vmem:[%s0 + $0x48] sm:$0xff]
  %v25 = vld [vmem:[%s0 + $0x50] sm:$0xff]
  %v26 = vld [vmem:[%s0 + $0x58] sm:$0xff]
  %v27 = vld [vmem:[%s0 + $0x60] sm:$0xff]
  %v28 = vld [vmem:[%s0 + $0x68] sm:$0xff]
  %v29 = vld [vmem:[%s0 + $0x70] sm:$0xff]
  %v30 = vld [vmem:[%s0 + $0x78] sm:$0xff]
  %v31 = vld [vmem:[%s1] sm:$0xf]
  %v32 = vld [vmem:[%s1 + $0x4] sm:$0xf]
  %v33 = vld [vmem:[%s1 + $0x8] sm:$0xf]
  %v34 = vld [vmem:[%s1 + $0xc] sm:$0xf]
  %v35 = vld [vmem:[%s1 + $0x10] sm:$0xf]
  %v36 = vld [vmem:[%s1 + $0x14] sm:$0xf]
  %v37 = vld [vmem:[%s1 + $0x18] sm:$0xf]
  %v38 = vld [vmem:[%s1 + $0x1c] sm:$0xf]
  %v39 = vld [vmem:[%s1 + $0x20] sm:$0xf]
  %v40 = vld [vmem:[%s1 + $0x24] sm:$0xf]
  %v41 = vld [vmem:[%s1 + $0x28] sm:$0xf]
  %v42 = vld [vmem:[%s1 + $0x2c] sm:$0xf]
  %v43 = vld [vmem:[%s1 + $0x30] sm:$0xf]
  %v44 = vld [vmem:[%s1 + $0x34] sm:$0xf]
  %v45 = vld [vmem:[%s1 + $0x38] sm:$0xf]
  %v46 = vld [vmem:[%s1 + $0x3c] sm:$0xf]
  %v47 = vld [vmem:[%s1 + $0x40] sm:$0xf]
  %v48 = vld [vmem:[%s1 + $0x44] sm:$0xf]
  %v49 = vld [vmem:[%s1 + $0x48] sm:$0xf]
  %v50 = vld [vmem:[%s1 + $0x4c] sm:$0xf]
  %v51 = vld [vmem:[%s1 + $0x50] sm:$0xf]
  %v52 = vld [vmem:[%s1 + $0x54] sm:$0xf]
  %v53 = vld [vmem:[%s1 + $0x58] sm:$0xf]
  %v54 = vld [vmem:[%s1 + $0x5c] sm:$0xf]
  %v55 = vld [vmem:[%s1 + $0x60] sm:$0xf]
  %v56 = vld [vmem:[%s1 + $0x64] sm:$0xf]
  %v57 = vld [vmem:[%s1 + $0x68] sm:$0xf]
  %v58 = vld [vmem:[%s2] sm:$0x1]
  %v60 = vperm.slane %v58, 0
  %v78 = vunpack.c.l.b16 %v15
  %v79 = vunpack.c.h.b16 %v15
  %v80 = vunpack.c.l.b16 %v16
  %v81 = vunpack.c.h.b16 %v16
  %v82 = vunpack.c.l.b16 %v17
  %v83 = vunpack.c.h.b16 %v17
  %v84 = vunpack.c.l.b16 %v18
  %v85 = vunpack.c.h.b16 %v18
  %v86 = vunpack.c.l.b16 %v19
  %v87 = vunpack.c.h.b16 %v19
  %v88 = vunpack.c.l.b16 %v20
  %v89 = vunpack.c.h.b16 %v20
  %v90 = vunpack.c.l.b16 %v21
  %v91 = vunpack.c.h.b16 %v21
  %v92 = vunpack.c.l.b16 %v22
  %v93 = vunpack.c.h.b16 %v22
  %v94 = vunpack.c.l.b16 %v23
  %v95 = vunpack.c.h.b16 %v23
  %v96 = vunpack.c.l.b16 %v24
  %v97 = vunpack.c.h.b16 %v24
  %v98 = vunpack.c.l.b16 %v25
  %v99 = vunpack.c.h.b16 %v25
  %v100 = vunpack.c.l.b16 %v26
  %v101 = vunpack.c.h.b16 %v26
  %v102 = vunpack.c.l.b16 %v27
  %v103 = vunpack.c.h.b16 %v27
  %v104 = vunpack.c.l.b16 %v28
  %v105 = vunpack.c.h.b16 %v28
  %v106 = vunpack.c.l.b16 %v29
  %v107 = vunpack.c.h.b16 %v29
  %v108 = vunpack.c.l.b16 %v30
  %v109 = vunpack.c.h.b16 %v30
  %v110 = vpack.c.b16 %v80, %v78
  %v111 = vpack.c.b16 %v81, %v79
  %v112 = vpack.c.b16 %v84, %v82
  %v113 = vpack.c.b16 %v85, %v83
  %v114 = vpack.c.b16 %v88, %v86
  %v115 = vpack.c.b16 %v89, %v87
  %v116 = vpack.c.b16 %v92, %v90
  %v117 = vpack.c.b16 %v93, %v91
  %v118 = vpack.c.b16 %v96, %v94
  %v119 = vpack.c.b16 %v97, %v95
  %v120 = vpack.c.b16 %v100, %v98
  %v121 = vpack.c.b16 %v101, %v99
  %v122 = vpack.c.b16 %v104, %v102
  %v123 = vpack.c.b16 %v105, %v103
  %v124 = vpack.c.b16 %v108, %v106
  %v125 = vpack.c.b16 %v109, %v107
  %v161 = vunpack.c.l.b16 %v31
  %v162 = vunpack.c.l.b16 %v32
  %v163 = vunpack.c.l.b16 %v33
  %v164 = vunpack.c.l.b16 %v34
  %v165 = vunpack.c.l.b16 %v35
  %v166 = vunpack.c.l.b16 %v36
  %v167 = vunpack.c.l.b16 %v37
  %v168 = vunpack.c.l.b16 %v38
  %v169 = vunpack.c.l.b16 %v39
  %v170 = vunpack.c.l.b16 %v40
  %v171 = vunpack.c.l.b16 %v41
  %v172 = vunpack.c.l.b16 %v42
  %v173 = vunpack.c.l.b16 %v43
  %v174 = vunpack.c.l.b16 %v44
  %v175 = vunpack.c.l.b16 %v45
  %v176 = vunpack.c.l.b16 %v46
  %v177 = vunpack.c.l.b16 %v47
  %v178 = vunpack.c.l.b16 %v48
  %v179 = vunpack.c.l.b16 %v49
  %v180 = vunpack.c.l.b16 %v50
  %v181 = vunpack.c.l.b16 %v51
  %v182 = vunpack.c.l.b16 %v52
  %v183 = vunpack.c.l.b16 %v53
  %v184 = vunpack.c.l.b16 %v54
  %v185 = vunpack.c.l.b16 %v55
  %v186 = vunpack.c.l.b16 %v56
  %v187 = vunpack.c.l.b16 %v57
  %v188 = vpack.c.b16 %v162, %v161
  %v189 = vpack.c.b16 %v164, %v163
  %v190 = vpack.c.b16 %v166, %v165
  %v191 = vpack.c.b16 %v168, %v167
  %v192 = vpack.c.b16 %v170, %v169
  %v193 = vpack.c.b16 %v172, %v171
  %v194 = vpack.c.b16 %v174, %v173
  %v195 = vpack.c.b16 %v176, %v175
  %v196 = vpack.c.b16 %v178, %v177
  %v197 = vpack.c.b16 %v180, %v179
  %v198 = vpack.c.b16 %v182, %v181
  %v199 = vpack.c.b16 %v184, %v183
  %v200 = vpack.c.b16 %v186, %v185
  %v201 = vpack.c.b16 %v187, %v187
  %vm215 = vcmask 719872
  %v217 = vsel %vm215, %v111, 0
  %v220 = vsel %vm215, %v113, 0
  %v223 = vsel %vm215, %v115, 0
  %v226 = vsel %vm215, %v117, 0
  %v229 = vsel %vm215, %v119, 0
  %v232 = vsel %vm215, %v121, 0
  %v235 = vsel %vm215, %v123, 0
  %v238 = vsel %vm215, %v125, 0
  %vm240 = vcmask 1043456
  %v242 = vsel %vm240, %v201, 0
  %244 = vmatpush.bf16.msra.mxu0 %v195
  %245 = vmatpush.bf16.msra.mxu0 %v194
  %246 = vmatpush.bf16.msra.mxu0 %v193
  %247 = vmatpush.bf16.msra.mxu0 %v192
  %248 = vmatpush.bf16.msra.mxu0 %v191
  %249 = vmatpush.bf16.msra.mxu0 %v190
  %250 = vmatpush.bf16.msra.mxu0 %v189
  %251 = vmatpush.bf16.msra.mxu0 %v188
  %252 = vmatmul.bf16.gmra.mxu0 %v110
  %v253 = vpop.f32.mrf.mxu0
  %v254 = vadd.f32 %v60, %v253
  %v255 = vpop.f32.mrf.mxu0
  %v256 = vadd.f32 %v60, %v255
  %257 = vmatmul.bf16.gmra.mxu0 %v112
  %v258 = vpop.f32.mrf.mxu0
  %v259 = vadd.f32 %v60, %v258
  %v260 = vpop.f32.mrf.mxu0
  %v261 = vadd.f32 %v60, %v260
  %262 = vmatmul.bf16.gmra.mxu0 %v114
  %v263 = vpop.f32.mrf.mxu0
  %v264 = vadd.f32 %v60, %v263
  %v265 = vpop.f32.mrf.mxu0
  %v266 = vadd.f32 %v60, %v265
  %267 = vmatmul.bf16.gmra.mxu0 %v116
  %v268 = vpop.f32.mrf.mxu0
  %v269 = vadd.f32 %v60, %v268
  %v270 = vpop.f32.mrf.mxu0
  %v271 = vadd.f32 %v60, %v270
  %272 = vmatmul.bf16.gmra.mxu0 %v118
  %v273 = vpop.f32.mrf.mxu0
  %v274 = vadd.f32 %v60, %v273
  %v275 = vpop.f32.mrf.mxu0
  %v276 = vadd.f32 %v60, %v275
  %277 = vmatmul.bf16.gmra.mxu0 %v120
  %v278 = vpop.f32.mrf.mxu0
  %v279 = vadd.f32 %v60, %v278
  %v280 = vpop.f32.mrf.mxu0
  %v281 = vadd.f32 %v60, %v280
  %282 = vmatmul.bf16.gmra.mxu0 %v122
  %v283 = vpop.f32.mrf.mxu0
  %v284 = vadd.f32 %v60, %v283
  %v285 = vpop.f32.mrf.mxu0
  %v286 = vadd.f32 %v60, %v285
  %287 = vmatmul.bf16.gmra.mxu0 %v124
  %v288 = vpop.f32.mrf.mxu0
  %v289 = vadd.f32 %v60, %v288
  %v290 = vpop.f32.mrf.mxu0
  %v291 = vadd.f32 %v60, %v290
  %292 = vdwg.mxu0
  %293 = vmatpush.bf16.msra.mxu0 0
  %294 = vmatpush.bf16.msra.mxu0 0
  %295 = vmatpush.bf16.msra.mxu0 %v242
  %296 = vmatpush.bf16.msra.mxu0 %v200
  %297 = vmatpush.bf16.msra.mxu0 %v199
  %298 = vmatpush.bf16.msra.mxu0 %v198
  %299 = vmatpush.bf16.msra.mxu0 %v197
  %300 = vmatpush.bf16.msra.mxu0 %v196
  %301 = vmatmul.bf16.gmra.mxu0 %v217
  %v302 = vpop.f32.mrf.mxu0
  %v303 = vadd.f32 %v254, %v302
  %v304 = vpop.f32.mrf.mxu0
  %v305 = vadd.f32 %v256, %v304
  %306 = vmatmul.bf16.gmra.mxu0 %v220
  %v307 = vpop.f32.mrf.mxu0
  %v308 = vadd.f32 %v259, %v307
  %v309 = vpop.f32.mrf.mxu0
  %v310 = vadd.f32 %v261, %v309
  %311 = vmatmul.bf16.gmra.mxu0 %v223
  %v312 = vpop.f32.mrf.mxu0
  %v313 = vadd.f32 %v264, %v312
  %v314 = vpop.f32.mrf.mxu0
  %v315 = vadd.f32 %v266, %v314
  %316 = vmatmul.bf16.gmra.mxu0 %v226
  %v317 = vpop.f32.mrf.mxu0
  %v318 = vadd.f32 %v269, %v317
  %v319 = vpop.f32.mrf.mxu0
  %v320 = vadd.f32 %v271, %v319
  %321 = vmatmul.bf16.gmra.mxu0 %v229
  %v322 = vpop.f32.mrf.mxu0
  %v323 = vadd.f32 %v274, %v322
  %v324 = vpop.f32.mrf.mxu0
  %v325 = vadd.f32 %v276, %v324
  %326 = vmatmul.bf16.gmra.mxu0 %v232
  %v327 = vpop.f32.mrf.mxu0
  %v328 = vadd.f32 %v279, %v327
  %v329 = vpop.f32.mrf.mxu0
  %v330 = vadd.f32 %v281, %v329
  %331 = vmatmul.bf16.gmra.mxu0 %v235
  %v332 = vpop.f32.mrf.mxu0
  %v333 = vadd.f32 %v284, %v332
  %v334 = vpop.f32.mrf.mxu0
  %v335 = vadd.f32 %v286, %v334
  %336 = vmatmul.bf16.gmra.mxu0 %v238
  %v337 = vpop.f32.mrf.mxu0
  %v338 = vadd.f32 %v289, %v337
  %v339 = vpop.f32.mrf.mxu0
  %v340 = vadd.f32 %v291, %v339
  %341 = vdwg.mxu0
  %342 = vst [vmem:[%s3] sm:$0xff] %v303
  %343 = vst [vmem:[%s3 + $0x8] sm:$0xff] %v305
  %344 = vst [vmem:[%s3 + $0x10] sm:$0xff] %v308
  %345 = vst [vmem:[%s3 + $0x18] sm:$0xff] %v310
  %346 = vst [vmem:[%s3 + $0x20] sm:$0xff] %v313
  %347 = vst [vmem:[%s3 + $0x28] sm:$0xff] %v315
  %348 = vst [vmem:[%s3 + $0x30] sm:$0xff] %v318
  %349 = vst [vmem:[%s3 + $0x38] sm:$0xff] %v320
  %350 = vst [vmem:[%s3 + $0x40] sm:$0xff] %v323
  %351 = vst [vmem:[%s3 + $0x48] sm:$0xff] %v325
  %352 = vst [vmem:[%s3 + $0x50] sm:$0xff] %v328
  %353 = vst [vmem:[%s3 + $0x58] sm:$0xff] %v330
  %354 = vst [vmem:[%s3 + $0x60] sm:$0xff] %v333
  %355 = vst [vmem:[%s3 + $0x68] sm:$0xff] %v335
  %356 = vst [vmem:[%s3 + $0x70] sm:$0xff] %v338
  %357 = vst [vmem:[%s3 + $0x78] sm:$0xff] %v340
  // Predicated region
  $region14: #{fwd.56} parent=0 // pred_check
    _
  $region15: #{fwd.56} parent=0 // pred_check_branch
    %359 = sbr.rel (0) target = $region17
  $region16: #{fwd.56} parent=0 // pred_region
    _
  $region17: #{fwd.56} parent=0 // pred_fallthru
    _
  // Predicated region
  $region18: #{fwd.56} parent=0 // pred_check
    _
  $region19: #{fwd.56} parent=0 // pred_check_branch
    %361 = sbr.rel (0) target = $region21
  $region20: #{fwd.56} parent=0 // pred_region
    _
  $region21: #{fwd.56} parent=0 // pred_fallthru
    _

// kernel: fwd.65
$region0: #{fwd.65}
  #allocation0 [shape = 'u32[]', space=smem, size = 0x4, offset = 0x4, fixed_abs, tag = 'smem constant byte address 0x4 - core index']
  #allocation1 [shape = 'u32[72,128]{1,0:T(1,128)}', space=vmem, size = 0x9000, scoped, tag = 'internal scratch']
  %s0 = inlined_call_operand.vmem [shape: f32[512,128], index: 0, kind: input, shape index: {}]
  %s1 = inlined_call_operand.vmem [shape: f32[512,128], index: 1, kind: input, shape index: {}]
  %s2 = inlined_call_operand.vmem [shape: f32[512,128], index: 2, kind: input, shape index: {}]
  %s3 = inlined_call_operand.vmem [shape: f32[512,128], index: 3, kind: output, shape index: {}]
  %s4 = sld [smem:[#allocation0]]
  $region22: #{fwd.65} parent=0
    _
  %s6 = ssub.s32 1, %s4
  %s7 = scalar_select 0, %s6, %s4
  // Predicated region
  $region2: #{fwd.65} parent=0 // pred_check
    _
  $region3: #{fwd.65} parent=0 // pred_check_branch
    %9 = sbr.rel (0) target = $region5
  $region4: #{fwd.65} parent=0 // pred_region
    _
  $region5: #{fwd.65} parent=0 // pred_fallthru
    _
  // Predicated region
  $region6: #{fwd.65} parent=0 // pred_check
    _
  $region7: #{fwd.65} parent=0 // pred_check_branch
    %11 = sbr.rel (0) target = $region9
  $region8: #{fwd.65} parent=0 // pred_region
    _
  $region9: #{fwd.65} parent=0 // pred_fallthru
    _
  // Predicated region
  $region10: #{fwd.65} parent=0 // pred_check
    _
  $region11: #{fwd.65} parent=0 // pred_check_branch
    %13 = sbr.rel (0) target = $region13
  $region12: #{fwd.65} parent=0 // pred_region
    _
  $region13: #{fwd.65} parent=0 // pred_fallthru
    _
  %v14 = vld [vmem:[%s2] sm:$0xff]
  %v15 = vld [vmem:[%s2 + $0x8] sm:$0xff]
  %v16 = vld [vmem:[%s2 + $0x10] sm:$0xff]
  %v17 = vld [vmem:[%s2 + $0x18] sm:$0xff]
  %v18 = vld [vmem:[%s2 + $0x20] sm:$0xff]
  %v19 = vld [vmem:[%s2 + $0x28] sm:$0xff]
  %v20 = vld [vmem:[%s2 + $0x30] sm:$0xff]
  %v21 = vld [vmem:[%s2 + $0x38] sm:$0xff]
  %v22 = vld [vmem:[%s2 + $0x40] sm:$0xff]
  %v23 = vld [vmem:[%s2 + $0x48] sm:$0xff]
  %v24 = vld [vmem:[%s2 + $0x50] sm:$0xff]
  %v25 = vld [vmem:[%s2 + $0x58] sm:$0xff]
  %v26 = vld [vmem:[%s2 + $0x60] sm:$0xff]
  %v27 = vld [vmem:[%s2 + $0x68] sm:$0xff]
  %v28 = vld [vmem:[%s2 + $0x70] sm:$0xff]
  %v29 = vld [vmem:[%s2 + $0x78] sm:$0xff]
  %v30 = vld [vmem:[%s2 + $0x80] sm:$0xff]
  %v31 = vld [vmem:[%s2 + $0x88] sm:$0xff]
  %v32 = vld [vmem:[%s2 + $0x90] sm:$0xff]
  %v33 = vld [vmem:[%s2 + $0x98] sm:$0xff]
  %v34 = vld [vmem:[%s2 + $0xa0] sm:$0xff]
  %v35 = vld [vmem:[%s2 + $0xa8] sm:$0xff]
  %v36 = vld [vmem:[%s2 + $0xb0] sm:$0xff]
  %v37 = vld [vmem:[%s2 + $0xb8] sm:$0xff]
  %v38 = vld [vmem:[%s2 + $0xc0] sm:$0xff]
  %v39 = vld [vmem:[%s2 + $0xc8] sm:$0xff]
  %v40 = vld [vmem:[%s2 + $0xd0] sm:$0xff]
  %v41 = vld [vmem:[%s2 + $0xd8] sm:$0xff]
  %v42 = vld [vmem:[%s2 + $0xe0] sm:$0xff]
  %v43 = vld [vmem:[%s2 + $0xe8] sm:$0xff]
  %v44 = vld [vmem:[%s2 + $0xf0] sm:$0xff]
  %v45 = vld [vmem:[%s2 + $0xf8] sm:$0xff]
  %v46 = vld [vmem:[%s2 + $0x100] sm:$0xff]
  %v47 = vld [vmem:[%s2 + $0x108] sm:$0xff]
  %v48 = vld [vmem:[%s2 + $0x110] sm:$0xff]
  %v49 = vld [vmem:[%s2 + $0x118] sm:$0xff]
  %v50 = vld [vmem:[%s2 + $0x120] sm:$0xff]
  %v51 = vld [vmem:[%s2 + $0x128] sm:$0xff]
  %v52 = vld [vmem:[%s2 + $0x130] sm:$0xff]
  %v53 = vld [vmem:[%s2 + $0x138] sm:$0xff]
  %v54 = vld [vmem:[%s2 + $0x140] sm:$0xff]
  %v55 = vld [vmem:[%s2 + $0x148] sm:$0xff]
  %v56 = vld [vmem:[%s2 + $0x150] sm:$0xff]
  %v57 = vld [vmem:[%s2 + $0x158] sm:$0xff]
  %v58 = vld [vmem:[%s2 + $0x160] sm:$0xff]
  %v59 = vld [vmem:[%s2 + $0x168] sm:$0xff]
  %v60 = vld [vmem:[%s2 + $0x170] sm:$0xff]
  %v61 = vld [vmem:[%s2 + $0x178] sm:$0xff]
  %v62 = vld [vmem:[%s2 + $0x180] sm:$0xff]
  %v63 = vld [vmem:[%s2 + $0x188] sm:$0xff]
  %v64 = vld [vmem:[%s2 + $0x190] sm:$0xff]
  %v65 = vld [vmem:[%s2 + $0x198] sm:$0xff]
  %v66 = vld [vmem:[%s2 + $0x1a0] sm:$0xff]
  %v67 = vld [vmem:[%s2 + $0x1a8] sm:$0xff]
  %v68 = vld [vmem:[%s2 + $0x1b0] sm:$0xff]
  %v69 = vld [vmem:[%s2 + $0x1b8] sm:$0xff]
  %v70 = vld [vmem:[%s2 + $0x1c0] sm:$0xff]
  %v71 = vld [vmem:[%s2 + $0x1c8] sm:$0xff]
  %v72 = vld [vmem:[%s2 + $0x1d0] sm:$0xff]
  %v73 = vld [vmem:[%s2 + $0x1d8] sm:$0xff]
  %v74 = vld [vmem:[%s2 + $0x1e0] sm:$0xff]
  %v75 = vld [vmem:[%s2 + $0x1e8] sm:$0xff]
  %v76 = vld [vmem:[%s2 + $0x1f0] sm:$0xff]
  %v77 = vld [vmem:[%s2 + $0x1f8] sm:$0xff]
  %v78 = vxor.u32 %v14, 2147483648
  %v79 = vxor.u32 %v15, 2147483648
  %v80 = vxor.u32 %v16, 2147483648
  %v81 = vxor.u32 %v17, 2147483648
  %v82 = vxor.u32 %v18, 2147483648
  %v83 = vxor.u32 %v19, 2147483648
  %v84 = vxor.u32 %v20, 2147483648
  %v85 = vxor.u32 %v21, 2147483648
  %v86 = vxor.u32 %v22, 2147483648
  %v87 = vxor.u32 %v23, 2147483648
  %v88 = vxor.u32 %v24, 2147483648
  %v89 = vxor.u32 %v25, 2147483648
  %v90 = vxor.u32 %v26, 2147483648
  %v91 = vxor.u32 %v27, 2147483648
  %v92 = vxor.u32 %v28, 2147483648
  %v93 = vxor.u32 %v29, 2147483648
  %v94 = vxor.u32 %v30, 2147483648
  %v95 = vxor.u32 %v31, 2147483648
  %v96 = vxor.u32 %v32, 2147483648
  %v97 = vxor.u32 %v33, 2147483648
  %v98 = vxor.u32 %v34, 2147483648
  %v99 = vxor.u32 %v35, 2147483648
  %v100 = vxor.u32 %v36, 2147483648
  %v101 = vxor.u32 %v37, 2147483648
  %v102 = vxor.u32 %v38, 2147483648
  %v103 = vxor.u32 %v39, 2147483648
  %v104 = vxor.u32 %v40, 2147483648
  %v105 = vxor.u32 %v41, 2147483648
  %v106 = vxor.u32 %v42, 2147483648
  %v107 = vxor.u32 %v43, 2147483648
  %v108 = vxor.u32 %v44, 2147483648
  %v109 = vxor.u32 %v45, 2147483648
  %v110 = vxor.u32 %v46, 2147483648
  %v111 = vxor.u32 %v47, 2147483648
  %v112 = vxor.u32 %v48, 2147483648
  %v113 = vxor.u32 %v49, 2147483648
  %v114 = vxor.u32 %v50, 2147483648
  %v115 = vxor.u32 %v51, 2147483648
  %v116 = vxor.u32 %v52, 2147483648
  %v117 = vxor.u32 %v53, 2147483648
  %v118 = vxor.u32 %v54, 2147483648
  %v119 = vxor.u32 %v55, 2147483648
  %v120 = vxor.u32 %v56, 2147483648
  %v121 = vxor.u32 %v57, 2147483648
  %v122 = vxor.u32 %v58, 2147483648
  %v123 = vxor.u32 %v59, 2147483648
  %v124 = vxor.u32 %v60, 2147483648
  %v125 = vxor.u32 %v61, 2147483648
  %v126 = vxor.u32 %v62, 2147483648
  %v127 = vxor.u32 %v63, 2147483648
  %v128 = vxor.u32 %v64, 2147483648
  %v129 = vxor.u32 %v65, 2147483648
  %v130 = vxor.u32 %v66, 2147483648
  %v131 = vxor.u32 %v67, 2147483648
  %v132 = vxor.u32 %v68, 2147483648
  %v133 = vxor.u32 %v69, 2147483648
  %v134 = vxor.u32 %v70, 2147483648
  %v135 = vxor.u32 %v71, 2147483648
  %v136 = vxor.u32 %v72, 2147483648
  %v137 = vxor.u32 %v73, 2147483648
  %v138 = vxor.u32 %v74, 2147483648
  %v139 = vxor.u32 %v75, 2147483648
  %v140 = vxor.u32 %v76, 2147483648
  %v141 = vxor.u32 %v77, 2147483648
  %v142 = vmul.f32 %v78, 1.442695
  %v143 = vpow.pop %v142
  %v144 = vmul.f32 %v79, 1.442695
  %v145 = vpow.pop %v144
  %v146 = vmul.f32 %v80, 1.442695
  %v147 = vpow.pop %v146
  %v148 = vmul.f32 %v81, 1.442695
  %v149 = vpow.pop %v148
  %v150 = vmul.f32 %v82, 1.442695
  %v151 = vpow.pop %v150
  %v152 = vmul.f32 %v83, 1.442695
  %v153 = vpow.pop %v152
  %v154 = vmul.f32 %v84, 1.442695
  %v155 = vpow.pop %v154
  %v156 = vmul.f32 %v85, 1.442695
  %v157 = vpow.pop %v156
  %v158 = vmul.f32 %v86, 1.442695
  %v159 = vpow.pop %v158
  %v160 = vmul.f32 %v87, 1.442695
  %v161 = vpow.pop %v160
  %v162 = vmul.f32 %v88, 1.442695
  %v163 = vpow.pop %v162
  %v164 = vmul.f32 %v89, 1.442695
  %v165 = vpow.pop %v164
  %v166 = vmul.f32 %v90, 1.442695
  %v167 = vpow.pop %v166
  %v168 = vmul.f32 %v91, 1.442695
  %v169 = vpow.pop %v168
  %v170 = vmul.f32 %v92, 1.442695
  %v171 = vpow.pop %v170
  %v172 = vmul.f32 %v93, 1.442695
  %v173 = vpow.pop %v172
  %v174 = vmul.f32 %v94, 1.442695
  %v175 = vpow.pop %v174
  %v176 = vmul.f32 %v95, 1.442695
  %v177 = vpow.pop %v176
  %v178 = vmul.f32 %v96, 1.442695
  %v179 = vpow.pop %v178
  %v180 = vmul.f32 %v97, 1.442695
  %v181 = vpow.pop %v180
  %v182 = vmul.f32 %v98, 1.442695
  %v183 = vpow.pop %v182
  %v184 = vmul.f32 %v99, 1.442695
  %v185 = vpow.pop %v184
  %v186 = vmul.f32 %v100, 1.442695
  %v187 = vpow.pop %v186
  %v188 = vmul.f32 %v101, 1.442695
  %v189 = vpow.pop %v188
  %v190 = vmul.f32 %v102, 1.442695
  %v191 = vpow.pop %v190
  %v192 = vmul.f32 %v103, 1.442695
  %v193 = vpow.pop %v192
  %v194 = vmul.f32 %v104, 1.442695
  %v195 = vpow.pop %v194
  %v196 = vmul.f32 %v105, 1.442695
  %v197 = vpow.pop %v196
  %v198 = vmul.f32 %v106, 1.442695
  %v199 = vpow.pop %v198
  %v200 = vmul.f32 %v107, 1.442695
  %v201 = vpow.pop %v200
  %v202 = vmul.f32 %v108, 1.442695
  %v203 = vpow.pop %v202
  %v204 = vmul.f32 %v109, 1.442695
  %v205 = vpow.pop %v204
  %v206 = vmul.f32 %v110, 1.442695
  %v207 = vpow.pop %v206
  %v208 = vmul.f32 %v111, 1.442695
  %v209 = vpow.pop %v208
  %v210 = vmul.f32 %v112, 1.442695
  %v211 = vpow.pop %v210
  %v212 = vmul.f32 %v113, 1.442695
  %v213 = vpow.pop %v212
  %v214 = vmul.f32 %v114, 1.442695
  %v215 = vpow.pop %v214
  %v216 = vmul.f32 %v115, 1.442695
  %v217 = vpow.pop %v216
  %v218 = vmul.f32 %v116, 1.442695
  %v219 = vpow.pop %v218
  %v220 = vmul.f32 %v117, 1.442695
  %v221 = vpow.pop %v220
  %v222 = vmul.f32 %v118, 1.442695
  %v223 = vpow.pop %v222
  %v224 = vmul.f32 %v119, 1.442695
  %v225 = vpow.pop %v224
  %v226 = vmul.f32 %v120, 1.442695
  %v227 = vpow.pop %v226
  %v228 = vmul.f32 %v121, 1.442695
  %v229 = vpow.pop %v228
  %v230 = vmul.f32 %v122, 1.442695
  %v231 = vpow.pop %v230
  %v232 = vmul.f32 %v123, 1.442695
  %v233 = vpow.pop %v232
  %v234 = vmul.f32 %v124, 1.442695
  %v235 = vpow.pop %v234
  %v236 = vmul.f32 %v125, 1.442695
  %v237 = vpow.pop %v236
  %v238 = vmul.f32 %v126, 1.442695
  %v239 = vpow.pop %v238
  %v240 = vmul.f32 %v127, 1.442695
  %v241 = vpow.pop %v240
  %v242 = vmul.f32 %v128, 1.442695
  %v243 = vpow.pop %v242
  %v244 = vmul.f32 %v129, 1.442695
  %v245 = vpow.pop %v244
  %v246 = vmul.f32 %v130, 1.442695
  %v247 = vpow.pop %v246
  %v248 = vmul.f32 %v131, 1.442695
  %v249 = vpow.pop %v248
  %v250 = vmul.f32 %v132, 1.442695
  %v251 = vpow.pop %v250
  %v252 = vmul.f32 %v133, 1.442695
  %v253 = vpow.pop %v252
  %v254 = vmul.f32 %v134, 1.442695
  %v255 = vpow.pop %v254
  %v256 = vmul.f32 %v135, 1.442695
  %v257 = vpow.pop %v256
  %v258 = vmul.f32 %v136, 1.442695
  %v259 = vpow.pop %v258
  %v260 = vmul.f32 %v137, 1.442695
  %v261 = vpow.pop %v260
  %v262 = vmul.f32 %v138, 1.442695
  %v263 = vpow.pop %v262
  %v264 = vmul.f32 %v139, 1.442695
  %v265 = vpow.pop %v264
  %v266 = vmul.f32 %v140, 1.442695
  %v267 = vpow.pop %v266
  %v268 = vmul.f32 %v141, 1.442695
  %v269 = vpow.pop %v268
  %v270 = vadd.f32 %v143, 1.0
  %v271 = vadd.f32 %v145, 1.0
  %v272 = vadd.f32 %v147, 1.0
  %v273 = vadd.f32 %v149, 1.0
  %v274 = vadd.f32 %v151, 1.0
  %v275 = vadd.f32 %v153, 1.0
  %v276 = vadd.f32 %v155, 1.0
  %v277 = vadd.f32 %v157, 1.0
  %v278 = vadd.f32 %v159, 1.0
  %v279 = vadd.f32 %v161, 1.0
  %v280 = vadd.f32 %v163, 1.0
  %v281 = vadd.f32 %v165, 1.0
  %v282 = vadd.f32 %v167, 1.0
  %v283 = vadd.f32 %v169, 1.0
  %v284 = vadd.f32 %v171, 1.0
  %v285 = vadd.f32 %v173, 1.0
  %v286 = vadd.f32 %v175, 1.0
  %v287 = vadd.f32 %v177, 1.0
  %v288 = vadd.f32 %v179, 1.0
  %v289 = vadd.f32 %v181, 1.0
  %v290 = vadd.f32 %v183, 1.0
  %v291 = vadd.f32 %v185, 1.0
  %v292 = vadd.f32 %v187, 1.0
  %v293 = vadd.f32 %v189, 1.0
  %v294 = vadd.f32 %v191, 1.0
  %v295 = vadd.f32 %v193, 1.0
  %v296 = vadd.f32 %v195, 1.0
  %v297 = vadd.f32 %v197, 1.0
  %v298 = vadd.f32 %v199, 1.0
  %v299 = vadd.f32 %v201, 1.0
  %v300 = vadd.f32 %v203, 1.0
  %v301 = vadd.f32 %v205, 1.0
  %v302 = vadd.f32 %v207, 1.0
  %v303 = vadd.f32 %v209, 1.0
  %v304 = vadd.f32 %v211, 1.0
  %v305 = vadd.f32 %v213, 1.0
  %v306 = vadd.f32 %v215, 1.0
  %v307 = vadd.f32 %v217, 1.0
  %v308 = vadd.f32 %v219, 1.0
  %v309 = vadd.f32 %v221, 1.0
  %v310 = vadd.f32 %v223, 1.0
  %v311 = vadd.f32 %v225, 1.0
  %v312 = vadd.f32 %v227, 1.0
  %v313 = vadd.f32 %v229, 1.0
  %v314 = vadd.f32 %v231, 1.0
  %v315 = vadd.f32 %v233, 1.0
  %v316 = vadd.f32 %v235, 1.0
  %v317 = vadd.f32 %v237, 1.0
  %v318 = vadd.f32 %v239, 1.0
  %v319 = vadd.f32 %v241, 1.0
  %v320 = vadd.f32 %v243, 1.0
  %v321 = vadd.f32 %v245, 1.0
  %v322 = vadd.f32 %v247, 1.0
  %v323 = vadd.f32 %v249, 1.0
  %v324 = vadd.f32 %v251, 1.0
  %v325 = vadd.f32 %v253, 1.0
  %v326 = vadd.f32 %v255, 1.0
  %v327 = vadd.f32 %v257, 1.0
  %v328 = vadd.f32 %v259, 1.0
  %v329 = vadd.f32 %v261, 1.0
  %v330 = vadd.f32 %v263, 1.0
  %v331 = vadd.f32 %v265, 1.0
  %v332 = vadd.f32 %v267, 1.0
  %v333 = vadd.f32 %v269, 1.0
  %v334 = vrcp.pop %v270
  %v335 = vmul.f32 %v270, %v334
  %v336 = vsub.f32 1.0, %v335
  %v337 = vmul.f32 %v334, %v336
  %v338 = vadd.f32 %v334, %v337
  %vm339 = vweird.f32 %v270
  %vm340 = vweird.f32 %v334
  %vm341 = vmor %vm339, %vm340
  %v342 = vsel %vm341, %v334, %v338
  %v343 = vand.u32 2147483647, %v270
  %vm344 = vcmp.eq.f32.partialorder %v343, 8.507059e+37
  %v345 = vand.u32 %v270, 2147483648
  %v346 = vor.u32 1.1754944e-38, %v345
  %v347 = vsel %vm344, %v346, %v342
  %v348 = vmul.f32 1.0, %v347
  %v349 = vrcp.pop %v271
  %v350 = vmul.f32 %v271, %v349
  %v351 = vsub.f32 1.0, %v350
  %v352 = vmul.f32 %v349, %v351
  %v353 = vadd.f32 %v349, %v352
  %vm354 = vweird.f32 %v271
  %vm355 = vweird.f32 %v349
  %vm356 = vmor %vm354, %vm355
  %v357 = vsel %vm356, %v349, %v353
  %v358 = vand.u32 2147483647, %v271
  %vm359 = vcmp.eq.f32.partialorder %v358, 8.507059e+37
  %v360 = vand.u32 %v271, 2147483648
  %v361 = vor.u32 1.1754944e-38, %v360
  %v362 = vsel %vm359, %v361, %v357
  %v363 = vmul.f32 1.0, %v362
  %v364 = vrcp.pop %v272
  %v365 = vmul.f32 %v272, %v364
  %v366 = vsub.f32 1.0, %v365
  %v367 = vmul.f32 %v364, %v366
  %v368 = vadd.f32 %v364, %v367
  %vm369 = vweird.f32 %v272
  %vm370 = vweird.f32 %v364
  %vm371 = vmor %vm369, %vm370
  %v372 = vsel %vm371, %v364, %v368
  %v373 = vand.u32 2147483647, %v272
  %vm374 = vcmp.eq.f32.partialorder %v373, 8.507059e+37
  %v375 = vand.u32 %v272, 2147483648
  %v376 = vor.u32 1.1754944e-38, %v375
  %v377 = vsel %vm374, %v376, %v372
  %v378 = vmul.f32 1.0, %v377
  %v379 = vrcp.pop %v273
  %v380 = vmul.f32 %v273, %v379
  %v381 = vsub.f32 1.0, %v380
  %v382 = vmul.f32 %v379, %v381
  %v383 = vadd.f32 %v379, %v382
  %vm384 = vweird.f32 %v273
  %vm385 = vweird.f32 %v379
  %vm386 = vmor %vm384, %vm385
  %v387 = vsel %vm386, %v379, %v383
  %v388 = vand.u32 2147483647, %v273
  %vm389 = vcmp.eq.f32.partialorder %v388, 8.507059e+37
  %v390 = vand.u32 %v273, 2147483648
  %v391 = vor.u32 1.1754944e-38, %v390
  %v392 = vsel %vm389, %v391, %v387
  %v393 = vmul.f32 1.0, %v392
  %v394 = vrcp.pop %v274
  %v395 = vmul.f32 %v274, %v394
  %v396 = vsub.f32 1.0, %v395
  %v397 = vmul.f32 %v394, %v396
  %v398 = vadd.f32 %v394, %v397
  %vm399 = vweird.f32 %v274
  %vm400 = vweird.f32 %v394
  %vm401 = vmor %vm399, %vm400
  %v402 = vsel %vm401, %v394, %v398
  %v403 = vand.u32 2147483647, %v274
  %vm404 = vcmp.eq.f32.partialorder %v403, 8.507059e+37
  %v405 = vand.u32 %v274, 2147483648
  %v406 = vor.u32 1.1754944e-38, %v405
  %v407 = vsel %vm404, %v406, %v402
  %v408 = vmul.f32 1.0, %v407
  %v409 = vrcp.pop %v275
  %v410 = vmul.f32 %v275, %v409
  %v411 = vsub.f32 1.0, %v410
  %v412 = vmul.f32 %v409, %v411
  %v413 = vadd.f32 %v409, %v412
  %vm414 = vweird.f32 %v275
  %vm415 = vweird.f32 %v409
  %vm416 = vmor %vm414, %vm415
  %v417 = vsel %vm416, %v409, %v413
  %v418 = vand.u32 2147483647, %v275
  %vm419 = vcmp.eq.f32.partialorder %v418, 8.507059e+37
  %v420 = vand.u32 %v275, 2147483648
  %v421 = vor.u32 1.1754944e-38, %v420
  %v422 = vsel %vm419, %v421, %v417
  %v423 = vmul.f32 1.0, %v422
  %v424 = vrcp.pop %v276
  %v425 = vmul.f32 %v276, %v424
  %v426 = vsub.f32 1.0, %v425
  %v427 = vmul.f32 %v424, %v426
  %v428 = vadd.f32 %v424, %v427
  %vm429 = vweird.f32 %v276
  %vm430 = vweird.f32 %v424
  %vm431 = vmor %vm429, %vm430
  %v432 = vsel %vm431, %v424, %v428
  %v433 = vand.u32 2147483647, %v276
  %vm434 = vcmp.eq.f32.partialorder %v433, 8.507059e+37
  %v435 = vand.u32 %v276, 2147483648
  %v436 = vor.u32 1.1754944e-38, %v435
  %v437 = vsel %vm434, %v436, %v432
  %v438 = vmul.f32 1.0, %v437
  %v439 = vrcp.pop %v277
  %v440 = vmul.f32 %v277, %v439
  %v441 = vsub.f32 1.0, %v440
  %v442 = vmul.f32 %v439, %v441
  %v443 = vadd.f32 %v439, %v442
  %vm444 = vweird.f32 %v277
  %vm445 = vweird.f32 %v439
  %vm446 = vmor %vm444, %vm445
  %v447 = vsel %vm446, %v439, %v443
  %v448 = vand.u32 2147483647, %v277
  %vm449 = vcmp.eq.f32.partialorder %v448, 8.507059e+37
  %v450 = vand.u32 %v277, 2147483648
  %v451 = vor.u32 1.1754944e-38, %v450
  %v452 = vsel %vm449, %v451, %v447
  %v453 = vmul.f32 1.0, %v452
  %v454 = vrcp.pop %v278
  %v455 = vmul.f32 %v278, %v454
  %v456 = vsub.f32 1.0, %v455
  %v457 = vmul.f32 %v454, %v456
  %v458 = vadd.f32 %v454, %v457
  %vm459 = vweird.f32 %v278
  %vm460 = vweird.f32 %v454
  %vm461 = vmor %vm459, %vm460
  %v462 = vsel %vm461, %v454, %v458
  %v463 = vand.u32 2147483647, %v278
  %vm464 = vcmp.eq.f32.partialorder %v463, 8.507059e+37
  %v465 = vand.u32 %v278, 2147483648
  %v466 = vor.u32 1.1754944e-38, %v465
  %v467 = vsel %vm464, %v466, %v462
  %v468 = vmul.f32 1.0, %v467
  %v469 = vrcp.pop %v279
  %v470 = vmul.f32 %v279, %v469
  %v471 = vsub.f32 1.0, %v470
  %v472 = vmul.f32 %v469, %v471
  %v473 = vadd.f32 %v469, %v472
  %vm474 = vweird.f32 %v279
  %vm475 = vweird.f32 %v469
  %vm476 = vmor %vm474, %vm475
  %v477 = vsel %vm476, %v469, %v473
  %v478 = vand.u32 2147483647, %v279
  %vm479 = vcmp.eq.f32.partialorder %v478, 8.507059e+37
  %v480 = vand.u32 %v279, 2147483648
  %v481 = vor.u32 1.1754944e-38, %v480
  %v482 = vsel %vm479, %v481, %v477
  %v483 = vmul.f32 1.0, %v482
  %v484 = vrcp.pop %v280
  %v485 = vmul.f32 %v280, %v484
  %v486 = vsub.f32 1.0, %v485
  %v487 = vmul.f32 %v484, %v486
  %v488 = vadd.f32 %v484, %v487
  %vm489 = vweird.f32 %v280
  %vm490 = vweird.f32 %v484
  %vm491 = vmor %vm489, %vm490
  %v492 = vsel %vm491, %v484, %v488
  %v493 = vand.u32 2147483647, %v280
  %vm494 = vcmp.eq.f32.partialorder %v493, 8.507059e+37
  %v495 = vand.u32 %v280, 2147483648
  %v496 = vor.u32 1.1754944e-38, %v495
  %v497 = vsel %vm494, %v496, %v492
  %v498 = vmul.f32 1.0, %v497
  %v499 = vrcp.pop %v281
  %v500 = vmul.f32 %v281, %v499
  %v501 = vsub.f32 1.0, %v500
  %v502 = vmul.f32 %v499, %v501
  %v503 = vadd.f32 %v499, %v502
  %vm504 = vweird.f32 %v281
  %vm505 = vweird.f32 %v499
  %vm506 = vmor %vm504, %vm505
  %v507 = vsel %vm506, %v499, %v503
  %v508 = vand.u32 2147483647, %v281
  %vm509 = vcmp.eq.f32.partialorder %v508, 8.507059e+37
  %v510 = vand.u32 %v281, 2147483648
  %v511 = vor.u32 1.1754944e-38, %v510
  %v512 = vsel %vm509, %v511, %v507
  %v513 = vmul.f32 1.0, %v512
  %v514 = vrcp.pop %v282
  %v515 = vmul.f32 %v282, %v514
  %v516 = vsub.f32 1.0, %v515
  %v517 = vmul.f32 %v514, %v516
  %v518 = vadd.f32 %v514, %v517
  %vm519 = vweird.f32 %v282
  %vm520 = vweird.f32 %v514
  %vm521 = vmor %vm519, %vm520
  %v522 = vsel %vm521, %v514, %v518
  %v523 = vand.u32 2147483647, %v282
  %vm524 = vcmp.eq.f32.partialorder %v523, 8.507059e+37
  %v525 = vand.u32 %v282, 2147483648
  %v526 = vor.u32 1.1754944e-38, %v525
  %v527 = vsel %vm524, %v526, %v522
  %v528 = vmul.f32 1.0, %v527
  %v529 = vrcp.pop %v283
  %v530 = vmul.f32 %v283, %v529
  %v531 = vsub.f32 1.0, %v530
  %v532 = vmul.f32 %v529, %v531
  %v533 = vadd.f32 %v529, %v532
  %vm534 = vweird.f32 %v283
  %vm535 = vweird.f32 %v529
  %vm536 = vmor %vm534, %vm535
  %v537 = vsel %vm536, %v529, %v533
  %v538 = vand.u32 2147483647, %v283
  %vm539 = vcmp.eq.f32.partialorder %v538, 8.507059e+37
  %v540 = vand.u32 %v283, 2147483648
  %v541 = vor.u32 1.1754944e-38, %v540
  %v542 = vsel %vm539, %v541, %v537
  %v543 = vmul.f32 1.0, %v542
  %v544 = vrcp.pop %v284
  %v545 = vmul.f32 %v284, %v544
  %v546 = vsub.f32 1.0, %v545
  %v547 = vmul.f32 %v544, %v546
  %v548 = vadd.f32 %v544, %v547
  %vm549 = vweird.f32 %v284
  %vm550 = vweird.f32 %v544
  %vm551 = vmor %vm549, %vm550
  %v552 = vsel %vm551, %v544, %v548
  %v553 = vand.u32 2147483647, %v284
  %vm554 = vcmp.eq.f32.partialorder %v553, 8.507059e+37
  %v555 = vand.u32 %v284, 2147483648
  %v556 = vor.u32 1.1754944e-38, %v555
  %v557 = vsel %vm554, %v556, %v552
  %v558 = vmul.f32 1.0, %v557
  %v559 = vrcp.pop %v285
  %v560 = vmul.f32 %v285, %v559
  %v561 = vsub.f32 1.0, %v560
  %v562 = vmul.f32 %v559, %v561
  %v563 = vadd.f32 %v559, %v562
  %vm564 = vweird.f32 %v285
  %vm565 = vweird.f32 %v559
  %vm566 = vmor %vm564, %vm565
  %v567 = vsel %vm566, %v559, %v563
  %v568 = vand.u32 2147483647, %v285
  %vm569 = vcmp.eq.f32.partialorder %v568, 8.507059e+37
  %v570 = vand.u32 %v285, 2147483648
  %v571 = vor.u32 1.1754944e-38, %v570
  %v572 = vsel %vm569, %v571, %v567
  %v573 = vmul.f32 1.0, %v572
  %v574 = vrcp.pop %v286
  %v575 = vmul.f32 %v286, %v574
  %v576 = vsub.f32 1.0, %v575
  %v577 = vmul.f32 %v574, %v576
  %v578 = vadd.f32 %v574, %v577
  %vm579 = vweird.f32 %v286
  %vm580 = vweird.f32 %v574
  %vm581 = vmor %vm579, %vm580
  %v582 = vsel %vm581, %v574, %v578
  %v583 = vand.u32 2147483647, %v286
  %vm584 = vcmp.eq.f32.partialorder %v583, 8.507059e+37
  %v585 = vand.u32 %v286, 2147483648
  %v586 = vor.u32 1.1754944e-38, %v585
  %v587 = vsel %vm584, %v586, %v582
  %v588 = vmul.f32 1.0, %v587
  %v589 = vrcp.pop %v287
  %v590 = vmul.f32 %v287, %v589
  %v591 = vsub.f32 1.0, %v590
  %v592 = vmul.f32 %v589, %v591
  %v593 = vadd.f32 %v589, %v592
  %vm594 = vweird.f32 %v287
  %vm595 = vweird.f32 %v589
  %vm596 = vmor %vm594, %vm595
  %v597 = vsel %vm596, %v589, %v593
  %v598 = vand.u32 2147483647, %v287
  %vm599 = vcmp.eq.f32.partialorder %v598, 8.507059e+37
  %v600 = vand.u32 %v287, 2147483648
  %v601 = vor.u32 1.1754944e-38, %v600
  %v602 = vsel %vm599, %v601, %v597
  %v603 = vmul.f32 1.0, %v602
  %v604 = vrcp.pop %v288
  %v605 = vmul.f32 %v288, %v604
  %v606 = vsub.f32 1.0, %v605
  %v607 = vmul.f32 %v604, %v606
  %v608 = vadd.f32 %v604, %v607
  %vm609 = vweird.f32 %v288
  %vm610 = vweird.f32 %v604
  %vm611 = vmor %vm609, %vm610
  %v612 = vsel %vm611, %v604, %v608
  %v613 = vand.u32 2147483647, %v288
  %vm614 = vcmp.eq.f32.partialorder %v613, 8.507059e+37
  %v615 = vand.u32 %v288, 2147483648
  %v616 = vor.u32 1.1754944e-38, %v615
  %v617 = vsel %vm614, %v616, %v612
  %v618 = vmul.f32 1.0, %v617
  %v619 = vrcp.pop %v289
  %v620 = vmul.f32 %v289, %v619
  %v621 = vsub.f32 1.0, %v620
  %v622 = vmul.f32 %v619, %v621
  %v623 = vadd.f32 %v619, %v622
  %vm624 = vweird.f32 %v289
  %vm625 = vweird.f32 %v619
  %vm626 = vmor %vm624, %vm625
  %v627 = vsel %vm626, %v619, %v623
  %v628 = vand.u32 2147483647, %v289
  %vm629 = vcmp.eq.f32.partialorder %v628, 8.507059e+37
  %v630 = vand.u32 %v289, 2147483648
  %v631 = vor.u32 1.1754944e-38, %v630
  %v632 = vsel %vm629, %v631, %v627
  %v633 = vmul.f32 1.0, %v632
  %v634 = vrcp.pop %v290
  %v635 = vmul.f32 %v290, %v634
  %v636 = vsub.f32 1.0, %v635
  %v637 = vmul.f32 %v634, %v636
  %v638 = vadd.f32 %v634, %v637
  %vm639 = vweird.f32 %v290
  %vm640 = vweird.f32 %v634
  %vm641 = vmor %vm639, %vm640
  %v642 = vsel %vm641, %v634, %v638
  %v643 = vand.u32 2147483647, %v290
  %vm644 = vcmp.eq.f32.partialorder %v643, 8.507059e+37
  %v645 = vand.u32 %v290, 2147483648
  %v646 = vor.u32 1.1754944e-38, %v645
  %v647 = vsel %vm644, %v646, %v642
  %v648 = vmul.f32 1.0, %v647
  %v649 = vrcp.pop %v291
  %v650 = vmul.f32 %v291, %v649
  %v651 = vsub.f32 1.0, %v650
  %v652 = vmul.f32 %v649, %v651
  %v653 = vadd.f32 %v649, %v652
  %vm654 = vweird.f32 %v291
  %vm655 = vweird.f32 %v649
  %vm656 = vmor %vm654, %vm655
  %v657 = vsel %vm656, %v649, %v653
  %v658 = vand.u32 2147483647, %v291
  %vm659 = vcmp.eq.f32.partialorder %v658, 8.507059e+37
  %v660 = vand.u32 %v291, 2147483648
  %v661 = vor.u32 1.1754944e-38, %v660
  %v662 = vsel %vm659, %v661, %v657
  %v663 = vmul.f32 1.0, %v662
  %v664 = vrcp.pop %v292
  %v665 = vmul.f32 %v292, %v664
  %v666 = vsub.f32 1.0, %v665
  %v667 = vmul.f32 %v664, %v666
  %v668 = vadd.f32 %v664, %v667
  %vm669 = vweird.f32 %v292
  %vm670 = vweird.f32 %v664
  %vm671 = vmor %vm669, %vm670
  %v672 = vsel %vm671, %v664, %v668
  %v673 = vand.u32 2147483647, %v292
  %vm674 = vcmp.eq.f32.partialorder %v673, 8.507059e+37
  %v675 = vand.u32 %v292, 2147483648
  %v676 = vor.u32 1.1754944e-38, %v675
  %v677 = vsel %vm674, %v676, %v672
  %v678 = vmul.f32 1.0, %v677
  %v679 = vrcp.pop %v293
  %v680 = vmul.f32 %v293, %v679
  %v681 = vsub.f32 1.0, %v680
  %v682 = vmul.f32 %v679, %v681
  %v683 = vadd.f32 %v679, %v682
  %vm684 = vweird.f32 %v293
  %vm685 = vweird.f32 %v679
  %vm686 = vmor %vm684, %vm685
  %v687 = vsel %vm686, %v679, %v683
  %v688 = vand.u32 2147483647, %v293
  %vm689 = vcmp.eq.f32.partialorder %v688, 8.507059e+37
  %v690 = vand.u32 %v293, 2147483648
  %v691 = vor.u32 1.1754944e-38, %v690
  %v692 = vsel %vm689, %v691, %v687
  %v693 = vmul.f32 1.0, %v692
  %v694 = vrcp.pop %v294
  %v695 = vmul.f32 %v294, %v694
  %v696 = vsub.f32 1.0, %v695
  %v697 = vmul.f32 %v694, %v696
  %v698 = vadd.f32 %v694, %v697
  %vm699 = vweird.f32 %v294
  %vm700 = vweird.f32 %v694
  %vm701 = vmor %vm699, %vm700
  %v702 = vsel %vm701, %v694, %v698
  %v703 = vand.u32 2147483647, %v294
  %vm704 = vcmp.eq.f32.partialorder %v703, 8.507059e+37
  %v705 = vand.u32 %v294, 2147483648
  %v706 = vor.u32 1.1754944e-38, %v705
  %v707 = vsel %vm704, %v706, %v702
  %v708 = vmul.f32 1.0, %v707
  %v709 = vrcp.pop %v295
  %v710 = vmul.f32 %v295, %v709
  %v711 = vsub.f32 1.0, %v710
  %v712 = vmul.f32 %v709, %v711
  %v713 = vadd.f32 %v709, %v712
  %vm714 = vweird.f32 %v295
  %vm715 = vweird.f32 %v709
  %vm716 = vmor %vm714, %vm715
  %v717 = vsel %vm716, %v709, %v713
  %v718 = vand.u32 2147483647, %v295
  %vm719 = vcmp.eq.f32.partialorder %v718, 8.507059e+37
  %v720 = vand.u32 %v295, 2147483648
  %v721 = vor.u32 1.1754944e-38, %v720
  %v722 = vsel %vm719, %v721, %v717
  %v723 = vmul.f32 1.0, %v722
  %v724 = vrcp.pop %v296
  %v725 = vmul.f32 %v296, %v724
  %v726 = vsub.f32 1.0, %v725
  %v727 = vmul.f32 %v724, %v726
  %v728 = vadd.f32 %v724, %v727
  %vm729 = vweird.f32 %v296
  %vm730 = vweird.f32 %v724
  %vm731 = vmor %vm729, %vm730
  %v732 = vsel %vm731, %v724, %v728
  %v733 = vand.u32 2147483647, %v296
  %vm734 = vcmp.eq.f32.partialorder %v733, 8.507059e+37
  %v735 = vand.u32 %v296, 2147483648
  %v736 = vor.u32 1.1754944e-38, %v735
  %v737 = vsel %vm734, %v736, %v732
  %v738 = vmul.f32 1.0, %v737
  %v739 = vrcp.pop %v297
  %v740 = vmul.f32 %v297, %v739
  %v741 = vsub.f32 1.0, %v740
  %v742 = vmul.f32 %v739, %v741
  %v743 = vadd.f32 %v739, %v742
  %vm744 = vweird.f32 %v297
  %vm745 = vweird.f32 %v739
  %vm746 = vmor %vm744, %vm745
  %v747 = vsel %vm746, %v739, %v743
  %v748 = vand.u32 2147483647, %v297
  %vm749 = vcmp.eq.f32.partialorder %v748, 8.507059e+37
  %v750 = vand.u32 %v297, 2147483648
  %v751 = vor.u32 1.1754944e-38, %v750
  %v752 = vsel %vm749, %v751, %v747
  %v753 = vmul.f32 1.0, %v752
  %v754 = vrcp.pop %v298
  %v755 = vmul.f32 %v298, %v754
  %v756 = vsub.f32 1.0, %v755
  %v757 = vmul.f32 %v754, %v756
  %v758 = vadd.f32 %v754, %v757
  %vm759 = vweird.f32 %v298
  %vm760 = vweird.f32 %v754
  %vm761 = vmor %vm759, %vm760
  %v762 = vsel %vm761, %v754, %v758
  %v763 = vand.u32 2147483647, %v298
  %vm764 = vcmp.eq.f32.partialorder %v763, 8.507059e+37
  %v765 = vand.u32 %v298, 2147483648
  %v766 = vor.u32 1.1754944e-38, %v765
  %v767 = vsel %vm764, %v766, %v762
  %v768 = vmul.f32 1.0, %v767
  %v769 = vrcp.pop %v299
  %v770 = vmul.f32 %v299, %v769
  %v771 = vsub.f32 1.0, %v770
  %v772 = vmul.f32 %v769, %v771
  %v773 = vadd.f32 %v769, %v772
  %vm774 = vweird.f32 %v299
  %vm775 = vweird.f32 %v769
  %vm776 = vmor %vm774, %vm775
  %v777 = vsel %vm776, %v769, %v773
  %v778 = vand.u32 2147483647, %v299
  %vm779 = vcmp.eq.f32.partialorder %v778, 8.507059e+37
  %v780 = vand.u32 %v299, 2147483648
  %v781 = vor.u32 1.1754944e-38, %v780
  %v782 = vsel %vm779, %v781, %v777
  %v783 = vmul.f32 1.0, %v782
  %v784 = vrcp.pop %v300
  %v785 = vmul.f32 %v300, %v784
  %v786 = vsub.f32 1.0, %v785
  %v787 = vmul.f32 %v784, %v786
  %v788 = vadd.f32 %v784, %v787
  %vm789 = vweird.f32 %v300
  %vm790 = vweird.f32 %v784
  %vm791 = vmor %vm789, %vm790
  %v792 = vsel %vm791, %v784, %v788
  %v793 = vand.u32 2147483647, %v300
  %vm794 = vcmp.eq.f32.partialorder %v793, 8.507059e+37
  %v795 = vand.u32 %v300, 2147483648
  %v796 = vor.u32 1.1754944e-38, %v795
  %v797 = vsel %vm794, %v796, %v792
  %v798 = vmul.f32 1.0, %v797
  %v799 = vrcp.pop %v301
  %v800 = vmul.f32 %v301, %v799
  %v801 = vsub.f32 1.0, %v800
  %v802 = vmul.f32 %v799, %v801
  %v803 = vadd.f32 %v799, %v802
  %vm804 = vweird.f32 %v301
  %vm805 = vweird.f32 %v799
  %vm806 = vmor %vm804, %vm805
  %v807 = vsel %vm806, %v799, %v803
  %v808 = vand.u32 2147483647, %v301
  %vm809 = vcmp.eq.f32.partialorder %v808, 8.507059e+37
  %v810 = vand.u32 %v301, 2147483648
  %v811 = vor.u32 1.1754944e-38, %v810
  %v812 = vsel %vm809, %v811, %v807
  %v813 = vmul.f32 1.0, %v812
  %v814 = vrcp.pop %v302
  %v815 = vmul.f32 %v302, %v814
  %v816 = vsub.f32 1.0, %v815
  %v817 = vmul.f32 %v814, %v816
  %v818 = vadd.f32 %v814, %v817
  %vm819 = vweird.f32 %v302
  %vm820 = vweird.f32 %v814
  %vm821 = vmor %vm819, %vm820
  %v822 = vsel %vm821, %v814, %v818
  %v823 = vand.u32 2147483647, %v302
  %vm824 = vcmp.eq.f32.partialorder %v823, 8.507059e+37
  %v825 = vand.u32 %v302, 2147483648
  %v826 = vor.u32 1.1754944e-38, %v825
  %v827 = vsel %vm824, %v826, %v822
  %v828 = vmul.f32 1.0, %v827
  %v829 = vrcp.pop %v303
  %v830 = vmul.f32 %v303, %v829
  %v831 = vsub.f32 1.0, %v830
  %v832 = vmul.f32 %v829, %v831
  %v833 = vadd.f32 %v829, %v832
  %vm834 = vweird.f32 %v303
  %vm835 = vweird.f32 %v829
  %vm836 = vmor %vm834, %vm835
  %v837 = vsel %vm836, %v829, %v833
  %v838 = vand.u32 2147483647, %v303
  %vm839 = vcmp.eq.f32.partialorder %v838, 8.507059e+37
  %v840 = vand.u32 %v303, 2147483648
  %v841 = vor.u32 1.1754944e-38, %v840
  %v842 = vsel %vm839, %v841, %v837
  %v843 = vmul.f32 1.0, %v842
  %v844 = vrcp.pop %v304
  %v845 = vmul.f32 %v304, %v844
  %v846 = vsub.f32 1.0, %v845
  %v847 = vmul.f32 %v844, %v846
  %v848 = vadd.f32 %v844, %v847
  %vm849 = vweird.f32 %v304
  %vm850 = vweird.f32 %v844
  %vm851 = vmor %vm849, %vm850
  %v852 = vsel %vm851, %v844, %v848
  %v853 = vand.u32 2147483647, %v304
  %vm854 = vcmp.eq.f32.partialorder %v853, 8.507059e+37
  %v855 = vand.u32 %v304, 2147483648
  %v856 = vor.u32 1.1754944e-38, %v855
  %v857 = vsel %vm854, %v856, %v852
  %v858 = vmul.f32 1.0, %v857
  %v859 = vrcp.pop %v305
  %v860 = vmul.f32 %v305, %v859
  %v861 = vsub.f32 1.0, %v860
  %v862 = vmul.f32 %v859, %v861
  %v863 = vadd.f32 %v859, %v862
  %vm864 = vweird.f32 %v305
  %vm865 = vweird.f32 %v859
  %vm866 = vmor %vm864, %vm865
  %v867 = vsel %vm866, %v859, %v863
  %v868 = vand.u32 2147483647, %v305
  %vm869 = vcmp.eq.f32.partialorder %v868, 8.507059e+37
  %v870 = vand.u32 %v305, 2147483648
  %v871 = vor.u32 1.1754944e-38, %v870
  %v872 = vsel %vm869, %v871, %v867
  %v873 = vmul.f32 1.0, %v872
  %v874 = vrcp.pop %v306
  %v875 = vmul.f32 %v306, %v874
  %v876 = vsub.f32 1.0, %v875
  %v877 = vmul.f32 %v874, %v876
  %v878 = vadd.f32 %v874, %v877
  %vm879 = vweird.f32 %v306
  %vm880 = vweird.f32 %v874
  %vm881 = vmor %vm879, %vm880
  %v882 = vsel %vm881, %v874, %v878
  %v883 = vand.u32 2147483647, %v306
  %vm884 = vcmp.eq.f32.partialorder %v883, 8.507059e+37
  %v885 = vand.u32 %v306, 2147483648
  %v886 = vor.u32 1.1754944e-38, %v885
  %v887 = vsel %vm884, %v886, %v882
  %v888 = vmul.f32 1.0, %v887
  %v889 = vrcp.pop %v307
  %v890 = vmul.f32 %v307, %v889
  %v891 = vsub.f32 1.0, %v890
  %v892 = vmul.f32 %v889, %v891
  %v893 = vadd.f32 %v889, %v892
  %vm894 = vweird.f32 %v307
  %vm895 = vweird.f32 %v889
  %vm896 = vmor %vm894, %vm895
  %v897 = vsel %vm896, %v889, %v893
  %v898 = vand.u32 2147483647, %v307
  %vm899 = vcmp.eq.f32.partialorder %v898, 8.507059e+37
  %v900 = vand.u32 %v307, 2147483648
  %v901 = vor.u32 1.1754944e-38, %v900
  %v902 = vsel %vm899, %v901, %v897
  %v903 = vmul.f32 1.0, %v902
  %v904 = vrcp.pop %v308
  %v905 = vmul.f32 %v308, %v904
  %v906 = vsub.f32 1.0, %v905
  %v907 = vmul.f32 %v904, %v906
  %v908 = vadd.f32 %v904, %v907
  %vm909 = vweird.f32 %v308
  %vm910 = vweird.f32 %v904
  %vm911 = vmor %vm909, %vm910
  %v912 = vsel %vm911, %v904, %v908
  %v913 = vand.u32 2147483647, %v308
  %vm914 = vcmp.eq.f32.partialorder %v913, 8.507059e+37
  %v915 = vand.u32 %v308, 2147483648
  %v916 = vor.u32 1.1754944e-38, %v915
  %v917 = vsel %vm914, %v916, %v912
  %v918 = vmul.f32 1.0, %v917
  %v919 = vrcp.pop %v309
  %v920 = vmul.f32 %v309, %v919
  %v921 = vsub.f32 1.0, %v920
  %v922 = vmul.f32 %v919, %v921
  %v923 = vadd.f32 %v919, %v922
  %vm924 = vweird.f32 %v309
  %vm925 = vweird.f32 %v919
  %vm926 = vmor %vm924, %vm925
  %v927 = vsel %vm926, %v919, %v923
  %v928 = vand.u32 2147483647, %v309
  %vm929 = vcmp.eq.f32.partialorder %v928, 8.507059e+37
  %v930 = vand.u32 %v309, 2147483648
  %v931 = vor.u32 1.1754944e-38, %v930
  %v932 = vsel %vm929, %v931, %v927
  %v933 = vmul.f32 1.0, %v932
  %v934 = vrcp.pop %v310
  %v935 = vmul.f32 %v310, %v934
  %v936 = vsub.f32 1.0, %v935
  %v937 = vmul.f32 %v934, %v936
  %v938 = vadd.f32 %v934, %v937
  %vm939 = vweird.f32 %v310
  %vm940 = vweird.f32 %v934
  %vm941 = vmor %vm939, %vm940
  %v942 = vsel %vm941, %v934, %v938
  %v943 = vand.u32 2147483647, %v310
  %vm944 = vcmp.eq.f32.partialorder %v943, 8.507059e+37
  %v945 = vand.u32 %v310, 2147483648
  %v946 = vor.u32 1.1754944e-38, %v945
  %v947 = vsel %vm944, %v946, %v942
  %v948 = vmul.f32 1.0, %v947
  %v949 = vrcp.pop %v311
  %v950 = vmul.f32 %v311, %v949
  %v951 = vsub.f32 1.0, %v950
  %v952 = vmul.f32 %v949, %v951
  %v953 = vadd.f32 %v949, %v952
  %vm954 = vweird.f32 %v311
  %vm955 = vweird.f32 %v949
  %vm956 = vmor %vm954, %vm955
  %v957 = vsel %vm956, %v949, %v953
  %v958 = vand.u32 2147483647, %v311
  %vm959 = vcmp.eq.f32.partialorder %v958, 8.507059e+37
  %v960 = vand.u32 %v311, 2147483648
  %v961 = vor.u32 1.1754944e-38, %v960
  %v962 = vsel %vm959, %v961, %v957
  %v963 = vmul.f32 1.0, %v962
  %v964 = vrcp.pop %v312
  %v965 = vmul.f32 %v312, %v964
  %v966 = vsub.f32 1.0, %v965
  %v967 = vmul.f32 %v964, %v966
  %v968 = vadd.f32 %v964, %v967
  %vm969 = vweird.f32 %v312
  %vm970 = vweird.f32 %v964
  %vm971 = vmor %vm969, %vm970
  %v972 = vsel %vm971, %v964, %v968
  %v973 = vand.u32 2147483647, %v312
  %vm974 = vcmp.eq.f32.partialorder %v973, 8.507059e+37
  %v975 = vand.u32 %v312, 2147483648
  %v976 = vor.u32 1.1754944e-38, %v975
  %v977 = vsel %vm974, %v976, %v972
  %v978 = vmul.f32 1.0, %v977
  %v979 = vrcp.pop %v313
  %v980 = vmul.f32 %v313, %v979
  %v981 = vsub.f32 1.0, %v980
  %v982 = vmul.f32 %v979, %v981
  %v983 = vadd.f32 %v979, %v982
  %vm984 = vweird.f32 %v313
  %vm985 = vweird.f32 %v979
  %vm986 = vmor %vm984, %vm985
  %v987 = vsel %vm986, %v979, %v983
  %v988 = vand.u32 2147483647, %v313
  %vm989 = vcmp.eq.f32.partialorder %v988, 8.507059e+37
  %v990 = vand.u32 %v313, 2147483648
  %v991 = vor.u32 1.1754944e-38, %v990
  %v992 = vsel %vm989, %v991, %v987
  %v993 = vmul.f32 1.0, %v992
  %v994 = vrcp.pop %v314
  %v995 = vmul.f32 %v314, %v994
  %v996 = vsub.f32 1.0, %v995
  %v997 = vmul.f32 %v994, %v996
  %v998 = vadd.f32 %v994, %v997
  %vm999 = vweird.f32 %v314
  %vm1000 = vweird.f32 %v994
  %vm1001 = vmor %vm999, %vm1000
  %v1002 = vsel %vm1001, %v994, %v998
  %v1003 = vand.u32 2147483647, %v314
  %vm1004 = vcmp.eq.f32.partialorder %v1003, 8.507059e+37
  %v1005 = vand.u32 %v314, 2147483648
  %v1006 = vor.u32 1.1754944e-38, %v1005
  %v1007 = vsel %vm1004, %v1006, %v1002
  %v1008 = vmul.f32 1.0, %v1007
  %v1009 = vrcp.pop %v315
  %v1010 = vmul.f32 %v315, %v1009
  %v1011 = vsub.f32 1.0, %v1010
  %v1012 = vmul.f32 %v1009, %v1011
  %v1013 = vadd.f32 %v1009, %v1012
  %vm1014 = vweird.f32 %v315
  %vm1015 = vweird.f32 %v1009
  %vm1016 = vmor %vm1014, %vm1015
  %v1017 = vsel %vm1016, %v1009, %v1013
  %v1018 = vand.u32 2147483647, %v315
  %vm1019 = vcmp.eq.f32.partialorder %v1018, 8.507059e+37
  %v1020 = vand.u32 %v315, 2147483648
  %v1021 = vor.u32 1.1754944e-38, %v1020
  %v1022 = vsel %vm1019, %v1021, %v1017
  %v1023 = vmul.f32 1.0, %v1022
  %v1024 = vrcp.pop %v316
  %v1025 = vmul.f32 %v316, %v1024
  %v1026 = vsub.f32 1.0, %v1025
  %v1027 = vmul.f32 %v1024, %v1026
  %v1028 = vadd.f32 %v1024, %v1027
  %vm1029 = vweird.f32 %v316
  %vm1030 = vweird.f32 %v1024
  %vm1031 = vmor %vm1029, %vm1030
  %v1032 = vsel %vm1031, %v1024, %v1028
  %v1033 = vand.u32 2147483647, %v316
  %vm1034 = vcmp.eq.f32.partialorder %v1033, 8.507059e+37
  %v1035 = vand.u32 %v316, 2147483648
  %v1036 = vor.u32 1.1754944e-38, %v1035
  %v1037 = vsel %vm1034, %v1036, %v1032
  %v1038 = vmul.f32 1.0, %v1037
  %v1039 = vrcp.pop %v317
  %v1040 = vmul.f32 %v317, %v1039
  %v1041 = vsub.f32 1.0, %v1040
  %v1042 = vmul.f32 %v1039, %v1041
  %v1043 = vadd.f32 %v1039, %v1042
  %vm1044 = vweird.f32 %v317
  %vm1045 = vweird.f32 %v1039
  %vm1046 = vmor %vm1044, %vm1045
  %v1047 = vsel %vm1046, %v1039, %v1043
  %v1048 = vand.u32 2147483647, %v317
  %vm1049 = vcmp.eq.f32.partialorder %v1048, 8.507059e+37
  %v1050 = vand.u32 %v317, 2147483648
  %v1051 = vor.u32 1.1754944e-38, %v1050
  %v1052 = vsel %vm1049, %v1051, %v1047
  %v1053 = vmul.f32 1.0, %v1052
  %v1054 = vrcp.pop %v318
  %v1055 = vmul.f32 %v318, %v1054
  %v1056 = vsub.f32 1.0, %v1055
  %v1057 = vmul.f32 %v1054, %v1056
  %v1058 = vadd.f32 %v1054, %v1057
  %vm1059 = vweird.f32 %v318
  %vm1060 = vweird.f32 %v1054
  %vm1061 = vmor %vm1059, %vm1060
  %v1062 = vsel %vm1061, %v1054, %v1058
  %v1063 = vand.u32 2147483647, %v318
  %vm1064 = vcmp.eq.f32.partialorder %v1063, 8.507059e+37
  %v1065 = vand.u32 %v318, 2147483648
  %v1066 = vor.u32 1.1754944e-38, %v1065
  %v1067 = vsel %vm1064, %v1066, %v1062
  %v1068 = vmul.f32 1.0, %v1067
  %v1069 = vrcp.pop %v319
  %v1070 = vmul.f32 %v319, %v1069
  %v1071 = vsub.f32 1.0, %v1070
  %v1072 = vmul.f32 %v1069, %v1071
  %v1073 = vadd.f32 %v1069, %v1072
  %vm1074 = vweird.f32 %v319
  %vm1075 = vweird.f32 %v1069
  %vm1076 = vmor %vm1074, %vm1075
  %v1077 = vsel %vm1076, %v1069, %v1073
  %v1078 = vand.u32 2147483647, %v319
  %vm1079 = vcmp.eq.f32.partialorder %v1078, 8.507059e+37
  %v1080 = vand.u32 %v319, 2147483648
  %v1081 = vor.u32 1.1754944e-38, %v1080
  %v1082 = vsel %vm1079, %v1081, %v1077
  %v1083 = vmul.f32 1.0, %v1082
  %v1084 = vrcp.pop %v320
  %v1085 = vmul.f32 %v320, %v1084
  %v1086 = vsub.f32 1.0, %v1085
  %v1087 = vmul.f32 %v1084, %v1086
  %v1088 = vadd.f32 %v1084, %v1087
  %vm1089 = vweird.f32 %v320
  %vm1090 = vweird.f32 %v1084
  %vm1091 = vmor %vm1089, %vm1090
  %v1092 = vsel %vm1091, %v1084, %v1088
  %v1093 = vand.u32 2147483647, %v320
  %vm1094 = vcmp.eq.f32.partialorder %v1093, 8.507059e+37
  %v1095 = vand.u32 %v320, 2147483648
  %v1096 = vor.u32 1.1754944e-38, %v1095
  %v1097 = vsel %vm1094, %v1096, %v1092
  %v1098 = vmul.f32 1.0, %v1097
  %v1099 = vrcp.pop %v321
  %v1100 = vmul.f32 %v321, %v1099
  %v1101 = vsub.f32 1.0, %v1100
  %v1102 = vmul.f32 %v1099, %v1101
  %v1103 = vadd.f32 %v1099, %v1102
  %vm1104 = vweird.f32 %v321
  %vm1105 = vweird.f32 %v1099
  %vm1106 = vmor %vm1104, %vm1105
  %v1107 = vsel %vm1106, %v1099, %v1103
  %v1108 = vand.u32 2147483647, %v321
  %vm1109 = vcmp.eq.f32.partialorder %v1108, 8.507059e+37
  %v1110 = vand.u32 %v321, 2147483648
  %v1111 = vor.u32 1.1754944e-38, %v1110
  %v1112 = vsel %vm1109, %v1111, %v1107
  %v1113 = vmul.f32 1.0, %v1112
  %v1114 = vrcp.pop %v322
  %v1115 = vmul.f32 %v322, %v1114
  %v1116 = vsub.f32 1.0, %v1115
  %v1117 = vmul.f32 %v1114, %v1116
  %v1118 = vadd.f32 %v1114, %v1117
  %vm1119 = vweird.f32 %v322
  %vm1120 = vweird.f32 %v1114
  %vm1121 = vmor %vm1119, %vm1120
  %v1122 = vsel %vm1121, %v1114, %v1118
  %v1123 = vand.u32 2147483647, %v322
  %vm1124 = vcmp.eq.f32.partialorder %v1123, 8.507059e+37
  %v1125 = vand.u32 %v322, 2147483648
  %v1126 = vor.u32 1.1754944e-38, %v1125
  %v1127 = vsel %vm1124, %v1126, %v1122
  %v1128 = vmul.f32 1.0, %v1127
  %v1129 = vrcp.pop %v323
  %v1130 = vmul.f32 %v323, %v1129
  %v1131 = vsub.f32 1.0, %v1130
  %v1132 = vmul.f32 %v1129, %v1131
  %v1133 = vadd.f32 %v1129, %v1132
  %vm1134 = vweird.f32 %v323
  %vm1135 = vweird.f32 %v1129
  %vm1136 = vmor %vm1134, %vm1135
  %v1137 = vsel %vm1136, %v1129, %v1133
  %v1138 = vand.u32 2147483647, %v323
  %vm1139 = vcmp.eq.f32.partialorder %v1138, 8.507059e+37
  %v1140 = vand.u32 %v323, 2147483648
  %v1141 = vor.u32 1.1754944e-38, %v1140
  %v1142 = vsel %vm1139, %v1141, %v1137
  %v1143 = vmul.f32 1.0, %v1142
  %v1144 = vrcp.pop %v324
  %v1145 = vmul.f32 %v324, %v1144
  %v1146 = vsub.f32 1.0, %v1145
  %v1147 = vmul.f32 %v1144, %v1146
  %v1148 = vadd.f32 %v1144, %v1147
  %vm1149 = vweird.f32 %v324
  %vm1150 = vweird.f32 %v1144
  %vm1151 = vmor %vm1149, %vm1150
  %v1152 = vsel %vm1151, %v1144, %v1148
  %v1153 = vand.u32 2147483647, %v324
  %vm1154 = vcmp.eq.f32.partialorder %v1153, 8.507059e+37
  %v1155 = vand.u32 %v324, 2147483648
  %v1156 = vor.u32 1.1754944e-38, %v1155
  %v1157 = vsel %vm1154, %v1156, %v1152
  %v1158 = vmul.f32 1.0, %v1157
  %v1159 = vrcp.pop %v325
  %v1160 = vmul.f32 %v325, %v1159
  %v1161 = vsub.f32 1.0, %v1160
  %v1162 = vmul.f32 %v1159, %v1161
  %v1163 = vadd.f32 %v1159, %v1162
  %vm1164 = vweird.f32 %v325
  %vm1165 = vweird.f32 %v1159
  %vm1166 = vmor %vm1164, %vm1165
  %v1167 = vsel %vm1166, %v1159, %v1163
  %v1168 = vand.u32 2147483647, %v325
  %vm1169 = vcmp.eq.f32.partialorder %v1168, 8.507059e+37
  %v1170 = vand.u32 %v325, 2147483648
  %v1171 = vor.u32 1.1754944e-38, %v1170
  %v1172 = vsel %vm1169, %v1171, %v1167
  %v1173 = vmul.f32 1.0, %v1172
  %v1174 = vrcp.pop %v326
  %v1175 = vmul.f32 %v326, %v1174
  %v1176 = vsub.f32 1.0, %v1175
  %v1177 = vmul.f32 %v1174, %v1176
  %v1178 = vadd.f32 %v1174, %v1177
  %vm1179 = vweird.f32 %v326
  %vm1180 = vweird.f32 %v1174
  %vm1181 = vmor %vm1179, %vm1180
  %v1182 = vsel %vm1181, %v1174, %v1178
  %v1183 = vand.u32 2147483647, %v326
  %vm1184 = vcmp.eq.f32.partialorder %v1183, 8.507059e+37
  %v1185 = vand.u32 %v326, 2147483648
  %v1186 = vor.u32 1.1754944e-38, %v1185
  %v1187 = vsel %vm1184, %v1186, %v1182
  %v1188 = vmul.f32 1.0, %v1187
  %v1189 = vrcp.pop %v327
  %v1190 = vmul.f32 %v327, %v1189
  %v1191 = vsub.f32 1.0, %v1190
  %v1192 = vmul.f32 %v1189, %v1191
  %v1193 = vadd.f32 %v1189, %v1192
  %vm1194 = vweird.f32 %v327
  %vm1195 = vweird.f32 %v1189
  %vm1196 = vmor %vm1194, %vm1195
  %v1197 = vsel %vm1196, %v1189, %v1193
  %v1198 = vand.u32 2147483647, %v327
  %vm1199 = vcmp.eq.f32.partialorder %v1198, 8.507059e+37
  %v1200 = vand.u32 %v327, 2147483648
  %v1201 = vor.u32 1.1754944e-38, %v1200
  %v1202 = vsel %vm1199, %v1201, %v1197
  %v1203 = vmul.f32 1.0, %v1202
  %v1204 = vrcp.pop %v328
  %v1205 = vmul.f32 %v328, %v1204
  %v1206 = vsub.f32 1.0, %v1205
  %v1207 = vmul.f32 %v1204, %v1206
  %v1208 = vadd.f32 %v1204, %v1207
  %vm1209 = vweird.f32 %v328
  %vm1210 = vweird.f32 %v1204
  %vm1211 = vmor %vm1209, %vm1210
  %v1212 = vsel %vm1211, %v1204, %v1208
  %v1213 = vand.u32 2147483647, %v328
  %vm1214 = vcmp.eq.f32.partialorder %v1213, 8.507059e+37
  %v1215 = vand.u32 %v328, 2147483648
  %v1216 = vor.u32 1.1754944e-38, %v1215
  %v1217 = vsel %vm1214, %v1216, %v1212
  %v1218 = vmul.f32 1.0, %v1217
  %v1219 = vrcp.pop %v329
  %v1220 = vmul.f32 %v329, %v1219
  %v1221 = vsub.f32 1.0, %v1220
  %v1222 = vmul.f32 %v1219, %v1221
  %v1223 = vadd.f32 %v1219, %v1222
  %vm1224 = vweird.f32 %v329
  %vm1225 = vweird.f32 %v1219
  %vm1226 = vmor %vm1224, %vm1225
  %v1227 = vsel %vm1226, %v1219, %v1223
  %v1228 = vand.u32 2147483647, %v329
  %vm1229 = vcmp.eq.f32.partialorder %v1228, 8.507059e+37
  %v1230 = vand.u32 %v329, 2147483648
  %v1231 = vor.u32 1.1754944e-38, %v1230
  %v1232 = vsel %vm1229, %v1231, %v1227
  %v1233 = vmul.f32 1.0, %v1232
  %v1234 = vrcp.pop %v330
  %v1235 = vmul.f32 %v330, %v1234
  %v1236 = vsub.f32 1.0, %v1235
  %v1237 = vmul.f32 %v1234, %v1236
  %v1238 = vadd.f32 %v1234, %v1237
  %vm1239 = vweird.f32 %v330
  %vm1240 = vweird.f32 %v1234
  %vm1241 = vmor %vm1239, %vm1240
  %v1242 = vsel %vm1241, %v1234, %v1238
  %v1243 = vand.u32 2147483647, %v330
  %vm1244 = vcmp.eq.f32.partialorder %v1243, 8.507059e+37
  %v1245 = vand.u32 %v330, 2147483648
  %v1246 = vor.u32 1.1754944e-38, %v1245
  %v1247 = vsel %vm1244, %v1246, %v1242
  %v1248 = vmul.f32 1.0, %v1247
  %v1249 = vrcp.pop %v331
  %v1250 = vmul.f32 %v331, %v1249
  %v1251 = vsub.f32 1.0, %v1250
  %v1252 = vmul.f32 %v1249, %v1251
  %v1253 = vadd.f32 %v1249, %v1252
  %vm1254 = vweird.f32 %v331
  %vm1255 = vweird.f32 %v1249
  %vm1256 = vmor %vm1254, %vm1255
  %v1257 = vsel %vm1256, %v1249, %v1253
  %v1258 = vand.u32 2147483647, %v331
  %vm1259 = vcmp.eq.f32.partialorder %v1258, 8.507059e+37
  %v1260 = vand.u32 %v331, 2147483648
  %v1261 = vor.u32 1.1754944e-38, %v1260
  %v1262 = vsel %vm1259, %v1261, %v1257
  %v1263 = vmul.f32 1.0, %v1262
  %v1264 = vrcp.pop %v332
  %v1265 = vmul.f32 %v332, %v1264
  %v1266 = vsub.f32 1.0, %v1265
  %v1267 = vmul.f32 %v1264, %v1266
  %v1268 = vadd.f32 %v1264, %v1267
  %vm1269 = vweird.f32 %v332
  %vm1270 = vweird.f32 %v1264
  %vm1271 = vmor %vm1269, %vm1270
  %v1272 = vsel %vm1271, %v1264, %v1268
  %v1273 = vand.u32 2147483647, %v332
  %vm1274 = vcmp.eq.f32.partialorder %v1273, 8.507059e+37
  %v1275 = vand.u32 %v332, 2147483648
  %v1276 = vor.u32 1.1754944e-38, %v1275
  %v1277 = vsel %vm1274, %v1276, %v1272
  %v1278 = vmul.f32 1.0, %v1277
  %v1279 = vrcp.pop %v333
  %v1280 = vmul.f32 %v333, %v1279
  %v1281 = vsub.f32 1.0, %v1280
  %v1282 = vmul.f32 %v1279, %v1281
  %v1283 = vadd.f32 %v1279, %v1282
  %vm1284 = vweird.f32 %v333
  %vm1285 = vweird.f32 %v1279
  %vm1286 = vmor %vm1284, %vm1285
  %v1287 = vsel %vm1286, %v1279, %v1283
  %v1288 = vand.u32 2147483647, %v333
  %vm1289 = vcmp.eq.f32.partialorder %v1288, 8.507059e+37
  %v1290 = vand.u32 %v333, 2147483648
  %v1291 = vor.u32 1.1754944e-38, %v1290
  %v1292 = vsel %vm1289, %v1291, %v1287
  %v1293 = vmul.f32 1.0, %v1292
  %v1294 = vld [vmem:[%s0] sm:$0xff]
  %v1295 = vld [vmem:[%s0 + $0x8] sm:$0xff]
  %v1296 = vld [vmem:[%s0 + $0x10] sm:$0xff]
  %v1297 = vld [vmem:[%s0 + $0x18] sm:$0xff]
  %v1298 = vld [vmem:[%s0 + $0x20] sm:$0xff]
  %v1299 = vld [vmem:[%s0 + $0x28] sm:$0xff]
  %v1300 = vld [vmem:[%s0 + $0x30] sm:$0xff]
  %v1301 = vld [vmem:[%s0 + $0x38] sm:$0xff]
  %v1302 = vld [vmem:[%s0 + $0x40] sm:$0xff]
  %v1303 = vld [vmem:[%s0 + $0x48] sm:$0xff]
  %v1304 = vld [vmem:[%s0 + $0x50] sm:$0xff]
  %v1305 = vld [vmem:[%s0 + $0x58] sm:$0xff]
  %v1306 = vld [vmem:[%s0 + $0x60] sm:$0xff]
  %v1307 = vld [vmem:[%s0 + $0x68] sm:$0xff]
  %v1308 = vld [vmem:[%s0 + $0x70] sm:$0xff]
  %v1309 = vld [vmem:[%s0 + $0x78] sm:$0xff]
  %v1310 = vld [vmem:[%s0 + $0x80] sm:$0xff]
  %v1311 = vld [vmem:[%s0 + $0x88] sm:$0xff]
  %v1312 = vld [vmem:[%s0 + $0x90] sm:$0xff]
  %v1313 = vld [vmem:[%s0 + $0x98] sm:$0xff]
  %v1314 = vld [vmem:[%s0 + $0xa0] sm:$0xff]
  %v1315 = vld [vmem:[%s0 + $0xa8] sm:$0xff]
  %v1316 = vld [vmem:[%s0 + $0xb0] sm:$0xff]
  %v1317 = vld [vmem:[%s0 + $0xb8] sm:$0xff]
  %v1318 = vld [vmem:[%s0 + $0xc0] sm:$0xff]
  %v1319 = vld [vmem:[%s0 + $0xc8] sm:$0xff]
  %v1320 = vld [vmem:[%s0 + $0xd0] sm:$0xff]
  %v1321 = vld [vmem:[%s0 + $0xd8] sm:$0xff]
  %v1322 = vld [vmem:[%s0 + $0xe0] sm:$0xff]
  %v1323 = vld [vmem:[%s0 + $0xe8] sm:$0xff]
  %v1324 = vld [vmem:[%s0 + $0xf0] sm:$0xff]
  %v1325 = vld [vmem:[%s0 + $0xf8] sm:$0xff]
  %v1326 = vld [vmem:[%s0 + $0x100] sm:$0xff]
  %v1327 = vld [vmem:[%s0 + $0x108] sm:$0xff]
  %v1328 = vld [vmem:[%s0 + $0x110] sm:$0xff]
  %v1329 = vld [vmem:[%s0 + $0x118] sm:$0xff]
  %v1330 = vld [vmem:[%s0 + $0x120] sm:$0xff]
  %v1331 = vld [vmem:[%s0 + $0x128] sm:$0xff]
  %v1332 = vld [vmem:[%s0 + $0x130] sm:$0xff]
  %v1333 = vld [vmem:[%s0 + $0x138] sm:$0xff]
  %v1334 = vld [vmem:[%s0 + $0x140] sm:$0xff]
  %v1335 = vld [vmem:[%s0 + $0x148] sm:$0xff]
  %v1336 = vld [vmem:[%s0 + $0x150] sm:$0xff]
  %v1337 = vld [vmem:[%s0 + $0x158] sm:$0xff]
  %v1338 = vld [vmem:[%s0 + $0x160] sm:$0xff]
  %v1339 = vld [vmem:[%s0 + $0x168] sm:$0xff]
  %v1340 = vld [vmem:[%s0 + $0x170] sm:$0xff]
  %v1341 = vld [vmem:[%s0 + $0x178] sm:$0xff]
  %v1342 = vld [vmem:[%s0 + $0x180] sm:$0xff]
  %v1343 = vld [vmem:[%s0 + $0x188] sm:$0xff]
  %v1344 = vld [vmem:[%s0 + $0x190] sm:$0xff]
  %v1345 = vld [vmem:[%s0 + $0x198] sm:$0xff]
  %v1346 = vld [vmem:[%s0 + $0x1a0] sm:$0xff]
  %v1347 = vld [vmem:[%s0 + $0x1a8] sm:$0xff]
  %v1348 = vld [vmem:[%s0 + $0x1b0] sm:$0xff]
  %v1349 = vld [vmem:[%s0 + $0x1b8] sm:$0xff]
  %v1350 = vld [vmem:[%s0 + $0x1c0] sm:$0xff]
  %v1351 = vld [vmem:[%s0 + $0x1c8] sm:$0xff]
  %v1352 = vld [vmem:[%s0 + $0x1d0] sm:$0xff]
  %v1353 = vld [vmem:[%s0 + $0x1d8] sm:$0xff]
  %v1354 = vld [vmem:[%s0 + $0x1e0] sm:$0xff]
  %v1355 = vld [vmem:[%s0 + $0x1e8] sm:$0xff]
  %v1356 = vld [vmem:[%s0 + $0x1f0] sm:$0xff]
  %v1357 = vld [vmem:[%s0 + $0x1f8] sm:$0xff]
  %v1358 = vmul.f32 %v1294, %v348
  %v1359 = vmul.f32 %v1295, %v363
  %v1360 = vmul.f32 %v1296, %v378
  %v1361 = vmul.f32 %v1297, %v393
  %v1362 = vmul.f32 %v1298, %v408
  %v1363 = vmul.f32 %v1299, %v423
  %v1364 = vmul.f32 %v1300, %v438
  %v1365 = vmul.f32 %v1301, %v453
  %v1366 = vmul.f32 %v1302, %v468
  %v1367 = vmul.f32 %v1303, %v483
  %v1368 = vmul.f32 %v1304, %v498
  %v1369 = vmul.f32 %v1305, %v513
  %v1370 = vmul.f32 %v1306, %v528
  %v1371 = vmul.f32 %v1307, %v543
  %v1372 = vmul.f32 %v1308, %v558
  %v1373 = vmul.f32 %v1309, %v573
  %v1374 = vmul.f32 %v1310, %v588
  %v1375 = vmul.f32 %v1311, %v603
  %v1376 = vmul.f32 %v1312, %v618
  %v1377 = vmul.f32 %v1313, %v633
  %v1378 = vmul.f32 %v1314, %v648
  %v1379 = vmul.f32 %v1315, %v663
  %v1380 = vmul.f32 %v1316, %v678
  %v1381 = vmul.f32 %v1317, %v693
  %v1382 = vmul.f32 %v1318, %v708
  %v1383 = vmul.f32 %v1319, %v723
  %v1384 = vmul.f32 %v1320, %v738
  %v1385 = vmul.f32 %v1321, %v753
  %v1386 = vmul.f32 %v1322, %v768
  %v1387 = vmul.f32 %v1323, %v783
  %v1388 = vmul.f32 %v1324, %v798
  %v1389 = vmul.f32 %v1325, %v813
  %v1390 = vmul.f32 %v1326, %v828
  %v1391 = vmul.f32 %v1327, %v843
  %v1392 = vmul.f32 %v1328, %v858
  %v1393 = vmul.f32 %v1329, %v873
  %v1394 = vmul.f32 %v1330, %v888
  %v1395 = vmul.f32 %v1331, %v903
  %v1396 = vmul.f32 %v1332, %v918
  %v1397 = vmul.f32 %v1333, %v933
  %v1398 = vmul.f32 %v1334, %v948
  %v1399 = vmul.f32 %v1335, %v963
  %v1400 = vmul.f32 %v1336, %v978
  %v1401 = vmul.f32 %v1337, %v993
  %v1402 = vmul.f32 %v1338, %v1008
  %v1403 = vmul.f32 %v1339, %v1023
  %v1404 = vmul.f32 %v1340, %v1038
  %v1405 = vmul.f32 %v1341, %v1053
  %v1406 = vmul.f32 %v1342, %v1068
  %v1407 = vmul.f32 %v1343, %v1083
  %v1408 = vmul.f32 %v1344, %v1098
  %v1409 = vmul.f32 %v1345, %v1113
  %v1410 = vmul.f32 %v1346, %v1128
  %v1411 = vmul.f32 %v1347, %v1143
  %v1412 = vmul.f32 %v1348, %v1158
  %v1413 = vmul.f32 %v1349, %v1173
  %v1414 = vmul.f32 %v1350, %v1188
  %v1415 = vmul.f32 %v1351, %v1203
  %v1416 = vmul.f32 %v1352, %v1218
  %v1417 = vmul.f32 %v1353, %v1233
  %v1418 = vmul.f32 %v1354, %v1248
  %v1419 = vmul.f32 %v1355, %v1263
  %v1420 = vmul.f32 %v1356, %v1278
  %v1421 = vmul.f32 %v1357, %v1293
  %v1422 = vld [vmem:[%s1] sm:$0xff]
  %v1423 = vld [vmem:[%s1 + $0x8] sm:$0xff]
  %v1424 = vld [vmem:[%s1 + $0x10] sm:$0xff]
  %v1425 = vld [vmem:[%s1 + $0x18] sm:$0xff]
  %v1426 = vld [vmem:[%s1 + $0x20] sm:$0xff]
  %v1427 = vld [vmem:[%s1 + $0x28] sm:$0xff]
  %v1428 = vld [vmem:[%s1 + $0x30] sm:$0xff]
  %v1429 = vld [vmem:[%s1 + $0x38] sm:$0xff]
  %v1430 = vld [vmem:[%s1 + $0x40] sm:$0xff]
  %v1431 = vld [vmem:[%s1 + $0x48] sm:$0xff]
  %v1432 = vld [vmem:[%s1 + $0x50] sm:$0xff]
  %v1433 = vld [vmem:[%s1 + $0x58] sm:$0xff]
  %v1434 = vld [vmem:[%s1 + $0x60] sm:$0xff]
  %v1435 = vld [vmem:[%s1 + $0x68] sm:$0xff]
  %v1436 = vld [vmem:[%s1 + $0x70] sm:$0xff]
  %v1437 = vld [vmem:[%s1 + $0x78] sm:$0xff]
  %v1438 = vld [vmem:[%s1 + $0x80] sm:$0xff]
  %v1439 = vld [vmem:[%s1 + $0x88] sm:$0xff]
  %v1440 = vld [vmem:[%s1 + $0x90] sm:$0xff]
  %v1441 = vld [vmem:[%s1 + $0x98] sm:$0xff]
  %v1442 = vld [vmem:[%s1 + $0xa0] sm:$0xff]
  %v1443 = vld [vmem:[%s1 + $0xa8] sm:$0xff]
  %v1444 = vld [vmem:[%s1 + $0xb0] sm:$0xff]
  %v1445 = vld [vmem:[%s1 + $0xb8] sm:$0xff]
  %v1446 = vld [vmem:[%s1 + $0xc0] sm:$0xff]
  %v1447 = vld [vmem:[%s1 + $0xc8] sm:$0xff]
  %v1448 = vld [vmem:[%s1 + $0xd0] sm:$0xff]
  %v1449 = vld [vmem:[%s1 + $0xd8] sm:$0xff]
  %v1450 = vld [vmem:[%s1 + $0xe0] sm:$0xff]
  %v1451 = vld [vmem:[%s1 + $0xe8] sm:$0xff]
  %v1452 = vld [vmem:[%s1 + $0xf0] sm:$0xff]
  %v1453 = vld [vmem:[%s1 + $0xf8] sm:$0xff]
  %v1454 = vld [vmem:[%s1 + $0x100] sm:$0xff]
  %v1455 = vld [vmem:[%s1 + $0x108] sm:$0xff]
  %v1456 = vld [vmem:[%s1 + $0x110] sm:$0xff]
  %v1457 = vld [vmem:[%s1 + $0x118] sm:$0xff]
  %v1458 = vld [vmem:[%s1 + $0x120] sm:$0xff]
  %v1459 = vld [vmem:[%s1 + $0x128] sm:$0xff]
  %v1460 = vld [vmem:[%s1 + $0x130] sm:$0xff]
  %v1461 = vld [vmem:[%s1 + $0x138] sm:$0xff]
  %v1462 = vld [vmem:[%s1 + $0x140] sm:$0xff]
  %v1463 = vld [vmem:[%s1 + $0x148] sm:$0xff]
  %v1464 = vld [vmem:[%s1 + $0x150] sm:$0xff]
  %v1465 = vld [vmem:[%s1 + $0x158] sm:$0xff]
  %v1466 = vld [vmem:[%s1 + $0x160] sm:$0xff]
  %v1467 = vld [vmem:[%s1 + $0x168] sm:$0xff]
  %v1468 = vld [vmem:[%s1 + $0x170] sm:$0xff]
  %v1469 = vld [vmem:[%s1 + $0x178] sm:$0xff]
  %v1470 = vld [vmem:[%s1 + $0x180] sm:$0xff]
  %v1471 = vld [vmem:[%s1 + $0x188] sm:$0xff]
  %v1472 = vld [vmem:[%s1 + $0x190] sm:$0xff]
  %v1473 = vld [vmem:[%s1 + $0x198] sm:$0xff]
  %v1474 = vld [vmem:[%s1 + $0x1a0] sm:$0xff]
  %v1475 = vld [vmem:[%s1 + $0x1a8] sm:$0xff]
  %v1476 = vld [vmem:[%s1 + $0x1b0] sm:$0xff]
  %v1477 = vld [vmem:[%s1 + $0x1b8] sm:$0xff]
  %v1478 = vld [vmem:[%s1 + $0x1c0] sm:$0xff]
  %v1479 = vld [vmem:[%s1 + $0x1c8] sm:$0xff]
  %v1480 = vld [vmem:[%s1 + $0x1d0] sm:$0xff]
  %v1481 = vld [vmem:[%s1 + $0x1d8] sm:$0xff]
  %v1482 = vld [vmem:[%s1 + $0x1e0] sm:$0xff]
  %v1483 = vld [vmem:[%s1 + $0x1e8] sm:$0xff]
  %v1484 = vld [vmem:[%s1 + $0x1f0] sm:$0xff]
  %v1485 = vld [vmem:[%s1 + $0x1f8] sm:$0xff]
  %v1486 = vsub.f32 1.0, %v348
  %v1487 = vsub.f32 1.0, %v363
  %v1488 = vsub.f32 1.0, %v378
  %v1489 = vsub.f32 1.0, %v393
  %v1490 = vsub.f32 1.0, %v408
  %v1491 = vsub.f32 1.0, %v423
  %v1492 = vsub.f32 1.0, %v438
  %v1493 = vsub.f32 1.0, %v453
  %v1494 = vsub.f32 1.0, %v468
  %v1495 = vsub.f32 1.0, %v483
  %v1496 = vsub.f32 1.0, %v498
  %v1497 = vsub.f32 1.0, %v513
  %v1498 = vsub.f32 1.0, %v528
  %v1499 = vsub.f32 1.0, %v543
  %v1500 = vsub.f32 1.0, %v558
  %v1501 = vsub.f32 1.0, %v573
  %v1502 = vsub.f32 1.0, %v588
  %v1503 = vsub.f32 1.0, %v603
  %v1504 = vsub.f32 1.0, %v618
  %v1505 = vsub.f32 1.0, %v633
  %v1506 = vsub.f32 1.0, %v648
  %v1507 = vsub.f32 1.0, %v663
  %v1508 = vsub.f32 1.0, %v678
  %v1509 = vsub.f32 1.0, %v693
  %v1510 = vsub.f32 1.0, %v708
  %v1511 = vsub.f32 1.0, %v723
  %v1512 = vsub.f32 1.0, %v738
  %v1513 = vsub.f32 1.0, %v753
  %v1514 = vsub.f32 1.0, %v768
  %v1515 = vsub.f32 1.0, %v783
  %v1516 = vsub.f32 1.0, %v798
  %v1517 = vsub.f32 1.0, %v813
  %v1518 = vsub.f32 1.0, %v828
  %v1519 = vsub.f32 1.0, %v843
  %v1520 = vsub.f32 1.0, %v858
  %v1521 = vsub.f32 1.0, %v873
  %v1522 = vsub.f32 1.0, %v888
  %v1523 = vsub.f32 1.0, %v903
  %v1524 = vsub.f32 1.0, %v918
  %v1525 = vsub.f32 1.0, %v933
  %v1526 = vsub.f32 1.0, %v948
  %v1527 = vsub.f32 1.0, %v963
  %v1528 = vsub.f32 1.0, %v978
  %v1529 = vsub.f32 1.0, %v993
  %v1530 = vsub.f32 1.0, %v1008
  %v1531 = vsub.f32 1.0, %v1023
  %v1532 = vsub.f32 1.0, %v1038
  %v1533 = vsub.f32 1.0, %v1053
  %v1534 = vsub.f32 1.0, %v1068
  %v1535 = vsub.f32 1.0, %v1083
  %v1536 = vsub.f32 1.0, %v1098
  %v1537 = vsub.f32 1.0, %v1113
  %v1538 = vsub.f32 1.0, %v1128
  %v1539 = vsub.f32 1.0, %v1143
  %v1540 = vsub.f32 1.0, %v1158
  %v1541 = vsub.f32 1.0, %v1173
  %v1542 = vsub.f32 1.0, %v1188
  %v1543 = vsub.f32 1.0, %v1203
  %v1544 = vsub.f32 1.0, %v1218
  %v1545 = vsub.f32 1.0, %v1233
  %v1546 = vsub.f32 1.0, %v1248
  %v1547 = vsub.f32 1.0, %v1263
  %v1548 = vsub.f32 1.0, %v1278
  %v1549 = vsub.f32 1.0, %v1293
  %v1550 = vmul.f32 %v1422, %v1486
  %v1551 = vmul.f32 %v1423, %v1487
  %v1552 = vmul.f32 %v1424, %v1488
  %v1553 = vmul.f32 %v1425, %v1489
  %v1554 = vmul.f32 %v1426, %v1490
  %v1555 = vmul.f32 %v1427, %v1491
  %v1556 = vmul.f32 %v1428, %v1492
  %v1557 = vmul.f32 %v1429, %v1493
  %v1558 = vmul.f32 %v1430, %v1494
  %v1559 = vmul.f32 %v1431, %v1495
  %v1560 = vmul.f32 %v1432, %v1496
  %v1561 = vmul.f32 %v1433, %v1497
  %v1562 = vmul.f32 %v1434, %v1498
  %v1563 = vmul.f32 %v1435, %v1499
  %v1564 = vmul.f32 %v1436, %v1500
  %v1565 = vmul.f32 %v1437, %v1501
  %v1566 = vmul.f32 %v1438, %v1502
  %v1567 = vmul.f32 %v1439, %v1503
  %v1568 = vmul.f32 %v1440, %v1504
  %v1569 = vmul.f32 %v1441, %v1505
  %v1570 = vmul.f32 %v1442, %v1506
  %v1571 = vmul.f32 %v1443, %v1507
  %v1572 = vmul.f32 %v1444, %v1508
  %v1573 = vmul.f32 %v1445, %v1509
  %v1574 = vmul.f32 %v1446, %v1510
  %v1575 = vmul.f32 %v1447, %v1511
  %v1576 = vmul.f32 %v1448, %v1512
  %v1577 = vmul.f32 %v1449, %v1513
  %v1578 = vmul.f32 %v1450, %v1514
  %v1579 = vmul.f32 %v1451, %v1515
  %v1580 = vmul.f32 %v1452, %v1516
  %v1581 = vmul.f32 %v1453, %v1517
  %v1582 = vmul.f32 %v1454, %v1518
  %v1583 = vmul.f32 %v1455, %v1519
  %v1584 = vmul.f32 %v1456, %v1520
  %v1585 = vmul.f32 %v1457, %v1521
  %v1586 = vmul.f32 %v1458, %v1522
  %v1587 = vmul.f32 %v1459, %v1523
  %v1588 = vmul.f32 %v1460, %v1524
  %v1589 = vmul.f32 %v1461, %v1525
  %v1590 = vmul.f32 %v1462, %v1526
  %v1591 = vmul.f32 %v1463, %v1527
  %v1592 = vmul.f32 %v1464, %v1528
  %v1593 = vmul.f32 %v1465, %v1529
  %v1594 = vmul.f32 %v1466, %v1530
  %v1595 = vmul.f32 %v1467, %v1531
  %v1596 = vmul.f32 %v1468, %v1532
  %v1597 = vmul.f32 %v1469, %v1533
  %v1598 = vmul.f32 %v1470, %v1534
  %v1599 = vmul.f32 %v1471, %v1535
  %v1600 = vmul.f32 %v1472, %v1536
  %v1601 = vmul.f32 %v1473, %v1537
  %v1602 = vmul.f32 %v1474, %v1538
  %v1603 = vmul.f32 %v1475, %v1539
  %v1604 = vmul.f32 %v1476, %v1540
  %v1605 = vmul.f32 %v1477, %v1541
  %v1606 = vmul.f32 %v1478, %v1542
  %v1607 = vmul.f32 %v1479, %v1543
  %v1608 = vmul.f32 %v1480, %v1544
  %v1609 = vmul.f32 %v1481, %v1545
  %v1610 = vmul.f32 %v1482, %v1546
  %v1611 = vmul.f32 %v1483, %v1547
  %v1612 = vmul.f32 %v1484, %v1548
  %v1613 = vmul.f32 %v1485, %v1549
  %v1614 = vadd.f32 %v1358, %v1550
  %v1615 = vadd.f32 %v1359, %v1551
  %v1616 = vadd.f32 %v1360, %v1552
  %v1617 = vadd.f32 %v1361, %v1553
  %v1618 = vadd.f32 %v1362, %v1554
  %v1619 = vadd.f32 %v1363, %v1555
  %v1620 = vadd.f32 %v1364, %v1556
  %v1621 = vadd.f32 %v1365, %v1557
  %v1622 = vadd.f32 %v1366, %v1558
  %v1623 = vadd.f32 %v1367, %v1559
  %v1624 = vadd.f32 %v1368, %v1560
  %v1625 = vadd.f32 %v1369, %v1561
  %v1626 = vadd.f32 %v1370, %v1562
  %v1627 = vadd.f32 %v1371, %v1563
  %v1628 = vadd.f32 %v1372, %v1564
  %v1629 = vadd.f32 %v1373, %v1565
  %v1630 = vadd.f32 %v1374, %v1566
  %v1631 = vadd.f32 %v1375, %v1567
  %v1632 = vadd.f32 %v1376, %v1568
  %v1633 = vadd.f32 %v1377, %v1569
  %v1634 = vadd.f32 %v1378, %v1570
  %v1635 = vadd.f32 %v1379, %v1571
  %v1636 = vadd.f32 %v1380, %v1572
  %v1637 = vadd.f32 %v1381, %v1573
  %v1638 = vadd.f32 %v1382, %v1574
  %v1639 = vadd.f32 %v1383, %v1575
  %v1640 = vadd.f32 %v1384, %v1576
  %v1641 = vadd.f32 %v1385, %v1577
  %v1642 = vadd.f32 %v1386, %v1578
  %v1643 = vadd.f32 %v1387, %v1579
  %v1644 = vadd.f32 %v1388, %v1580
  %v1645 = vadd.f32 %v1389, %v1581
  %v1646 = vadd.f32 %v1390, %v1582
  %v1647 = vadd.f32 %v1391, %v1583
  %v1648 = vadd.f32 %v1392, %v1584
  %v1649 = vadd.f32 %v1393, %v1585
  %v1650 = vadd.f32 %v1394, %v1586
  %v1651 = vadd.f32 %v1395, %v1587
  %v1652 = vadd.f32 %v1396, %v1588
  %v1653 = vadd.f32 %v1397, %v1589
  %v1654 = vadd.f32 %v1398, %v1590
  %v1655 = vadd.f32 %v1399, %v1591
  %v1656 = vadd.f32 %v1400, %v1592
  %v1657 = vadd.f32 %v1401, %v1593
  %v1658 = vadd.f32 %v1402, %v1594
  %v1659 = vadd.f32 %v1403, %v1595
  %v1660 = vadd.f32 %v1404, %v1596
  %v1661 = vadd.f32 %v1405, %v1597
  %v1662 = vadd.f32 %v1406, %v1598
  %v1663 = vadd.f32 %v1407, %v1599
  %v1664 = vadd.f32 %v1408, %v1600
  %v1665 = vadd.f32 %v1409, %v1601
  %v1666 = vadd.f32 %v1410, %v1602
  %v1667 = vadd.f32 %v1411, %v1603
  %v1668 = vadd.f32 %v1412, %v1604
  %v1669 = vadd.f32 %v1413, %v1605
  %v1670 = vadd.f32 %v1414, %v1606
  %v1671 = vadd.f32 %v1415, %v1607
  %v1672 = vadd.f32 %v1416, %v1608
  %v1673 = vadd.f32 %v1417, %v1609
  %v1674 = vadd.f32 %v1418, %v1610
  %v1675 = vadd.f32 %v1419, %v1611
  %v1676 = vadd.f32 %v1420, %v1612
  %v1677 = vadd.f32 %v1421, %v1613
  %v1678 = vmax.f32 %v1614, 0.0
  %v1679 = vmax.f32 %v1615, 0.0
  %v1680 = vmax.f32 %v1616, 0.0
  %v1681 = vmax.f32 %v1617, 0.0
  %v1682 = vmax.f32 %v1618, 0.0
  %v1683 = vmax.f32 %v1619, 0.0
  %v1684 = vmax.f32 %v1620, 0.0
  %v1685 = vmax.f32 %v1621, 0.0
  %v1686 = vmax.f32 %v1622, 0.0
  %v1687 = vmax.f32 %v1623, 0.0
  %v1688 = vmax.f32 %v1624, 0.0
  %v1689 = vmax.f32 %v1625, 0.0
  %v1690 = vmax.f32 %v1626, 0.0
  %v1691 = vmax.f32 %v1627, 0.0
  %v1692 = vmax.f32 %v1628, 0.0
  %v1693 = vmax.f32 %v1629, 0.0
  %v1694 = vmax.f32 %v1630, 0.0
  %v1695 = vmax.f32 %v1631, 0.0
  %v1696 = vmax.f32 %v1632, 0.0
  %v1697 = vmax.f32 %v1633, 0.0
  %v1698 = vmax.f32 %v1634, 0.0
  %v1699 = vmax.f32 %v1635, 0.0
  %v1700 = vmax.f32 %v1636, 0.0
  %v1701 = vmax.f32 %v1637, 0.0
  %v1702 = vmax.f32 %v1638, 0.0
  %v1703 = vmax.f32 %v1639, 0.0
  %v1704 = vmax.f32 %v1640, 0.0
  %v1705 = vmax.f32 %v1641, 0.0
  %v1706 = vmax.f32 %v1642, 0.0
  %v1707 = vmax.f32 %v1643, 0.0
  %v1708 = vmax.f32 %v1644, 0.0
  %v1709 = vmax.f32 %v1645, 0.0
  %v1710 = vmax.f32 %v1646, 0.0
  %v1711 = vmax.f32 %v1647, 0.0
  %v1712 = vmax.f32 %v1648, 0.0
  %v1713 = vmax.f32 %v1649, 0.0
  %v1714 = vmax.f32 %v1650, 0.0
  %v1715 = vmax.f32 %v1651, 0.0
  %v1716 = vmax.f32 %v1652, 0.0
  %v1717 = vmax.f32 %v1653, 0.0
  %v1718 = vmax.f32 %v1654, 0.0
  %v1719 = vmax.f32 %v1655, 0.0
  %v1720 = vmax.f32 %v1656, 0.0
  %v1721 = vmax.f32 %v1657, 0.0
  %v1722 = vmax.f32 %v1658, 0.0
  %v1723 = vmax.f32 %v1659, 0.0
  %v1724 = vmax.f32 %v1660, 0.0
  %v1725 = vmax.f32 %v1661, 0.0
  %v1726 = vmax.f32 %v1662, 0.0
  %v1727 = vmax.f32 %v1663, 0.0
  %v1728 = vmax.f32 %v1664, 0.0
  %v1729 = vmax.f32 %v1665, 0.0
  %v1730 = vmax.f32 %v1666, 0.0
  %v1731 = vmax.f32 %v1667, 0.0
  %v1732 = vmax.f32 %v1668, 0.0
  %v1733 = vmax.f32 %v1669, 0.0
  %v1734 = vmax.f32 %v1670, 0.0
  %v1735 = vmax.f32 %v1671, 0.0
  %v1736 = vmax.f32 %v1672, 0.0
  %v1737 = vmax.f32 %v1673, 0.0
  %v1738 = vmax.f32 %v1674, 0.0
  %v1739 = vmax.f32 %v1675, 0.0
  %v1740 = vmax.f32 %v1676, 0.0
  %v1741 = vmax.f32 %v1677, 0.0
  %v1742 = vmin.f32 %v1678, 1.0
  %v1743 = vmin.f32 %v1679, 1.0
  %v1744 = vmin.f32 %v1680, 1.0
  %v1745 = vmin.f32 %v1681, 1.0
  %v1746 = vmin.f32 %v1682, 1.0
  %v1747 = vmin.f32 %v1683, 1.0
  %v1748 = vmin.f32 %v1684, 1.0
  %v1749 = vmin.f32 %v1685, 1.0
  %v1750 = vmin.f32 %v1686, 1.0
  %v1751 = vmin.f32 %v1687, 1.0
  %v1752 = vmin.f32 %v1688, 1.0
  %v1753 = vmin.f32 %v1689, 1.0
  %v1754 = vmin.f32 %v1690, 1.0
  %v1755 = vmin.f32 %v1691, 1.0
  %v1756 = vmin.f32 %v1692, 1.0
  %v1757 = vmin.f32 %v1693, 1.0
  %v1758 = vmin.f32 %v1694, 1.0
  %v1759 = vmin.f32 %v1695, 1.0
  %v1760 = vmin.f32 %v1696, 1.0
  %v1761 = vmin.f32 %v1697, 1.0
  %v1762 = vmin.f32 %v1698, 1.0
  %v1763 = vmin.f32 %v1699, 1.0
  %v1764 = vmin.f32 %v1700, 1.0
  %v1765 = vmin.f32 %v1701, 1.0
  %v1766 = vmin.f32 %v1702, 1.0
  %v1767 = vmin.f32 %v1703, 1.0
  %v1768 = vmin.f32 %v1704, 1.0
  %v1769 = vmin.f32 %v1705, 1.0
  %v1770 = vmin.f32 %v1706, 1.0
  %v1771 = vmin.f32 %v1707, 1.0
  %v1772 = vmin.f32 %v1708, 1.0
  %v1773 = vmin.f32 %v1709, 1.0
  %v1774 = vmin.f32 %v1710, 1.0
  %v1775 = vmin.f32 %v1711, 1.0
  %v1776 = vmin.f32 %v1712, 1.0
  %v1777 = vmin.f32 %v1713, 1.0
  %v1778 = vmin.f32 %v1714, 1.0
  %v1779 = vmin.f32 %v1715, 1.0
  %v1780 = vmin.f32 %v1716, 1.0
  %v1781 = vmin.f32 %v1717, 1.0
  %v1782 = vmin.f32 %v1718, 1.0
  %v1783 = vmin.f32 %v1719, 1.0
  %v1784 = vmin.f32 %v1720, 1.0
  %v1785 = vmin.f32 %v1721, 1.0
  %v1786 = vmin.f32 %v1722, 1.0
  %v1787 = vmin.f32 %v1723, 1.0
  %v1788 = vmin.f32 %v1724, 1.0
  %v1789 = vmin.f32 %v1725, 1.0
  %v1790 = vmin.f32 %v1726, 1.0
  %v1791 = vmin.f32 %v1727, 1.0
  %v1792 = vmin.f32 %v1728, 1.0
  %v1793 = vmin.f32 %v1729, 1.0
  %v1794 = vmin.f32 %v1730, 1.0
  %v1795 = vmin.f32 %v1731, 1.0
  %v1796 = vmin.f32 %v1732, 1.0
  %v1797 = vmin.f32 %v1733, 1.0
  %v1798 = vmin.f32 %v1734, 1.0
  %v1799 = vmin.f32 %v1735, 1.0
  %v1800 = vmin.f32 %v1736, 1.0
  %v1801 = vmin.f32 %v1737, 1.0
  %v1802 = vmin.f32 %v1738, 1.0
  %v1803 = vmin.f32 %v1739, 1.0
  %v1804 = vmin.f32 %v1740, 1.0
  %v1805 = vmin.f32 %v1741, 1.0
  %1806 = vst [vmem:[%s3] sm:$0xff] %v1742
  %1807 = vst [vmem:[%s3 + $0x8] sm:$0xff] %v1743
  %1808 = vst [vmem:[%s3 + $0x10] sm:$0xff] %v1744
  %1809 = vst [vmem:[%s3 + $0x18] sm:$0xff] %v1745
  %1810 = vst [vmem:[%s3 + $0x20] sm:$0xff] %v1746
  %1811 = vst [vmem:[%s3 + $0x28] sm:$0xff] %v1747
  %1812 = vst [vmem:[%s3 + $0x30] sm:$0xff] %v1748
  %1813 = vst [vmem:[%s3 + $0x38] sm:$0xff] %v1749
  %1814 = vst [vmem:[%s3 + $0x40] sm:$0xff] %v1750
  %1815 = vst [vmem:[%s3 + $0x48] sm:$0xff] %v1751
  %1816 = vst [vmem:[%s3 + $0x50] sm:$0xff] %v1752
  %1817 = vst [vmem:[%s3 + $0x58] sm:$0xff] %v1753
  %1818 = vst [vmem:[%s3 + $0x60] sm:$0xff] %v1754
  %1819 = vst [vmem:[%s3 + $0x68] sm:$0xff] %v1755
  %1820 = vst [vmem:[%s3 + $0x70] sm:$0xff] %v1756
  %1821 = vst [vmem:[%s3 + $0x78] sm:$0xff] %v1757
  %1822 = vst [vmem:[%s3 + $0x80] sm:$0xff] %v1758
  %1823 = vst [vmem:[%s3 + $0x88] sm:$0xff] %v1759
  %1824 = vst [vmem:[%s3 + $0x90] sm:$0xff] %v1760
  %1825 = vst [vmem:[%s3 + $0x98] sm:$0xff] %v1761
  %1826 = vst [vmem:[%s3 + $0xa0] sm:$0xff] %v1762
  %1827 = vst [vmem:[%s3 + $0xa8] sm:$0xff] %v1763
  %1828 = vst [vmem:[%s3 + $0xb0] sm:$0xff] %v1764
  %1829 = vst [vmem:[%s3 + $0xb8] sm:$0xff] %v1765
  %1830 = vst [vmem:[%s3 + $0xc0] sm:$0xff] %v1766
  %1831 = vst [vmem:[%s3 + $0xc8] sm:$0xff] %v1767
  %1832 = vst [vmem:[%s3 + $0xd0] sm:$0xff] %v1768
  %1833 = vst [vmem:[%s3 + $0xd8] sm:$0xff] %v1769
  %1834 = vst [vmem:[%s3 + $0xe0] sm:$0xff] %v1770
  %1835 = vst [vmem:[%s3 + $0xe8] sm:$0xff] %v1771
  %1836 = vst [vmem:[%s3 + $0xf0] sm:$0xff] %v1772
  %1837 = vst [vmem:[%s3 + $0xf8] sm:$0xff] %v1773
  %1838 = vst [vmem:[%s3 + $0x100] sm:$0xff] %v1774
  %1839 = vst [vmem:[%s3 + $0x108] sm:$0xff] %v1775
  %1840 = vst [vmem:[%s3 + $0x110] sm:$0xff] %v1776
  %1841 = vst [vmem:[%s3 + $0x118] sm:$0xff] %v1777
  %1842 = vst [vmem:[%s3 + $0x120] sm:$0xff] %v1778
  %1843 = vst [vmem:[%s3 + $0x128] sm:$0xff] %v1779
  %1844 = vst [vmem:[%s3 + $0x130] sm:$0xff] %v1780
  %1845 = vst [vmem:[%s3 + $0x138] sm:$0xff] %v1781
  %1846 = vst [vmem:[%s3 + $0x140] sm:$0xff] %v1782
  %1847 = vst [vmem:[%s3 + $0x148] sm:$0xff] %v1783
  %1848 = vst [vmem:[%s3 + $0x150] sm:$0xff] %v1784
  %1849 = vst [vmem:[%s3 + $0x158] sm:$0xff] %v1785
  %1850 = vst [vmem:[%s3 + $0x160] sm:$0xff] %v1786
  %1851 = vst [vmem:[%s3 + $0x168] sm:$0xff] %v1787
  %1852 = vst [vmem:[%s3 + $0x170] sm:$0xff] %v1788
  %1853 = vst [vmem:[%s3 + $0x178] sm:$0xff] %v1789
  %1854 = vst [vmem:[%s3 + $0x180] sm:$0xff] %v1790
  %1855 = vst [vmem:[%s3 + $0x188] sm:$0xff] %v1791
  %1856 = vst [vmem:[%s3 + $0x190] sm:$0xff] %v1792
  %1857 = vst [vmem:[%s3 + $0x198] sm:$0xff] %v1793
  %1858 = vst [vmem:[%s3 + $0x1a0] sm:$0xff] %v1794
  %1859 = vst [vmem:[%s3 + $0x1a8] sm:$0xff] %v1795
  %1860 = vst [vmem:[%s3 + $0x1b0] sm:$0xff] %v1796
  %1861 = vst [vmem:[%s3 + $0x1b8] sm:$0xff] %v1797
  %1862 = vst [vmem:[%s3 + $0x1c0] sm:$0xff] %v1798
  %1863 = vst [vmem:[%s3 + $0x1c8] sm:$0xff] %v1799
  %1864 = vst [vmem:[%s3 + $0x1d0] sm:$0xff] %v1800
  %1865 = vst [vmem:[%s3 + $0x1d8] sm:$0xff] %v1801
  %1866 = vst [vmem:[%s3 + $0x1e0] sm:$0xff] %v1802
  %1867 = vst [vmem:[%s3 + $0x1e8] sm:$0xff] %v1803
  %1868 = vst [vmem:[%s3 + $0x1f0] sm:$0xff] %v1804
  %1869 = vst [vmem:[%s3 + $0x1f8] sm:$0xff] %v1805
  // Predicated region
  $region14: #{fwd.65} parent=0 // pred_check
    _
  $region15: #{fwd.65} parent=0 // pred_check_branch
    %1871 = sbr.rel (0) target = $region17
  $region16: #{fwd.65} parent=0 // pred_region
    _
  $region17: #{fwd.65} parent=0 // pred_fallthru
    _
  // Predicated region
  $region18: #{fwd.65} parent=0 // pred_check
    _
  $region19: #{fwd.65} parent=0 // pred_check_branch
    %1873 = sbr.rel (0) target = $region21
  $region20: #{fwd.65} parent=0 // pred_region
    _
  $region21: #{fwd.65} parent=0 // pred_fallthru
    _

// kernel: squeeze.67
$region0: #{squeeze.67}
  %s0 = inlined_call_operand.vmem [shape: f32[12,128], index: 0, kind: input, shape index: {}]
  %s1 = inlined_call_operand.vmem [shape: f32[2,16,16,3], index: 1, kind: output, shape index: {}]
  %v2 = vld [vmem:[%s0] ss:$3 sm:$0xf]
  %vm3 = vcmask 23552
  %4 = vst.msk [vmem:[%s1] sm:$0x1] %vm3, %v2
  %s5 = scalar_lea.vmem %s1, 127
  %6 = vst.msk [vmem:[%s5] sm:$0x2] %vm3, %v2
  %s7 = scalar_lea.vmem %s1, 254
  %8 = vst.msk [vmem:[%s7] sm:$0x4] %vm3, %v2
  %s9 = scalar_lea.vmem %s1, 381
  %10 = vst.msk [vmem:[%s9] sm:$0x8] %vm3, %v2
  %s11 = scalar_lea.vmem %s0, 1
  %v12 = vld [vmem:[%s11] ss:$3 sm:$0xf]
  %13 = vrot.lane.b32.xlu0 %v12, 127
  %v14 = vpop.permute.xlu0 %13
  %vm15 = vcmask 23552
  %s16 = scalar_lea.vmem %s1, 43
  %17 = vst.msk [vmem:[%s16] sm:$0x1] %vm15, %v14
  %s18 = scalar_lea.vmem %s1, 170
  %19 = vst.msk [vmem:[%s18] sm:$0x2] %vm15, %v14
  %s20 = scalar_lea.vmem %s1, 297
  %21 = vst.msk [vmem:[%s20] sm:$0x4] %vm15, %v14
  %s22 = scalar_lea.vmem %s1, 424
  %23 = vst.msk [vmem:[%s22] sm:$0x8] %vm15, %v14
  %s24 = scalar_lea.vmem %s0, 2
  %v25 = vld [vmem:[%s24] ss:$3 sm:$0xf]
  %26 = vrot.lane.b32.xlu0 %v25, 126
  %v27 = vpop.permute.xlu0 %26
  %vm28 = vcmask 23552
  %s29 = scalar_lea.vmem %s1, 86
  %30 = vst.msk [vmem:[%s29] sm:$0x1] %vm28, %v27
  %s31 = scalar_lea.vmem %s1, 213
  %32 = vst.msk [vmem:[%s31] sm:$0x2] %vm28, %v27
  %s33 = scalar_lea.vmem %s1, 340
  %34 = vst.msk [vmem:[%s33] sm:$0x4] %vm28, %v27
  %s35 = scalar_lea.vmem %s1, 467
  %36 = vst.msk [vmem:[%s35] sm:$0x8] %vm28, %v27
  %v37 = vld [vmem:[%s0] ss:$3 sm:$0xf]
  %38 = vrot.lane.b32.xlu0 %v37, 125
  %v39 = vpop.permute.xlu0 %38
  %vm40 = vcmask 23552
  %s41 = scalar_lea.vmem %s1, 1
  %42 = vst.msk [vmem:[%s41] sm:$0x1] %vm40, %v39
  %s43 = scalar_lea.vmem %s1, 128
  %44 = vst.msk [vmem:[%s43] sm:$0x2] %vm40, %v39
  %s45 = scalar_lea.vmem %s1, 255
  %46 = vst.msk [vmem:[%s45] sm:$0x4] %vm40, %v39
  %s47 = scalar_lea.vmem %s1, 382
  %48 = vst.msk [vmem:[%s47] sm:$0x8] %vm40, %v39
  %s49 = scalar_lea.vmem %s0, 1
  %v50 = vld [vmem:[%s49] ss:$3 sm:$0xf]
  %51 = vrot.lane.b32.xlu0 %v50, 124
  %v52 = vpop.permute.xlu0 %51
  %vm53 = vcmask 23552
  %s54 = scalar_lea.vmem %s1, 44
  %55 = vst.msk [vmem:[%s54] sm:$0x1] %vm53, %v52
  %s56 = scalar_lea.vmem %s1, 171
  %57 = vst.msk [vmem:[%s56] sm:$0x2] %vm53, %v52
  %s58 = scalar_lea.vmem %s1, 298
  %59 = vst.msk [vmem:[%s58] sm:$0x4] %vm53, %v52
  %s60 = scalar_lea.vmem %s1, 425
  %61 = vst.msk [vmem:[%s60] sm:$0x8] %vm53, %v52
  %s62 = scalar_lea.vmem %s0, 2
  %v63 = vld [vmem:[%s62] ss:$3 sm:$0xf]
  %64 = vrot.lane.b32.xlu0 %v63, 123
  %v65 = vpop.permute.xlu0 %64
  %vm66 = vcmask 23552
  %s67 = scalar_lea.vmem %s1, 87
  %68 = vst.msk [vmem:[%s67] sm:$0x1] %vm66, %v65
  %s69 = scalar_lea.vmem %s1, 214
  %70 = vst.msk [vmem:[%s69] sm:$0x2] %vm66, %v65
  %s71 = scalar_lea.vmem %s1, 341
  %72 = vst.msk [vmem:[%s71] sm:$0x4] %vm66, %v65
  %s73 = scalar_lea.vmem %s1, 468
  %74 = vst.msk [vmem:[%s73] sm:$0x8] %vm66, %v65
  %v75 = vld [vmem:[%s0] ss:$3 sm:$0xf]
  %76 = vrot.lane.b32.xlu0 %v75, 122
  %v77 = vpop.permute.xlu0 %76
  %vm78 = vcmask 23552
  %s79 = scalar_lea.vmem %s1, 2
  %80 = vst.msk [vmem:[%s79] sm:$0x1] %vm78, %v77
  %s81 = scalar_lea.vmem %s1, 129
  %82 = vst.msk [vmem:[%s81] sm:$0x2] %vm78, %v77
  %s83 = scalar_lea.vmem %s1, 256
  %84 = vst.msk [vmem:[%s83] sm:$0x4] %vm78, %v77
  %s85 = scalar_lea.vmem %s1, 383
  %86 = vst.msk [vmem:[%s85] sm:$0x8] %vm78, %v77
  %s87 = scalar_lea.vmem %s0, 1
  %v88 = vld [vmem:[%s87] ss:$3 sm:$0xf]
  %89 = vrot.lane.b32.xlu0 %v88, 121
  %v90 = vpop.permute.xlu0 %89
  %vm91 = vcmask 23552
  %s92 = scalar_lea.vmem %s1, 45
  %93 = vst.msk [vmem:[%s92] sm:$0x1] %vm91, %v90
  %s94 = scalar_lea.vmem %s1, 172
  %95 = vst.msk [vmem:[%s94] sm:$0x2] %vm91, %v90
  %s96 = scalar_lea.vmem %s1, 299
  %97 = vst.msk [vmem:[%s96] sm:$0x4] %vm91, %v90
  %s98 = scalar_lea.vmem %s1, 426
  %99 = vst.msk [vmem:[%s98] sm:$0x8] %vm91, %v90
  %s100 = scalar_lea.vmem %s0, 2
  %v101 = vld [vmem:[%s100] ss:$3 sm:$0xf]
  %102 = vrot.lane.b32.xlu0 %v101, 120
  %v103 = vpop.permute.xlu0 %102
  %vm104 = vcmask 23552
  %s105 = scalar_lea.vmem %s1, 88
  %106 = vst.msk [vmem:[%s105] sm:$0x1] %vm104, %v103
  %s107 = scalar_lea.vmem %s1, 215
  %108 = vst.msk [vmem:[%s107] sm:$0x2] %vm104, %v103
  %s109 = scalar_lea.vmem %s1, 342
  %110 = vst.msk [vmem:[%s109] sm:$0x4] %vm104, %v103
  %s111 = scalar_lea.vmem %s1, 469
  %112 = vst.msk [vmem:[%s111] sm:$0x8] %vm104, %v103
  %v113 = vld [vmem:[%s0] ss:$3 sm:$0xf]
  %114 = vrot.lane.b32.xlu0 %v113, 119
  %v115 = vpop.permute.xlu0 %114
  %vm116 = vcmask 23552
  %s117 = scalar_lea.vmem %s1, 3
  %118 = vst.msk [vmem:[%s117] sm:$0x1] %vm116, %v115
  %s119 = scalar_lea.vmem %s1, 130
  %120 = vst.msk [vmem:[%s119] sm:$0x2] %vm116, %v115
  %s121 = scalar_lea.vmem %s1, 257
  %122 = vst.msk [vmem:[%s121] sm:$0x4] %vm116, %v115
  %s123 = scalar_lea.vmem %s1, 384
  %124 = vst.msk [vmem:[%s123] sm:$0x8] %vm116, %v115
  %s125 = scalar_lea.vmem %s0, 1
  %v126 = vld [vmem:[%s125] ss:$3 sm:$0xf]
  %127 = vrot.lane.b32.xlu0 %v126, 118
  %v128 = vpop.permute.xlu0 %127
  %vm129 = vcmask 23552
  %s130 = scalar_lea.vmem %s1, 46
  %131 = vst.msk [vmem:[%s130] sm:$0x1] %vm129, %v128
  %s132 = scalar_lea.vmem %s1, 173
  %133 = vst.msk [vmem:[%s132] sm:$0x2] %vm129, %v128
  %s134 = scalar_lea.vmem %s1, 300
  %135 = vst.msk [vmem:[%s134] sm:$0x4] %vm129, %v128
  %s136 = scalar_lea.vmem %s1, 427
  %137 = vst.msk [vmem:[%s136] sm:$0x8] %vm129, %v128
  %s138 = scalar_lea.vmem %s0, 2
  %v139 = vld [vmem:[%s138] ss:$3 sm:$0xf]
  %140 = vrot.lane.b32.xlu0 %v139, 117
  %v141 = vpop.permute.xlu0 %140
  %vm142 = vcmask 23552
  %s143 = scalar_lea.vmem %s1, 89
  %144 = vst.msk [vmem:[%s143] sm:$0x1] %vm142, %v141
  %s145 = scalar_lea.vmem %s1, 216
  %146 = vst.msk [vmem:[%s145] sm:$0x2] %vm142, %v141
  %s147 = scalar_lea.vmem %s1, 343
  %148 = vst.msk [vmem:[%s147] sm:$0x4] %vm142, %v141
  %s149 = scalar_lea.vmem %s1, 470
  %150 = vst.msk [vmem:[%s149] sm:$0x8] %vm142, %v141
  %v151 = vld [vmem:[%s0] ss:$3 sm:$0xf]
  %152 = vrot.lane.b32.xlu0 %v151, 116
  %v153 = vpop.permute.xlu0 %152
  %vm154 = vcmask 23552
  %s155 = scalar_lea.vmem %s1, 4
  %156 = vst.msk [vmem:[%s155] sm:$0x1] %vm154, %v153
  %s157 = scalar_lea.vmem %s1, 131
  %158 = vst.msk [vmem:[%s157] sm:$0x2] %vm154, %v153
  %s159 = scalar_lea.vmem %s1, 258
  %160 = vst.msk [vmem:[%s159] sm:$0x4] %vm154, %v153
  %s161 = scalar_lea.vmem %s1, 385
  %162 = vst.msk [vmem:[%s161] sm:$0x8] %vm154, %v153
  %s163 = scalar_lea.vmem %s0, 1
  %v164 = vld [vmem:[%s163] ss:$3 sm:$0xf]
  %165 = vrot.lane.b32.xlu0 %v164, 115
  %v166 = vpop.permute.xlu0 %165
  %vm167 = vcmask 23552
  %s168 = scalar_lea.vmem %s1, 47
  %169 = vst.msk [vmem:[%s168] sm:$0x1] %vm167, %v166
  %s170 = scalar_lea.vmem %s1, 174
  %171 = vst.msk [vmem:[%s170] sm:$0x2] %vm167, %v166
  %s172 = scalar_lea.vmem %s1, 301
  %173 = vst.msk [vmem:[%s172] sm:$0x4] %vm167, %v166
  %s174 = scalar_lea.vmem %s1, 428
  %175 = vst.msk [vmem:[%s174] sm:$0x8] %vm167, %v166
  %s176 = scalar_lea.vmem %s0, 2
  %v177 = vld [vmem:[%s176] ss:$3 sm:$0xf]
  %178 = vrot.lane.b32.xlu0 %v177, 114
  %v179 = vpop.permute.xlu0 %178
  %vm180 = vcmask 23552
  %s181 = scalar_lea.vmem %s1, 90
  %182 = vst.msk [vmem:[%s181] sm:$0x1] %vm180, %v179
  %s183 = scalar_lea.vmem %s1, 217
  %184 = vst.msk [vmem:[%s183] sm:$0x2] %vm180, %v179
  %s185 = scalar_lea.vmem %s1, 344
  %186 = vst.msk [vmem:[%s185] sm:$0x4] %vm180, %v179
  %s187 = scalar_lea.vmem %s1, 471
  %188 = vst.msk [vmem:[%s187] sm:$0x8] %vm180, %v179
  %v189 = vld [vmem:[%s0] ss:$3 sm:$0xf]
  %190 = vrot.lane.b32.xlu0 %v189, 113
  %v191 = vpop.permute.xlu0 %190
  %vm192 = vcmask 23552
  %s193 = scalar_lea.vmem %s1, 5
  %194 = vst.msk [vmem:[%s193] sm:$0x1] %vm192, %v191
  %s195 = scalar_lea.vmem %s1, 132
  %196 = vst.msk [vmem:[%s195] sm:$0x2] %vm192, %v191
  %s197 = scalar_lea.vmem %s1, 259
  %198 = vst.msk [vmem:[%s197] sm:$0x4] %vm192, %v191
  %s199 = scalar_lea.vmem %s1, 386
  %200 = vst.msk [vmem:[%s199] sm:$0x8] %vm192, %v191
  %s201 = scalar_lea.vmem %s0, 1
  %v202 = vld [vmem:[%s201] ss:$3 sm:$0xf]
  %203 = vrot.lane.b32.xlu0 %v202, 112
  %v204 = vpop.permute.xlu0 %203
  %vm205 = vcmask 23552
  %s206 = scalar_lea.vmem %s1, 48
  %207 = vst.msk [vmem:[%s206] sm:$0x1] %vm205, %v204
  %s208 = scalar_lea.vmem %s1, 175
  %209 = vst.msk [vmem:[%s208] sm:$0x2] %vm205, %v204
  %s210 = scalar_lea.vmem %s1, 302
  %211 = vst.msk [vmem:[%s210] sm:$0x4] %vm205, %v204
  %s212 = scalar_lea.vmem %s1, 429
  %213 = vst.msk [vmem:[%s212] sm:$0x8] %vm205, %v204
  %s214 = scalar_lea.vmem %s0, 2
  %v215 = vld [vmem:[%s214] ss:$3 sm:$0xf]
  %216 = vrot.lane.b32.xlu0 %v215, 111
  %v217 = vpop.permute.xlu0 %216
  %vm218 = vcmask 23552
  %s219 = scalar_lea.vmem %s1, 91
  %220 = vst.msk [vmem:[%s219] sm:$0x1] %vm218, %v217
  %s221 = scalar_lea.vmem %s1, 218
  %222 = vst.msk [vmem:[%s221] sm:$0x2] %vm218, %v217
  %s223 = scalar_lea.vmem %s1, 345
  %224 = vst.msk [vmem:[%s223] sm:$0x4] %vm218, %v217
  %s225 = scalar_lea.vmem %s1, 472
  %226 = vst.msk [vmem:[%s225] sm:$0x8] %vm218, %v217
  %v227 = vld [vmem:[%s0] ss:$3 sm:$0xf]
  %228 = vrot.lane.b32.xlu0 %v227, 110
  %v229 = vpop.permute.xlu0 %228
  %vm230 = vcmask 23552
  %s231 = scalar_lea.vmem %s1, 6
  %232 = vst.msk [vmem:[%s231] sm:$0x1] %vm230, %v229
  %s233 = scalar_lea.vmem %s1, 133
  %234 = vst.msk [vmem:[%s233] sm:$0x2] %vm230, %v229
  %s235 = scalar_lea.vmem %s1, 260
  %236 = vst.msk [vmem:[%s235] sm:$0x4] %vm230, %v229
  %s237 = scalar_lea.vmem %s1, 387
  %238 = vst.msk [vmem:[%s237] sm:$0x8] %vm230, %v229
  %s239 = scalar_lea.vmem %s0, 1
  %v240 = vld [vmem:[%s239] ss:$3 sm:$0xf]
  %241 = vrot.lane.b32.xlu0 %v240, 109
  %v242 = vpop.permute.xlu0 %241
  %vm243 = vcmask 23552
  %s244 = scalar_lea.vmem %s1, 49
  %245 = vst.msk [vmem:[%s244] sm:$0x1] %vm243, %v242
  %s246 = scalar_lea.vmem %s1, 176
  %247 = vst.msk [vmem:[%s246] sm:$0x2] %vm243, %v242
  %s248 = scalar_lea.vmem %s1, 303
  %249 = vst.msk [vmem:[%s248] sm:$0x4] %vm243, %v242
  %s250 = scalar_lea.vmem %s1, 430
  %251 = vst.msk [vmem:[%s250] sm:$0x8] %vm243, %v242
  %s252 = scalar_lea.vmem %s0, 2
  %v253 = vld [vmem:[%s252] ss:$3 sm:$0xf]
  %254 = vrot.lane.b32.xlu0 %v253, 108
  %v255 = vpop.permute.xlu0 %254
  %vm256 = vcmask 23552
  %s257 = scalar_lea.vmem %s1, 92
  %258 = vst.msk [vmem:[%s257] sm:$0x1] %vm256, %v255
  %s259 = scalar_lea.vmem %s1, 219
  %260 = vst.msk [vmem:[%s259] sm:$0x2] %vm256, %v255
  %s261 = scalar_lea.vmem %s1, 346
  %262 = vst.msk [vmem:[%s261] sm:$0x4] %vm256, %v255
  %s263 = scalar_lea.vmem %s1, 473
  %264 = vst.msk [vmem:[%s263] sm:$0x8] %vm256, %v255
  %v265 = vld [vmem:[%s0] ss:$3 sm:$0xf]
  %266 = vrot.lane.b32.xlu0 %v265, 107
  %v267 = vpop.permute.xlu0 %266
  %vm268 = vcmask 23552
  %s269 = scalar_lea.vmem %s1, 7
  %270 = vst.msk [vmem:[%s269] sm:$0x1] %vm268, %v267
  %s271 = scalar_lea.vmem %s1, 134
  %272 = vst.msk [vmem:[%s271] sm:$0x2] %vm268, %v267
  %s273 = scalar_lea.vmem %s1, 261
  %274 = vst.msk [vmem:[%s273] sm:$0x4] %vm268, %v267
  %s275 = scalar_lea.vmem %s1, 388
  %276 = vst.msk [vmem:[%s275] sm:$0x8] %vm268, %v267
  %s277 = scalar_lea.vmem %s0, 1
  %v278 = vld [vmem:[%s277] ss:$3 sm:$0xf]
  %279 = vrot.lane.b32.xlu0 %v278, 106
  %v280 = vpop.permute.xlu0 %279
  %vm281 = vcmask 23552
  %s282 = scalar_lea.vmem %s1, 50
  %283 = vst.msk [vmem:[%s282] sm:$0x1] %vm281, %v280
  %s284 = scalar_lea.vmem %s1, 177
  %285 = vst.msk [vmem:[%s284] sm:$0x2] %vm281, %v280
  %s286 = scalar_lea.vmem %s1, 304
  %287 = vst.msk [vmem:[%s286] sm:$0x4] %vm281, %v280
  %s288 = scalar_lea.vmem %s1, 431
  %289 = vst.msk [vmem:[%s288] sm:$0x8] %vm281, %v280
  %s290 = scalar_lea.vmem %s0, 2
  %v291 = vld [vmem:[%s290] ss:$3 sm:$0xf]
  %292 = vrot.lane.b32.xlu0 %v291, 105
  %v293 = vpop.permute.xlu0 %292
  %vm294 = vcmask 23552
  %s295 = scalar_lea.vmem %s1, 93
  %296 = vst.msk [vmem:[%s295] sm:$0x1] %vm294, %v293
  %s297 = scalar_lea.vmem %s1, 220
  %298 = vst.msk [vmem:[%s297] sm:$0x2] %vm294, %v293
  %s299 = scalar_lea.vmem %s1, 347
  %300 = vst.msk [vmem:[%s299] sm:$0x4] %vm294, %v293
  %s301 = scalar_lea.vmem %s1, 474
  %302 = vst.msk [vmem:[%s301] sm:$0x8] %vm294, %v293
  %v303 = vld [vmem:[%s0] ss:$3 sm:$0xf]
  %304 = vrot.lane.b32.xlu0 %v303, 104
  %v305 = vpop.permute.xlu0 %304
  %vm306 = vcmask 23552
  %s307 = scalar_lea.vmem %s1, 8
  %308 = vst.msk [vmem:[%s307] sm:$0x1] %vm306, %v305
  %s309 = scalar_lea.vmem %s1, 135
  %310 = vst.msk [vmem:[%s309] sm:$0x2] %vm306, %v305
  %s311 = scalar_lea.vmem %s1, 262
  %312 = vst.msk [vmem:[%s311] sm:$0x4] %vm306, %v305
  %s313 = scalar_lea.vmem %s1, 389
  %314 = vst.msk [vmem:[%s313] sm:$0x8] %vm306, %v305
  %s315 = scalar_lea.vmem %s0, 1
  %v316 = vld [vmem:[%s315] ss:$3 sm:$0xf]
  %317 = vrot.lane.b32.xlu0 %v316, 103
  %v318 = vpop.permute.xlu0 %317
  %vm319 = vcmask 23552
  %s320 = scalar_lea.vmem %s1, 51
  %321 = vst.msk [vmem:[%s320] sm:$0x1] %vm319, %v318
  %s322 = scalar_lea.vmem %s1, 178
  %323 = vst.msk [vmem:[%s322] sm:$0x2] %vm319, %v318
  %s324 = scalar_lea.vmem %s1, 305
  %325 = vst.msk [vmem:[%s324] sm:$0x4] %vm319, %v318
  %s326 = scalar_lea.vmem %s1, 432
  %327 = vst.msk [vmem:[%s326] sm:$0x8] %vm319, %v318
  %s328 = scalar_lea.vmem %s0, 2
  %v329 = vld [vmem:[%s328] ss:$3 sm:$0xf]
  %330 = vrot.lane.b32.xlu0 %v329, 102
  %v331 = vpop.permute.xlu0 %330
  %vm332 = vcmask 23552
  %s333 = scalar_lea.vmem %s1, 94
  %334 = vst.msk [vmem:[%s333] sm:$0x1] %vm332, %v331
  %s335 = scalar_lea.vmem %s1, 221
  %336 = vst.msk [vmem:[%s335] sm:$0x2] %vm332, %v331
  %s337 = scalar_lea.vmem %s1, 348
  %338 = vst.msk [vmem:[%s337] sm:$0x4] %vm332, %v331
  %s339 = scalar_lea.vmem %s1, 475
  %340 = vst.msk [vmem:[%s339] sm:$0x8] %vm332, %v331
  %v341 = vld [vmem:[%s0] ss:$3 sm:$0xf]
  %342 = vrot.lane.b32.xlu0 %v341, 101
  %v343 = vpop.permute.xlu0 %342
  %vm344 = vcmask 23552
  %s345 = scalar_lea.vmem %s1, 9
  %346 = vst.msk [vmem:[%s345] sm:$0x1] %vm344, %v343
  %s347 = scalar_lea.vmem %s1, 136
  %348 = vst.msk [vmem:[%s347] sm:$0x2] %vm344, %v343
  %s349 = scalar_lea.vmem %s1, 263
  %350 = vst.msk [vmem:[%s349] sm:$0x4] %vm344, %v343
  %s351 = scalar_lea.vmem %s1, 390
  %352 = vst.msk [vmem:[%s351] sm:$0x8] %vm344, %v343
  %s353 = scalar_lea.vmem %s0, 1
  %v354 = vld [vmem:[%s353] ss:$3 sm:$0xf]
  %355 = vrot.lane.b32.xlu0 %v354, 100
  %v356 = vpop.permute.xlu0 %355
  %vm357 = vcmask 23552
  %s358 = scalar_lea.vmem %s1, 52
  %359 = vst.msk [vmem:[%s358] sm:$0x1] %vm357, %v356
  %s360 = scalar_lea.vmem %s1, 179
  %361 = vst.msk [vmem:[%s360] sm:$0x2] %vm357, %v356
  %s362 = scalar_lea.vmem %s1, 306
  %363 = vst.msk [vmem:[%s362] sm:$0x4] %vm357, %v356
  %s364 = scalar_lea.vmem %s1, 433
  %365 = vst.msk [vmem:[%s364] sm:$0x8] %vm357, %v356
  %s366 = scalar_lea.vmem %s0, 2
  %v367 = vld [vmem:[%s366] ss:$3 sm:$0xf]
  %368 = vrot.lane.b32.xlu0 %v367, 99
  %v369 = vpop.permute.xlu0 %368
  %vm370 = vcmask 23552
  %s371 = scalar_lea.vmem %s1, 95
  %372 = vst.msk [vmem:[%s371] sm:$0x1] %vm370, %v369
  %s373 = scalar_lea.vmem %s1, 222
  %374 = vst.msk [vmem:[%s373] sm:$0x2] %vm370, %v369
  %s375 = scalar_lea.vmem %s1, 349
  %376 = vst.msk [vmem:[%s375] sm:$0x4] %vm370, %v369
  %s377 = scalar_lea.vmem %s1, 476
  %378 = vst.msk [vmem:[%s377] sm:$0x8] %vm370, %v369
  %v379 = vld [vmem:[%s0] ss:$3 sm:$0xf]
  %380 = vrot.lane.b32.xlu0 %v379, 98
  %v381 = vpop.permute.xlu0 %380
  %vm382 = vcmask 23552
  %s383 = scalar_lea.vmem %s1, 10
  %384 = vst.msk [vmem:[%s383] sm:$0x1] %vm382, %v381
  %s385 = scalar_lea.vmem %s1, 137
  %386 = vst.msk [vmem:[%s385] sm:$0x2] %vm382, %v381
  %s387 = scalar_lea.vmem %s1, 264
  %388 = vst.msk [vmem:[%s387] sm:$0x4] %vm382, %v381
  %s389 = scalar_lea.vmem %s1, 391
  %390 = vst.msk [vmem:[%s389] sm:$0x8] %vm382, %v381
  %s391 = scalar_lea.vmem %s0, 1
  %v392 = vld [vmem:[%s391] ss:$3 sm:$0xf]
  %393 = vrot.lane.b32.xlu0 %v392, 97
  %v394 = vpop.permute.xlu0 %393
  %vm395 = vcmask 23552
  %s396 = scalar_lea.vmem %s1, 53
  %397 = vst.msk [vmem:[%s396] sm:$0x1] %vm395, %v394
  %s398 = scalar_lea.vmem %s1, 180
  %399 = vst.msk [vmem:[%s398] sm:$0x2] %vm395, %v394
  %s400 = scalar_lea.vmem %s1, 307
  %401 = vst.msk [vmem:[%s400] sm:$0x4] %vm395, %v394
  %s402 = scalar_lea.vmem %s1, 434
  %403 = vst.msk [vmem:[%s402] sm:$0x8] %vm395, %v394
  %s404 = scalar_lea.vmem %s0, 2
  %v405 = vld [vmem:[%s404] ss:$3 sm:$0xf]
  %406 = vrot.lane.b32.xlu0 %v405, 96
  %v407 = vpop.permute.xlu0 %406
  %vm408 = vcmask 23552
  %s409 = scalar_lea.vmem %s1, 96
  %410 = vst.msk [vmem:[%s409] sm:$0x1] %vm408, %v407
  %s411 = scalar_lea.vmem %s1, 223
  %412 = vst.msk [vmem:[%s411] sm:$0x2] %vm408, %v407
  %s413 = scalar_lea.vmem %s1, 350
  %414 = vst.msk [vmem:[%s413] sm:$0x4] %vm408, %v407
  %s415 = scalar_lea.vmem %s1, 477
  %416 = vst.msk [vmem:[%s415] sm:$0x8] %vm408, %v407
  %v417 = vld [vmem:[%s0] ss:$3 sm:$0xf]
  %418 = vrot.lane.b32.xlu0 %v417, 95
  %v419 = vpop.permute.xlu0 %418
  %vm420 = vcmask 23552
  %s421 = scalar_lea.vmem %s1, 11
  %422 = vst.msk [vmem:[%s421] sm:$0x1] %vm420, %v419
  %s423 = scalar_lea.vmem %s1, 138
  %424 = vst.msk [vmem:[%s423] sm:$0x2] %vm420, %v419
  %s425 = scalar_lea.vmem %s1, 265
  %426 = vst.msk [vmem:[%s425] sm:$0x4] %vm420, %v419
  %s427 = scalar_lea.vmem %s1, 392
  %428 = vst.msk [vmem:[%s427] sm:$0x8] %vm420, %v419
  %s429 = scalar_lea.vmem %s0, 1
  %v430 = vld [vmem:[%s429] ss:$3 sm:$0xf]
  %431 = vrot.lane.b32.xlu0 %v430, 94
  %v432 = vpop.permute.xlu0 %431
  %vm433 = vcmask 23552
  %s434 = scalar_lea.vmem %s1, 54
  %435 = vst.msk [vmem:[%s434] sm:$0x1] %vm433, %v432
  %s436 = scalar_lea.vmem %s1, 181
  %437 = vst.msk [vmem:[%s436] sm:$0x2] %vm433, %v432
  %s438 = scalar_lea.vmem %s1, 308
  %439 = vst.msk [vmem:[%s438] sm:$0x4] %vm433, %v432
  %s440 = scalar_lea.vmem %s1, 435
  %441 = vst.msk [vmem:[%s440] sm:$0x8] %vm433, %v432
  %s442 = scalar_lea.vmem %s0, 2
  %v443 = vld [vmem:[%s442] ss:$3 sm:$0xf]
  %444 = vrot.lane.b32.xlu0 %v443, 93
  %v445 = vpop.permute.xlu0 %444
  %vm446 = vcmask 23552
  %s447 = scalar_lea.vmem %s1, 97
  %448 = vst.msk [vmem:[%s447] sm:$0x1] %vm446, %v445
  %s449 = scalar_lea.vmem %s1, 224
  %450 = vst.msk [vmem:[%s449] sm:$0x2] %vm446, %v445
  %s451 = scalar_lea.vmem %s1, 351
  %452 = vst.msk [vmem:[%s451] sm:$0x4] %vm446, %v445
  %s453 = scalar_lea.vmem %s1, 478
  %454 = vst.msk [vmem:[%s453] sm:$0x8] %vm446, %v445
  %v455 = vld [vmem:[%s0] ss:$3 sm:$0xf]
  %456 = vrot.lane.b32.xlu0 %v455, 92
  %v457 = vpop.permute.xlu0 %456
  %vm458 = vcmask 23552
  %s459 = scalar_lea.vmem %s1, 12
  %460 = vst.msk [vmem:[%s459] sm:$0x1] %vm458, %v457
  %s461 = scalar_lea.vmem %s1, 139
  %462 = vst.msk [vmem:[%s461] sm:$0x2] %vm458, %v457
  %s463 = scalar_lea.vmem %s1, 266
  %464 = vst.msk [vmem:[%s463] sm:$0x4] %vm458, %v457
  %s465 = scalar_lea.vmem %s1, 393
  %466 = vst.msk [vmem:[%s465] sm:$0x8] %vm458, %v457
  %s467 = scalar_lea.vmem %s0, 1
  %v468 = vld [vmem:[%s467] ss:$3 sm:$0xf]
  %469 = vrot.lane.b32.xlu0 %v468, 91
  %v470 = vpop.permute.xlu0 %469
  %vm471 = vcmask 23552
  %s472 = scalar_lea.vmem %s1, 55
  %473 = vst.msk [vmem:[%s472] sm:$0x1] %vm471, %v470
  %s474 = scalar_lea.vmem %s1, 182
  %475 = vst.msk [vmem:[%s474] sm:$0x2] %vm471, %v470
  %s476 = scalar_lea.vmem %s1, 309
  %477 = vst.msk [vmem:[%s476] sm:$0x4] %vm471, %v470
  %s478 = scalar_lea.vmem %s1, 436
  %479 = vst.msk [vmem:[%s478] sm:$0x8] %vm471, %v470
  %s480 = scalar_lea.vmem %s0, 2
  %v481 = vld [vmem:[%s480] ss:$3 sm:$0xf]
  %482 = vrot.lane.b32.xlu0 %v481, 90
  %v483 = vpop.permute.xlu0 %482
  %vm484 = vcmask 23552
  %s485 = scalar_lea.vmem %s1, 98
  %486 = vst.msk [vmem:[%s485] sm:$0x1] %vm484, %v483
  %s487 = scalar_lea.vmem %s1, 225
  %488 = vst.msk [vmem:[%s487] sm:$0x2] %vm484, %v483
  %s489 = scalar_lea.vmem %s1, 352
  %490 = vst.msk [vmem:[%s489] sm:$0x4] %vm484, %v483
  %s491 = scalar_lea.vmem %s1, 479
  %492 = vst.msk [vmem:[%s491] sm:$0x8] %vm484, %v483
  %v493 = vld [vmem:[%s0] ss:$3 sm:$0xf]
  %494 = vrot.lane.b32.xlu0 %v493, 89
  %v495 = vpop.permute.xlu0 %494
  %vm496 = vcmask 23552
  %s497 = scalar_lea.vmem %s1, 13
  %498 = vst.msk [vmem:[%s497] sm:$0x1] %vm496, %v495
  %s499 = scalar_lea.vmem %s1, 140
  %500 = vst.msk [vmem:[%s499] sm:$0x2] %vm496, %v495
  %s501 = scalar_lea.vmem %s1, 267
  %502 = vst.msk [vmem:[%s501] sm:$0x4] %vm496, %v495
  %s503 = scalar_lea.vmem %s1, 394
  %504 = vst.msk [vmem:[%s503] sm:$0x8] %vm496, %v495
  %s505 = scalar_lea.vmem %s0, 1
  %v506 = vld [vmem:[%s505] ss:$3 sm:$0xf]
  %507 = vrot.lane.b32.xlu0 %v506, 88
  %v508 = vpop.permute.xlu0 %507
  %vm509 = vcmask 23552
  %s510 = scalar_lea.vmem %s1, 56
  %511 = vst.msk [vmem:[%s510] sm:$0x1] %vm509, %v508
  %s512 = scalar_lea.vmem %s1, 183
  %513 = vst.msk [vmem:[%s512] sm:$0x2] %vm509, %v508
  %s514 = scalar_lea.vmem %s1, 310
  %515 = vst.msk [vmem:[%s514] sm:$0x4] %vm509, %v508
  %s516 = scalar_lea.vmem %s1, 437
  %517 = vst.msk [vmem:[%s516] sm:$0x8] %vm509, %v508
  %s518 = scalar_lea.vmem %s0, 2
  %v519 = vld [vmem:[%s518] ss:$3 sm:$0xf]
  %520 = vrot.lane.b32.xlu0 %v519, 87
  %v521 = vpop.permute.xlu0 %520
  %vm522 = vcmask 23552
  %s523 = scalar_lea.vmem %s1, 99
  %524 = vst.msk [vmem:[%s523] sm:$0x1] %vm522, %v521
  %s525 = scalar_lea.vmem %s1, 226
  %526 = vst.msk [vmem:[%s525] sm:$0x2] %vm522, %v521
  %s527 = scalar_lea.vmem %s1, 353
  %528 = vst.msk [vmem:[%s527] sm:$0x4] %vm522, %v521
  %s529 = scalar_lea.vmem %s1, 480
  %530 = vst.msk [vmem:[%s529] sm:$0x8] %vm522, %v521
  %v531 = vld [vmem:[%s0] ss:$3 sm:$0xf]
  %532 = vrot.lane.b32.xlu0 %v531, 86
  %v533 = vpop.permute.xlu0 %532
  %vm534 = vcmask 23552
  %s535 = scalar_lea.vmem %s1, 14
  %536 = vst.msk [vmem:[%s535] sm:$0x1] %vm534, %v533
  %s537 = scalar_lea.vmem %s1, 141
  %538 = vst.msk [vmem:[%s537] sm:$0x2] %vm534, %v533
  %s539 = scalar_lea.vmem %s1, 268
  %540 = vst.msk [vmem:[%s539] sm:$0x4] %vm534, %v533
  %s541 = scalar_lea.vmem %s1, 395
  %542 = vst.msk [vmem:[%s541] sm:$0x8] %vm534, %v533
  %s543 = scalar_lea.vmem %s0, 1
  %v544 = vld [vmem:[%s543] ss:$3 sm:$0xf]
  %545 = vrot.lane.b32.xlu0 %v544, 85
  %v546 = vpop.permute.xlu0 %545
  %vm547 = vcmask 23552
  %s548 = scalar_lea.vmem %s1, 57
  %549 = vst.msk [vmem:[%s548] sm:$0x1] %vm547, %v546
  %s550 = scalar_lea.vmem %s1, 184
  %551 = vst.msk [vmem:[%s550] sm:$0x2] %vm547, %v546
  %s552 = scalar_lea.vmem %s1, 311
  %553 = vst.msk [vmem:[%s552] sm:$0x4] %vm547, %v546
  %s554 = scalar_lea.vmem %s1, 438
  %555 = vst.msk [vmem:[%s554] sm:$0x8] %vm547, %v546
  %s556 = scalar_lea.vmem %s0, 2
  %v557 = vld [vmem:[%s556] ss:$3 sm:$0xf]
  %558 = vrot.lane.b32.xlu0 %v557, 84
  %v559 = vpop.permute.xlu0 %558
  %vm560 = vcmask 23552
  %s561 = scalar_lea.vmem %s1, 100
  %562 = vst.msk [vmem:[%s561] sm:$0x1] %vm560, %v559
  %s563 = scalar_lea.vmem %s1, 227
  %564 = vst.msk [vmem:[%s563] sm:$0x2] %vm560, %v559
  %s565 = scalar_lea.vmem %s1, 354
  %566 = vst.msk [vmem:[%s565] sm:$0x4] %vm560, %v559
  %s567 = scalar_lea.vmem %s1, 481
  %568 = vst.msk [vmem:[%s567] sm:$0x8] %vm560, %v559
  %v569 = vld [vmem:[%s0] ss:$3 sm:$0xf]
  %570 = vrot.lane.b32.xlu0 %v569, 83
  %v571 = vpop.permute.xlu0 %570
  %vm572 = vcmask 23552
  %s573 = scalar_lea.vmem %s1, 15
  %574 = vst.msk [vmem:[%s573] sm:$0x1] %vm572, %v571
  %s575 = scalar_lea.vmem %s1, 142
  %576 = vst.msk [vmem:[%s575] sm:$0x2] %vm572, %v571
  %s577 = scalar_lea.vmem %s1, 269
  %578 = vst.msk [vmem:[%s577] sm:$0x4] %vm572, %v571
  %s579 = scalar_lea.vmem %s1, 396
  %580 = vst.msk [vmem:[%s579] sm:$0x8] %vm572, %v571
  %s581 = scalar_lea.vmem %s0, 1
  %v582 = vld [vmem:[%s581] ss:$3 sm:$0xf]
  %583 = vrot.lane.b32.xlu0 %v582, 82
  %v584 = vpop.permute.xlu0 %583
  %vm585 = vcmask 23552
  %s586 = scalar_lea.vmem %s1, 58
  %587 = vst.msk [vmem:[%s586] sm:$0x1] %vm585, %v584
  %s588 = scalar_lea.vmem %s1, 185
  %589 = vst.msk [vmem:[%s588] sm:$0x2] %vm585, %v584
  %s590 = scalar_lea.vmem %s1, 312
  %591 = vst.msk [vmem:[%s590] sm:$0x4] %vm585, %v584
  %s592 = scalar_lea.vmem %s1, 439
  %593 = vst.msk [vmem:[%s592] sm:$0x8] %vm585, %v584
  %s594 = scalar_lea.vmem %s0, 2
  %v595 = vld [vmem:[%s594] ss:$3 sm:$0xf]
  %596 = vrot.lane.b32.xlu0 %v595, 81
  %v597 = vpop.permute.xlu0 %596
  %vm598 = vcmask 23552
  %s599 = scalar_lea.vmem %s1, 101
  %600 = vst.msk [vmem:[%s599] sm:$0x1] %vm598, %v597
  %s601 = scalar_lea.vmem %s1, 228
  %602 = vst.msk [vmem:[%s601] sm:$0x2] %vm598, %v597
  %s603 = scalar_lea.vmem %s1, 355
  %604 = vst.msk [vmem:[%s603] sm:$0x4] %vm598, %v597
  %s605 = scalar_lea.vmem %s1, 482
  %606 = vst.msk [vmem:[%s605] sm:$0x8] %vm598, %v597
  %v607 = vld [vmem:[%s0] ss:$3 sm:$0xf]
  %608 = vrot.lane.b32.xlu0 %v607, 80
  %v609 = vpop.permute.xlu0 %608
  %vm610 = vcmask 23552
  %s611 = scalar_lea.vmem %s1, 16
  %612 = vst.msk [vmem:[%s611] sm:$0x1] %vm610, %v609
  %s613 = scalar_lea.vmem %s1, 143
  %614 = vst.msk [vmem:[%s613] sm:$0x2] %vm610, %v609
  %s615 = scalar_lea.vmem %s1, 270
  %616 = vst.msk [vmem:[%s615] sm:$0x4] %vm610, %v609
  %s617 = scalar_lea.vmem %s1, 397
  %618 = vst.msk [vmem:[%s617] sm:$0x8] %vm610, %v609
  %s619 = scalar_lea.vmem %s0, 1
  %v620 = vld [vmem:[%s619] ss:$3 sm:$0xf]
  %621 = vrot.lane.b32.xlu0 %v620, 79
  %v622 = vpop.permute.xlu0 %621
  %vm623 = vcmask 23552
  %s624 = scalar_lea.vmem %s1, 59
  %625 = vst.msk [vmem:[%s624] sm:$0x1] %vm623, %v622
  %s626 = scalar_lea.vmem %s1, 186
  %627 = vst.msk [vmem:[%s626] sm:$0x2] %vm623, %v622
  %s628 = scalar_lea.vmem %s1, 313
  %629 = vst.msk [vmem:[%s628] sm:$0x4] %vm623, %v622
  %s630 = scalar_lea.vmem %s1, 440
  %631 = vst.msk [vmem:[%s630] sm:$0x8] %vm623, %v622
  %s632 = scalar_lea.vmem %s0, 2
  %v633 = vld [vmem:[%s632] ss:$3 sm:$0xf]
  %634 = vrot.lane.b32.xlu0 %v633, 78
  %v635 = vpop.permute.xlu0 %634
  %vm636 = vcmask 23552
  %s637 = scalar_lea.vmem %s1, 102
  %638 = vst.msk [vmem:[%s637] sm:$0x1] %vm636, %v635
  %s639 = scalar_lea.vmem %s1, 229
  %640 = vst.msk [vmem:[%s639] sm:$0x2] %vm636, %v635
  %s641 = scalar_lea.vmem %s1, 356
  %642 = vst.msk [vmem:[%s641] sm:$0x4] %vm636, %v635
  %s643 = scalar_lea.vmem %s1, 483
  %644 = vst.msk [vmem:[%s643] sm:$0x8] %vm636, %v635
  %v645 = vld [vmem:[%s0] ss:$3 sm:$0xf]
  %646 = vrot.lane.b32.xlu0 %v645, 77
  %v647 = vpop.permute.xlu0 %646
  %vm648 = vcmask 23552
  %s649 = scalar_lea.vmem %s1, 17
  %650 = vst.msk [vmem:[%s649] sm:$0x1] %vm648, %v647
  %s651 = scalar_lea.vmem %s1, 144
  %652 = vst.msk [vmem:[%s651] sm:$0x2] %vm648, %v647
  %s653 = scalar_lea.vmem %s1, 271
  %654 = vst.msk [vmem:[%s653] sm:$0x4] %vm648, %v647
  %s655 = scalar_lea.vmem %s1, 398
  %656 = vst.msk [vmem:[%s655] sm:$0x8] %vm648, %v647
  %s657 = scalar_lea.vmem %s0, 1
  %v658 = vld [vmem:[%s657] ss:$3 sm:$0xf]
  %659 = vrot.lane.b32.xlu0 %v658, 76
  %v660 = vpop.permute.xlu0 %659
  %vm661 = vcmask 23552
  %s662 = scalar_lea.vmem %s1, 60
  %663 = vst.msk [vmem:[%s662] sm:$0x1] %vm661, %v660
  %s664 = scalar_lea.vmem %s1, 187
  %665 = vst.msk [vmem:[%s664] sm:$0x2] %vm661, %v660
  %s666 = scalar_lea.vmem %s1, 314
  %667 = vst.msk [vmem:[%s666] sm:$0x4] %vm661, %v660
  %s668 = scalar_lea.vmem %s1, 441
  %669 = vst.msk [vmem:[%s668] sm:$0x8] %vm661, %v660
  %s670 = scalar_lea.vmem %s0, 2
  %v671 = vld [vmem:[%s670] ss:$3 sm:$0xf]
  %672 = vrot.lane.b32.xlu0 %v671, 75
  %v673 = vpop.permute.xlu0 %672
  %vm674 = vcmask 23552
  %s675 = scalar_lea.vmem %s1, 103
  %676 = vst.msk [vmem:[%s675] sm:$0x1] %vm674, %v673
  %s677 = scalar_lea.vmem %s1, 230
  %678 = vst.msk [vmem:[%s677] sm:$0x2] %vm674, %v673
  %s679 = scalar_lea.vmem %s1, 357
  %680 = vst.msk [vmem:[%s679] sm:$0x4] %vm674, %v673
  %s681 = scalar_lea.vmem %s1, 484
  %682 = vst.msk [vmem:[%s681] sm:$0x8] %vm674, %v673
  %v683 = vld [vmem:[%s0] ss:$3 sm:$0xf]
  %684 = vrot.lane.b32.xlu0 %v683, 74
  %v685 = vpop.permute.xlu0 %684
  %vm686 = vcmask 23552
  %s687 = scalar_lea.vmem %s1, 18
  %688 = vst.msk [vmem:[%s687] sm:$0x1] %vm686, %v685
  %s689 = scalar_lea.vmem %s1, 145
  %690 = vst.msk [vmem:[%s689] sm:$0x2] %vm686, %v685
  %s691 = scalar_lea.vmem %s1, 272
  %692 = vst.msk [vmem:[%s691] sm:$0x4] %vm686, %v685
  %s693 = scalar_lea.vmem %s1, 399
  %694 = vst.msk [vmem:[%s693] sm:$0x8] %vm686, %v685
  %s695 = scalar_lea.vmem %s0, 1
  %v696 = vld [vmem:[%s695] ss:$3 sm:$0xf]
  %697 = vrot.lane.b32.xlu0 %v696, 73
  %v698 = vpop.permute.xlu0 %697
  %vm699 = vcmask 23552
  %s700 = scalar_lea.vmem %s1, 61
  %701 = vst.msk [vmem:[%s700] sm:$0x1] %vm699, %v698
  %s702 = scalar_lea.vmem %s1, 188
  %703 = vst.msk [vmem:[%s702] sm:$0x2] %vm699, %v698
  %s704 = scalar_lea.vmem %s1, 315
  %705 = vst.msk [vmem:[%s704] sm:$0x4] %vm699, %v698
  %s706 = scalar_lea.vmem %s1, 442
  %707 = vst.msk [vmem:[%s706] sm:$0x8] %vm699, %v698
  %s708 = scalar_lea.vmem %s0, 2
  %v709 = vld [vmem:[%s708] ss:$3 sm:$0xf]
  %710 = vrot.lane.b32.xlu0 %v709, 72
  %v711 = vpop.permute.xlu0 %710
  %vm712 = vcmask 23552
  %s713 = scalar_lea.vmem %s1, 104
  %714 = vst.msk [vmem:[%s713] sm:$0x1] %vm712, %v711
  %s715 = scalar_lea.vmem %s1, 231
  %716 = vst.msk [vmem:[%s715] sm:$0x2] %vm712, %v711
  %s717 = scalar_lea.vmem %s1, 358
  %718 = vst.msk [vmem:[%s717] sm:$0x4] %vm712, %v711
  %s719 = scalar_lea.vmem %s1, 485
  %720 = vst.msk [vmem:[%s719] sm:$0x8] %vm712, %v711
  %v721 = vld [vmem:[%s0] ss:$3 sm:$0xf]
  %722 = vrot.lane.b32.xlu0 %v721, 71
  %v723 = vpop.permute.xlu0 %722
  %vm724 = vcmask 23552
  %s725 = scalar_lea.vmem %s1, 19
  %726 = vst.msk [vmem:[%s725] sm:$0x1] %vm724, %v723
  %s727 = scalar_lea.vmem %s1, 146
  %728 = vst.msk [vmem:[%s727] sm:$0x2] %vm724, %v723
  %s729 = scalar_lea.vmem %s1, 273
  %730 = vst.msk [vmem:[%s729] sm:$0x4] %vm724, %v723
  %s731 = scalar_lea.vmem %s1, 400
  %732 = vst.msk [vmem:[%s731] sm:$0x8] %vm724, %v723
  %s733 = scalar_lea.vmem %s0, 1
  %v734 = vld [vmem:[%s733] ss:$3 sm:$0xf]
  %735 = vrot.lane.b32.xlu0 %v734, 70
  %v736 = vpop.permute.xlu0 %735
  %vm737 = vcmask 23552
  %s738 = scalar_lea.vmem %s1, 62
  %739 = vst.msk [vmem:[%s738] sm:$0x1] %vm737, %v736
  %s740 = scalar_lea.vmem %s1, 189
  %741 = vst.msk [vmem:[%s740] sm:$0x2] %vm737, %v736
  %s742 = scalar_lea.vmem %s1, 316
  %743 = vst.msk [vmem:[%s742] sm:$0x4] %vm737, %v736
  %s744 = scalar_lea.vmem %s1, 443
  %745 = vst.msk [vmem:[%s744] sm:$0x8] %vm737, %v736
  %s746 = scalar_lea.vmem %s0, 2
  %v747 = vld [vmem:[%s746] ss:$3 sm:$0xf]
  %748 = vrot.lane.b32.xlu0 %v747, 69
  %v749 = vpop.permute.xlu0 %748
  %vm750 = vcmask 23552
  %s751 = scalar_lea.vmem %s1, 105
  %752 = vst.msk [vmem:[%s751] sm:$0x1] %vm750, %v749
  %s753 = scalar_lea.vmem %s1, 232
  %754 = vst.msk [vmem:[%s753] sm:$0x2] %vm750, %v749
  %s755 = scalar_lea.vmem %s1, 359
  %756 = vst.msk [vmem:[%s755] sm:$0x4] %vm750, %v749
  %s757 = scalar_lea.vmem %s1, 486
  %758 = vst.msk [vmem:[%s757] sm:$0x8] %vm750, %v749
  %v759 = vld [vmem:[%s0] ss:$3 sm:$0xf]
  %760 = vrot.lane.b32.xlu0 %v759, 68
  %v761 = vpop.permute.xlu0 %760
  %vm762 = vcmask 23552
  %s763 = scalar_lea.vmem %s1, 20
  %764 = vst.msk [vmem:[%s763] sm:$0x1] %vm762, %v761
  %s765 = scalar_lea.vmem %s1, 147
  %766 = vst.msk [vmem:[%s765] sm:$0x2] %vm762, %v761
  %s767 = scalar_lea.vmem %s1, 274
  %768 = vst.msk [vmem:[%s767] sm:$0x4] %vm762, %v761
  %s769 = scalar_lea.vmem %s1, 401
  %770 = vst.msk [vmem:[%s769] sm:$0x8] %vm762, %v761
  %s771 = scalar_lea.vmem %s0, 1
  %v772 = vld [vmem:[%s771] ss:$3 sm:$0xf]
  %773 = vrot.lane.b32.xlu0 %v772, 67
  %v774 = vpop.permute.xlu0 %773
  %vm775 = vcmask 23552
  %s776 = scalar_lea.vmem %s1, 63
  %777 = vst.msk [vmem:[%s776] sm:$0x1] %vm775, %v774
  %s778 = scalar_lea.vmem %s1, 190
  %779 = vst.msk [vmem:[%s778] sm:$0x2] %vm775, %v774
  %s780 = scalar_lea.vmem %s1, 317
  %781 = vst.msk [vmem:[%s780] sm:$0x4] %vm775, %v774
  %s782 = scalar_lea.vmem %s1, 444
  %783 = vst.msk [vmem:[%s782] sm:$0x8] %vm775, %v774
  %s784 = scalar_lea.vmem %s0, 2
  %v785 = vld [vmem:[%s784] ss:$3 sm:$0xf]
  %786 = vrot.lane.b32.xlu0 %v785, 66
  %v787 = vpop.permute.xlu0 %786
  %vm788 = vcmask 23552
  %s789 = scalar_lea.vmem %s1, 106
  %790 = vst.msk [vmem:[%s789] sm:$0x1] %vm788, %v787
  %s791 = scalar_lea.vmem %s1, 233
  %792 = vst.msk [vmem:[%s791] sm:$0x2] %vm788, %v787
  %s793 = scalar_lea.vmem %s1, 360
  %794 = vst.msk [vmem:[%s793] sm:$0x4] %vm788, %v787
  %s795 = scalar_lea.vmem %s1, 487
  %796 = vst.msk [vmem:[%s795] sm:$0x8] %vm788, %v787
  %v797 = vld [vmem:[%s0] ss:$3 sm:$0xf]
  %798 = vrot.lane.b32.xlu0 %v797, 65
  %v799 = vpop.permute.xlu0 %798
  %vm800 = vcmask 23552
  %s801 = scalar_lea.vmem %s1, 21
  %802 = vst.msk [vmem:[%s801] sm:$0x1] %vm800, %v799
  %s803 = scalar_lea.vmem %s1, 148
  %804 = vst.msk [vmem:[%s803] sm:$0x2] %vm800, %v799
  %s805 = scalar_lea.vmem %s1, 275
  %806 = vst.msk [vmem:[%s805] sm:$0x4] %vm800, %v799
  %s807 = scalar_lea.vmem %s1, 402
  %808 = vst.msk [vmem:[%s807] sm:$0x8] %vm800, %v799
  %s809 = scalar_lea.vmem %s0, 1
  %v810 = vld [vmem:[%s809] ss:$3 sm:$0xf]
  %811 = vrot.lane.b32.xlu0 %v810, 64
  %v812 = vpop.permute.xlu0 %811
  %vm813 = vcmask 23552
  %s814 = scalar_lea.vmem %s1, 64
  %815 = vst.msk [vmem:[%s814] sm:$0x1] %vm813, %v812
  %s816 = scalar_lea.vmem %s1, 191
  %817 = vst.msk [vmem:[%s816] sm:$0x2] %vm813, %v812
  %s818 = scalar_lea.vmem %s1, 318
  %819 = vst.msk [vmem:[%s818] sm:$0x4] %vm813, %v812
  %s820 = scalar_lea.vmem %s1, 445
  %821 = vst.msk [vmem:[%s820] sm:$0x8] %vm813, %v812
  %s822 = scalar_lea.vmem %s0, 2
  %v823 = vld [vmem:[%s822] ss:$3 sm:$0xf]
  %824 = vrot.lane.b32.xlu0 %v823, 63
  %v825 = vpop.permute.xlu0 %824
  %vm826 = vcmask 23552
  %s827 = scalar_lea.vmem %s1, 107
  %828 = vst.msk [vmem:[%s827] sm:$0x1] %vm826, %v825
  %s829 = scalar_lea.vmem %s1, 234
  %830 = vst.msk [vmem:[%s829] sm:$0x2] %vm826, %v825
  %s831 = scalar_lea.vmem %s1, 361
  %832 = vst.msk [vmem:[%s831] sm:$0x4] %vm826, %v825
  %s833 = scalar_lea.vmem %s1, 488
  %834 = vst.msk [vmem:[%s833] sm:$0x8] %vm826, %v825
  %v835 = vld [vmem:[%s0] ss:$3 sm:$0xf]
  %836 = vrot.lane.b32.xlu0 %v835, 62
  %v837 = vpop.permute.xlu0 %836
  %vm838 = vcmask 23552
  %s839 = scalar_lea.vmem %s1, 22
  %840 = vst.msk [vmem:[%s839] sm:$0x1] %vm838, %v837
  %s841 = scalar_lea.vmem %s1, 149
  %842 = vst.msk [vmem:[%s841] sm:$0x2] %vm838, %v837
  %s843 = scalar_lea.vmem %s1, 276
  %844 = vst.msk [vmem:[%s843] sm:$0x4] %vm838, %v837
  %s845 = scalar_lea.vmem %s1, 403
  %846 = vst.msk [vmem:[%s845] sm:$0x8] %vm838, %v837
  %s847 = scalar_lea.vmem %s0, 1
  %v848 = vld [vmem:[%s847] ss:$3 sm:$0xf]
  %849 = vrot.lane.b32.xlu0 %v848, 61
  %v850 = vpop.permute.xlu0 %849
  %vm851 = vcmask 23552
  %s852 = scalar_lea.vmem %s1, 65
  %853 = vst.msk [vmem:[%s852] sm:$0x1] %vm851, %v850
  %s854 = scalar_lea.vmem %s1, 192
  %855 = vst.msk [vmem:[%s854] sm:$0x2] %vm851, %v850
  %s856 = scalar_lea.vmem %s1, 319
  %857 = vst.msk [vmem:[%s856] sm:$0x4] %vm851, %v850
  %s858 = scalar_lea.vmem %s1, 446
  %859 = vst.msk [vmem:[%s858] sm:$0x8] %vm851, %v850
  %s860 = scalar_lea.vmem %s0, 2
  %v861 = vld [vmem:[%s860] ss:$3 sm:$0xf]
  %862 = vrot.lane.b32.xlu0 %v861, 60
  %v863 = vpop.permute.xlu0 %862
  %vm864 = vcmask 23552
  %s865 = scalar_lea.vmem %s1, 108
  %866 = vst.msk [vmem:[%s865] sm:$0x1] %vm864, %v863
  %s867 = scalar_lea.vmem %s1, 235
  %868 = vst.msk [vmem:[%s867] sm:$0x2] %vm864, %v863
  %s869 = scalar_lea.vmem %s1, 362
  %870 = vst.msk [vmem:[%s869] sm:$0x4] %vm864, %v863
  %s871 = scalar_lea.vmem %s1, 489
  %872 = vst.msk [vmem:[%s871] sm:$0x8] %vm864, %v863
  %v873 = vld [vmem:[%s0] ss:$3 sm:$0xf]
  %874 = vrot.lane.b32.xlu0 %v873, 59
  %v875 = vpop.permute.xlu0 %874
  %vm876 = vcmask 23552
  %s877 = scalar_lea.vmem %s1, 23
  %878 = vst.msk [vmem:[%s877] sm:$0x1] %vm876, %v875
  %s879 = scalar_lea.vmem %s1, 150
  %880 = vst.msk [vmem:[%s879] sm:$0x2] %vm876, %v875
  %s881 = scalar_lea.vmem %s1, 277
  %882 = vst.msk [vmem:[%s881] sm:$0x4] %vm876, %v875
  %s883 = scalar_lea.vmem %s1, 404
  %884 = vst.msk [vmem:[%s883] sm:$0x8] %vm876, %v875
  %s885 = scalar_lea.vmem %s0, 1
  %v886 = vld [vmem:[%s885] ss:$3 sm:$0xf]
  %887 = vrot.lane.b32.xlu0 %v886, 58
  %v888 = vpop.permute.xlu0 %887
  %vm889 = vcmask 23552
  %s890 = scalar_lea.vmem %s1, 66
  %891 = vst.msk [vmem:[%s890] sm:$0x1] %vm889, %v888
  %s892 = scalar_lea.vmem %s1, 193
  %893 = vst.msk [vmem:[%s892] sm:$0x2] %vm889, %v888
  %s894 = scalar_lea.vmem %s1, 320
  %895 = vst.msk [vmem:[%s894] sm:$0x4] %vm889, %v888
  %s896 = scalar_lea.vmem %s1, 447
  %897 = vst.msk [vmem:[%s896] sm:$0x8] %vm889, %v888
  %s898 = scalar_lea.vmem %s0, 2
  %v899 = vld [vmem:[%s898] ss:$3 sm:$0xf]
  %900 = vrot.lane.b32.xlu0 %v899, 57
  %v901 = vpop.permute.xlu0 %900
  %vm902 = vcmask 23552
  %s903 = scalar_lea.vmem %s1, 109
  %904 = vst.msk [vmem:[%s903] sm:$0x1] %vm902, %v901
  %s905 = scalar_lea.vmem %s1, 236
  %906 = vst.msk [vmem:[%s905] sm:$0x2] %vm902, %v901
  %s907 = scalar_lea.vmem %s1, 363
  %908 = vst.msk [vmem:[%s907] sm:$0x4] %vm902, %v901
  %s909 = scalar_lea.vmem %s1, 490
  %910 = vst.msk [vmem:[%s909] sm:$0x8] %vm902, %v901
  %v911 = vld [vmem:[%s0] ss:$3 sm:$0xf]
  %912 = vrot.lane.b32.xlu0 %v911, 56
  %v913 = vpop.permute.xlu0 %912
  %vm914 = vcmask 23552
  %s915 = scalar_lea.vmem %s1, 24
  %916 = vst.msk [vmem:[%s915] sm:$0x1] %vm914, %v913
  %s917 = scalar_lea.vmem %s1, 151
  %918 = vst.msk [vmem:[%s917] sm:$0x2] %vm914, %v913
  %s919 = scalar_lea.vmem %s1, 278
  %920 = vst.msk [vmem:[%s919] sm:$0x4] %vm914, %v913
  %s921 = scalar_lea.vmem %s1, 405
  %922 = vst.msk [vmem:[%s921] sm:$0x8] %vm914, %v913
  %s923 = scalar_lea.vmem %s0, 1
  %v924 = vld [vmem:[%s923] ss:$3 sm:$0xf]
  %925 = vrot.lane.b32.xlu0 %v924, 55
  %v926 = vpop.permute.xlu0 %925
  %vm927 = vcmask 23552
  %s928 = scalar_lea.vmem %s1, 67
  %929 = vst.msk [vmem:[%s928] sm:$0x1] %vm927, %v926
  %s930 = scalar_lea.vmem %s1, 194
  %931 = vst.msk [vmem:[%s930] sm:$0x2] %vm927, %v926
  %s932 = scalar_lea.vmem %s1, 321
  %933 = vst.msk [vmem:[%s932] sm:$0x4] %vm927, %v926
  %s934 = scalar_lea.vmem %s1, 448
  %935 = vst.msk [vmem:[%s934] sm:$0x8] %vm927, %v926
  %s936 = scalar_lea.vmem %s0, 2
  %v937 = vld [vmem:[%s936] ss:$3 sm:$0xf]
  %938 = vrot.lane.b32.xlu0 %v937, 54
  %v939 = vpop.permute.xlu0 %938
  %vm940 = vcmask 23552
  %s941 = scalar_lea.vmem %s1, 110
  %942 = vst.msk [vmem:[%s941] sm:$0x1] %vm940, %v939
  %s943 = scalar_lea.vmem %s1, 237
  %944 = vst.msk [vmem:[%s943] sm:$0x2] %vm940, %v939
  %s945 = scalar_lea.vmem %s1, 364
  %946 = vst.msk [vmem:[%s945] sm:$0x4] %vm940, %v939
  %s947 = scalar_lea.vmem %s1, 491
  %948 = vst.msk [vmem:[%s947] sm:$0x8] %vm940, %v939
  %v949 = vld [vmem:[%s0] ss:$3 sm:$0xf]
  %950 = vrot.lane.b32.xlu0 %v949, 53
  %v951 = vpop.permute.xlu0 %950
  %vm952 = vcmask 23552
  %s953 = scalar_lea.vmem %s1, 25
  %954 = vst.msk [vmem:[%s953] sm:$0x1] %vm952, %v951
  %s955 = scalar_lea.vmem %s1, 152
  %956 = vst.msk [vmem:[%s955] sm:$0x2] %vm952, %v951
  %s957 = scalar_lea.vmem %s1, 279
  %958 = vst.msk [vmem:[%s957] sm:$0x4] %vm952, %v951
  %s959 = scalar_lea.vmem %s1, 406
  %960 = vst.msk [vmem:[%s959] sm:$0x8] %vm952, %v951
  %s961 = scalar_lea.vmem %s0, 1
  %v962 = vld [vmem:[%s961] ss:$3 sm:$0xf]
  %963 = vrot.lane.b32.xlu0 %v962, 52
  %v964 = vpop.permute.xlu0 %963
  %vm965 = vcmask 23552
  %s966 = scalar_lea.vmem %s1, 68
  %967 = vst.msk [vmem:[%s966] sm:$0x1] %vm965, %v964
  %s968 = scalar_lea.vmem %s1, 195
  %969 = vst.msk [vmem:[%s968] sm:$0x2] %vm965, %v964
  %s970 = scalar_lea.vmem %s1, 322
  %971 = vst.msk [vmem:[%s970] sm:$0x4] %vm965, %v964
  %s972 = scalar_lea.vmem %s1, 449
  %973 = vst.msk [vmem:[%s972] sm:$0x8] %vm965, %v964
  %s974 = scalar_lea.vmem %s0, 2
  %v975 = vld [vmem:[%s974] ss:$3 sm:$0xf]
  %976 = vrot.lane.b32.xlu0 %v975, 51
  %v977 = vpop.permute.xlu0 %976
  %vm978 = vcmask 23552
  %s979 = scalar_lea.vmem %s1, 111
  %980 = vst.msk [vmem:[%s979] sm:$0x1] %vm978, %v977
  %s981 = scalar_lea.vmem %s1, 238
  %982 = vst.msk [vmem:[%s981] sm:$0x2] %vm978, %v977
  %s983 = scalar_lea.vmem %s1, 365
  %984 = vst.msk [vmem:[%s983] sm:$0x4] %vm978, %v977
  %s985 = scalar_lea.vmem %s1, 492
  %986 = vst.msk [vmem:[%s985] sm:$0x8] %vm978, %v977
  %v987 = vld [vmem:[%s0] ss:$3 sm:$0xf]
  %988 = vrot.lane.b32.xlu0 %v987, 50
  %v989 = vpop.permute.xlu0 %988
  %vm990 = vcmask 23552
  %s991 = scalar_lea.vmem %s1, 26
  %992 = vst.msk [vmem:[%s991] sm:$0x1] %vm990, %v989
  %s993 = scalar_lea.vmem %s1, 153
  %994 = vst.msk [vmem:[%s993] sm:$0x2] %vm990, %v989
  %s995 = scalar_lea.vmem %s1, 280
  %996 = vst.msk [vmem:[%s995] sm:$0x4] %vm990, %v989
  %s997 = scalar_lea.vmem %s1, 407
  %998 = vst.msk [vmem:[%s997] sm:$0x8] %vm990, %v989
  %s999 = scalar_lea.vmem %s0, 1
  %v1000 = vld [vmem:[%s999] ss:$3 sm:$0xf]
  %1001 = vrot.lane.b32.xlu0 %v1000, 49
  %v1002 = vpop.permute.xlu0 %1001
  %vm1003 = vcmask 23552
  %s1004 = scalar_lea.vmem %s1, 69
  %1005 = vst.msk [vmem:[%s1004] sm:$0x1] %vm1003, %v1002
  %s1006 = scalar_lea.vmem %s1, 196
  %1007 = vst.msk [vmem:[%s1006] sm:$0x2] %vm1003, %v1002
  %s1008 = scalar_lea.vmem %s1, 323
  %1009 = vst.msk [vmem:[%s1008] sm:$0x4] %vm1003, %v1002
  %s1010 = scalar_lea.vmem %s1, 450
  %1011 = vst.msk [vmem:[%s1010] sm:$0x8] %vm1003, %v1002
  %s1012 = scalar_lea.vmem %s0, 2
  %v1013 = vld [vmem:[%s1012] ss:$3 sm:$0xf]
  %1014 = vrot.lane.b32.xlu0 %v1013, 48
  %v1015 = vpop.permute.xlu0 %1014
  %vm1016 = vcmask 23552
  %s1017 = scalar_lea.vmem %s1, 112
  %1018 = vst.msk [vmem:[%s1017] sm:$0x1] %vm1016, %v1015
  %s1019 = scalar_lea.vmem %s1, 239
  %1020 = vst.msk [vmem:[%s1019] sm:$0x2] %vm1016, %v1015
  %s1021 = scalar_lea.vmem %s1, 366
  %1022 = vst.msk [vmem:[%s1021] sm:$0x4] %vm1016, %v1015
  %s1023 = scalar_lea.vmem %s1, 493
  %1024 = vst.msk [vmem:[%s1023] sm:$0x8] %vm1016, %v1015
  %v1025 = vld [vmem:[%s0] ss:$3 sm:$0xf]
  %1026 = vrot.lane.b32.xlu0 %v1025, 47
  %v1027 = vpop.permute.xlu0 %1026
  %vm1028 = vcmask 23552
  %s1029 = scalar_lea.vmem %s1, 27
  %1030 = vst.msk [vmem:[%s1029] sm:$0x1] %vm1028, %v1027
  %s1031 = scalar_lea.vmem %s1, 154
  %1032 = vst.msk [vmem:[%s1031] sm:$0x2] %vm1028, %v1027
  %s1033 = scalar_lea.vmem %s1, 281
  %1034 = vst.msk [vmem:[%s1033] sm:$0x4] %vm1028, %v1027
  %s1035 = scalar_lea.vmem %s1, 408
  %1036 = vst.msk [vmem:[%s1035] sm:$0x8] %vm1028, %v1027
  %s1037 = scalar_lea.vmem %s0, 1
  %v1038 = vld [vmem:[%s1037] ss:$3 sm:$0xf]
  %1039 = vrot.lane.b32.xlu0 %v1038, 46
  %v1040 = vpop.permute.xlu0 %1039
  %vm1041 = vcmask 23552
  %s1042 = scalar_lea.vmem %s1, 70
  %1043 = vst.msk [vmem:[%s1042] sm:$0x1] %vm1041, %v1040
  %s1044 = scalar_lea.vmem %s1, 197
  %1045 = vst.msk [vmem:[%s1044] sm:$0x2] %vm1041, %v1040
  %s1046 = scalar_lea.vmem %s1, 324
  %1047 = vst.msk [vmem:[%s1046] sm:$0x4] %vm1041, %v1040
  %s1048 = scalar_lea.vmem %s1, 451
  %1049 = vst.msk [vmem:[%s1048] sm:$0x8] %vm1041, %v1040
  %s1050 = scalar_lea.vmem %s0, 2
  %v1051 = vld [vmem:[%s1050] ss:$3 sm:$0xf]
  %1052 = vrot.lane.b32.xlu0 %v1051, 45
  %v1053 = vpop.permute.xlu0 %1052
  %vm1054 = vcmask 23552
  %s1055 = scalar_lea.vmem %s1, 113
  %1056 = vst.msk [vmem:[%s1055] sm:$0x1] %vm1054, %v1053
  %s1057 = scalar_lea.vmem %s1, 240
  %1058 = vst.msk [vmem:[%s1057] sm:$0x2] %vm1054, %v1053
  %s1059 = scalar_lea.vmem %s1, 367
  %1060 = vst.msk [vmem:[%s1059] sm:$0x4] %vm1054, %v1053
  %s1061 = scalar_lea.vmem %s1, 494
  %1062 = vst.msk [vmem:[%s1061] sm:$0x8] %vm1054, %v1053
  %v1063 = vld [vmem:[%s0] ss:$3 sm:$0xf]
  %1064 = vrot.lane.b32.xlu0 %v1063, 44
  %v1065 = vpop.permute.xlu0 %1064
  %vm1066 = vcmask 23552
  %s1067 = scalar_lea.vmem %s1, 28
  %1068 = vst.msk [vmem:[%s1067] sm:$0x1] %vm1066, %v1065
  %s1069 = scalar_lea.vmem %s1, 155
  %1070 = vst.msk [vmem:[%s1069] sm:$0x2] %vm1066, %v1065
  %s1071 = scalar_lea.vmem %s1, 282
  %1072 = vst.msk [vmem:[%s1071] sm:$0x4] %vm1066, %v1065
  %s1073 = scalar_lea.vmem %s1, 409
  %1074 = vst.msk [vmem:[%s1073] sm:$0x8] %vm1066, %v1065
  %s1075 = scalar_lea.vmem %s0, 1
  %v1076 = vld [vmem:[%s1075] ss:$3 sm:$0xf]
  %1077 = vrot.lane.b32.xlu0 %v1076, 43
  %v1078 = vpop.permute.xlu0 %1077
  %vm1079 = vcmask 23552
  %s1080 = scalar_lea.vmem %s1, 71
  %1081 = vst.msk [vmem:[%s1080] sm:$0x1] %vm1079, %v1078
  %s1082 = scalar_lea.vmem %s1, 198
  %1083 = vst.msk [vmem:[%s1082] sm:$0x2] %vm1079, %v1078
  %s1084 = scalar_lea.vmem %s1, 325
  %1085 = vst.msk [vmem:[%s1084] sm:$0x4] %vm1079, %v1078
  %s1086 = scalar_lea.vmem %s1, 452
  %1087 = vst.msk [vmem:[%s1086] sm:$0x8] %vm1079, %v1078
  %s1088 = scalar_lea.vmem %s0, 2
  %v1089 = vld [vmem:[%s1088] ss:$3 sm:$0xf]
  %1090 = vrot.lane.b32.xlu0 %v1089, 42
  %v1091 = vpop.permute.xlu0 %1090
  %vm1092 = vcmask 23552
  %s1093 = scalar_lea.vmem %s1, 114
  %1094 = vst.msk [vmem:[%s1093] sm:$0x1] %vm1092, %v1091
  %s1095 = scalar_lea.vmem %s1, 241
  %1096 = vst.msk [vmem:[%s1095] sm:$0x2] %vm1092, %v1091
  %s1097 = scalar_lea.vmem %s1, 368
  %1098 = vst.msk [vmem:[%s1097] sm:$0x4] %vm1092, %v1091
  %s1099 = scalar_lea.vmem %s1, 495
  %1100 = vst.msk [vmem:[%s1099] sm:$0x8] %vm1092, %v1091
  %v1101 = vld [vmem:[%s0] ss:$3 sm:$0xf]
  %1102 = vrot.lane.b32.xlu0 %v1101, 41
  %v1103 = vpop.permute.xlu0 %1102
  %vm1104 = vcmask 23552
  %s1105 = scalar_lea.vmem %s1, 29
  %1106 = vst.msk [vmem:[%s1105] sm:$0x1] %vm1104, %v1103
  %s1107 = scalar_lea.vmem %s1, 156
  %1108 = vst.msk [vmem:[%s1107] sm:$0x2] %vm1104, %v1103
  %s1109 = scalar_lea.vmem %s1, 283
  %1110 = vst.msk [vmem:[%s1109] sm:$0x4] %vm1104, %v1103
  %s1111 = scalar_lea.vmem %s1, 410
  %1112 = vst.msk [vmem:[%s1111] sm:$0x8] %vm1104, %v1103
  %s1113 = scalar_lea.vmem %s0, 1
  %v1114 = vld [vmem:[%s1113] ss:$3 sm:$0xf]
  %1115 = vrot.lane.b32.xlu0 %v1114, 40
  %v1116 = vpop.permute.xlu0 %1115
  %vm1117 = vcmask 23552
  %s1118 = scalar_lea.vmem %s1, 72
  %1119 = vst.msk [vmem:[%s1118] sm:$0x1] %vm1117, %v1116
  %s1120 = scalar_lea.vmem %s1, 199
  %1121 = vst.msk [vmem:[%s1120] sm:$0x2] %vm1117, %v1116
  %s1122 = scalar_lea.vmem %s1, 326
  %1123 = vst.msk [vmem:[%s1122] sm:$0x4] %vm1117, %v1116
  %s1124 = scalar_lea.vmem %s1, 453
  %1125 = vst.msk [vmem:[%s1124] sm:$0x8] %vm1117, %v1116
  %s1126 = scalar_lea.vmem %s0, 2
  %v1127 = vld [vmem:[%s1126] ss:$3 sm:$0xf]
  %1128 = vrot.lane.b32.xlu0 %v1127, 39
  %v1129 = vpop.permute.xlu0 %1128
  %vm1130 = vcmask 23552
  %s1131 = scalar_lea.vmem %s1, 115
  %1132 = vst.msk [vmem:[%s1131] sm:$0x1] %vm1130, %v1129
  %s1133 = scalar_lea.vmem %s1, 242
  %1134 = vst.msk [vmem:[%s1133] sm:$0x2] %vm1130, %v1129
  %s1135 = scalar_lea.vmem %s1, 369
  %1136 = vst.msk [vmem:[%s1135] sm:$0x4] %vm1130, %v1129
  %s1137 = scalar_lea.vmem %s1, 496
  %1138 = vst.msk [vmem:[%s1137] sm:$0x8] %vm1130, %v1129
  %v1139 = vld [vmem:[%s0] ss:$3 sm:$0xf]
  %1140 = vrot.lane.b32.xlu0 %v1139, 38
  %v1141 = vpop.permute.xlu0 %1140
  %vm1142 = vcmask 23552
  %s1143 = scalar_lea.vmem %s1, 30
  %1144 = vst.msk [vmem:[%s1143] sm:$0x1] %vm1142, %v1141
  %s1145 = scalar_lea.vmem %s1, 157
  %1146 = vst.msk [vmem:[%s1145] sm:$0x2] %vm1142, %v1141
  %s1147 = scalar_lea.vmem %s1, 284
  %1148 = vst.msk [vmem:[%s1147] sm:$0x4] %vm1142, %v1141
  %s1149 = scalar_lea.vmem %s1, 411
  %1150 = vst.msk [vmem:[%s1149] sm:$0x8] %vm1142, %v1141
  %s1151 = scalar_lea.vmem %s0, 1
  %v1152 = vld [vmem:[%s1151] ss:$3 sm:$0xf]
  %1153 = vrot.lane.b32.xlu0 %v1152, 37
  %v1154 = vpop.permute.xlu0 %1153
  %vm1155 = vcmask 23552
  %s1156 = scalar_lea.vmem %s1, 73
  %1157 = vst.msk [vmem:[%s1156] sm:$0x1] %vm1155, %v1154
  %s1158 = scalar_lea.vmem %s1, 200
  %1159 = vst.msk [vmem:[%s1158] sm:$0x2] %vm1155, %v1154
  %s1160 = scalar_lea.vmem %s1, 327
  %1161 = vst.msk [vmem:[%s1160] sm:$0x4] %vm1155, %v1154
  %s1162 = scalar_lea.vmem %s1, 454
  %1163 = vst.msk [vmem:[%s1162] sm:$0x8] %vm1155, %v1154
  %s1164 = scalar_lea.vmem %s0, 2
  %v1165 = vld [vmem:[%s1164] ss:$3 sm:$0xf]
  %1166 = vrot.lane.b32.xlu0 %v1165, 36
  %v1167 = vpop.permute.xlu0 %1166
  %vm1168 = vcmask 23552
  %s1169 = scalar_lea.vmem %s1, 116
  %1170 = vst.msk [vmem:[%s1169] sm:$0x1] %vm1168, %v1167
  %s1171 = scalar_lea.vmem %s1, 243
  %1172 = vst.msk [vmem:[%s1171] sm:$0x2] %vm1168, %v1167
  %s1173 = scalar_lea.vmem %s1, 370
  %1174 = vst.msk [vmem:[%s1173] sm:$0x4] %vm1168, %v1167
  %s1175 = scalar_lea.vmem %s1, 497
  %1176 = vst.msk [vmem:[%s1175] sm:$0x8] %vm1168, %v1167
  %v1177 = vld [vmem:[%s0] ss:$3 sm:$0xf]
  %1178 = vrot.lane.b32.xlu0 %v1177, 35
  %v1179 = vpop.permute.xlu0 %1178
  %vm1180 = vcmask 23552
  %s1181 = scalar_lea.vmem %s1, 31
  %1182 = vst.msk [vmem:[%s1181] sm:$0x1] %vm1180, %v1179
  %s1183 = scalar_lea.vmem %s1, 158
  %1184 = vst.msk [vmem:[%s1183] sm:$0x2] %vm1180, %v1179
  %s1185 = scalar_lea.vmem %s1, 285
  %1186 = vst.msk [vmem:[%s1185] sm:$0x4] %vm1180, %v1179
  %s1187 = scalar_lea.vmem %s1, 412
  %1188 = vst.msk [vmem:[%s1187] sm:$0x8] %vm1180, %v1179
  %s1189 = scalar_lea.vmem %s0, 1
  %v1190 = vld [vmem:[%s1189] ss:$3 sm:$0xf]
  %1191 = vrot.lane.b32.xlu0 %v1190, 34
  %v1192 = vpop.permute.xlu0 %1191
  %vm1193 = vcmask 23552
  %s1194 = scalar_lea.vmem %s1, 74
  %1195 = vst.msk [vmem:[%s1194] sm:$0x1] %vm1193, %v1192
  %s1196 = scalar_lea.vmem %s1, 201
  %1197 = vst.msk [vmem:[%s1196] sm:$0x2] %vm1193, %v1192
  %s1198 = scalar_lea.vmem %s1, 328
  %1199 = vst.msk [vmem:[%s1198] sm:$0x4] %vm1193, %v1192
  %s1200 = scalar_lea.vmem %s1, 455
  %1201 = vst.msk [vmem:[%s1200] sm:$0x8] %vm1193, %v1192
  %s1202 = scalar_lea.vmem %s0, 2
  %v1203 = vld [vmem:[%s1202] ss:$3 sm:$0xf]
  %1204 = vrot.lane.b32.xlu0 %v1203, 33
  %v1205 = vpop.permute.xlu0 %1204
  %vm1206 = vcmask 23552
  %s1207 = scalar_lea.vmem %s1, 117
  %1208 = vst.msk [vmem:[%s1207] sm:$0x1] %vm1206, %v1205
  %s1209 = scalar_lea.vmem %s1, 244
  %1210 = vst.msk [vmem:[%s1209] sm:$0x2] %vm1206, %v1205
  %s1211 = scalar_lea.vmem %s1, 371
  %1212 = vst.msk [vmem:[%s1211] sm:$0x4] %vm1206, %v1205
  %s1213 = scalar_lea.vmem %s1, 498
  %1214 = vst.msk [vmem:[%s1213] sm:$0x8] %vm1206, %v1205
  %v1215 = vld [vmem:[%s0] ss:$3 sm:$0xf]
  %1216 = vrot.lane.b32.xlu0 %v1215, 32
  %v1217 = vpop.permute.xlu0 %1216
  %vm1218 = vcmask 23552
  %s1219 = scalar_lea.vmem %s1, 32
  %1220 = vst.msk [vmem:[%s1219] sm:$0x1] %vm1218, %v1217
  %s1221 = scalar_lea.vmem %s1, 159
  %1222 = vst.msk [vmem:[%s1221] sm:$0x2] %vm1218, %v1217
  %s1223 = scalar_lea.vmem %s1, 286
  %1224 = vst.msk [vmem:[%s1223] sm:$0x4] %vm1218, %v1217
  %s1225 = scalar_lea.vmem %s1, 413
  %1226 = vst.msk [vmem:[%s1225] sm:$0x8] %vm1218, %v1217
  %s1227 = scalar_lea.vmem %s0, 1
  %v1228 = vld [vmem:[%s1227] ss:$3 sm:$0xf]
  %1229 = vrot.lane.b32.xlu0 %v1228, 31
  %v1230 = vpop.permute.xlu0 %1229
  %vm1231 = vcmask 23552
  %s1232 = scalar_lea.vmem %s1, 75
  %1233 = vst.msk [vmem:[%s1232] sm:$0x1] %vm1231, %v1230
  %s1234 = scalar_lea.vmem %s1, 202
  %1235 = vst.msk [vmem:[%s1234] sm:$0x2] %vm1231, %v1230
  %s1236 = scalar_lea.vmem %s1, 329
  %1237 = vst.msk [vmem:[%s1236] sm:$0x4] %vm1231, %v1230
  %s1238 = scalar_lea.vmem %s1, 456
  %1239 = vst.msk [vmem:[%s1238] sm:$0x8] %vm1231, %v1230
  %s1240 = scalar_lea.vmem %s0, 2
  %v1241 = vld [vmem:[%s1240] ss:$3 sm:$0xf]
  %1242 = vrot.lane.b32.xlu0 %v1241, 30
  %v1243 = vpop.permute.xlu0 %1242
  %vm1244 = vcmask 23552
  %s1245 = scalar_lea.vmem %s1, 118
  %1246 = vst.msk [vmem:[%s1245] sm:$0x1] %vm1244, %v1243
  %s1247 = scalar_lea.vmem %s1, 245
  %1248 = vst.msk [vmem:[%s1247] sm:$0x2] %vm1244, %v1243
  %s1249 = scalar_lea.vmem %s1, 372
  %1250 = vst.msk [vmem:[%s1249] sm:$0x4] %vm1244, %v1243
  %s1251 = scalar_lea.vmem %s1, 499
  %1252 = vst.msk [vmem:[%s1251] sm:$0x8] %vm1244, %v1243
  %v1253 = vld [vmem:[%s0] ss:$3 sm:$0xf]
  %1254 = vrot.lane.b32.xlu0 %v1253, 29
  %v1255 = vpop.permute.xlu0 %1254
  %vm1256 = vcmask 23552
  %s1257 = scalar_lea.vmem %s1, 33
  %1258 = vst.msk [vmem:[%s1257] sm:$0x1] %vm1256, %v1255
  %s1259 = scalar_lea.vmem %s1, 160
  %1260 = vst.msk [vmem:[%s1259] sm:$0x2] %vm1256, %v1255
  %s1261 = scalar_lea.vmem %s1, 287
  %1262 = vst.msk [vmem:[%s1261] sm:$0x4] %vm1256, %v1255
  %s1263 = scalar_lea.vmem %s1, 414
  %1264 = vst.msk [vmem:[%s1263] sm:$0x8] %vm1256, %v1255
  %s1265 = scalar_lea.vmem %s0, 1
  %v1266 = vld [vmem:[%s1265] ss:$3 sm:$0xf]
  %1267 = vrot.lane.b32.xlu0 %v1266, 28
  %v1268 = vpop.permute.xlu0 %1267
  %vm1269 = vcmask 23552
  %s1270 = scalar_lea.vmem %s1, 76
  %1271 = vst.msk [vmem:[%s1270] sm:$0x1] %vm1269, %v1268
  %s1272 = scalar_lea.vmem %s1, 203
  %1273 = vst.msk [vmem:[%s1272] sm:$0x2] %vm1269, %v1268
  %s1274 = scalar_lea.vmem %s1, 330
  %1275 = vst.msk [vmem:[%s1274] sm:$0x4] %vm1269, %v1268
  %s1276 = scalar_lea.vmem %s1, 457
  %1277 = vst.msk [vmem:[%s1276] sm:$0x8] %vm1269, %v1268
  %s1278 = scalar_lea.vmem %s0, 2
  %v1279 = vld [vmem:[%s1278] ss:$3 sm:$0xf]
  %1280 = vrot.lane.b32.xlu0 %v1279, 27
  %v1281 = vpop.permute.xlu0 %1280
  %vm1282 = vcmask 23552
  %s1283 = scalar_lea.vmem %s1, 119
  %1284 = vst.msk [vmem:[%s1283] sm:$0x1] %vm1282, %v1281
  %s1285 = scalar_lea.vmem %s1, 246
  %1286 = vst.msk [vmem:[%s1285] sm:$0x2] %vm1282, %v1281
  %s1287 = scalar_lea.vmem %s1, 373
  %1288 = vst.msk [vmem:[%s1287] sm:$0x4] %vm1282, %v1281
  %s1289 = scalar_lea.vmem %s1, 500
  %1290 = vst.msk [vmem:[%s1289] sm:$0x8] %vm1282, %v1281
  %v1291 = vld [vmem:[%s0] ss:$3 sm:$0xf]
  %1292 = vrot.lane.b32.xlu0 %v1291, 26
  %v1293 = vpop.permute.xlu0 %1292
  %vm1294 = vcmask 23552
  %s1295 = scalar_lea.vmem %s1, 34
  %1296 = vst.msk [vmem:[%s1295] sm:$0x1] %vm1294, %v1293
  %s1297 = scalar_lea.vmem %s1, 161
  %1298 = vst.msk [vmem:[%s1297] sm:$0x2] %vm1294, %v1293
  %s1299 = scalar_lea.vmem %s1, 288
  %1300 = vst.msk [vmem:[%s1299] sm:$0x4] %vm1294, %v1293
  %s1301 = scalar_lea.vmem %s1, 415
  %1302 = vst.msk [vmem:[%s1301] sm:$0x8] %vm1294, %v1293
  %s1303 = scalar_lea.vmem %s0, 1
  %v1304 = vld [vmem:[%s1303] ss:$3 sm:$0xf]
  %1305 = vrot.lane.b32.xlu0 %v1304, 25
  %v1306 = vpop.permute.xlu0 %1305
  %vm1307 = vcmask 23552
  %s1308 = scalar_lea.vmem %s1, 77
  %1309 = vst.msk [vmem:[%s1308] sm:$0x1] %vm1307, %v1306
  %s1310 = scalar_lea.vmem %s1, 204
  %1311 = vst.msk [vmem:[%s1310] sm:$0x2] %vm1307, %v1306
  %s1312 = scalar_lea.vmem %s1, 331
  %1313 = vst.msk [vmem:[%s1312] sm:$0x4] %vm1307, %v1306
  %s1314 = scalar_lea.vmem %s1, 458
  %1315 = vst.msk [vmem:[%s1314] sm:$0x8] %vm1307, %v1306
  %s1316 = scalar_lea.vmem %s0, 2
  %v1317 = vld [vmem:[%s1316] ss:$3 sm:$0xf]
  %1318 = vrot.lane.b32.xlu0 %v1317, 24
  %v1319 = vpop.permute.xlu0 %1318
  %vm1320 = vcmask 23552
  %s1321 = scalar_lea.vmem %s1, 120
  %1322 = vst.msk [vmem:[%s1321] sm:$0x1] %vm1320, %v1319
  %s1323 = scalar_lea.vmem %s1, 247
  %1324 = vst.msk [vmem:[%s1323] sm:$0x2] %vm1320, %v1319
  %s1325 = scalar_lea.vmem %s1, 374
  %1326 = vst.msk [vmem:[%s1325] sm:$0x4] %vm1320, %v1319
  %s1327 = scalar_lea.vmem %s1, 501
  %1328 = vst.msk [vmem:[%s1327] sm:$0x8] %vm1320, %v1319
  %v1329 = vld [vmem:[%s0] ss:$3 sm:$0xf]
  %1330 = vrot.lane.b32.xlu0 %v1329, 23
  %v1331 = vpop.permute.xlu0 %1330
  %vm1332 = vcmask 23552
  %s1333 = scalar_lea.vmem %s1, 35
  %1334 = vst.msk [vmem:[%s1333] sm:$0x1] %vm1332, %v1331
  %s1335 = scalar_lea.vmem %s1, 162
  %1336 = vst.msk [vmem:[%s1335] sm:$0x2] %vm1332, %v1331
  %s1337 = scalar_lea.vmem %s1, 289
  %1338 = vst.msk [vmem:[%s1337] sm:$0x4] %vm1332, %v1331
  %s1339 = scalar_lea.vmem %s1, 416
  %1340 = vst.msk [vmem:[%s1339] sm:$0x8] %vm1332, %v1331
  %s1341 = scalar_lea.vmem %s0, 1
  %v1342 = vld [vmem:[%s1341] ss:$3 sm:$0xf]
  %1343 = vrot.lane.b32.xlu0 %v1342, 22
  %v1344 = vpop.permute.xlu0 %1343
  %vm1345 = vcmask 23552
  %s1346 = scalar_lea.vmem %s1, 78
  %1347 = vst.msk [vmem:[%s1346] sm:$0x1] %vm1345, %v1344
  %s1348 = scalar_lea.vmem %s1, 205
  %1349 = vst.msk [vmem:[%s1348] sm:$0x2] %vm1345, %v1344
  %s1350 = scalar_lea.vmem %s1, 332
  %1351 = vst.msk [vmem:[%s1350] sm:$0x4] %vm1345, %v1344
  %s1352 = scalar_lea.vmem %s1, 459
  %1353 = vst.msk [vmem:[%s1352] sm:$0x8] %vm1345, %v1344
  %s1354 = scalar_lea.vmem %s0, 2
  %v1355 = vld [vmem:[%s1354] ss:$3 sm:$0xf]
  %1356 = vrot.lane.b32.xlu0 %v1355, 21
  %v1357 = vpop.permute.xlu0 %1356
  %vm1358 = vcmask 23552
  %s1359 = scalar_lea.vmem %s1, 121
  %1360 = vst.msk [vmem:[%s1359] sm:$0x1] %vm1358, %v1357
  %s1361 = scalar_lea.vmem %s1, 248
  %1362 = vst.msk [vmem:[%s1361] sm:$0x2] %vm1358, %v1357
  %s1363 = scalar_lea.vmem %s1, 375
  %1364 = vst.msk [vmem:[%s1363] sm:$0x4] %vm1358, %v1357
  %s1365 = scalar_lea.vmem %s1, 502
  %1366 = vst.msk [vmem:[%s1365] sm:$0x8] %vm1358, %v1357
  %v1367 = vld [vmem:[%s0] ss:$3 sm:$0xf]
  %1368 = vrot.lane.b32.xlu0 %v1367, 20
  %v1369 = vpop.permute.xlu0 %1368
  %vm1370 = vcmask 23552
  %s1371 = scalar_lea.vmem %s1, 36
  %1372 = vst.msk [vmem:[%s1371] sm:$0x1] %vm1370, %v1369
  %s1373 = scalar_lea.vmem %s1, 163
  %1374 = vst.msk [vmem:[%s1373] sm:$0x2] %vm1370, %v1369
  %s1375 = scalar_lea.vmem %s1, 290
  %1376 = vst.msk [vmem:[%s1375] sm:$0x4] %vm1370, %v1369
  %s1377 = scalar_lea.vmem %s1, 417
  %1378 = vst.msk [vmem:[%s1377] sm:$0x8] %vm1370, %v1369
  %s1379 = scalar_lea.vmem %s0, 1
  %v1380 = vld [vmem:[%s1379] ss:$3 sm:$0xf]
  %1381 = vrot.lane.b32.xlu0 %v1380, 19
  %v1382 = vpop.permute.xlu0 %1381
  %vm1383 = vcmask 23552
  %s1384 = scalar_lea.vmem %s1, 79
  %1385 = vst.msk [vmem:[%s1384] sm:$0x1] %vm1383, %v1382
  %s1386 = scalar_lea.vmem %s1, 206
  %1387 = vst.msk [vmem:[%s1386] sm:$0x2] %vm1383, %v1382
  %s1388 = scalar_lea.vmem %s1, 333
  %1389 = vst.msk [vmem:[%s1388] sm:$0x4] %vm1383, %v1382
  %s1390 = scalar_lea.vmem %s1, 460
  %1391 = vst.msk [vmem:[%s1390] sm:$0x8] %vm1383, %v1382
  %s1392 = scalar_lea.vmem %s0, 2
  %v1393 = vld [vmem:[%s1392] ss:$3 sm:$0xf]
  %1394 = vrot.lane.b32.xlu0 %v1393, 18
  %v1395 = vpop.permute.xlu0 %1394
  %vm1396 = vcmask 23552
  %s1397 = scalar_lea.vmem %s1, 122
  %1398 = vst.msk [vmem:[%s1397] sm:$0x1] %vm1396, %v1395
  %s1399 = scalar_lea.vmem %s1, 249
  %1400 = vst.msk [vmem:[%s1399] sm:$0x2] %vm1396, %v1395
  %s1401 = scalar_lea.vmem %s1, 376
  %1402 = vst.msk [vmem:[%s1401] sm:$0x4] %vm1396, %v1395
  %s1403 = scalar_lea.vmem %s1, 503
  %1404 = vst.msk [vmem:[%s1403] sm:$0x8] %vm1396, %v1395
  %v1405 = vld [vmem:[%s0] ss:$3 sm:$0xf]
  %1406 = vrot.lane.b32.xlu0 %v1405, 17
  %v1407 = vpop.permute.xlu0 %1406
  %vm1408 = vcmask 23552
  %s1409 = scalar_lea.vmem %s1, 37
  %1410 = vst.msk [vmem:[%s1409] sm:$0x1] %vm1408, %v1407
  %s1411 = scalar_lea.vmem %s1, 164
  %1412 = vst.msk [vmem:[%s1411] sm:$0x2] %vm1408, %v1407
  %s1413 = scalar_lea.vmem %s1, 291
  %1414 = vst.msk [vmem:[%s1413] sm:$0x4] %vm1408, %v1407
  %s1415 = scalar_lea.vmem %s1, 418
  %1416 = vst.msk [vmem:[%s1415] sm:$0x8] %vm1408, %v1407
  %s1417 = scalar_lea.vmem %s0, 1
  %v1418 = vld [vmem:[%s1417] ss:$3 sm:$0xf]
  %1419 = vrot.lane.b32.xlu0 %v1418, 16
  %v1420 = vpop.permute.xlu0 %1419
  %vm1421 = vcmask 23552
  %s1422 = scalar_lea.vmem %s1, 80
  %1423 = vst.msk [vmem:[%s1422] sm:$0x1] %vm1421, %v1420
  %s1424 = scalar_lea.vmem %s1, 207
  %1425 = vst.msk [vmem:[%s1424] sm:$0x2] %vm1421, %v1420
  %s1426 = scalar_lea.vmem %s1, 334
  %1427 = vst.msk [vmem:[%s1426] sm:$0x4] %vm1421, %v1420
  %s1428 = scalar_lea.vmem %s1, 461
  %1429 = vst.msk [vmem:[%s1428] sm:$0x8] %vm1421, %v1420
  %s1430 = scalar_lea.vmem %s0, 2
  %v1431 = vld [vmem:[%s1430] ss:$3 sm:$0xf]
  %1432 = vrot.lane.b32.xlu0 %v1431, 15
  %v1433 = vpop.permute.xlu0 %1432
  %vm1434 = vcmask 23552
  %s1435 = scalar_lea.vmem %s1, 123
  %1436 = vst.msk [vmem:[%s1435] sm:$0x1] %vm1434, %v1433
  %s1437 = scalar_lea.vmem %s1, 250
  %1438 = vst.msk [vmem:[%s1437] sm:$0x2] %vm1434, %v1433
  %s1439 = scalar_lea.vmem %s1, 377
  %1440 = vst.msk [vmem:[%s1439] sm:$0x4] %vm1434, %v1433
  %s1441 = scalar_lea.vmem %s1, 504
  %1442 = vst.msk [vmem:[%s1441] sm:$0x8] %vm1434, %v1433
  %v1443 = vld [vmem:[%s0] ss:$3 sm:$0xf]
  %1444 = vrot.lane.b32.xlu0 %v1443, 14
  %v1445 = vpop.permute.xlu0 %1444
  %vm1446 = vcmask 23552
  %s1447 = scalar_lea.vmem %s1, 38
  %1448 = vst.msk [vmem:[%s1447] sm:$0x1] %vm1446, %v1445
  %s1449 = scalar_lea.vmem %s1, 165
  %1450 = vst.msk [vmem:[%s1449] sm:$0x2] %vm1446, %v1445
  %s1451 = scalar_lea.vmem %s1, 292
  %1452 = vst.msk [vmem:[%s1451] sm:$0x4] %vm1446, %v1445
  %s1453 = scalar_lea.vmem %s1, 419
  %1454 = vst.msk [vmem:[%s1453] sm:$0x8] %vm1446, %v1445
  %s1455 = scalar_lea.vmem %s0, 1
  %v1456 = vld [vmem:[%s1455] ss:$3 sm:$0xf]
  %1457 = vrot.lane.b32.xlu0 %v1456, 13
  %v1458 = vpop.permute.xlu0 %1457
  %vm1459 = vcmask 23552
  %s1460 = scalar_lea.vmem %s1, 81
  %1461 = vst.msk [vmem:[%s1460] sm:$0x1] %vm1459, %v1458
  %s1462 = scalar_lea.vmem %s1, 208
  %1463 = vst.msk [vmem:[%s1462] sm:$0x2] %vm1459, %v1458
  %s1464 = scalar_lea.vmem %s1, 335
  %1465 = vst.msk [vmem:[%s1464] sm:$0x4] %vm1459, %v1458
  %s1466 = scalar_lea.vmem %s1, 462
  %1467 = vst.msk [vmem:[%s1466] sm:$0x8] %vm1459, %v1458
  %s1468 = scalar_lea.vmem %s0, 2
  %v1469 = vld [vmem:[%s1468] ss:$3 sm:$0xf]
  %1470 = vrot.lane.b32.xlu0 %v1469, 12
  %v1471 = vpop.permute.xlu0 %1470
  %vm1472 = vcmask 23552
  %s1473 = scalar_lea.vmem %s1, 124
  %1474 = vst.msk [vmem:[%s1473] sm:$0x1] %vm1472, %v1471
  %s1475 = scalar_lea.vmem %s1, 251
  %1476 = vst.msk [vmem:[%s1475] sm:$0x2] %vm1472, %v1471
  %s1477 = scalar_lea.vmem %s1, 378
  %1478 = vst.msk [vmem:[%s1477] sm:$0x4] %vm1472, %v1471
  %s1479 = scalar_lea.vmem %s1, 505
  %1480 = vst.msk [vmem:[%s1479] sm:$0x8] %vm1472, %v1471
  %v1481 = vld [vmem:[%s0] ss:$3 sm:$0xf]
  %1482 = vrot.lane.b32.xlu0 %v1481, 11
  %v1483 = vpop.permute.xlu0 %1482
  %vm1484 = vcmask 23552
  %s1485 = scalar_lea.vmem %s1, 39
  %1486 = vst.msk [vmem:[%s1485] sm:$0x1] %vm1484, %v1483
  %s1487 = scalar_lea.vmem %s1, 166
  %1488 = vst.msk [vmem:[%s1487] sm:$0x2] %vm1484, %v1483
  %s1489 = scalar_lea.vmem %s1, 293
  %1490 = vst.msk [vmem:[%s1489] sm:$0x4] %vm1484, %v1483
  %s1491 = scalar_lea.vmem %s1, 420
  %1492 = vst.msk [vmem:[%s1491] sm:$0x8] %vm1484, %v1483
  %s1493 = scalar_lea.vmem %s0, 1
  %v1494 = vld [vmem:[%s1493] ss:$3 sm:$0xf]
  %1495 = vrot.lane.b32.xlu0 %v1494, 10
  %v1496 = vpop.permute.xlu0 %1495
  %vm1497 = vcmask 23552
  %s1498 = scalar_lea.vmem %s1, 82
  %1499 = vst.msk [vmem:[%s1498] sm:$0x1] %vm1497, %v1496
  %s1500 = scalar_lea.vmem %s1, 209
  %1501 = vst.msk [vmem:[%s1500] sm:$0x2] %vm1497, %v1496
  %s1502 = scalar_lea.vmem %s1, 336
  %1503 = vst.msk [vmem:[%s1502] sm:$0x4] %vm1497, %v1496
  %s1504 = scalar_lea.vmem %s1, 463
  %1505 = vst.msk [vmem:[%s1504] sm:$0x8] %vm1497, %v1496
  %s1506 = scalar_lea.vmem %s0, 2
  %v1507 = vld [vmem:[%s1506] ss:$3 sm:$0xf]
  %1508 = vrot.lane.b32.xlu0 %v1507, 9
  %v1509 = vpop.permute.xlu0 %1508
  %vm1510 = vcmask 23552
  %s1511 = scalar_lea.vmem %s1, 125
  %1512 = vst.msk [vmem:[%s1511] sm:$0x1] %vm1510, %v1509
  %s1513 = scalar_lea.vmem %s1, 252
  %1514 = vst.msk [vmem:[%s1513] sm:$0x2] %vm1510, %v1509
  %s1515 = scalar_lea.vmem %s1, 379
  %1516 = vst.msk [vmem:[%s1515] sm:$0x4] %vm1510, %v1509
  %s1517 = scalar_lea.vmem %s1, 506
  %1518 = vst.msk [vmem:[%s1517] sm:$0x8] %vm1510, %v1509
  %v1519 = vld [vmem:[%s0] ss:$3 sm:$0xf]
  %1520 = vrot.lane.b32.xlu0 %v1519, 8
  %v1521 = vpop.permute.xlu0 %1520
  %vm1522 = vcmask 23552
  %s1523 = scalar_lea.vmem %s1, 40
  %1524 = vst.msk [vmem:[%s1523] sm:$0x1] %vm1522, %v1521
  %s1525 = scalar_lea.vmem %s1, 167
  %1526 = vst.msk [vmem:[%s1525] sm:$0x2] %vm1522, %v1521
  %s1527 = scalar_lea.vmem %s1, 294
  %1528 = vst.msk [vmem:[%s1527] sm:$0x4] %vm1522, %v1521
  %s1529 = scalar_lea.vmem %s1, 421
  %1530 = vst.msk [vmem:[%s1529] sm:$0x8] %vm1522, %v1521
  %s1531 = scalar_lea.vmem %s0, 1
  %v1532 = vld [vmem:[%s1531] ss:$3 sm:$0xf]
  %1533 = vrot.lane.b32.xlu0 %v1532, 7
  %v1534 = vpop.permute.xlu0 %1533
  %vm1535 = vcmask 23552
  %s1536 = scalar_lea.vmem %s1, 83
  %1537 = vst.msk [vmem:[%s1536] sm:$0x1] %vm1535, %v1534
  %s1538 = scalar_lea.vmem %s1, 210
  %1539 = vst.msk [vmem:[%s1538] sm:$0x2] %vm1535, %v1534
  %s1540 = scalar_lea.vmem %s1, 337
  %1541 = vst.msk [vmem:[%s1540] sm:$0x4] %vm1535, %v1534
  %s1542 = scalar_lea.vmem %s1, 464
  %1543 = vst.msk [vmem:[%s1542] sm:$0x8] %vm1535, %v1534
  %s1544 = scalar_lea.vmem %s0, 2
  %v1545 = vld [vmem:[%s1544] ss:$3 sm:$0xf]
  %1546 = vrot.lane.b32.xlu0 %v1545, 6
  %v1547 = vpop.permute.xlu0 %1546
  %vm1548 = vcmask 23552
  %s1549 = scalar_lea.vmem %s1, 126
  %1550 = vst.msk [vmem:[%s1549] sm:$0x1] %vm1548, %v1547
  %s1551 = scalar_lea.vmem %s1, 253
  %1552 = vst.msk [vmem:[%s1551] sm:$0x2] %vm1548, %v1547
  %s1553 = scalar_lea.vmem %s1, 380
  %1554 = vst.msk [vmem:[%s1553] sm:$0x4] %vm1548, %v1547
  %s1555 = scalar_lea.vmem %s1, 507
  %1556 = vst.msk [vmem:[%s1555] sm:$0x8] %vm1548, %v1547
  %v1557 = vld [vmem:[%s0] ss:$3 sm:$0xf]
  %1558 = vrot.lane.b32.xlu0 %v1557, 5
  %v1559 = vpop.permute.xlu0 %1558
  %vm1560 = vcmask 23552
  %s1561 = scalar_lea.vmem %s1, 41
  %1562 = vst.msk [vmem:[%s1561] sm:$0x1] %vm1560, %v1559
  %s1563 = scalar_lea.vmem %s1, 168
  %1564 = vst.msk [vmem:[%s1563] sm:$0x2] %vm1560, %v1559
  %s1565 = scalar_lea.vmem %s1, 295
  %1566 = vst.msk [vmem:[%s1565] sm:$0x4] %vm1560, %v1559
  %s1567 = scalar_lea.vmem %s1, 422
  %1568 = vst.msk [vmem:[%s1567] sm:$0x8] %vm1560, %v1559
  %s1569 = scalar_lea.vmem %s0, 1
  %v1570 = vld [vmem:[%s1569] ss:$3 sm:$0xf]
  %1571 = vrot.lane.b32.xlu0 %v1570, 4
  %v1572 = vpop.permute.xlu0 %1571
  %vm1573 = vcmask 23552
  %s1574 = scalar_lea.vmem %s1, 84
  %1575 = vst.msk [vmem:[%s1574] sm:$0x1] %vm1573, %v1572
  %s1576 = scalar_lea.vmem %s1, 211
  %1577 = vst.msk [vmem:[%s1576] sm:$0x2] %vm1573, %v1572
  %s1578 = scalar_lea.vmem %s1, 338
  %1579 = vst.msk [vmem:[%s1578] sm:$0x4] %vm1573, %v1572
  %s1580 = scalar_lea.vmem %s1, 465
  %1581 = vst.msk [vmem:[%s1580] sm:$0x8] %vm1573, %v1572
  %s1582 = scalar_lea.vmem %s0, 2
  %v1583 = vld [vmem:[%s1582] ss:$3 sm:$0xf]
  %1584 = vrot.lane.b32.xlu0 %v1583, 3
  %v1585 = vpop.permute.xlu0 %1584
  %vm1586 = vcmask 23552
  %s1587 = scalar_lea.vmem %s1, 127
  %1588 = vst.msk [vmem:[%s1587] sm:$0x1] %vm1586, %v1585
  %s1589 = scalar_lea.vmem %s1, 254
  %1590 = vst.msk [vmem:[%s1589] sm:$0x2] %vm1586, %v1585
  %s1591 = scalar_lea.vmem %s1, 381
  %1592 = vst.msk [vmem:[%s1591] sm:$0x4] %vm1586, %v1585
  %s1593 = scalar_lea.vmem %s1, 508
  %1594 = vst.msk [vmem:[%s1593] sm:$0x8] %vm1586, %v1585
  %v1595 = vld [vmem:[%s0] ss:$3 sm:$0xf]
  %s1596 = scalar_lea.vmem %s0, 1
  %v1597 = vld [vmem:[%s1596] ss:$3 sm:$0xf]
  %vm1598 = vcmask 1031168
  %v1599 = vsel %vm1598, %v1597, %v1595
  %1600 = vrot.lane.b32.xlu0 %v1599, 2
  %v1601 = vpop.permute.xlu0 %1600
  %vm1602 = vcmask 15360
  %s1603 = scalar_lea.vmem %s1, 42
  %1604 = vst.msk [vmem:[%s1603] sm:$0x1] %vm1602, %v1601
  %s1605 = scalar_lea.vmem %s1, 169
  %1606 = vst.msk [vmem:[%s1605] sm:$0x2] %vm1602, %v1601
  %s1607 = scalar_lea.vmem %s1, 296
  %1608 = vst.msk [vmem:[%s1607] sm:$0x4] %vm1602, %v1601
  %s1609 = scalar_lea.vmem %s1, 423
  %1610 = vst.msk [vmem:[%s1609] sm:$0x8] %vm1602, %v1601
  %vm1611 = vcmask 23568
  %s1612 = scalar_lea.vmem %s1, 42
  %1613 = vst.msk [vmem:[%s1612] sm:$0x1] %vm1611, %v1601
  %s1614 = scalar_lea.vmem %s1, 169
  %1615 = vst.msk [vmem:[%s1614] sm:$0x2] %vm1611, %v1601
  %s1616 = scalar_lea.vmem %s1, 296
  %1617 = vst.msk [vmem:[%s1616] sm:$0x4] %vm1611, %v1601
  %s1618 = scalar_lea.vmem %s1, 423
  %1619 = vst.msk [vmem:[%s1618] sm:$0x8] %vm1611, %v1601
  %s1620 = scalar_lea.vmem %s0, 1
  %v1621 = vld [vmem:[%s1620] ss:$3 sm:$0xf]
  %s1622 = scalar_lea.vmem %s0, 2
  %v1623 = vld [vmem:[%s1622] ss:$3 sm:$0xf]
  %vm1624 = vcmask 1039360
  %v1625 = vsel %vm1624, %v1623, %v1621
  %1626 = vrot.lane.b32.xlu0 %v1625, 1
  %v1627 = vpop.permute.xlu0 %1626
  %vm1628 = vcmask 7168
  %s1629 = scalar_lea.vmem %s1, 85
  %1630 = vst.msk [vmem:[%s1629] sm:$0x1] %vm1628, %v1627
  %s1631 = scalar_lea.vmem %s1, 212
  %1632 = vst.msk [vmem:[%s1631] sm:$0x2] %vm1628, %v1627
  %s1633 = scalar_lea.vmem %s1, 339
  %1634 = vst.msk [vmem:[%s1633] sm:$0x4] %vm1628, %v1627
  %s1635 = scalar_lea.vmem %s1, 466
  %1636 = vst.msk [vmem:[%s1635] sm:$0x8] %vm1628, %v1627
  %vm1637 = vcmask 23560
  %s1638 = scalar_lea.vmem %s1, 85
  %1639 = vst.msk [vmem:[%s1638] sm:$0x1] %vm1637, %v1627
  %s1640 = scalar_lea.vmem %s1, 212
  %1641 = vst.msk [vmem:[%s1640] sm:$0x2] %vm1637, %v1627
  %s1642 = scalar_lea.vmem %s1, 339
  %1643 = vst.msk [vmem:[%s1642] sm:$0x4] %vm1637, %v1627
  %s1644 = scalar_lea.vmem %s1, 466
  %1645 = vst.msk [vmem:[%s1644] sm:$0x8] %vm1637, %v1627

</llo_original>
